<compile_context>
chip_gen: v5e
topology: v5e:2x2
jax: 0.10.0
libtpu: 0.0.40
codegen_flags: <defaults>
</compile_context>

<pallas_src>
import functools
import math

import jax
import jax.numpy as jnp
from jax.experimental import pallas as pl
from jax.experimental.pallas import tpu as pltpu


def _moe_kernel(x_ref, w1g_ref, b1g_ref, expand_ref, w2b_ref, o_ref, *,
                num_experts, approximate_gelu):
    E = num_experts
    GP, EH = expand_ref.shape                  # GP = 128 lane pad, EH = E * hidden
    f32 = jnp.float32
    prec = (jax.lax.Precision.HIGHEST
            if w1g_ref.dtype == jnp.float32 else jax.lax.Precision.DEFAULT)

    x = x_ref[...]                                                  # (TM, D)

    # ---- fused: all experts layer-1 + gate logits, one lane-dense matmul ----
    z = jnp.dot(x.astype(w1g_ref.dtype), w1g_ref[...],
                preferred_element_type=f32, precision=prec)         # (TM, EH+GP)
    z = z + b1g_ref[...]

    # ---- gate softmax over the trailing GP lanes (only first E are real) ----
    g = z[:, EH:]                                                   # (TM, GP)
    lane = jax.lax.broadcasted_iota(jnp.int32, g.shape, 1)
    g = jnp.where(lane < E, g, -1e30)          # masked lanes: exp underflows to 0
    m = jnp.max(g, axis=-1, keepdims=True)
    p = jnp.exp(g - m)
    gate = p / jnp.sum(p, axis=-1, keepdims=True)                   # (TM, GP)

    # ---- exact (erf) GELU on expert hidden activations, as in nn.GELU() -----
    h = z[:, :EH]
    if approximate_gelu:
        h = jax.nn.gelu(h, approximate=True)   # optional EUP-tanh fast path
    else:
        h = 0.5 * h * (1.0 + jax.lax.erf(h * 0.7071067811865476))

    # ---- broadcast gate over each expert's H lanes (0/1 matmul on the MXU) ---
    gate_rep = jnp.dot(gate, expand_ref[...],
                       preferred_element_type=f32, precision=prec)  # (TM, EH)

    # ---- fused: layer-2 + weighted expert sum + gate-weighted biases ---------
    #   sum_e gate_e * (h_e @ W2_e + b2_e)
    #     == concat([gate_rep*h, gate]) @ vstack([W2_rows, b2_rows])
    lhs = jnp.concatenate([gate_rep * h, gate], axis=-1)            # (TM, EH+GP)
    y = jnp.dot(lhs.astype(w2b_ref.dtype), w2b_ref[...],
                preferred_element_type=f32, precision=prec)         # (TM, O_pad)
    o_ref[...] = y.astype(o_ref.dtype)


def pack_moe_weights(wg, bg, w1, b1, w2, b2, *, compute_dtype=jnp.float32):
    """One-time weight packing (hoisted out of the jitted forward).
       wg:(D,E) bg:(1,E) w1:(E,D,H) b1:(E,1,H) w2:(E,H,O) b2:(E,1,O)."""
    E, D, H = w1.shape
    O = w2.shape[-1]
    EH = E * H
    GP = 128                                        # lane-dense gate pad
    O_pad = ((O + 127) // 128) * 128

    # layer-1 RHS with gate columns appended: (D, EH + GP)
    w1cat = jnp.transpose(w1, (1, 0, 2)).reshape(D, EH)
    wg_pad = jnp.pad(wg, ((0, 0), (0, GP - E)))
    w1g = jnp.concatenate([w1cat, wg_pad], axis=1).astype(compute_dtype)

    # fused bias row (kept f32, added after f32 accumulation)
    b1cat = b1.reshape(1, EH)
    bg_pad = jnp.pad(bg.reshape(1, E), ((0, 0), (0, GP - E)))
    b1g = jnp.concatenate([b1cat, bg_pad], axis=1).astype(jnp.float32)

    # gate -> per-expert-lane broadcast matrix (rows >= E are zero): (GP, EH)
    expand_top = jnp.repeat(jnp.eye(E, dtype=jnp.float32), H, axis=1)
    expand = jnp.concatenate(
        [expand_top, jnp.zeros((GP - E, EH), jnp.float32)], axis=0)

    # layer-2 RHS with gated-bias rows appended: (EH + GP, O_pad)
    w2rows = jnp.pad(w2.reshape(EH, O), ((0, 0), (0, O_pad - O)))
    b2rows = jnp.pad(b2.reshape(E, O), ((0, GP - E), (0, O_pad - O)))
    w2b = jnp.concatenate([w2rows, b2rows], axis=0).astype(compute_dtype)

    return {"w1g": w1g, "b1g": b1g, "expand": expand, "w2b": w2b}


@functools.partial(
    jax.jit,
    static_argnames=("num_experts", "output_dim", "tm_cap", "min_token_tiles",
                     "approximate_gelu"))
def moe_forward(x, w1g, b1g, expand, w2b, *, num_experts, output_dim,
                tm_cap=512, min_token_tiles=1, approximate_gelu=False):
    """x: (B, S, D) f32 -> (B, S, output_dim) f32, using pre-packed weights."""
    B, S, D = x.shape
    GP, EH = expand.shape
    W1C = w1g.shape[1]                      # EH + GP
    O_pad = w2b.shape[1]

    # --- token tiling: one big tile when it fits (serial grid on v5e/v6e);
    #     min_token_tiles=2 balances v7x's two TensorCores on the parallel axis.
    N = B * S
    n_tiles = max(min_token_tiles, -(-N // tm_cap))
    if min_token_tiles > 1:
        n_tiles = -(-n_tiles // min_token_tiles) * min_token_tiles
    TM = -(-N // n_tiles)
    TM = -(-TM // 8) * 8
    N_pad = n_tiles * TM

    xf = x.reshape(N, D)
    if N_pad != N:
        xf = jnp.pad(xf, ((0, N_pad - N), (0, 0)))

    kernel = functools.partial(_moe_kernel, num_experts=num_experts,
                               approximate_gelu=approximate_gelu)

    out = pl.pallas_call(
        kernel,
        out_shape=jax.ShapeDtypeStruct((N_pad, O_pad), jnp.float32),
        grid=(n_tiles,),
        in_specs=[
            pl.BlockSpec((TM, D), lambda i: (i, 0)),          # x tile
            pl.BlockSpec((D, W1C), lambda i: (0, 0)),         # W1 ++ gate W
            pl.BlockSpec((1, W1C), lambda i: (0, 0)),         # b1 ++ gate b
            pl.BlockSpec((GP, EH), lambda i: (0, 0)),         # gate -> lane expand
            pl.BlockSpec((EH + GP, O_pad), lambda i: (0, 0)), # W2 rows ++ b2 rows
        ],
        out_specs=pl.BlockSpec((TM, O_pad), lambda i: (i, 0)),
        compiler_params=pltpu.CompilerParams(
            dimension_semantics=("parallel",)),
    )(xf, w1g, b1g, expand, w2b)

    return out[:N, :output_dim].reshape(B, S, output_dim)


def _reference(x, wg, bg, w1, b1, w2, b2):
    hp = jax.lax.Precision.HIGHEST
    gate = jax.nn.softmax(jnp.dot(x, wg, precision=hp) + bg[0], axis=-1)
    out = jnp.zeros(x.shape[:2] + (w2.shape[-1],), jnp.float32)
    for i in range(w1.shape[0]):
        h = jnp.dot(x, w1[i], precision=hp) + b1[i, 0]
        h = 0.5 * h * (1.0 + jax.lax.erf(h / jnp.sqrt(2.0)))
        y = jnp.dot(h, w2[i], precision=hp) + b2[i, 0]
        out = out + gate[..., i:i + 1] * y
    return out


if __name__ == "__main__":
    # small shapes consistent with the module
    B, S = 2, 8
    D = 32          # input_dim
    O = 32          # output_dim
    E = 8           # num_experts
    H = 4 * D       # expert hidden dim

    key = jax.random.PRNGKey(0)
    ks = jax.random.split(key, 7)

    x = jax.random.normal(ks[0], (B, S, D), jnp.float32)

    # deterministic stand-in for nn.Linear init
    wg = jax.random.normal(ks[1], (D, E), jnp.float32) / math.sqrt(D)
    bg = jax.random.normal(ks[2], (1, E), jnp.float32) * 0.01
    w1 = jax.random.normal(ks[3], (E, D, H), jnp.float32) / math.sqrt(D)
    b1 = jax.random.normal(ks[4], (E, 1, H), jnp.float32) * 0.01
    w2 = jax.random.normal(ks[5], (E, H, O), jnp.float32) / math.sqrt(H)
    b2 = jax.random.normal(ks[6], (E, 1, O), jnp.float32) * 0.01

    packed = pack_moe_weights(wg, bg, w1, b1, w2, b2)      # one-time packing
    out = moe_forward(x, packed["w1g"], packed["b1g"], packed["expand"],
                      packed["w2b"], num_experts=E, output_dim=O)
    out = jax.block_until_ready(out)

    ref = _reference(x, wg, bg, w1, b1, w2, b2)
    assert out.shape == (B, S, O)
    max_err = float(jnp.max(jnp.abs(out - ref)))
    assert jnp.allclose(out, ref, atol=5e-4, rtol=5e-4), \
        f"mismatch vs reference, max abs err {max_err}"

    print("KERNEL_OK")
</pallas_src>

<mosaic_0001>
module attributes {stable_mosaic.version = 11 : i64} {
  func.func @_moe_kernel(%arg0: i32, %arg1: memref<16x32xf32, #tpu.memory_space<vmem>>, %arg2: memref<32x1152xf32, #tpu.memory_space<vmem>>, %arg3: memref<1x1152xf32, #tpu.memory_space<vmem>>, %arg4: memref<128x1024xf32, #tpu.memory_space<vmem>>, %arg5: memref<1152x128xf32, #tpu.memory_space<vmem>>, %arg6: memref<16x128xf32, #tpu.memory_space<vmem>>) attributes {dimension_semantics = [#tpu.dimension_semantics<parallel>], iteration_bounds = array<i64: 1>, scalar_prefetch = 0 : i64, scratch_operands = 0 : i64, tpu.core_type = #tpu.core_type<tc>, window_params = [{transform_indices = @transform_0, window_bounds = array<i64: 16, 32>}, {pipeline_mode = #tpu.pipeline_mode<synchronous>, transform_indices = @transform_1, window_bounds = array<i64: 32, 1152>}, {pipeline_mode = #tpu.pipeline_mode<synchronous>, transform_indices = @transform_2, window_bounds = array<i64: 1, 1152>}, {pipeline_mode = #tpu.pipeline_mode<synchronous>, transform_indices = @transform_3, window_bounds = array<i64: 128, 1024>}, {pipeline_mode = #tpu.pipeline_mode<synchronous>, transform_indices = @transform_4, window_bounds = array<i64: 1152, 128>}, {transform_indices = @transform_5, window_bounds = array<i64: 16, 128>}]} {
    %c0 = arith.constant 0 : index
    %c0_0 = arith.constant 0 : index
    %0 = vector.load %arg1[%c0, %c0_0] : memref<16x32xf32, #tpu.memory_space<vmem>>, vector<16x32xf32>
    %c0_1 = arith.constant 0 : index
    %c0_2 = arith.constant 0 : index
    %1 = vector.load %arg2[%c0_1, %c0_2] : memref<32x1152xf32, #tpu.memory_space<vmem>>, vector<32x1152xf32>
    %cst = arith.constant dense<0.000000e+00> : vector<16x1152xf32>
    %2 = tpu.matmul %0, %1, %cst {dimension_numbers = #tpu.dot_dimension_numbers<[1], [0], [0], [1], [0, 0, 1, 1], [], []>, precision = #tpu.contract_precision<fp32>} : vector<16x32xf32>, vector<32x1152xf32>, vector<16x1152xf32> -> vector<16x1152xf32>
    %c0_3 = arith.constant 0 : index
    %c0_4 = arith.constant 0 : index
    %3 = vector.load %arg3[%c0_3, %c0_4] : memref<1x1152xf32, #tpu.memory_space<vmem>>, vector<1x1152xf32>
    %4 = vector.broadcast %3 : vector<1x1152xf32> to vector<16x1152xf32>
    %5 = arith.addf %2, %4 : vector<16x1152xf32>
    %6 = vector.extract_strided_slice %5 {offsets = [0, 1024], sizes = [16, 128], strides = [1, 1]} : vector<16x1152xf32> to vector<16x128xf32>
    %7 = tpu.iota {dimensions = array<i32: 1>} : vector<16x128xi32>
    %c8_i32 = arith.constant 8 : i32
    %8 = vector.broadcast %c8_i32 : i32 to vector<16x128xi32>
    %9 = arith.cmpi slt, %7, %8 : vector<16x128xi32>
    %cst_5 = arith.constant -1.000000e+30 : f32
    %10 = vector.broadcast %cst_5 : f32 to vector<16x128xf32>
    %11 = arith.select %9, %6, %10 : vector<16x128xi1>, vector<16x128xf32>
    %cst_6 = arith.constant dense<0xFF800000> : vector<16xf32>
    %12 = vector.multi_reduction <maximumf>, %11, %cst_6 [1] : vector<16x128xf32> to vector<16xf32>
    %13 = vector.shape_cast %12 : vector<16xf32> to vector<16x1xf32>
    %14 = vector.broadcast %13 : vector<16x1xf32> to vector<16x128xf32>
    %15 = arith.subf %11, %14 : vector<16x128xf32>
    %16 = math.exp %15 : vector<16x128xf32>
    %cst_7 = arith.constant dense<0.000000e+00> : vector<16xf32>
    %17 = vector.multi_reduction <add>, %16, %cst_7 [1] : vector<16x128xf32> to vector<16xf32>
    %18 = vector.shape_cast %17 : vector<16xf32> to vector<16x1xf32>
    %19 = vector.broadcast %18 : vector<16x1xf32> to vector<16x128xf32>
    %20 = arith.divf %16, %19 : vector<16x128xf32>
    %21 = vector.extract_strided_slice %5 {offsets = [0, 0], sizes = [16, 1024], strides = [1, 1]} : vector<16x1152xf32> to vector<16x1024xf32>
    %cst_8 = arith.constant 5.000000e-01 : f32
    %22 = vector.broadcast %cst_8 : f32 to vector<16x1024xf32>
    %23 = arith.mulf %22, %21 : vector<16x1024xf32>
    %cst_9 = arith.constant 0.707106769 : f32
    %24 = vector.broadcast %cst_9 : f32 to vector<16x1024xf32>
    %25 = arith.mulf %21, %24 : vector<16x1024xf32>
    %26 = math.erf %25 : vector<16x1024xf32>
    %cst_10 = arith.constant 1.000000e+00 : f32
    %27 = vector.broadcast %cst_10 : f32 to vector<16x1024xf32>
    %28 = arith.addf %27, %26 : vector<16x1024xf32>
    %29 = arith.mulf %23, %28 : vector<16x1024xf32>
    %c0_11 = arith.constant 0 : index
    %c0_12 = arith.constant 0 : index
    %30 = vector.load %arg4[%c0_11, %c0_12] : memref<128x1024xf32, #tpu.memory_space<vmem>>, vector<128x1024xf32>
    %cst_13 = arith.constant dense<0.000000e+00> : vector<16x1024xf32>
    %31 = tpu.matmul %20, %30, %cst_13 {dimension_numbers = #tpu.dot_dimension_numbers<[1], [0], [0], [1], [0, 0, 1, 1], [], []>, precision = #tpu.contract_precision<fp32>} : vector<16x128xf32>, vector<128x1024xf32>, vector<16x1024xf32> -> vector<16x1024xf32>
    %32 = arith.mulf %31, %29 : vector<16x1024xf32>
    %33 = tpu.concatenate %32, %20 in 1 : vector<16x1024xf32>, vector<16x128xf32> -> vector<16x1152xf32>
    %c0_14 = arith.constant 0 : index
    %c0_15 = arith.constant 0 : index
    %34 = vector.load %arg5[%c0_14, %c0_15] : memref<1152x128xf32, #tpu.memory_space<vmem>>, vector<1152x128xf32>
    %cst_16 = arith.constant dense<0.000000e+00> : vector<16x128xf32>
    %35 = tpu.matmul %33, %34, %cst_16 {dimension_numbers = #tpu.dot_dimension_numbers<[1], [0], [0], [1], [0, 0, 1, 1], [], []>, precision = #tpu.contract_precision<fp32>} : vector<16x1152xf32>, vector<1152x128xf32>, vector<16x128xf32> -> vector<16x128xf32>
    %c0_17 = arith.constant 0 : index
    %c0_18 = arith.constant 0 : index
    %36 = vector.load %arg6[%c0_17, %c0_18] : memref<16x128xf32, #tpu.memory_space<vmem>>, vector<16x128xf32>
    tpu.vector_store %arg6[%c0_17, %c0_18], %35 {strides = array<i32>} : memref<16x128xf32, #tpu.memory_space<vmem>>, vector<16x128xf32>,
    return
  }
  func.func @transform_0(%arg0: i32) -> (i32, i32) {
    %c0_i32 = arith.constant 0 : i32
    %c0_i32_0 = arith.constant 0 : i32
    return %arg0, %c0_i32 : i32, i32
  }
  func.func @transform_1(%arg0: i32) -> (i32, i32) {
    %c0_i32 = arith.constant 0 : i32
    %c0_i32_0 = arith.constant 0 : i32
    %c0_i32_1 = arith.constant 0 : i32
    return %c0_i32, %c0_i32_0 : i32, i32
  }
  func.func @transform_2(%arg0: i32) -> (i32, i32) {
    %c0_i32 = arith.constant 0 : i32
    %c0_i32_0 = arith.constant 0 : i32
    %c0_i32_1 = arith.constant 0 : i32
    return %c0_i32, %c0_i32_0 : i32, i32
  }
  func.func @transform_3(%arg0: i32) -> (i32, i32) {
    %c0_i32 = arith.constant 0 : i32
    %c0_i32_0 = arith.constant 0 : i32
    %c0_i32_1 = arith.constant 0 : i32
    return %c0_i32, %c0_i32_0 : i32, i32
  }
  func.func @transform_4(%arg0: i32) -> (i32, i32) {
    %c0_i32 = arith.constant 0 : i32
    %c0_i32_0 = arith.constant 0 : i32
    %c0_i32_1 = arith.constant 0 : i32
    return %c0_i32, %c0_i32_0 : i32, i32
  }
  func.func @transform_5(%arg0: i32) -> (i32, i32) {
    %c0_i32 = arith.constant 0 : i32
    %c0_i32_0 = arith.constant 0 : i32
    return %arg0, %c0_i32 : i32, i32
  }
}

</mosaic_0001>

<llo_original>
// kernel: moe_forward.1
$region0: #{moe_forward.1}
  #allocation0 [shape = 'u32[]', space=smem, size = 0x4, offset = 0x4, fixed_abs, tag = 'smem constant byte address 0x4 - core index']
  #allocation1 [shape = 'u32[72,128]{1,0:T(1,128)}', space=vmem, size = 0x9000, scoped, tag = 'internal scratch']
  %s0 = inlined_call_operand.hbm [shape: f32[16,32], index: 0, kind: input, shape index: {}]
  %s1 = inlined_call_operand.hbm [shape: f32[32,1152], index: 1, kind: input, shape index: {}]
  %s2 = inlined_call_operand.hbm [shape: f32[1,1152], index: 2, kind: input, shape index: {}]
  %s3 = inlined_call_operand.hbm [shape: f32[128,1024], index: 3, kind: input, shape index: {}]
  %s4 = inlined_call_operand.hbm [shape: f32[1152,128], index: 4, kind: input, shape index: {}]
  %s5 = inlined_call_operand.vmem [shape: f32[16,128], index: 5, kind: output, shape index: {}]
  %s6 = sld [smem:[#allocation0]]
  $region50: #{moe_forward.1} parent=0
    _
  %s8 = ssub.s32 1, %s6
  %s9 = scalar_select 0, %s8, %s6
  $region1: #{moe_forward.1} parent=0
    #allocation2 [shape = 'u8[8192]{0}', space=vmem, size = 0x2000, scoped, tag = 'input window, operand 0, single buffered']
    #allocation3 [shape = 's32[1]{0}', space=sflag, size = 0x4, scoped, tag = 'scoped memory for moe_forward.1']
    #allocation4 [shape = 'u8[147456]{0}', space=vmem, size = 0x24000, scoped, tag = 'input window, operand 1, single buffered']
    #allocation5 [shape = 's32[1]{0}', space=sflag, size = 0x4, scoped, tag = 'scoped memory for moe_forward.1']
    #allocation6 [shape = 'u8[4608]{0}', space=vmem, size = 0x1400, scoped, tag = 'input window, operand 2, single buffered']
    #allocation7 [shape = 'u8[524288]{0}', space=vmem, size = 0x80000, scoped, tag = 'input window, operand 3, single buffered']
    #allocation8 [shape = 's32[1]{0}', space=sflag, size = 0x4, scoped, tag = 'scoped memory for moe_forward.1']
    #allocation9 [shape = 'u8[589824]{0}', space=vmem, size = 0x90000, scoped, tag = 'input window, operand 4, single buffered']
    %10 = vsyncpa [#allocation3], 0
    %11 = vsyncpa [#allocation5], 0
    %12 = vsyncpa [#allocation8], 0
    // Predicated region
    $region2: #{moe_forward.1} parent=1 // pred_check
      _
    $region3: #{moe_forward.1} parent=1 // pred_check_branch
      %14 = sbr.rel (0) target = $region5
    $region4: #{moe_forward.1} parent=1 // pred_region
      %16 = vsyncadd [#allocation3], 0
      %s17 = sshll.u32 %s0, 4
      %s18 = int_to_ptr.hbm [resolvable:$true] %s17
      %s19 = sshll.u32 [#allocation2], 4
      %s20 = int_to_ptr.vmem [resolvable:$true] %s19
      %25 = dma.hbm_to_vmem [thread:$0]  %s18, 256, %s20, [#allocation3], 128, 128, 8
    $region5: #{moe_forward.1} parent=1 // pred_fallthru
      _
    // Predicated region
    $region6: #{moe_forward.1} parent=1 // pred_check
      _
    $region7: #{moe_forward.1} parent=1 // pred_check_branch
      %27 = sbr.rel (0) target = $region9
    $region8: #{moe_forward.1} parent=1 // pred_region
      %29 = vsyncadd [#allocation5], 0
      %s30 = sshll.u32 %s1, 4
      %s31 = int_to_ptr.hbm [resolvable:$true] %s30
      %s32 = sshll.u32 [#allocation4], 4
      %s33 = int_to_ptr.vmem [resolvable:$true] %s32
      %38 = dma.hbm_to_vmem [thread:$0]  %s31, 4608, %s33, [#allocation5], 1152, 1152, 72
    $region9: #{moe_forward.1} parent=1 // pred_fallthru
      _
    // Predicated region
    $region10: #{moe_forward.1} parent=1 // pred_check
      _
    $region11: #{moe_forward.1} parent=1 // pred_check_branch
      %40 = sbr.rel (0) target = $region13
    $region12: #{moe_forward.1} parent=1 // pred_region
      %42 = vsyncadd [#allocation5], 0
      %s44 = sshll.u32 %s2, 4
      %s45 = int_to_ptr.hbm [resolvable:$true] %s44
      %s46 = sshll.u32 [#allocation6], 4
      %s47 = int_to_ptr.vmem [resolvable:$true] %s46
      %49 = dma.hbm_to_vmem [thread:$0]  %s45, 144, %s47, [#allocation5]
    $region13: #{moe_forward.1} parent=1 // pred_fallthru
      _
    // Predicated region
    $region14: #{moe_forward.1} parent=1 // pred_check
      _
    $region15: #{moe_forward.1} parent=1 // pred_check_branch
      %51 = sbr.rel (0) target = $region17
    $region16: #{moe_forward.1} parent=1 // pred_region
      %53 = vsyncadd [#allocation8], 0
      %s54 = sshll.u32 %s3, 4
      %s55 = int_to_ptr.hbm [resolvable:$true] %s54
      %s56 = sshll.u32 [#allocation7], 4
      %s57 = int_to_ptr.vmem [resolvable:$true] %s56
      %62 = dma.hbm_to_vmem [thread:$0]  %s55, 16384, %s57, [#allocation8], 1024, 1024, 64
    $region17: #{moe_forward.1} parent=1 // pred_fallthru
      _
    // Predicated region
    $region18: #{moe_forward.1} parent=1 // pred_check
      _
    $region19: #{moe_forward.1} parent=1 // pred_check_branch
      %64 = sbr.rel (0) target = $region21
    $region20: #{moe_forward.1} parent=1 // pred_region
      %66 = vsyncadd [#allocation8], 0
      %s67 = sshll.u32 %s4, 4
      %s68 = int_to_ptr.hbm [resolvable:$true] %s67
      %s69 = sshll.u32 [#allocation9], 4
      %s70 = int_to_ptr.vmem [resolvable:$true] %s69
      %75 = dma.hbm_to_vmem [thread:$0]  %s68, 18432, %s70, [#allocation8], 128, 128, 8
    $region21: #{moe_forward.1} parent=1 // pred_fallthru
      _
    // Predicated region
    $region22: #{moe_forward.1} parent=1 // pred_check
      _
    $region23: #{moe_forward.1} parent=1 // pred_check_branch
      %77 = sbr.rel (0) target = $region25
    $region24: #{moe_forward.1} parent=1 // pred_region
      %79 = dma.done [#allocation3], 256
    $region25: #{moe_forward.1} parent=1 // pred_fallthru
      _
    // Predicated region
    $region26: #{moe_forward.1} parent=1 // pred_check
      _
    $region27: #{moe_forward.1} parent=1 // pred_check_branch
      %81 = sbr.rel (0) target = $region29
    $region28: #{moe_forward.1} parent=1 // pred_region
      %83 = dma.done [#allocation5], 4608
    $region29: #{moe_forward.1} parent=1 // pred_fallthru
      _
    // Predicated region
    $region30: #{moe_forward.1} parent=1 // pred_check
      _
    $region31: #{moe_forward.1} parent=1 // pred_check_branch
      %85 = sbr.rel (0) target = $region33
    $region32: #{moe_forward.1} parent=1 // pred_region
      %87 = dma.done [#allocation5], 144
    $region33: #{moe_forward.1} parent=1 // pred_fallthru
      _
    // Predicated region
    $region34: #{moe_forward.1} parent=1 // pred_check
      _
    $region35: #{moe_forward.1} parent=1 // pred_check_branch
      %89 = sbr.rel (0) target = $region37
    $region36: #{moe_forward.1} parent=1 // pred_region
      %91 = dma.done [#allocation8], 16384
    $region37: #{moe_forward.1} parent=1 // pred_fallthru
      _
    // Predicated region
    $region38: #{moe_forward.1} parent=1 // pred_check
      _
    $region39: #{moe_forward.1} parent=1 // pred_check_branch
      %93 = sbr.rel (0) target = $region41
    $region40: #{moe_forward.1} parent=1 // pred_region
      %95 = dma.done [#allocation8], 18432
    $region41: #{moe_forward.1} parent=1 // pred_fallthru
      _
    %v96 = vld [vmem:[#allocation2] sm:$0xff]
    %v97 = vld [vmem:[#allocation2 + $0x8] sm:$0xff]
    %v98 = vld [vmem:[#allocation4] sm:$0xff]
    %v99 = vld [vmem:[#allocation4 + $0x8] sm:$0xff]
    %v100 = vld [vmem:[#allocation4 + $0x10] sm:$0xff]
    %v101 = vld [vmem:[#allocation4 + $0x18] sm:$0xff]
    %v102 = vld [vmem:[#allocation4 + $0x20] sm:$0xff]
    %v103 = vld [vmem:[#allocation4 + $0x28] sm:$0xff]
    %v104 = vld [vmem:[#allocation4 + $0x30] sm:$0xff]
    %v105 = vld [vmem:[#allocation4 + $0x38] sm:$0xff]
    %v106 = vld [vmem:[#allocation4 + $0x40] sm:$0xff]
    %v107 = vld [vmem:[#allocation4 + $0x48] sm:$0xff]
    %v108 = vld [vmem:[#allocation4 + $0x50] sm:$0xff]
    %v109 = vld [vmem:[#allocation4 + $0x58] sm:$0xff]
    %v110 = vld [vmem:[#allocation4 + $0x60] sm:$0xff]
    %v111 = vld [vmem:[#allocation4 + $0x68] sm:$0xff]
    %v112 = vld [vmem:[#allocation4 + $0x70] sm:$0xff]
    %v113 = vld [vmem:[#allocation4 + $0x78] sm:$0xff]
    %v114 = vld [vmem:[#allocation4 + $0x80] sm:$0xff]
    %v115 = vld [vmem:[#allocation4 + $0x88] sm:$0xff]
    %v116 = vld [vmem:[#allocation4 + $0x90] sm:$0xff]
    %v117 = vld [vmem:[#allocation4 + $0x98] sm:$0xff]
    %v118 = vld [vmem:[#allocation4 + $0xa0] sm:$0xff]
    %v119 = vld [vmem:[#allocation4 + $0xa8] sm:$0xff]
    %v120 = vld [vmem:[#allocation4 + $0xb0] sm:$0xff]
    %v121 = vld [vmem:[#allocation4 + $0xb8] sm:$0xff]
    %v122 = vld [vmem:[#allocation4 + $0xc0] sm:$0xff]
    %v123 = vld [vmem:[#allocation4 + $0xc8] sm:$0xff]
    %v124 = vld [vmem:[#allocation4 + $0xd0] sm:$0xff]
    %v125 = vld [vmem:[#allocation4 + $0xd8] sm:$0xff]
    %v126 = vld [vmem:[#allocation4 + $0xe0] sm:$0xff]
    %v127 = vld [vmem:[#allocation4 + $0xe8] sm:$0xff]
    %v128 = vld [vmem:[#allocation4 + $0xf0] sm:$0xff]
    %v129 = vld [vmem:[#allocation4 + $0xf8] sm:$0xff]
    %v130 = vld [vmem:[#allocation4 + $0x100] sm:$0xff]
    %v131 = vld [vmem:[#allocation4 + $0x108] sm:$0xff]
    %v132 = vld [vmem:[#allocation4 + $0x110] sm:$0xff]
    %v133 = vld [vmem:[#allocation4 + $0x118] sm:$0xff]
    %v134 = vld [vmem:[#allocation6] sm:$0xff]
    %v135 = vld [vmem:[#allocation6 + $0x8] sm:$0x1]
    %v138 = vperm.slane %v134, 0
    %v139 = vperm.slane %v134, 1
    %v140 = vperm.slane %v134, 2
    %v141 = vperm.slane %v134, 3
    %v142 = vperm.slane %v134, 4
    %v143 = vperm.slane %v134, 5
    %v144 = vperm.slane %v134, 6
    %v145 = vperm.slane %v134, 7
    %v146 = vperm.slane %v135, 0
    %vm156 = vcmask 261120
    %v158 = vsel %vm156, %v96, 0
    %v161 = vsel %vm156, %v97, 0
    %163 = vmatpush.msra.mxu0 0.0
    %164 = vmatpush.msra.mxu0 0.0
    %165 = vmatpush.msra.mxu0 0.0
    %166 = vmatpush.msra.mxu0 0.0
    %167 = vmatpush.msra.mxu0 0.0
    %168 = vmatpush.msra.mxu0 0.0
    %169 = vmatpush.msra.mxu0 0.0
    %170 = vmatpush.msra.mxu0 0.0
    %171 = vmatpush.msra.mxu0 0.0
    %172 = vmatpush.msra.mxu0 0.0
    %173 = vmatpush.msra.mxu0 0.0
    %174 = vmatpush.msra.mxu0 0.0
    %v175 = vand.u32 %v125, 4294901760
    %176 = vmatpush.msra.mxu0 %v175
    %v177 = vand.u32 %v116, 4294901760
    %178 = vmatpush.msra.mxu0 %v177
    %v179 = vand.u32 %v107, 4294901760
    %180 = vmatpush.msra.mxu0 %v179
    %v181 = vand.u32 %v98, 4294901760
    %182 = vmatpush.msra.mxu0 %v181
    %v183 = vand.u32 %v158, 4294901760
    %v184 = vsub.f32 %v158, %v183
    %v185 = vand.u32 %v184, 4294901760
    %v186 = vsub.f32 %v184, %v185
    %v187 = vand.u32 %v186, 4294901760
    %188 = vmatmul.f32.gmra.mxu0 %v187
    %v189 = vpop.f32.mrf.mxu0
    %v190 = vadd.f32 %v138, %v189
    %v191 = vand.u32 %v161, 4294901760
    %v192 = vsub.f32 %v161, %v191
    %v193 = vand.u32 %v192, 4294901760
    %v194 = vsub.f32 %v192, %v193
    %v195 = vand.u32 %v194, 4294901760
    %196 = vmatmul.f32.gmra.mxu0 %v195
    %v197 = vpop.f32.mrf.mxu0
    %v198 = vadd.f32 %v138, %v197
    %199 = vdwg.mxu0
    %200 = vmatpush.msra.mxu0 0.0
    %201 = vmatpush.msra.mxu0 0.0
    %202 = vmatpush.msra.mxu0 0.0
    %203 = vmatpush.msra.mxu0 0.0
    %204 = vmatpush.msra.mxu0 0.0
    %205 = vmatpush.msra.mxu0 0.0
    %206 = vmatpush.msra.mxu0 0.0
    %207 = vmatpush.msra.mxu0 0.0
    %208 = vmatpush.msra.mxu0 0.0
    %209 = vmatpush.msra.mxu0 0.0
    %210 = vmatpush.msra.mxu0 0.0
    %211 = vmatpush.msra.mxu0 0.0
    %v212 = vand.u32 %v125, 4294901760
    %v213 = vsub.f32 %v125, %v212
    %v214 = vand.u32 %v213, 4294901760
    %v215 = vsub.f32 %v213, %v214
    %v216 = vand.u32 %v215, 4294901760
    %217 = vmatpush.msra.mxu0 %v216
    %v218 = vand.u32 %v116, 4294901760
    %v219 = vsub.f32 %v116, %v218
    %v220 = vand.u32 %v219, 4294901760
    %v221 = vsub.f32 %v219, %v220
    %v222 = vand.u32 %v221, 4294901760
    %223 = vmatpush.msra.mxu0 %v222
    %v224 = vand.u32 %v107, 4294901760
    %v225 = vsub.f32 %v107, %v224
    %v226 = vand.u32 %v225, 4294901760
    %v227 = vsub.f32 %v225, %v226
    %v228 = vand.u32 %v227, 4294901760
    %229 = vmatpush.msra.mxu0 %v228
    %v230 = vand.u32 %v98, 4294901760
    %v231 = vsub.f32 %v98, %v230
    %v232 = vand.u32 %v231, 4294901760
    %v233 = vsub.f32 %v231, %v232
    %v234 = vand.u32 %v233, 4294901760
    %235 = vmatpush.msra.mxu0 %v234
    %v236 = vand.u32 %v158, 4294901760
    %237 = vmatmul.f32.gmra.mxu0 %v236
    %v238 = vpop.f32.mrf.mxu0
    %v239 = vadd.f32 %v190, %v238
    %v240 = vand.u32 %v161, 4294901760
    %241 = vmatmul.f32.gmra.mxu0 %v240
    %v242 = vpop.f32.mrf.mxu0
    %v243 = vadd.f32 %v198, %v242
    %244 = vdwg.mxu0
    %245 = vmatpush.msra.mxu0 0.0
    %246 = vmatpush.msra.mxu0 0.0
    %247 = vmatpush.msra.mxu0 0.0
    %248 = vmatpush.msra.mxu0 0.0
    %249 = vmatpush.msra.mxu0 0.0
    %250 = vmatpush.msra.mxu0 0.0
    %251 = vmatpush.msra.mxu0 0.0
    %252 = vmatpush.msra.mxu0 0.0
    %253 = vmatpush.msra.mxu0 0.0
    %254 = vmatpush.msra.mxu0 0.0
    %255 = vmatpush.msra.mxu0 0.0
    %256 = vmatpush.msra.mxu0 0.0
    %v257 = vand.u32 %v125, 4294901760
    %v258 = vsub.f32 %v125, %v257
    %259 = vmatpush.msra.mxu0 %v258
    %v260 = vand.u32 %v116, 4294901760
    %v261 = vsub.f32 %v116, %v260
    %262 = vmatpush.msra.mxu0 %v261
    %v263 = vand.u32 %v107, 4294901760
    %v264 = vsub.f32 %v107, %v263
    %265 = vmatpush.msra.mxu0 %v264
    %v266 = vand.u32 %v98, 4294901760
    %v267 = vsub.f32 %v98, %v266
    %268 = vmatpush.msra.mxu0 %v267
    %v269 = vand.u32 %v158, 4294901760
    %v270 = vsub.f32 %v158, %v269
    %271 = vmatmul.f32.gmra.mxu0 %v270
    %v272 = vpop.f32.mrf.mxu0
    %v273 = vadd.f32 %v239, %v272
    %v274 = vand.u32 %v161, 4294901760
    %v275 = vsub.f32 %v161, %v274
    %276 = vmatmul.f32.gmra.mxu0 %v275
    %v277 = vpop.f32.mrf.mxu0
    %v278 = vadd.f32 %v243, %v277
    %279 = vdwg.mxu0
    %280 = vmatpush.msra.mxu0 0.0
    %281 = vmatpush.msra.mxu0 0.0
    %282 = vmatpush.msra.mxu0 0.0
    %283 = vmatpush.msra.mxu0 0.0
    %284 = vmatpush.msra.mxu0 0.0
    %285 = vmatpush.msra.mxu0 0.0
    %286 = vmatpush.msra.mxu0 0.0
    %287 = vmatpush.msra.mxu0 0.0
    %288 = vmatpush.msra.mxu0 0.0
    %289 = vmatpush.msra.mxu0 0.0
    %290 = vmatpush.msra.mxu0 0.0
    %291 = vmatpush.msra.mxu0 0.0
    %v292 = vand.u32 %v125, 4294901760
    %293 = vmatpush.msra.mxu0 %v292
    %v294 = vand.u32 %v116, 4294901760
    %295 = vmatpush.msra.mxu0 %v294
    %v296 = vand.u32 %v107, 4294901760
    %297 = vmatpush.msra.mxu0 %v296
    %v298 = vand.u32 %v98, 4294901760
    %299 = vmatpush.msra.mxu0 %v298
    %v300 = vand.u32 %v158, 4294901760
    %v301 = vsub.f32 %v158, %v300
    %v302 = vand.u32 %v301, 4294901760
    %303 = vmatmul.f32.gmra.mxu0 %v302
    %v304 = vpop.f32.mrf.mxu0
    %v305 = vadd.f32 %v273, %v304
    %v306 = vand.u32 %v161, 4294901760
    %v307 = vsub.f32 %v161, %v306
    %v308 = vand.u32 %v307, 4294901760
    %309 = vmatmul.f32.gmra.mxu0 %v308
    %v310 = vpop.f32.mrf.mxu0
    %v311 = vadd.f32 %v278, %v310
    %312 = vdwg.mxu0
    %313 = vmatpush.msra.mxu0 0.0
    %314 = vmatpush.msra.mxu0 0.0
    %315 = vmatpush.msra.mxu0 0.0
    %316 = vmatpush.msra.mxu0 0.0
    %317 = vmatpush.msra.mxu0 0.0
    %318 = vmatpush.msra.mxu0 0.0
    %319 = vmatpush.msra.mxu0 0.0
    %320 = vmatpush.msra.mxu0 0.0
    %321 = vmatpush.msra.mxu0 0.0
    %322 = vmatpush.msra.mxu0 0.0
    %323 = vmatpush.msra.mxu0 0.0
    %324 = vmatpush.msra.mxu0 0.0
    %v325 = vand.u32 %v125, 4294901760
    %v326 = vsub.f32 %v125, %v325
    %v327 = vand.u32 %v326, 4294901760
    %328 = vmatpush.msra.mxu0 %v327
    %v329 = vand.u32 %v116, 4294901760
    %v330 = vsub.f32 %v116, %v329
    %v331 = vand.u32 %v330, 4294901760
    %332 = vmatpush.msra.mxu0 %v331
    %v333 = vand.u32 %v107, 4294901760
    %v334 = vsub.f32 %v107, %v333
    %v335 = vand.u32 %v334, 4294901760
    %336 = vmatpush.msra.mxu0 %v335
    %v337 = vand.u32 %v98, 4294901760
    %v338 = vsub.f32 %v98, %v337
    %v339 = vand.u32 %v338, 4294901760
    %340 = vmatpush.msra.mxu0 %v339
    %v341 = vand.u32 %v158, 4294901760
    %342 = vmatmul.f32.gmra.mxu0 %v341
    %v343 = vpop.f32.mrf.mxu0
    %v344 = vadd.f32 %v305, %v343
    %v345 = vand.u32 %v161, 4294901760
    %346 = vmatmul.f32.gmra.mxu0 %v345
    %v347 = vpop.f32.mrf.mxu0
    %v348 = vadd.f32 %v311, %v347
    %349 = vdwg.mxu0
    %350 = vmatpush.msra.mxu0 0.0
    %351 = vmatpush.msra.mxu0 0.0
    %352 = vmatpush.msra.mxu0 0.0
    %353 = vmatpush.msra.mxu0 0.0
    %354 = vmatpush.msra.mxu0 0.0
    %355 = vmatpush.msra.mxu0 0.0
    %356 = vmatpush.msra.mxu0 0.0
    %357 = vmatpush.msra.mxu0 0.0
    %358 = vmatpush.msra.mxu0 0.0
    %359 = vmatpush.msra.mxu0 0.0
    %360 = vmatpush.msra.mxu0 0.0
    %361 = vmatpush.msra.mxu0 0.0
    %v362 = vand.u32 %v125, 4294901760
    %363 = vmatpush.msra.mxu0 %v362
    %v364 = vand.u32 %v116, 4294901760
    %365 = vmatpush.msra.mxu0 %v364
    %v366 = vand.u32 %v107, 4294901760
    %367 = vmatpush.msra.mxu0 %v366
    %v368 = vand.u32 %v98, 4294901760
    %369 = vmatpush.msra.mxu0 %v368
    %v370 = vand.u32 %v158, 4294901760
    %371 = vmatmul.f32.gmra.mxu0 %v370
    %v372 = vpop.f32.mrf.mxu0
    %v373 = vadd.f32 %v344, %v372
    %v374 = vand.u32 %v161, 4294901760
    %375 = vmatmul.f32.gmra.mxu0 %v374
    %v376 = vpop.f32.mrf.mxu0
    %v377 = vadd.f32 %v348, %v376
    %378 = vdwg.mxu0
    %379 = vmatpush.msra.mxu0 0.0
    %380 = vmatpush.msra.mxu0 0.0
    %381 = vmatpush.msra.mxu0 0.0
    %382 = vmatpush.msra.mxu0 0.0
    %383 = vmatpush.msra.mxu0 0.0
    %384 = vmatpush.msra.mxu0 0.0
    %385 = vmatpush.msra.mxu0 0.0
    %386 = vmatpush.msra.mxu0 0.0
    %387 = vmatpush.msra.mxu0 0.0
    %388 = vmatpush.msra.mxu0 0.0
    %389 = vmatpush.msra.mxu0 0.0
    %390 = vmatpush.msra.mxu0 0.0
    %v391 = vand.u32 %v126, 4294901760
    %392 = vmatpush.msra.mxu0 %v391
    %v393 = vand.u32 %v117, 4294901760
    %394 = vmatpush.msra.mxu0 %v393
    %v395 = vand.u32 %v108, 4294901760
    %396 = vmatpush.msra.mxu0 %v395
    %v397 = vand.u32 %v99, 4294901760
    %398 = vmatpush.msra.mxu0 %v397
    %v399 = vand.u32 %v158, 4294901760
    %v400 = vsub.f32 %v158, %v399
    %v401 = vand.u32 %v400, 4294901760
    %v402 = vsub.f32 %v400, %v401
    %v403 = vand.u32 %v402, 4294901760
    %404 = vmatmul.f32.gmra.mxu0 %v403
    %v405 = vpop.f32.mrf.mxu0
    %v406 = vadd.f32 %v139, %v405
    %v407 = vand.u32 %v161, 4294901760
    %v408 = vsub.f32 %v161, %v407
    %v409 = vand.u32 %v408, 4294901760
    %v410 = vsub.f32 %v408, %v409
    %v411 = vand.u32 %v410, 4294901760
    %412 = vmatmul.f32.gmra.mxu0 %v411
    %v413 = vpop.f32.mrf.mxu0
    %v414 = vadd.f32 %v139, %v413
    %415 = vdwg.mxu0
    %416 = vmatpush.msra.mxu0 0.0
    %417 = vmatpush.msra.mxu0 0.0
    %418 = vmatpush.msra.mxu0 0.0
    %419 = vmatpush.msra.mxu0 0.0
    %420 = vmatpush.msra.mxu0 0.0
    %421 = vmatpush.msra.mxu0 0.0
    %422 = vmatpush.msra.mxu0 0.0
    %423 = vmatpush.msra.mxu0 0.0
    %424 = vmatpush.msra.mxu0 0.0
    %425 = vmatpush.msra.mxu0 0.0
    %426 = vmatpush.msra.mxu0 0.0
    %427 = vmatpush.msra.mxu0 0.0
    %v428 = vand.u32 %v126, 4294901760
    %v429 = vsub.f32 %v126, %v428
    %v430 = vand.u32 %v429, 4294901760
    %v431 = vsub.f32 %v429, %v430
    %v432 = vand.u32 %v431, 4294901760
    %433 = vmatpush.msra.mxu0 %v432
    %v434 = vand.u32 %v117, 4294901760
    %v435 = vsub.f32 %v117, %v434
    %v436 = vand.u32 %v435, 4294901760
    %v437 = vsub.f32 %v435, %v436
    %v438 = vand.u32 %v437, 4294901760
    %439 = vmatpush.msra.mxu0 %v438
    %v440 = vand.u32 %v108, 4294901760
    %v441 = vsub.f32 %v108, %v440
    %v442 = vand.u32 %v441, 4294901760
    %v443 = vsub.f32 %v441, %v442
    %v444 = vand.u32 %v443, 4294901760
    %445 = vmatpush.msra.mxu0 %v444
    %v446 = vand.u32 %v99, 4294901760
    %v447 = vsub.f32 %v99, %v446
    %v448 = vand.u32 %v447, 4294901760
    %v449 = vsub.f32 %v447, %v448
    %v450 = vand.u32 %v449, 4294901760
    %451 = vmatpush.msra.mxu0 %v450
    %v452 = vand.u32 %v158, 4294901760
    %453 = vmatmul.f32.gmra.mxu0 %v452
    %v454 = vpop.f32.mrf.mxu0
    %v455 = vadd.f32 %v406, %v454
    %v456 = vand.u32 %v161, 4294901760
    %457 = vmatmul.f32.gmra.mxu0 %v456
    %v458 = vpop.f32.mrf.mxu0
    %v459 = vadd.f32 %v414, %v458
    %460 = vdwg.mxu0
    %461 = vmatpush.msra.mxu0 0.0
    %462 = vmatpush.msra.mxu0 0.0
    %463 = vmatpush.msra.mxu0 0.0
    %464 = vmatpush.msra.mxu0 0.0
    %465 = vmatpush.msra.mxu0 0.0
    %466 = vmatpush.msra.mxu0 0.0
    %467 = vmatpush.msra.mxu0 0.0
    %468 = vmatpush.msra.mxu0 0.0
    %469 = vmatpush.msra.mxu0 0.0
    %470 = vmatpush.msra.mxu0 0.0
    %471 = vmatpush.msra.mxu0 0.0
    %472 = vmatpush.msra.mxu0 0.0
    %v473 = vand.u32 %v126, 4294901760
    %v474 = vsub.f32 %v126, %v473
    %475 = vmatpush.msra.mxu0 %v474
    %v476 = vand.u32 %v117, 4294901760
    %v477 = vsub.f32 %v117, %v476
    %478 = vmatpush.msra.mxu0 %v477
    %v479 = vand.u32 %v108, 4294901760
    %v480 = vsub.f32 %v108, %v479
    %481 = vmatpush.msra.mxu0 %v480
    %v482 = vand.u32 %v99, 4294901760
    %v483 = vsub.f32 %v99, %v482
    %484 = vmatpush.msra.mxu0 %v483
    %v485 = vand.u32 %v158, 4294901760
    %v486 = vsub.f32 %v158, %v485
    %487 = vmatmul.f32.gmra.mxu0 %v486
    %v488 = vpop.f32.mrf.mxu0
    %v489 = vadd.f32 %v455, %v488
    %v490 = vand.u32 %v161, 4294901760
    %v491 = vsub.f32 %v161, %v490
    %492 = vmatmul.f32.gmra.mxu0 %v491
    %v493 = vpop.f32.mrf.mxu0
    %v494 = vadd.f32 %v459, %v493
    %495 = vdwg.mxu0
    %496 = vmatpush.msra.mxu0 0.0
    %497 = vmatpush.msra.mxu0 0.0
    %498 = vmatpush.msra.mxu0 0.0
    %499 = vmatpush.msra.mxu0 0.0
    %500 = vmatpush.msra.mxu0 0.0
    %501 = vmatpush.msra.mxu0 0.0
    %502 = vmatpush.msra.mxu0 0.0
    %503 = vmatpush.msra.mxu0 0.0
    %504 = vmatpush.msra.mxu0 0.0
    %505 = vmatpush.msra.mxu0 0.0
    %506 = vmatpush.msra.mxu0 0.0
    %507 = vmatpush.msra.mxu0 0.0
    %v508 = vand.u32 %v126, 4294901760
    %509 = vmatpush.msra.mxu0 %v508
    %v510 = vand.u32 %v117, 4294901760
    %511 = vmatpush.msra.mxu0 %v510
    %v512 = vand.u32 %v108, 4294901760
    %513 = vmatpush.msra.mxu0 %v512
    %v514 = vand.u32 %v99, 4294901760
    %515 = vmatpush.msra.mxu0 %v514
    %v516 = vand.u32 %v158, 4294901760
    %v517 = vsub.f32 %v158, %v516
    %v518 = vand.u32 %v517, 4294901760
    %519 = vmatmul.f32.gmra.mxu0 %v518
    %v520 = vpop.f32.mrf.mxu0
    %v521 = vadd.f32 %v489, %v520
    %v522 = vand.u32 %v161, 4294901760
    %v523 = vsub.f32 %v161, %v522
    %v524 = vand.u32 %v523, 4294901760
    %525 = vmatmul.f32.gmra.mxu0 %v524
    %v526 = vpop.f32.mrf.mxu0
    %v527 = vadd.f32 %v494, %v526
    %528 = vdwg.mxu0
    %529 = vmatpush.msra.mxu0 0.0
    %530 = vmatpush.msra.mxu0 0.0
    %531 = vmatpush.msra.mxu0 0.0
    %532 = vmatpush.msra.mxu0 0.0
    %533 = vmatpush.msra.mxu0 0.0
    %534 = vmatpush.msra.mxu0 0.0
    %535 = vmatpush.msra.mxu0 0.0
    %536 = vmatpush.msra.mxu0 0.0
    %537 = vmatpush.msra.mxu0 0.0
    %538 = vmatpush.msra.mxu0 0.0
    %539 = vmatpush.msra.mxu0 0.0
    %540 = vmatpush.msra.mxu0 0.0
    %v541 = vand.u32 %v126, 4294901760
    %v542 = vsub.f32 %v126, %v541
    %v543 = vand.u32 %v542, 4294901760
    %544 = vmatpush.msra.mxu0 %v543
    %v545 = vand.u32 %v117, 4294901760
    %v546 = vsub.f32 %v117, %v545
    %v547 = vand.u32 %v546, 4294901760
    %548 = vmatpush.msra.mxu0 %v547
    %v549 = vand.u32 %v108, 4294901760
    %v550 = vsub.f32 %v108, %v549
    %v551 = vand.u32 %v550, 4294901760
    %552 = vmatpush.msra.mxu0 %v551
    %v553 = vand.u32 %v99, 4294901760
    %v554 = vsub.f32 %v99, %v553
    %v555 = vand.u32 %v554, 4294901760
    %556 = vmatpush.msra.mxu0 %v555
    %v557 = vand.u32 %v158, 4294901760
    %558 = vmatmul.f32.gmra.mxu0 %v557
    %v559 = vpop.f32.mrf.mxu0
    %v560 = vadd.f32 %v521, %v559
    %v561 = vand.u32 %v161, 4294901760
    %562 = vmatmul.f32.gmra.mxu0 %v561
    %v563 = vpop.f32.mrf.mxu0
    %v564 = vadd.f32 %v527, %v563
    %565 = vdwg.mxu0
    %566 = vmatpush.msra.mxu0 0.0
    %567 = vmatpush.msra.mxu0 0.0
    %568 = vmatpush.msra.mxu0 0.0
    %569 = vmatpush.msra.mxu0 0.0
    %570 = vmatpush.msra.mxu0 0.0
    %571 = vmatpush.msra.mxu0 0.0
    %572 = vmatpush.msra.mxu0 0.0
    %573 = vmatpush.msra.mxu0 0.0
    %574 = vmatpush.msra.mxu0 0.0
    %575 = vmatpush.msra.mxu0 0.0
    %576 = vmatpush.msra.mxu0 0.0
    %577 = vmatpush.msra.mxu0 0.0
    %v578 = vand.u32 %v126, 4294901760
    %579 = vmatpush.msra.mxu0 %v578
    %v580 = vand.u32 %v117, 4294901760
    %581 = vmatpush.msra.mxu0 %v580
    %v582 = vand.u32 %v108, 4294901760
    %583 = vmatpush.msra.mxu0 %v582
    %v584 = vand.u32 %v99, 4294901760
    %585 = vmatpush.msra.mxu0 %v584
    %v586 = vand.u32 %v158, 4294901760
    %587 = vmatmul.f32.gmra.mxu0 %v586
    %v588 = vpop.f32.mrf.mxu0
    %v589 = vadd.f32 %v560, %v588
    %v590 = vand.u32 %v161, 4294901760
    %591 = vmatmul.f32.gmra.mxu0 %v590
    %v592 = vpop.f32.mrf.mxu0
    %v593 = vadd.f32 %v564, %v592
    %594 = vdwg.mxu0
    %595 = vmatpush.msra.mxu0 0.0
    %596 = vmatpush.msra.mxu0 0.0
    %597 = vmatpush.msra.mxu0 0.0
    %598 = vmatpush.msra.mxu0 0.0
    %599 = vmatpush.msra.mxu0 0.0
    %600 = vmatpush.msra.mxu0 0.0
    %601 = vmatpush.msra.mxu0 0.0
    %602 = vmatpush.msra.mxu0 0.0
    %603 = vmatpush.msra.mxu0 0.0
    %604 = vmatpush.msra.mxu0 0.0
    %605 = vmatpush.msra.mxu0 0.0
    %606 = vmatpush.msra.mxu0 0.0
    %v607 = vand.u32 %v127, 4294901760
    %608 = vmatpush.msra.mxu0 %v607
    %v609 = vand.u32 %v118, 4294901760
    %610 = vmatpush.msra.mxu0 %v609
    %v611 = vand.u32 %v109, 4294901760
    %612 = vmatpush.msra.mxu0 %v611
    %v613 = vand.u32 %v100, 4294901760
    %614 = vmatpush.msra.mxu0 %v613
    %v615 = vand.u32 %v158, 4294901760
    %v616 = vsub.f32 %v158, %v615
    %v617 = vand.u32 %v616, 4294901760
    %v618 = vsub.f32 %v616, %v617
    %v619 = vand.u32 %v618, 4294901760
    %620 = vmatmul.f32.gmra.mxu0 %v619
    %v621 = vpop.f32.mrf.mxu0
    %v622 = vadd.f32 %v140, %v621
    %v623 = vand.u32 %v161, 4294901760
    %v624 = vsub.f32 %v161, %v623
    %v625 = vand.u32 %v624, 4294901760
    %v626 = vsub.f32 %v624, %v625
    %v627 = vand.u32 %v626, 4294901760
    %628 = vmatmul.f32.gmra.mxu0 %v627
    %v629 = vpop.f32.mrf.mxu0
    %v630 = vadd.f32 %v140, %v629
    %631 = vdwg.mxu0
    %632 = vmatpush.msra.mxu0 0.0
    %633 = vmatpush.msra.mxu0 0.0
    %634 = vmatpush.msra.mxu0 0.0
    %635 = vmatpush.msra.mxu0 0.0
    %636 = vmatpush.msra.mxu0 0.0
    %637 = vmatpush.msra.mxu0 0.0
    %638 = vmatpush.msra.mxu0 0.0
    %639 = vmatpush.msra.mxu0 0.0
    %640 = vmatpush.msra.mxu0 0.0
    %641 = vmatpush.msra.mxu0 0.0
    %642 = vmatpush.msra.mxu0 0.0
    %643 = vmatpush.msra.mxu0 0.0
    %v644 = vand.u32 %v127, 4294901760
    %v645 = vsub.f32 %v127, %v644
    %v646 = vand.u32 %v645, 4294901760
    %v647 = vsub.f32 %v645, %v646
    %v648 = vand.u32 %v647, 4294901760
    %649 = vmatpush.msra.mxu0 %v648
    %v650 = vand.u32 %v118, 4294901760
    %v651 = vsub.f32 %v118, %v650
    %v652 = vand.u32 %v651, 4294901760
    %v653 = vsub.f32 %v651, %v652
    %v654 = vand.u32 %v653, 4294901760
    %655 = vmatpush.msra.mxu0 %v654
    %v656 = vand.u32 %v109, 4294901760
    %v657 = vsub.f32 %v109, %v656
    %v658 = vand.u32 %v657, 4294901760
    %v659 = vsub.f32 %v657, %v658
    %v660 = vand.u32 %v659, 4294901760
    %661 = vmatpush.msra.mxu0 %v660
    %v662 = vand.u32 %v100, 4294901760
    %v663 = vsub.f32 %v100, %v662
    %v664 = vand.u32 %v663, 4294901760
    %v665 = vsub.f32 %v663, %v664
    %v666 = vand.u32 %v665, 4294901760
    %667 = vmatpush.msra.mxu0 %v666
    %v668 = vand.u32 %v158, 4294901760
    %669 = vmatmul.f32.gmra.mxu0 %v668
    %v670 = vpop.f32.mrf.mxu0
    %v671 = vadd.f32 %v622, %v670
    %v672 = vand.u32 %v161, 4294901760
    %673 = vmatmul.f32.gmra.mxu0 %v672
    %v674 = vpop.f32.mrf.mxu0
    %v675 = vadd.f32 %v630, %v674
    %676 = vdwg.mxu0
    %677 = vmatpush.msra.mxu0 0.0
    %678 = vmatpush.msra.mxu0 0.0
    %679 = vmatpush.msra.mxu0 0.0
    %680 = vmatpush.msra.mxu0 0.0
    %681 = vmatpush.msra.mxu0 0.0
    %682 = vmatpush.msra.mxu0 0.0
    %683 = vmatpush.msra.mxu0 0.0
    %684 = vmatpush.msra.mxu0 0.0
    %685 = vmatpush.msra.mxu0 0.0
    %686 = vmatpush.msra.mxu0 0.0
    %687 = vmatpush.msra.mxu0 0.0
    %688 = vmatpush.msra.mxu0 0.0
    %v689 = vand.u32 %v127, 4294901760
    %v690 = vsub.f32 %v127, %v689
    %691 = vmatpush.msra.mxu0 %v690
    %v692 = vand.u32 %v118, 4294901760
    %v693 = vsub.f32 %v118, %v692
    %694 = vmatpush.msra.mxu0 %v693
    %v695 = vand.u32 %v109, 4294901760
    %v696 = vsub.f32 %v109, %v695
    %697 = vmatpush.msra.mxu0 %v696
    %v698 = vand.u32 %v100, 4294901760
    %v699 = vsub.f32 %v100, %v698
    %700 = vmatpush.msra.mxu0 %v699
    %v701 = vand.u32 %v158, 4294901760
    %v702 = vsub.f32 %v158, %v701
    %703 = vmatmul.f32.gmra.mxu0 %v702
    %v704 = vpop.f32.mrf.mxu0
    %v705 = vadd.f32 %v671, %v704
    %v706 = vand.u32 %v161, 4294901760
    %v707 = vsub.f32 %v161, %v706
    %708 = vmatmul.f32.gmra.mxu0 %v707
    %v709 = vpop.f32.mrf.mxu0
    %v710 = vadd.f32 %v675, %v709
    %711 = vdwg.mxu0
    %712 = vmatpush.msra.mxu0 0.0
    %713 = vmatpush.msra.mxu0 0.0
    %714 = vmatpush.msra.mxu0 0.0
    %715 = vmatpush.msra.mxu0 0.0
    %716 = vmatpush.msra.mxu0 0.0
    %717 = vmatpush.msra.mxu0 0.0
    %718 = vmatpush.msra.mxu0 0.0
    %719 = vmatpush.msra.mxu0 0.0
    %720 = vmatpush.msra.mxu0 0.0
    %721 = vmatpush.msra.mxu0 0.0
    %722 = vmatpush.msra.mxu0 0.0
    %723 = vmatpush.msra.mxu0 0.0
    %v724 = vand.u32 %v127, 4294901760
    %725 = vmatpush.msra.mxu0 %v724
    %v726 = vand.u32 %v118, 4294901760
    %727 = vmatpush.msra.mxu0 %v726
    %v728 = vand.u32 %v109, 4294901760
    %729 = vmatpush.msra.mxu0 %v728
    %v730 = vand.u32 %v100, 4294901760
    %731 = vmatpush.msra.mxu0 %v730
    %v732 = vand.u32 %v158, 4294901760
    %v733 = vsub.f32 %v158, %v732
    %v734 = vand.u32 %v733, 4294901760
    %735 = vmatmul.f32.gmra.mxu0 %v734
    %v736 = vpop.f32.mrf.mxu0
    %v737 = vadd.f32 %v705, %v736
    %v738 = vand.u32 %v161, 4294901760
    %v739 = vsub.f32 %v161, %v738
    %v740 = vand.u32 %v739, 4294901760
    %741 = vmatmul.f32.gmra.mxu0 %v740
    %v742 = vpop.f32.mrf.mxu0
    %v743 = vadd.f32 %v710, %v742
    %744 = vdwg.mxu0
    %745 = vmatpush.msra.mxu0 0.0
    %746 = vmatpush.msra.mxu0 0.0
    %747 = vmatpush.msra.mxu0 0.0
    %748 = vmatpush.msra.mxu0 0.0
    %749 = vmatpush.msra.mxu0 0.0
    %750 = vmatpush.msra.mxu0 0.0
    %751 = vmatpush.msra.mxu0 0.0
    %752 = vmatpush.msra.mxu0 0.0
    %753 = vmatpush.msra.mxu0 0.0
    %754 = vmatpush.msra.mxu0 0.0
    %755 = vmatpush.msra.mxu0 0.0
    %756 = vmatpush.msra.mxu0 0.0
    %v757 = vand.u32 %v127, 4294901760
    %v758 = vsub.f32 %v127, %v757
    %v759 = vand.u32 %v758, 4294901760
    %760 = vmatpush.msra.mxu0 %v759
    %v761 = vand.u32 %v118, 4294901760
    %v762 = vsub.f32 %v118, %v761
    %v763 = vand.u32 %v762, 4294901760
    %764 = vmatpush.msra.mxu0 %v763
    %v765 = vand.u32 %v109, 4294901760
    %v766 = vsub.f32 %v109, %v765
    %v767 = vand.u32 %v766, 4294901760
    %768 = vmatpush.msra.mxu0 %v767
    %v769 = vand.u32 %v100, 4294901760
    %v770 = vsub.f32 %v100, %v769
    %v771 = vand.u32 %v770, 4294901760
    %772 = vmatpush.msra.mxu0 %v771
    %v773 = vand.u32 %v158, 4294901760
    %774 = vmatmul.f32.gmra.mxu0 %v773
    %v775 = vpop.f32.mrf.mxu0
    %v776 = vadd.f32 %v737, %v775
    %v777 = vand.u32 %v161, 4294901760
    %778 = vmatmul.f32.gmra.mxu0 %v777
    %v779 = vpop.f32.mrf.mxu0
    %v780 = vadd.f32 %v743, %v779
    %781 = vdwg.mxu0
    %782 = vmatpush.msra.mxu0 0.0
    %783 = vmatpush.msra.mxu0 0.0
    %784 = vmatpush.msra.mxu0 0.0
    %785 = vmatpush.msra.mxu0 0.0
    %786 = vmatpush.msra.mxu0 0.0
    %787 = vmatpush.msra.mxu0 0.0
    %788 = vmatpush.msra.mxu0 0.0
    %789 = vmatpush.msra.mxu0 0.0
    %790 = vmatpush.msra.mxu0 0.0
    %791 = vmatpush.msra.mxu0 0.0
    %792 = vmatpush.msra.mxu0 0.0
    %793 = vmatpush.msra.mxu0 0.0
    %v794 = vand.u32 %v127, 4294901760
    %795 = vmatpush.msra.mxu0 %v794
    %v796 = vand.u32 %v118, 4294901760
    %797 = vmatpush.msra.mxu0 %v796
    %v798 = vand.u32 %v109, 4294901760
    %799 = vmatpush.msra.mxu0 %v798
    %v800 = vand.u32 %v100, 4294901760
    %801 = vmatpush.msra.mxu0 %v800
    %v802 = vand.u32 %v158, 4294901760
    %803 = vmatmul.f32.gmra.mxu0 %v802
    %v804 = vpop.f32.mrf.mxu0
    %v805 = vadd.f32 %v776, %v804
    %v806 = vand.u32 %v161, 4294901760
    %807 = vmatmul.f32.gmra.mxu0 %v806
    %v808 = vpop.f32.mrf.mxu0
    %v809 = vadd.f32 %v780, %v808
    %810 = vdwg.mxu0
    %811 = vmatpush.msra.mxu0 0.0
    %812 = vmatpush.msra.mxu0 0.0
    %813 = vmatpush.msra.mxu0 0.0
    %814 = vmatpush.msra.mxu0 0.0
    %815 = vmatpush.msra.mxu0 0.0
    %816 = vmatpush.msra.mxu0 0.0
    %817 = vmatpush.msra.mxu0 0.0
    %818 = vmatpush.msra.mxu0 0.0
    %819 = vmatpush.msra.mxu0 0.0
    %820 = vmatpush.msra.mxu0 0.0
    %821 = vmatpush.msra.mxu0 0.0
    %822 = vmatpush.msra.mxu0 0.0
    %v823 = vand.u32 %v128, 4294901760
    %824 = vmatpush.msra.mxu0 %v823
    %v825 = vand.u32 %v119, 4294901760
    %826 = vmatpush.msra.mxu0 %v825
    %v827 = vand.u32 %v110, 4294901760
    %828 = vmatpush.msra.mxu0 %v827
    %v829 = vand.u32 %v101, 4294901760
    %830 = vmatpush.msra.mxu0 %v829
    %v831 = vand.u32 %v158, 4294901760
    %v832 = vsub.f32 %v158, %v831
    %v833 = vand.u32 %v832, 4294901760
    %v834 = vsub.f32 %v832, %v833
    %v835 = vand.u32 %v834, 4294901760
    %836 = vmatmul.f32.gmra.mxu0 %v835
    %v837 = vpop.f32.mrf.mxu0
    %v838 = vadd.f32 %v141, %v837
    %v839 = vand.u32 %v161, 4294901760
    %v840 = vsub.f32 %v161, %v839
    %v841 = vand.u32 %v840, 4294901760
    %v842 = vsub.f32 %v840, %v841
    %v843 = vand.u32 %v842, 4294901760
    %844 = vmatmul.f32.gmra.mxu0 %v843
    %v845 = vpop.f32.mrf.mxu0
    %v846 = vadd.f32 %v141, %v845
    %847 = vdwg.mxu0
    %848 = vmatpush.msra.mxu0 0.0
    %849 = vmatpush.msra.mxu0 0.0
    %850 = vmatpush.msra.mxu0 0.0
    %851 = vmatpush.msra.mxu0 0.0
    %852 = vmatpush.msra.mxu0 0.0
    %853 = vmatpush.msra.mxu0 0.0
    %854 = vmatpush.msra.mxu0 0.0
    %855 = vmatpush.msra.mxu0 0.0
    %856 = vmatpush.msra.mxu0 0.0
    %857 = vmatpush.msra.mxu0 0.0
    %858 = vmatpush.msra.mxu0 0.0
    %859 = vmatpush.msra.mxu0 0.0
    %v860 = vand.u32 %v128, 4294901760
    %v861 = vsub.f32 %v128, %v860
    %v862 = vand.u32 %v861, 4294901760
    %v863 = vsub.f32 %v861, %v862
    %v864 = vand.u32 %v863, 4294901760
    %865 = vmatpush.msra.mxu0 %v864
    %v866 = vand.u32 %v119, 4294901760
    %v867 = vsub.f32 %v119, %v866
    %v868 = vand.u32 %v867, 4294901760
    %v869 = vsub.f32 %v867, %v868
    %v870 = vand.u32 %v869, 4294901760
    %871 = vmatpush.msra.mxu0 %v870
    %v872 = vand.u32 %v110, 4294901760
    %v873 = vsub.f32 %v110, %v872
    %v874 = vand.u32 %v873, 4294901760
    %v875 = vsub.f32 %v873, %v874
    %v876 = vand.u32 %v875, 4294901760
    %877 = vmatpush.msra.mxu0 %v876
    %v878 = vand.u32 %v101, 4294901760
    %v879 = vsub.f32 %v101, %v878
    %v880 = vand.u32 %v879, 4294901760
    %v881 = vsub.f32 %v879, %v880
    %v882 = vand.u32 %v881, 4294901760
    %883 = vmatpush.msra.mxu0 %v882
    %v884 = vand.u32 %v158, 4294901760
    %885 = vmatmul.f32.gmra.mxu0 %v884
    %v886 = vpop.f32.mrf.mxu0
    %v887 = vadd.f32 %v838, %v886
    %v888 = vand.u32 %v161, 4294901760
    %889 = vmatmul.f32.gmra.mxu0 %v888
    %v890 = vpop.f32.mrf.mxu0
    %v891 = vadd.f32 %v846, %v890
    %892 = vdwg.mxu0
    %893 = vmatpush.msra.mxu0 0.0
    %894 = vmatpush.msra.mxu0 0.0
    %895 = vmatpush.msra.mxu0 0.0
    %896 = vmatpush.msra.mxu0 0.0
    %897 = vmatpush.msra.mxu0 0.0
    %898 = vmatpush.msra.mxu0 0.0
    %899 = vmatpush.msra.mxu0 0.0
    %900 = vmatpush.msra.mxu0 0.0
    %901 = vmatpush.msra.mxu0 0.0
    %902 = vmatpush.msra.mxu0 0.0
    %903 = vmatpush.msra.mxu0 0.0
    %904 = vmatpush.msra.mxu0 0.0
    %v905 = vand.u32 %v128, 4294901760
    %v906 = vsub.f32 %v128, %v905
    %907 = vmatpush.msra.mxu0 %v906
    %v908 = vand.u32 %v119, 4294901760
    %v909 = vsub.f32 %v119, %v908
    %910 = vmatpush.msra.mxu0 %v909
    %v911 = vand.u32 %v110, 4294901760
    %v912 = vsub.f32 %v110, %v911
    %913 = vmatpush.msra.mxu0 %v912
    %v914 = vand.u32 %v101, 4294901760
    %v915 = vsub.f32 %v101, %v914
    %916 = vmatpush.msra.mxu0 %v915
    %v917 = vand.u32 %v158, 4294901760
    %v918 = vsub.f32 %v158, %v917
    %919 = vmatmul.f32.gmra.mxu0 %v918
    %v920 = vpop.f32.mrf.mxu0
    %v921 = vadd.f32 %v887, %v920
    %v922 = vand.u32 %v161, 4294901760
    %v923 = vsub.f32 %v161, %v922
    %924 = vmatmul.f32.gmra.mxu0 %v923
    %v925 = vpop.f32.mrf.mxu0
    %v926 = vadd.f32 %v891, %v925
    %927 = vdwg.mxu0
    %928 = vmatpush.msra.mxu0 0.0
    %929 = vmatpush.msra.mxu0 0.0
    %930 = vmatpush.msra.mxu0 0.0
    %931 = vmatpush.msra.mxu0 0.0
    %932 = vmatpush.msra.mxu0 0.0
    %933 = vmatpush.msra.mxu0 0.0
    %934 = vmatpush.msra.mxu0 0.0
    %935 = vmatpush.msra.mxu0 0.0
    %936 = vmatpush.msra.mxu0 0.0
    %937 = vmatpush.msra.mxu0 0.0
    %938 = vmatpush.msra.mxu0 0.0
    %939 = vmatpush.msra.mxu0 0.0
    %v940 = vand.u32 %v128, 4294901760
    %941 = vmatpush.msra.mxu0 %v940
    %v942 = vand.u32 %v119, 4294901760
    %943 = vmatpush.msra.mxu0 %v942
    %v944 = vand.u32 %v110, 4294901760
    %945 = vmatpush.msra.mxu0 %v944
    %v946 = vand.u32 %v101, 4294901760
    %947 = vmatpush.msra.mxu0 %v946
    %v948 = vand.u32 %v158, 4294901760
    %v949 = vsub.f32 %v158, %v948
    %v950 = vand.u32 %v949, 4294901760
    %951 = vmatmul.f32.gmra.mxu0 %v950
    %v952 = vpop.f32.mrf.mxu0
    %v953 = vadd.f32 %v921, %v952
    %v954 = vand.u32 %v161, 4294901760
    %v955 = vsub.f32 %v161, %v954
    %v956 = vand.u32 %v955, 4294901760
    %957 = vmatmul.f32.gmra.mxu0 %v956
    %v958 = vpop.f32.mrf.mxu0
    %v959 = vadd.f32 %v926, %v958
    %960 = vdwg.mxu0
    %961 = vmatpush.msra.mxu0 0.0
    %962 = vmatpush.msra.mxu0 0.0
    %963 = vmatpush.msra.mxu0 0.0
    %964 = vmatpush.msra.mxu0 0.0
    %965 = vmatpush.msra.mxu0 0.0
    %966 = vmatpush.msra.mxu0 0.0
    %967 = vmatpush.msra.mxu0 0.0
    %968 = vmatpush.msra.mxu0 0.0
    %969 = vmatpush.msra.mxu0 0.0
    %970 = vmatpush.msra.mxu0 0.0
    %971 = vmatpush.msra.mxu0 0.0
    %972 = vmatpush.msra.mxu0 0.0
    %v973 = vand.u32 %v128, 4294901760
    %v974 = vsub.f32 %v128, %v973
    %v975 = vand.u32 %v974, 4294901760
    %976 = vmatpush.msra.mxu0 %v975
    %v977 = vand.u32 %v119, 4294901760
    %v978 = vsub.f32 %v119, %v977
    %v979 = vand.u32 %v978, 4294901760
    %980 = vmatpush.msra.mxu0 %v979
    %v981 = vand.u32 %v110, 4294901760
    %v982 = vsub.f32 %v110, %v981
    %v983 = vand.u32 %v982, 4294901760
    %984 = vmatpush.msra.mxu0 %v983
    %v985 = vand.u32 %v101, 4294901760
    %v986 = vsub.f32 %v101, %v985
    %v987 = vand.u32 %v986, 4294901760
    %988 = vmatpush.msra.mxu0 %v987
    %v989 = vand.u32 %v158, 4294901760
    %990 = vmatmul.f32.gmra.mxu0 %v989
    %v991 = vpop.f32.mrf.mxu0
    %v992 = vadd.f32 %v953, %v991
    %v993 = vand.u32 %v161, 4294901760
    %994 = vmatmul.f32.gmra.mxu0 %v993
    %v995 = vpop.f32.mrf.mxu0
    %v996 = vadd.f32 %v959, %v995
    %997 = vdwg.mxu0
    %998 = vmatpush.msra.mxu0 0.0
    %999 = vmatpush.msra.mxu0 0.0
    %1000 = vmatpush.msra.mxu0 0.0
    %1001 = vmatpush.msra.mxu0 0.0
    %1002 = vmatpush.msra.mxu0 0.0
    %1003 = vmatpush.msra.mxu0 0.0
    %1004 = vmatpush.msra.mxu0 0.0
    %1005 = vmatpush.msra.mxu0 0.0
    %1006 = vmatpush.msra.mxu0 0.0
    %1007 = vmatpush.msra.mxu0 0.0
    %1008 = vmatpush.msra.mxu0 0.0
    %1009 = vmatpush.msra.mxu0 0.0
    %v1010 = vand.u32 %v128, 4294901760
    %1011 = vmatpush.msra.mxu0 %v1010
    %v1012 = vand.u32 %v119, 4294901760
    %1013 = vmatpush.msra.mxu0 %v1012
    %v1014 = vand.u32 %v110, 4294901760
    %1015 = vmatpush.msra.mxu0 %v1014
    %v1016 = vand.u32 %v101, 4294901760
    %1017 = vmatpush.msra.mxu0 %v1016
    %v1018 = vand.u32 %v158, 4294901760
    %1019 = vmatmul.f32.gmra.mxu0 %v1018
    %v1020 = vpop.f32.mrf.mxu0
    %v1021 = vadd.f32 %v992, %v1020
    %v1022 = vand.u32 %v161, 4294901760
    %1023 = vmatmul.f32.gmra.mxu0 %v1022
    %v1024 = vpop.f32.mrf.mxu0
    %v1025 = vadd.f32 %v996, %v1024
    %1026 = vdwg.mxu0
    %1027 = vmatpush.msra.mxu0 0.0
    %1028 = vmatpush.msra.mxu0 0.0
    %1029 = vmatpush.msra.mxu0 0.0
    %1030 = vmatpush.msra.mxu0 0.0
    %1031 = vmatpush.msra.mxu0 0.0
    %1032 = vmatpush.msra.mxu0 0.0
    %1033 = vmatpush.msra.mxu0 0.0
    %1034 = vmatpush.msra.mxu0 0.0
    %1035 = vmatpush.msra.mxu0 0.0
    %1036 = vmatpush.msra.mxu0 0.0
    %1037 = vmatpush.msra.mxu0 0.0
    %1038 = vmatpush.msra.mxu0 0.0
    %v1039 = vand.u32 %v129, 4294901760
    %1040 = vmatpush.msra.mxu0 %v1039
    %v1041 = vand.u32 %v120, 4294901760
    %1042 = vmatpush.msra.mxu0 %v1041
    %v1043 = vand.u32 %v111, 4294901760
    %1044 = vmatpush.msra.mxu0 %v1043
    %v1045 = vand.u32 %v102, 4294901760
    %1046 = vmatpush.msra.mxu0 %v1045
    %v1047 = vand.u32 %v158, 4294901760
    %v1048 = vsub.f32 %v158, %v1047
    %v1049 = vand.u32 %v1048, 4294901760
    %v1050 = vsub.f32 %v1048, %v1049
    %v1051 = vand.u32 %v1050, 4294901760
    %1052 = vmatmul.f32.gmra.mxu0 %v1051
    %v1053 = vpop.f32.mrf.mxu0
    %v1054 = vadd.f32 %v142, %v1053
    %v1055 = vand.u32 %v161, 4294901760
    %v1056 = vsub.f32 %v161, %v1055
    %v1057 = vand.u32 %v1056, 4294901760
    %v1058 = vsub.f32 %v1056, %v1057
    %v1059 = vand.u32 %v1058, 4294901760
    %1060 = vmatmul.f32.gmra.mxu0 %v1059
    %v1061 = vpop.f32.mrf.mxu0
    %v1062 = vadd.f32 %v142, %v1061
    %1063 = vdwg.mxu0
    %1064 = vmatpush.msra.mxu0 0.0
    %1065 = vmatpush.msra.mxu0 0.0
    %1066 = vmatpush.msra.mxu0 0.0
    %1067 = vmatpush.msra.mxu0 0.0
    %1068 = vmatpush.msra.mxu0 0.0
    %1069 = vmatpush.msra.mxu0 0.0
    %1070 = vmatpush.msra.mxu0 0.0
    %1071 = vmatpush.msra.mxu0 0.0
    %1072 = vmatpush.msra.mxu0 0.0
    %1073 = vmatpush.msra.mxu0 0.0
    %1074 = vmatpush.msra.mxu0 0.0
    %1075 = vmatpush.msra.mxu0 0.0
    %v1076 = vand.u32 %v129, 4294901760
    %v1077 = vsub.f32 %v129, %v1076
    %v1078 = vand.u32 %v1077, 4294901760
    %v1079 = vsub.f32 %v1077, %v1078
    %v1080 = vand.u32 %v1079, 4294901760
    %1081 = vmatpush.msra.mxu0 %v1080
    %v1082 = vand.u32 %v120, 4294901760
    %v1083 = vsub.f32 %v120, %v1082
    %v1084 = vand.u32 %v1083, 4294901760
    %v1085 = vsub.f32 %v1083, %v1084
    %v1086 = vand.u32 %v1085, 4294901760
    %1087 = vmatpush.msra.mxu0 %v1086
    %v1088 = vand.u32 %v111, 4294901760
    %v1089 = vsub.f32 %v111, %v1088
    %v1090 = vand.u32 %v1089, 4294901760
    %v1091 = vsub.f32 %v1089, %v1090
    %v1092 = vand.u32 %v1091, 4294901760
    %1093 = vmatpush.msra.mxu0 %v1092
    %v1094 = vand.u32 %v102, 4294901760
    %v1095 = vsub.f32 %v102, %v1094
    %v1096 = vand.u32 %v1095, 4294901760
    %v1097 = vsub.f32 %v1095, %v1096
    %v1098 = vand.u32 %v1097, 4294901760
    %1099 = vmatpush.msra.mxu0 %v1098
    %v1100 = vand.u32 %v158, 4294901760
    %1101 = vmatmul.f32.gmra.mxu0 %v1100
    %v1102 = vpop.f32.mrf.mxu0
    %v1103 = vadd.f32 %v1054, %v1102
    %v1104 = vand.u32 %v161, 4294901760
    %1105 = vmatmul.f32.gmra.mxu0 %v1104
    %v1106 = vpop.f32.mrf.mxu0
    %v1107 = vadd.f32 %v1062, %v1106
    %1108 = vdwg.mxu0
    %1109 = vmatpush.msra.mxu0 0.0
    %1110 = vmatpush.msra.mxu0 0.0
    %1111 = vmatpush.msra.mxu0 0.0
    %1112 = vmatpush.msra.mxu0 0.0
    %1113 = vmatpush.msra.mxu0 0.0
    %1114 = vmatpush.msra.mxu0 0.0
    %1115 = vmatpush.msra.mxu0 0.0
    %1116 = vmatpush.msra.mxu0 0.0
    %1117 = vmatpush.msra.mxu0 0.0
    %1118 = vmatpush.msra.mxu0 0.0
    %1119 = vmatpush.msra.mxu0 0.0
    %1120 = vmatpush.msra.mxu0 0.0
    %v1121 = vand.u32 %v129, 4294901760
    %v1122 = vsub.f32 %v129, %v1121
    %1123 = vmatpush.msra.mxu0 %v1122
    %v1124 = vand.u32 %v120, 4294901760
    %v1125 = vsub.f32 %v120, %v1124
    %1126 = vmatpush.msra.mxu0 %v1125
    %v1127 = vand.u32 %v111, 4294901760
    %v1128 = vsub.f32 %v111, %v1127
    %1129 = vmatpush.msra.mxu0 %v1128
    %v1130 = vand.u32 %v102, 4294901760
    %v1131 = vsub.f32 %v102, %v1130
    %1132 = vmatpush.msra.mxu0 %v1131
    %v1133 = vand.u32 %v158, 4294901760
    %v1134 = vsub.f32 %v158, %v1133
    %1135 = vmatmul.f32.gmra.mxu0 %v1134
    %v1136 = vpop.f32.mrf.mxu0
    %v1137 = vadd.f32 %v1103, %v1136
    %v1138 = vand.u32 %v161, 4294901760
    %v1139 = vsub.f32 %v161, %v1138
    %1140 = vmatmul.f32.gmra.mxu0 %v1139
    %v1141 = vpop.f32.mrf.mxu0
    %v1142 = vadd.f32 %v1107, %v1141
    %1143 = vdwg.mxu0
    %1144 = vmatpush.msra.mxu0 0.0
    %1145 = vmatpush.msra.mxu0 0.0
    %1146 = vmatpush.msra.mxu0 0.0
    %1147 = vmatpush.msra.mxu0 0.0
    %1148 = vmatpush.msra.mxu0 0.0
    %1149 = vmatpush.msra.mxu0 0.0
    %1150 = vmatpush.msra.mxu0 0.0
    %1151 = vmatpush.msra.mxu0 0.0
    %1152 = vmatpush.msra.mxu0 0.0
    %1153 = vmatpush.msra.mxu0 0.0
    %1154 = vmatpush.msra.mxu0 0.0
    %1155 = vmatpush.msra.mxu0 0.0
    %v1156 = vand.u32 %v129, 4294901760
    %1157 = vmatpush.msra.mxu0 %v1156
    %v1158 = vand.u32 %v120, 4294901760
    %1159 = vmatpush.msra.mxu0 %v1158
    %v1160 = vand.u32 %v111, 4294901760
    %1161 = vmatpush.msra.mxu0 %v1160
    %v1162 = vand.u32 %v102, 4294901760
    %1163 = vmatpush.msra.mxu0 %v1162
    %v1164 = vand.u32 %v158, 4294901760
    %v1165 = vsub.f32 %v158, %v1164
    %v1166 = vand.u32 %v1165, 4294901760
    %1167 = vmatmul.f32.gmra.mxu0 %v1166
    %v1168 = vpop.f32.mrf.mxu0
    %v1169 = vadd.f32 %v1137, %v1168
    %v1170 = vand.u32 %v161, 4294901760
    %v1171 = vsub.f32 %v161, %v1170
    %v1172 = vand.u32 %v1171, 4294901760
    %1173 = vmatmul.f32.gmra.mxu0 %v1172
    %v1174 = vpop.f32.mrf.mxu0
    %v1175 = vadd.f32 %v1142, %v1174
    %1176 = vdwg.mxu0
    %1177 = vmatpush.msra.mxu0 0.0
    %1178 = vmatpush.msra.mxu0 0.0
    %1179 = vmatpush.msra.mxu0 0.0
    %1180 = vmatpush.msra.mxu0 0.0
    %1181 = vmatpush.msra.mxu0 0.0
    %1182 = vmatpush.msra.mxu0 0.0
    %1183 = vmatpush.msra.mxu0 0.0
    %1184 = vmatpush.msra.mxu0 0.0
    %1185 = vmatpush.msra.mxu0 0.0
    %1186 = vmatpush.msra.mxu0 0.0
    %1187 = vmatpush.msra.mxu0 0.0
    %1188 = vmatpush.msra.mxu0 0.0
    %v1189 = vand.u32 %v129, 4294901760
    %v1190 = vsub.f32 %v129, %v1189
    %v1191 = vand.u32 %v1190, 4294901760
    %1192 = vmatpush.msra.mxu0 %v1191
    %v1193 = vand.u32 %v120, 4294901760
    %v1194 = vsub.f32 %v120, %v1193
    %v1195 = vand.u32 %v1194, 4294901760
    %1196 = vmatpush.msra.mxu0 %v1195
    %v1197 = vand.u32 %v111, 4294901760
    %v1198 = vsub.f32 %v111, %v1197
    %v1199 = vand.u32 %v1198, 4294901760
    %1200 = vmatpush.msra.mxu0 %v1199
    %v1201 = vand.u32 %v102, 4294901760
    %v1202 = vsub.f32 %v102, %v1201
    %v1203 = vand.u32 %v1202, 4294901760
    %1204 = vmatpush.msra.mxu0 %v1203
    %v1205 = vand.u32 %v158, 4294901760
    %1206 = vmatmul.f32.gmra.mxu0 %v1205
    %v1207 = vpop.f32.mrf.mxu0
    %v1208 = vadd.f32 %v1169, %v1207
    %v1209 = vand.u32 %v161, 4294901760
    %1210 = vmatmul.f32.gmra.mxu0 %v1209
    %v1211 = vpop.f32.mrf.mxu0
    %v1212 = vadd.f32 %v1175, %v1211
    %1213 = vdwg.mxu0
    %1214 = vmatpush.msra.mxu0 0.0
    %1215 = vmatpush.msra.mxu0 0.0
    %1216 = vmatpush.msra.mxu0 0.0
    %1217 = vmatpush.msra.mxu0 0.0
    %1218 = vmatpush.msra.mxu0 0.0
    %1219 = vmatpush.msra.mxu0 0.0
    %1220 = vmatpush.msra.mxu0 0.0
    %1221 = vmatpush.msra.mxu0 0.0
    %1222 = vmatpush.msra.mxu0 0.0
    %1223 = vmatpush.msra.mxu0 0.0
    %1224 = vmatpush.msra.mxu0 0.0
    %1225 = vmatpush.msra.mxu0 0.0
    %v1226 = vand.u32 %v129, 4294901760
    %1227 = vmatpush.msra.mxu0 %v1226
    %v1228 = vand.u32 %v120, 4294901760
    %1229 = vmatpush.msra.mxu0 %v1228
    %v1230 = vand.u32 %v111, 4294901760
    %1231 = vmatpush.msra.mxu0 %v1230
    %v1232 = vand.u32 %v102, 4294901760
    %1233 = vmatpush.msra.mxu0 %v1232
    %v1234 = vand.u32 %v158, 4294901760
    %1235 = vmatmul.f32.gmra.mxu0 %v1234
    %v1236 = vpop.f32.mrf.mxu0
    %v1237 = vadd.f32 %v1208, %v1236
    %v1238 = vand.u32 %v161, 4294901760
    %1239 = vmatmul.f32.gmra.mxu0 %v1238
    %v1240 = vpop.f32.mrf.mxu0
    %v1241 = vadd.f32 %v1212, %v1240
    %1242 = vdwg.mxu0
    %1243 = vmatpush.msra.mxu0 0.0
    %1244 = vmatpush.msra.mxu0 0.0
    %1245 = vmatpush.msra.mxu0 0.0
    %1246 = vmatpush.msra.mxu0 0.0
    %1247 = vmatpush.msra.mxu0 0.0
    %1248 = vmatpush.msra.mxu0 0.0
    %1249 = vmatpush.msra.mxu0 0.0
    %1250 = vmatpush.msra.mxu0 0.0
    %1251 = vmatpush.msra.mxu0 0.0
    %1252 = vmatpush.msra.mxu0 0.0
    %1253 = vmatpush.msra.mxu0 0.0
    %1254 = vmatpush.msra.mxu0 0.0
    %v1255 = vand.u32 %v130, 4294901760
    %1256 = vmatpush.msra.mxu0 %v1255
    %v1257 = vand.u32 %v121, 4294901760
    %1258 = vmatpush.msra.mxu0 %v1257
    %v1259 = vand.u32 %v112, 4294901760
    %1260 = vmatpush.msra.mxu0 %v1259
    %v1261 = vand.u32 %v103, 4294901760
    %1262 = vmatpush.msra.mxu0 %v1261
    %v1263 = vand.u32 %v158, 4294901760
    %v1264 = vsub.f32 %v158, %v1263
    %v1265 = vand.u32 %v1264, 4294901760
    %v1266 = vsub.f32 %v1264, %v1265
    %v1267 = vand.u32 %v1266, 4294901760
    %1268 = vmatmul.f32.gmra.mxu0 %v1267
    %v1269 = vpop.f32.mrf.mxu0
    %v1270 = vadd.f32 %v143, %v1269
    %v1271 = vand.u32 %v161, 4294901760
    %v1272 = vsub.f32 %v161, %v1271
    %v1273 = vand.u32 %v1272, 4294901760
    %v1274 = vsub.f32 %v1272, %v1273
    %v1275 = vand.u32 %v1274, 4294901760
    %1276 = vmatmul.f32.gmra.mxu0 %v1275
    %v1277 = vpop.f32.mrf.mxu0
    %v1278 = vadd.f32 %v143, %v1277
    %1279 = vdwg.mxu0
    %1280 = vmatpush.msra.mxu0 0.0
    %1281 = vmatpush.msra.mxu0 0.0
    %1282 = vmatpush.msra.mxu0 0.0
    %1283 = vmatpush.msra.mxu0 0.0
    %1284 = vmatpush.msra.mxu0 0.0
    %1285 = vmatpush.msra.mxu0 0.0
    %1286 = vmatpush.msra.mxu0 0.0
    %1287 = vmatpush.msra.mxu0 0.0
    %1288 = vmatpush.msra.mxu0 0.0
    %1289 = vmatpush.msra.mxu0 0.0
    %1290 = vmatpush.msra.mxu0 0.0
    %1291 = vmatpush.msra.mxu0 0.0
    %v1292 = vand.u32 %v130, 4294901760
    %v1293 = vsub.f32 %v130, %v1292
    %v1294 = vand.u32 %v1293, 4294901760
    %v1295 = vsub.f32 %v1293, %v1294
    %v1296 = vand.u32 %v1295, 4294901760
    %1297 = vmatpush.msra.mxu0 %v1296
    %v1298 = vand.u32 %v121, 4294901760
    %v1299 = vsub.f32 %v121, %v1298
    %v1300 = vand.u32 %v1299, 4294901760
    %v1301 = vsub.f32 %v1299, %v1300
    %v1302 = vand.u32 %v1301, 4294901760
    %1303 = vmatpush.msra.mxu0 %v1302
    %v1304 = vand.u32 %v112, 4294901760
    %v1305 = vsub.f32 %v112, %v1304
    %v1306 = vand.u32 %v1305, 4294901760
    %v1307 = vsub.f32 %v1305, %v1306
    %v1308 = vand.u32 %v1307, 4294901760
    %1309 = vmatpush.msra.mxu0 %v1308
    %v1310 = vand.u32 %v103, 4294901760
    %v1311 = vsub.f32 %v103, %v1310
    %v1312 = vand.u32 %v1311, 4294901760
    %v1313 = vsub.f32 %v1311, %v1312
    %v1314 = vand.u32 %v1313, 4294901760
    %1315 = vmatpush.msra.mxu0 %v1314
    %v1316 = vand.u32 %v158, 4294901760
    %1317 = vmatmul.f32.gmra.mxu0 %v1316
    %v1318 = vpop.f32.mrf.mxu0
    %v1319 = vadd.f32 %v1270, %v1318
    %v1320 = vand.u32 %v161, 4294901760
    %1321 = vmatmul.f32.gmra.mxu0 %v1320
    %v1322 = vpop.f32.mrf.mxu0
    %v1323 = vadd.f32 %v1278, %v1322
    %1324 = vdwg.mxu0
    %1325 = vmatpush.msra.mxu0 0.0
    %1326 = vmatpush.msra.mxu0 0.0
    %1327 = vmatpush.msra.mxu0 0.0
    %1328 = vmatpush.msra.mxu0 0.0
    %1329 = vmatpush.msra.mxu0 0.0
    %1330 = vmatpush.msra.mxu0 0.0
    %1331 = vmatpush.msra.mxu0 0.0
    %1332 = vmatpush.msra.mxu0 0.0
    %1333 = vmatpush.msra.mxu0 0.0
    %1334 = vmatpush.msra.mxu0 0.0
    %1335 = vmatpush.msra.mxu0 0.0
    %1336 = vmatpush.msra.mxu0 0.0
    %v1337 = vand.u32 %v130, 4294901760
    %v1338 = vsub.f32 %v130, %v1337
    %1339 = vmatpush.msra.mxu0 %v1338
    %v1340 = vand.u32 %v121, 4294901760
    %v1341 = vsub.f32 %v121, %v1340
    %1342 = vmatpush.msra.mxu0 %v1341
    %v1343 = vand.u32 %v112, 4294901760
    %v1344 = vsub.f32 %v112, %v1343
    %1345 = vmatpush.msra.mxu0 %v1344
    %v1346 = vand.u32 %v103, 4294901760
    %v1347 = vsub.f32 %v103, %v1346
    %1348 = vmatpush.msra.mxu0 %v1347
    %v1349 = vand.u32 %v158, 4294901760
    %v1350 = vsub.f32 %v158, %v1349
    %1351 = vmatmul.f32.gmra.mxu0 %v1350
    %v1352 = vpop.f32.mrf.mxu0
    %v1353 = vadd.f32 %v1319, %v1352
    %v1354 = vand.u32 %v161, 4294901760
    %v1355 = vsub.f32 %v161, %v1354
    %1356 = vmatmul.f32.gmra.mxu0 %v1355
    %v1357 = vpop.f32.mrf.mxu0
    %v1358 = vadd.f32 %v1323, %v1357
    %1359 = vdwg.mxu0
    %1360 = vmatpush.msra.mxu0 0.0
    %1361 = vmatpush.msra.mxu0 0.0
    %1362 = vmatpush.msra.mxu0 0.0
    %1363 = vmatpush.msra.mxu0 0.0
    %1364 = vmatpush.msra.mxu0 0.0
    %1365 = vmatpush.msra.mxu0 0.0
    %1366 = vmatpush.msra.mxu0 0.0
    %1367 = vmatpush.msra.mxu0 0.0
    %1368 = vmatpush.msra.mxu0 0.0
    %1369 = vmatpush.msra.mxu0 0.0
    %1370 = vmatpush.msra.mxu0 0.0
    %1371 = vmatpush.msra.mxu0 0.0
    %v1372 = vand.u32 %v130, 4294901760
    %1373 = vmatpush.msra.mxu0 %v1372
    %v1374 = vand.u32 %v121, 4294901760
    %1375 = vmatpush.msra.mxu0 %v1374
    %v1376 = vand.u32 %v112, 4294901760
    %1377 = vmatpush.msra.mxu0 %v1376
    %v1378 = vand.u32 %v103, 4294901760
    %1379 = vmatpush.msra.mxu0 %v1378
    %v1380 = vand.u32 %v158, 4294901760
    %v1381 = vsub.f32 %v158, %v1380
    %v1382 = vand.u32 %v1381, 4294901760
    %1383 = vmatmul.f32.gmra.mxu0 %v1382
    %v1384 = vpop.f32.mrf.mxu0
    %v1385 = vadd.f32 %v1353, %v1384
    %v1386 = vand.u32 %v161, 4294901760
    %v1387 = vsub.f32 %v161, %v1386
    %v1388 = vand.u32 %v1387, 4294901760
    %1389 = vmatmul.f32.gmra.mxu0 %v1388
    %v1390 = vpop.f32.mrf.mxu0
    %v1391 = vadd.f32 %v1358, %v1390
    %1392 = vdwg.mxu0
    %1393 = vmatpush.msra.mxu0 0.0
    %1394 = vmatpush.msra.mxu0 0.0
    %1395 = vmatpush.msra.mxu0 0.0
    %1396 = vmatpush.msra.mxu0 0.0
    %1397 = vmatpush.msra.mxu0 0.0
    %1398 = vmatpush.msra.mxu0 0.0
    %1399 = vmatpush.msra.mxu0 0.0
    %1400 = vmatpush.msra.mxu0 0.0
    %1401 = vmatpush.msra.mxu0 0.0
    %1402 = vmatpush.msra.mxu0 0.0
    %1403 = vmatpush.msra.mxu0 0.0
    %1404 = vmatpush.msra.mxu0 0.0
    %v1405 = vand.u32 %v130, 4294901760
    %v1406 = vsub.f32 %v130, %v1405
    %v1407 = vand.u32 %v1406, 4294901760
    %1408 = vmatpush.msra.mxu0 %v1407
    %v1409 = vand.u32 %v121, 4294901760
    %v1410 = vsub.f32 %v121, %v1409
    %v1411 = vand.u32 %v1410, 4294901760
    %1412 = vmatpush.msra.mxu0 %v1411
    %v1413 = vand.u32 %v112, 4294901760
    %v1414 = vsub.f32 %v112, %v1413
    %v1415 = vand.u32 %v1414, 4294901760
    %1416 = vmatpush.msra.mxu0 %v1415
    %v1417 = vand.u32 %v103, 4294901760
    %v1418 = vsub.f32 %v103, %v1417
    %v1419 = vand.u32 %v1418, 4294901760
    %1420 = vmatpush.msra.mxu0 %v1419
    %v1421 = vand.u32 %v158, 4294901760
    %1422 = vmatmul.f32.gmra.mxu0 %v1421
    %v1423 = vpop.f32.mrf.mxu0
    %v1424 = vadd.f32 %v1385, %v1423
    %v1425 = vand.u32 %v161, 4294901760
    %1426 = vmatmul.f32.gmra.mxu0 %v1425
    %v1427 = vpop.f32.mrf.mxu0
    %v1428 = vadd.f32 %v1391, %v1427
    %1429 = vdwg.mxu0
    %1430 = vmatpush.msra.mxu0 0.0
    %1431 = vmatpush.msra.mxu0 0.0
    %1432 = vmatpush.msra.mxu0 0.0
    %1433 = vmatpush.msra.mxu0 0.0
    %1434 = vmatpush.msra.mxu0 0.0
    %1435 = vmatpush.msra.mxu0 0.0
    %1436 = vmatpush.msra.mxu0 0.0
    %1437 = vmatpush.msra.mxu0 0.0
    %1438 = vmatpush.msra.mxu0 0.0
    %1439 = vmatpush.msra.mxu0 0.0
    %1440 = vmatpush.msra.mxu0 0.0
    %1441 = vmatpush.msra.mxu0 0.0
    %v1442 = vand.u32 %v130, 4294901760
    %1443 = vmatpush.msra.mxu0 %v1442
    %v1444 = vand.u32 %v121, 4294901760
    %1445 = vmatpush.msra.mxu0 %v1444
    %v1446 = vand.u32 %v112, 4294901760
    %1447 = vmatpush.msra.mxu0 %v1446
    %v1448 = vand.u32 %v103, 4294901760
    %1449 = vmatpush.msra.mxu0 %v1448
    %v1450 = vand.u32 %v158, 4294901760
    %1451 = vmatmul.f32.gmra.mxu0 %v1450
    %v1452 = vpop.f32.mrf.mxu0
    %v1453 = vadd.f32 %v1424, %v1452
    %v1454 = vand.u32 %v161, 4294901760
    %1455 = vmatmul.f32.gmra.mxu0 %v1454
    %v1456 = vpop.f32.mrf.mxu0
    %v1457 = vadd.f32 %v1428, %v1456
    %1458 = vdwg.mxu0
    %1459 = vmatpush.msra.mxu0 0.0
    %1460 = vmatpush.msra.mxu0 0.0
    %1461 = vmatpush.msra.mxu0 0.0
    %1462 = vmatpush.msra.mxu0 0.0
    %1463 = vmatpush.msra.mxu0 0.0
    %1464 = vmatpush.msra.mxu0 0.0
    %1465 = vmatpush.msra.mxu0 0.0
    %1466 = vmatpush.msra.mxu0 0.0
    %1467 = vmatpush.msra.mxu0 0.0
    %1468 = vmatpush.msra.mxu0 0.0
    %1469 = vmatpush.msra.mxu0 0.0
    %1470 = vmatpush.msra.mxu0 0.0
    %v1471 = vand.u32 %v131, 4294901760
    %1472 = vmatpush.msra.mxu0 %v1471
    %v1473 = vand.u32 %v122, 4294901760
    %1474 = vmatpush.msra.mxu0 %v1473
    %v1475 = vand.u32 %v113, 4294901760
    %1476 = vmatpush.msra.mxu0 %v1475
    %v1477 = vand.u32 %v104, 4294901760
    %1478 = vmatpush.msra.mxu0 %v1477
    %v1479 = vand.u32 %v158, 4294901760
    %v1480 = vsub.f32 %v158, %v1479
    %v1481 = vand.u32 %v1480, 4294901760
    %v1482 = vsub.f32 %v1480, %v1481
    %v1483 = vand.u32 %v1482, 4294901760
    %1484 = vmatmul.f32.gmra.mxu0 %v1483
    %v1485 = vpop.f32.mrf.mxu0
    %v1486 = vadd.f32 %v144, %v1485
    %v1487 = vand.u32 %v161, 4294901760
    %v1488 = vsub.f32 %v161, %v1487
    %v1489 = vand.u32 %v1488, 4294901760
    %v1490 = vsub.f32 %v1488, %v1489
    %v1491 = vand.u32 %v1490, 4294901760
    %1492 = vmatmul.f32.gmra.mxu0 %v1491
    %v1493 = vpop.f32.mrf.mxu0
    %v1494 = vadd.f32 %v144, %v1493
    %1495 = vdwg.mxu0
    %1496 = vmatpush.msra.mxu0 0.0
    %1497 = vmatpush.msra.mxu0 0.0
    %1498 = vmatpush.msra.mxu0 0.0
    %1499 = vmatpush.msra.mxu0 0.0
    %1500 = vmatpush.msra.mxu0 0.0
    %1501 = vmatpush.msra.mxu0 0.0
    %1502 = vmatpush.msra.mxu0 0.0
    %1503 = vmatpush.msra.mxu0 0.0
    %1504 = vmatpush.msra.mxu0 0.0
    %1505 = vmatpush.msra.mxu0 0.0
    %1506 = vmatpush.msra.mxu0 0.0
    %1507 = vmatpush.msra.mxu0 0.0
    %v1508 = vand.u32 %v131, 4294901760
    %v1509 = vsub.f32 %v131, %v1508
    %v1510 = vand.u32 %v1509, 4294901760
    %v1511 = vsub.f32 %v1509, %v1510
    %v1512 = vand.u32 %v1511, 4294901760
    %1513 = vmatpush.msra.mxu0 %v1512
    %v1514 = vand.u32 %v122, 4294901760
    %v1515 = vsub.f32 %v122, %v1514
    %v1516 = vand.u32 %v1515, 4294901760
    %v1517 = vsub.f32 %v1515, %v1516
    %v1518 = vand.u32 %v1517, 4294901760
    %1519 = vmatpush.msra.mxu0 %v1518
    %v1520 = vand.u32 %v113, 4294901760
    %v1521 = vsub.f32 %v113, %v1520
    %v1522 = vand.u32 %v1521, 4294901760
    %v1523 = vsub.f32 %v1521, %v1522
    %v1524 = vand.u32 %v1523, 4294901760
    %1525 = vmatpush.msra.mxu0 %v1524
    %v1526 = vand.u32 %v104, 4294901760
    %v1527 = vsub.f32 %v104, %v1526
    %v1528 = vand.u32 %v1527, 4294901760
    %v1529 = vsub.f32 %v1527, %v1528
    %v1530 = vand.u32 %v1529, 4294901760
    %1531 = vmatpush.msra.mxu0 %v1530
    %v1532 = vand.u32 %v158, 4294901760
    %1533 = vmatmul.f32.gmra.mxu0 %v1532
    %v1534 = vpop.f32.mrf.mxu0
    %v1535 = vadd.f32 %v1486, %v1534
    %v1536 = vand.u32 %v161, 4294901760
    %1537 = vmatmul.f32.gmra.mxu0 %v1536
    %v1538 = vpop.f32.mrf.mxu0
    %v1539 = vadd.f32 %v1494, %v1538
    %1540 = vdwg.mxu0
    %1541 = vmatpush.msra.mxu0 0.0
    %1542 = vmatpush.msra.mxu0 0.0
    %1543 = vmatpush.msra.mxu0 0.0
    %1544 = vmatpush.msra.mxu0 0.0
    %1545 = vmatpush.msra.mxu0 0.0
    %1546 = vmatpush.msra.mxu0 0.0
    %1547 = vmatpush.msra.mxu0 0.0
    %1548 = vmatpush.msra.mxu0 0.0
    %1549 = vmatpush.msra.mxu0 0.0
    %1550 = vmatpush.msra.mxu0 0.0
    %1551 = vmatpush.msra.mxu0 0.0
    %1552 = vmatpush.msra.mxu0 0.0
    %v1553 = vand.u32 %v131, 4294901760
    %v1554 = vsub.f32 %v131, %v1553
    %1555 = vmatpush.msra.mxu0 %v1554
    %v1556 = vand.u32 %v122, 4294901760
    %v1557 = vsub.f32 %v122, %v1556
    %1558 = vmatpush.msra.mxu0 %v1557
    %v1559 = vand.u32 %v113, 4294901760
    %v1560 = vsub.f32 %v113, %v1559
    %1561 = vmatpush.msra.mxu0 %v1560
    %v1562 = vand.u32 %v104, 4294901760
    %v1563 = vsub.f32 %v104, %v1562
    %1564 = vmatpush.msra.mxu0 %v1563
    %v1565 = vand.u32 %v158, 4294901760
    %v1566 = vsub.f32 %v158, %v1565
    %1567 = vmatmul.f32.gmra.mxu0 %v1566
    %v1568 = vpop.f32.mrf.mxu0
    %v1569 = vadd.f32 %v1535, %v1568
    %v1570 = vand.u32 %v161, 4294901760
    %v1571 = vsub.f32 %v161, %v1570
    %1572 = vmatmul.f32.gmra.mxu0 %v1571
    %v1573 = vpop.f32.mrf.mxu0
    %v1574 = vadd.f32 %v1539, %v1573
    %1575 = vdwg.mxu0
    %1576 = vmatpush.msra.mxu0 0.0
    %1577 = vmatpush.msra.mxu0 0.0
    %1578 = vmatpush.msra.mxu0 0.0
    %1579 = vmatpush.msra.mxu0 0.0
    %1580 = vmatpush.msra.mxu0 0.0
    %1581 = vmatpush.msra.mxu0 0.0
    %1582 = vmatpush.msra.mxu0 0.0
    %1583 = vmatpush.msra.mxu0 0.0
    %1584 = vmatpush.msra.mxu0 0.0
    %1585 = vmatpush.msra.mxu0 0.0
    %1586 = vmatpush.msra.mxu0 0.0
    %1587 = vmatpush.msra.mxu0 0.0
    %v1588 = vand.u32 %v131, 4294901760
    %1589 = vmatpush.msra.mxu0 %v1588
    %v1590 = vand.u32 %v122, 4294901760
    %1591 = vmatpush.msra.mxu0 %v1590
    %v1592 = vand.u32 %v113, 4294901760
    %1593 = vmatpush.msra.mxu0 %v1592
    %v1594 = vand.u32 %v104, 4294901760
    %1595 = vmatpush.msra.mxu0 %v1594
    %v1596 = vand.u32 %v158, 4294901760
    %v1597 = vsub.f32 %v158, %v1596
    %v1598 = vand.u32 %v1597, 4294901760
    %1599 = vmatmul.f32.gmra.mxu0 %v1598
    %v1600 = vpop.f32.mrf.mxu0
    %v1601 = vadd.f32 %v1569, %v1600
    %v1602 = vand.u32 %v161, 4294901760
    %v1603 = vsub.f32 %v161, %v1602
    %v1604 = vand.u32 %v1603, 4294901760
    %1605 = vmatmul.f32.gmra.mxu0 %v1604
    %v1606 = vpop.f32.mrf.mxu0
    %v1607 = vadd.f32 %v1574, %v1606
    %1608 = vdwg.mxu0
    %1609 = vmatpush.msra.mxu0 0.0
    %1610 = vmatpush.msra.mxu0 0.0
    %1611 = vmatpush.msra.mxu0 0.0
    %1612 = vmatpush.msra.mxu0 0.0
    %1613 = vmatpush.msra.mxu0 0.0
    %1614 = vmatpush.msra.mxu0 0.0
    %1615 = vmatpush.msra.mxu0 0.0
    %1616 = vmatpush.msra.mxu0 0.0
    %1617 = vmatpush.msra.mxu0 0.0
    %1618 = vmatpush.msra.mxu0 0.0
    %1619 = vmatpush.msra.mxu0 0.0
    %1620 = vmatpush.msra.mxu0 0.0
    %v1621 = vand.u32 %v131, 4294901760
    %v1622 = vsub.f32 %v131, %v1621
    %v1623 = vand.u32 %v1622, 4294901760
    %1624 = vmatpush.msra.mxu0 %v1623
    %v1625 = vand.u32 %v122, 4294901760
    %v1626 = vsub.f32 %v122, %v1625
    %v1627 = vand.u32 %v1626, 4294901760
    %1628 = vmatpush.msra.mxu0 %v1627
    %v1629 = vand.u32 %v113, 4294901760
    %v1630 = vsub.f32 %v113, %v1629
    %v1631 = vand.u32 %v1630, 4294901760
    %1632 = vmatpush.msra.mxu0 %v1631
    %v1633 = vand.u32 %v104, 4294901760
    %v1634 = vsub.f32 %v104, %v1633
    %v1635 = vand.u32 %v1634, 4294901760
    %1636 = vmatpush.msra.mxu0 %v1635
    %v1637 = vand.u32 %v158, 4294901760
    %1638 = vmatmul.f32.gmra.mxu0 %v1637
    %v1639 = vpop.f32.mrf.mxu0
    %v1640 = vadd.f32 %v1601, %v1639
    %v1641 = vand.u32 %v161, 4294901760
    %1642 = vmatmul.f32.gmra.mxu0 %v1641
    %v1643 = vpop.f32.mrf.mxu0
    %v1644 = vadd.f32 %v1607, %v1643
    %1645 = vdwg.mxu0
    %1646 = vmatpush.msra.mxu0 0.0
    %1647 = vmatpush.msra.mxu0 0.0
    %1648 = vmatpush.msra.mxu0 0.0
    %1649 = vmatpush.msra.mxu0 0.0
    %1650 = vmatpush.msra.mxu0 0.0
    %1651 = vmatpush.msra.mxu0 0.0
    %1652 = vmatpush.msra.mxu0 0.0
    %1653 = vmatpush.msra.mxu0 0.0
    %1654 = vmatpush.msra.mxu0 0.0
    %1655 = vmatpush.msra.mxu0 0.0
    %1656 = vmatpush.msra.mxu0 0.0
    %1657 = vmatpush.msra.mxu0 0.0
    %v1658 = vand.u32 %v131, 4294901760
    %1659 = vmatpush.msra.mxu0 %v1658
    %v1660 = vand.u32 %v122, 4294901760
    %1661 = vmatpush.msra.mxu0 %v1660
    %v1662 = vand.u32 %v113, 4294901760
    %1663 = vmatpush.msra.mxu0 %v1662
    %v1664 = vand.u32 %v104, 4294901760
    %1665 = vmatpush.msra.mxu0 %v1664
    %v1666 = vand.u32 %v158, 4294901760
    %1667 = vmatmul.f32.gmra.mxu0 %v1666
    %v1668 = vpop.f32.mrf.mxu0
    %v1669 = vadd.f32 %v1640, %v1668
    %v1670 = vand.u32 %v161, 4294901760
    %1671 = vmatmul.f32.gmra.mxu0 %v1670
    %v1672 = vpop.f32.mrf.mxu0
    %v1673 = vadd.f32 %v1644, %v1672
    %1674 = vdwg.mxu0
    %1675 = vmatpush.msra.mxu0 0.0
    %1676 = vmatpush.msra.mxu0 0.0
    %1677 = vmatpush.msra.mxu0 0.0
    %1678 = vmatpush.msra.mxu0 0.0
    %1679 = vmatpush.msra.mxu0 0.0
    %1680 = vmatpush.msra.mxu0 0.0
    %1681 = vmatpush.msra.mxu0 0.0
    %1682 = vmatpush.msra.mxu0 0.0
    %1683 = vmatpush.msra.mxu0 0.0
    %1684 = vmatpush.msra.mxu0 0.0
    %1685 = vmatpush.msra.mxu0 0.0
    %1686 = vmatpush.msra.mxu0 0.0
    %v1687 = vand.u32 %v132, 4294901760
    %1688 = vmatpush.msra.mxu0 %v1687
    %v1689 = vand.u32 %v123, 4294901760
    %1690 = vmatpush.msra.mxu0 %v1689
    %v1691 = vand.u32 %v114, 4294901760
    %1692 = vmatpush.msra.mxu0 %v1691
    %v1693 = vand.u32 %v105, 4294901760
    %1694 = vmatpush.msra.mxu0 %v1693
    %v1695 = vand.u32 %v158, 4294901760
    %v1696 = vsub.f32 %v158, %v1695
    %v1697 = vand.u32 %v1696, 4294901760
    %v1698 = vsub.f32 %v1696, %v1697
    %v1699 = vand.u32 %v1698, 4294901760
    %1700 = vmatmul.f32.gmra.mxu0 %v1699
    %v1701 = vpop.f32.mrf.mxu0
    %v1702 = vadd.f32 %v145, %v1701
    %v1703 = vand.u32 %v161, 4294901760
    %v1704 = vsub.f32 %v161, %v1703
    %v1705 = vand.u32 %v1704, 4294901760
    %v1706 = vsub.f32 %v1704, %v1705
    %v1707 = vand.u32 %v1706, 4294901760
    %1708 = vmatmul.f32.gmra.mxu0 %v1707
    %v1709 = vpop.f32.mrf.mxu0
    %v1710 = vadd.f32 %v145, %v1709
    %1711 = vdwg.mxu0
    %1712 = vmatpush.msra.mxu0 0.0
    %1713 = vmatpush.msra.mxu0 0.0
    %1714 = vmatpush.msra.mxu0 0.0
    %1715 = vmatpush.msra.mxu0 0.0
    %1716 = vmatpush.msra.mxu0 0.0
    %1717 = vmatpush.msra.mxu0 0.0
    %1718 = vmatpush.msra.mxu0 0.0
    %1719 = vmatpush.msra.mxu0 0.0
    %1720 = vmatpush.msra.mxu0 0.0
    %1721 = vmatpush.msra.mxu0 0.0
    %1722 = vmatpush.msra.mxu0 0.0
    %1723 = vmatpush.msra.mxu0 0.0
    %v1724 = vand.u32 %v132, 4294901760
    %v1725 = vsub.f32 %v132, %v1724
    %v1726 = vand.u32 %v1725, 4294901760
    %v1727 = vsub.f32 %v1725, %v1726
    %v1728 = vand.u32 %v1727, 4294901760
    %1729 = vmatpush.msra.mxu0 %v1728
    %v1730 = vand.u32 %v123, 4294901760
    %v1731 = vsub.f32 %v123, %v1730
    %v1732 = vand.u32 %v1731, 4294901760
    %v1733 = vsub.f32 %v1731, %v1732
    %v1734 = vand.u32 %v1733, 4294901760
    %1735 = vmatpush.msra.mxu0 %v1734
    %v1736 = vand.u32 %v114, 4294901760
    %v1737 = vsub.f32 %v114, %v1736
    %v1738 = vand.u32 %v1737, 4294901760
    %v1739 = vsub.f32 %v1737, %v1738
    %v1740 = vand.u32 %v1739, 4294901760
    %1741 = vmatpush.msra.mxu0 %v1740
    %v1742 = vand.u32 %v105, 4294901760
    %v1743 = vsub.f32 %v105, %v1742
    %v1744 = vand.u32 %v1743, 4294901760
    %v1745 = vsub.f32 %v1743, %v1744
    %v1746 = vand.u32 %v1745, 4294901760
    %1747 = vmatpush.msra.mxu0 %v1746
    %v1748 = vand.u32 %v158, 4294901760
    %1749 = vmatmul.f32.gmra.mxu0 %v1748
    %v1750 = vpop.f32.mrf.mxu0
    %v1751 = vadd.f32 %v1702, %v1750
    %v1752 = vand.u32 %v161, 4294901760
    %1753 = vmatmul.f32.gmra.mxu0 %v1752
    %v1754 = vpop.f32.mrf.mxu0
    %v1755 = vadd.f32 %v1710, %v1754
    %1756 = vdwg.mxu0
    %1757 = vmatpush.msra.mxu0 0.0
    %1758 = vmatpush.msra.mxu0 0.0
    %1759 = vmatpush.msra.mxu0 0.0
    %1760 = vmatpush.msra.mxu0 0.0
    %1761 = vmatpush.msra.mxu0 0.0
    %1762 = vmatpush.msra.mxu0 0.0
    %1763 = vmatpush.msra.mxu0 0.0
    %1764 = vmatpush.msra.mxu0 0.0
    %1765 = vmatpush.msra.mxu0 0.0
    %1766 = vmatpush.msra.mxu0 0.0
    %1767 = vmatpush.msra.mxu0 0.0
    %1768 = vmatpush.msra.mxu0 0.0
    %v1769 = vand.u32 %v132, 4294901760
    %v1770 = vsub.f32 %v132, %v1769
    %1771 = vmatpush.msra.mxu0 %v1770
    %v1772 = vand.u32 %v123, 4294901760
    %v1773 = vsub.f32 %v123, %v1772
    %1774 = vmatpush.msra.mxu0 %v1773
    %v1775 = vand.u32 %v114, 4294901760
    %v1776 = vsub.f32 %v114, %v1775
    %1777 = vmatpush.msra.mxu0 %v1776
    %v1778 = vand.u32 %v105, 4294901760
    %v1779 = vsub.f32 %v105, %v1778
    %1780 = vmatpush.msra.mxu0 %v1779
    %v1781 = vand.u32 %v158, 4294901760
    %v1782 = vsub.f32 %v158, %v1781
    %1783 = vmatmul.f32.gmra.mxu0 %v1782
    %v1784 = vpop.f32.mrf.mxu0
    %v1785 = vadd.f32 %v1751, %v1784
    %v1786 = vand.u32 %v161, 4294901760
    %v1787 = vsub.f32 %v161, %v1786
    %1788 = vmatmul.f32.gmra.mxu0 %v1787
    %v1789 = vpop.f32.mrf.mxu0
    %v1790 = vadd.f32 %v1755, %v1789
    %1791 = vdwg.mxu0
    %1792 = vmatpush.msra.mxu0 0.0
    %1793 = vmatpush.msra.mxu0 0.0
    %1794 = vmatpush.msra.mxu0 0.0
    %1795 = vmatpush.msra.mxu0 0.0
    %1796 = vmatpush.msra.mxu0 0.0
    %1797 = vmatpush.msra.mxu0 0.0
    %1798 = vmatpush.msra.mxu0 0.0
    %1799 = vmatpush.msra.mxu0 0.0
    %1800 = vmatpush.msra.mxu0 0.0
    %1801 = vmatpush.msra.mxu0 0.0
    %1802 = vmatpush.msra.mxu0 0.0
    %1803 = vmatpush.msra.mxu0 0.0
    %v1804 = vand.u32 %v132, 4294901760
    %1805 = vmatpush.msra.mxu0 %v1804
    %v1806 = vand.u32 %v123, 4294901760
    %1807 = vmatpush.msra.mxu0 %v1806
    %v1808 = vand.u32 %v114, 4294901760
    %1809 = vmatpush.msra.mxu0 %v1808
    %v1810 = vand.u32 %v105, 4294901760
    %1811 = vmatpush.msra.mxu0 %v1810
    %v1812 = vand.u32 %v158, 4294901760
    %v1813 = vsub.f32 %v158, %v1812
    %v1814 = vand.u32 %v1813, 4294901760
    %1815 = vmatmul.f32.gmra.mxu0 %v1814
    %v1816 = vpop.f32.mrf.mxu0
    %v1817 = vadd.f32 %v1785, %v1816
    %v1818 = vand.u32 %v161, 4294901760
    %v1819 = vsub.f32 %v161, %v1818
    %v1820 = vand.u32 %v1819, 4294901760
    %1821 = vmatmul.f32.gmra.mxu0 %v1820
    %v1822 = vpop.f32.mrf.mxu0
    %v1823 = vadd.f32 %v1790, %v1822
    %1824 = vdwg.mxu0
    %1825 = vmatpush.msra.mxu0 0.0
    %1826 = vmatpush.msra.mxu0 0.0
    %1827 = vmatpush.msra.mxu0 0.0
    %1828 = vmatpush.msra.mxu0 0.0
    %1829 = vmatpush.msra.mxu0 0.0
    %1830 = vmatpush.msra.mxu0 0.0
    %1831 = vmatpush.msra.mxu0 0.0
    %1832 = vmatpush.msra.mxu0 0.0
    %1833 = vmatpush.msra.mxu0 0.0
    %1834 = vmatpush.msra.mxu0 0.0
    %1835 = vmatpush.msra.mxu0 0.0
    %1836 = vmatpush.msra.mxu0 0.0
    %v1837 = vand.u32 %v132, 4294901760
    %v1838 = vsub.f32 %v132, %v1837
    %v1839 = vand.u32 %v1838, 4294901760
    %1840 = vmatpush.msra.mxu0 %v1839
    %v1841 = vand.u32 %v123, 4294901760
    %v1842 = vsub.f32 %v123, %v1841
    %v1843 = vand.u32 %v1842, 4294901760
    %1844 = vmatpush.msra.mxu0 %v1843
    %v1845 = vand.u32 %v114, 4294901760
    %v1846 = vsub.f32 %v114, %v1845
    %v1847 = vand.u32 %v1846, 4294901760
    %1848 = vmatpush.msra.mxu0 %v1847
    %v1849 = vand.u32 %v105, 4294901760
    %v1850 = vsub.f32 %v105, %v1849
    %v1851 = vand.u32 %v1850, 4294901760
    %1852 = vmatpush.msra.mxu0 %v1851
    %v1853 = vand.u32 %v158, 4294901760
    %1854 = vmatmul.f32.gmra.mxu0 %v1853
    %v1855 = vpop.f32.mrf.mxu0
    %v1856 = vadd.f32 %v1817, %v1855
    %v1857 = vand.u32 %v161, 4294901760
    %1858 = vmatmul.f32.gmra.mxu0 %v1857
    %v1859 = vpop.f32.mrf.mxu0
    %v1860 = vadd.f32 %v1823, %v1859
    %1861 = vdwg.mxu0
    %1862 = vmatpush.msra.mxu0 0.0
    %1863 = vmatpush.msra.mxu0 0.0
    %1864 = vmatpush.msra.mxu0 0.0
    %1865 = vmatpush.msra.mxu0 0.0
    %1866 = vmatpush.msra.mxu0 0.0
    %1867 = vmatpush.msra.mxu0 0.0
    %1868 = vmatpush.msra.mxu0 0.0
    %1869 = vmatpush.msra.mxu0 0.0
    %1870 = vmatpush.msra.mxu0 0.0
    %1871 = vmatpush.msra.mxu0 0.0
    %1872 = vmatpush.msra.mxu0 0.0
    %1873 = vmatpush.msra.mxu0 0.0
    %v1874 = vand.u32 %v132, 4294901760
    %1875 = vmatpush.msra.mxu0 %v1874
    %v1876 = vand.u32 %v123, 4294901760
    %1877 = vmatpush.msra.mxu0 %v1876
    %v1878 = vand.u32 %v114, 4294901760
    %1879 = vmatpush.msra.mxu0 %v1878
    %v1880 = vand.u32 %v105, 4294901760
    %1881 = vmatpush.msra.mxu0 %v1880
    %v1882 = vand.u32 %v158, 4294901760
    %1883 = vmatmul.f32.gmra.mxu0 %v1882
    %v1884 = vpop.f32.mrf.mxu0
    %v1885 = vadd.f32 %v1856, %v1884
    %v1886 = vand.u32 %v161, 4294901760
    %1887 = vmatmul.f32.gmra.mxu0 %v1886
    %v1888 = vpop.f32.mrf.mxu0
    %v1889 = vadd.f32 %v1860, %v1888
    %1890 = vdwg.mxu0
    %1891 = vmatpush.msra.mxu0 0.0
    %1892 = vmatpush.msra.mxu0 0.0
    %1893 = vmatpush.msra.mxu0 0.0
    %1894 = vmatpush.msra.mxu0 0.0
    %1895 = vmatpush.msra.mxu0 0.0
    %1896 = vmatpush.msra.mxu0 0.0
    %1897 = vmatpush.msra.mxu0 0.0
    %1898 = vmatpush.msra.mxu0 0.0
    %1899 = vmatpush.msra.mxu0 0.0
    %1900 = vmatpush.msra.mxu0 0.0
    %1901 = vmatpush.msra.mxu0 0.0
    %1902 = vmatpush.msra.mxu0 0.0
    %v1903 = vand.u32 %v133, 4294901760
    %1904 = vmatpush.msra.mxu0 %v1903
    %v1905 = vand.u32 %v124, 4294901760
    %1906 = vmatpush.msra.mxu0 %v1905
    %v1907 = vand.u32 %v115, 4294901760
    %1908 = vmatpush.msra.mxu0 %v1907
    %v1909 = vand.u32 %v106, 4294901760
    %1910 = vmatpush.msra.mxu0 %v1909
    %v1911 = vand.u32 %v158, 4294901760
    %v1912 = vsub.f32 %v158, %v1911
    %v1913 = vand.u32 %v1912, 4294901760
    %v1914 = vsub.f32 %v1912, %v1913
    %v1915 = vand.u32 %v1914, 4294901760
    %1916 = vmatmul.f32.gmra.mxu0 %v1915
    %v1917 = vpop.f32.mrf.mxu0
    %v1918 = vadd.f32 %v146, %v1917
    %v1919 = vand.u32 %v161, 4294901760
    %v1920 = vsub.f32 %v161, %v1919
    %v1921 = vand.u32 %v1920, 4294901760
    %v1922 = vsub.f32 %v1920, %v1921
    %v1923 = vand.u32 %v1922, 4294901760
    %1924 = vmatmul.f32.gmra.mxu0 %v1923
    %v1925 = vpop.f32.mrf.mxu0
    %v1926 = vadd.f32 %v146, %v1925
    %1927 = vdwg.mxu0
    %1928 = vmatpush.msra.mxu0 0.0
    %1929 = vmatpush.msra.mxu0 0.0
    %1930 = vmatpush.msra.mxu0 0.0
    %1931 = vmatpush.msra.mxu0 0.0
    %1932 = vmatpush.msra.mxu0 0.0
    %1933 = vmatpush.msra.mxu0 0.0
    %1934 = vmatpush.msra.mxu0 0.0
    %1935 = vmatpush.msra.mxu0 0.0
    %1936 = vmatpush.msra.mxu0 0.0
    %1937 = vmatpush.msra.mxu0 0.0
    %1938 = vmatpush.msra.mxu0 0.0
    %1939 = vmatpush.msra.mxu0 0.0
    %v1940 = vand.u32 %v133, 4294901760
    %v1941 = vsub.f32 %v133, %v1940
    %v1942 = vand.u32 %v1941, 4294901760
    %v1943 = vsub.f32 %v1941, %v1942
    %v1944 = vand.u32 %v1943, 4294901760
    %1945 = vmatpush.msra.mxu0 %v1944
    %v1946 = vand.u32 %v124, 4294901760
    %v1947 = vsub.f32 %v124, %v1946
    %v1948 = vand.u32 %v1947, 4294901760
    %v1949 = vsub.f32 %v1947, %v1948
    %v1950 = vand.u32 %v1949, 4294901760
    %1951 = vmatpush.msra.mxu0 %v1950
    %v1952 = vand.u32 %v115, 4294901760
    %v1953 = vsub.f32 %v115, %v1952
    %v1954 = vand.u32 %v1953, 4294901760
    %v1955 = vsub.f32 %v1953, %v1954
    %v1956 = vand.u32 %v1955, 4294901760
    %1957 = vmatpush.msra.mxu0 %v1956
    %v1958 = vand.u32 %v106, 4294901760
    %v1959 = vsub.f32 %v106, %v1958
    %v1960 = vand.u32 %v1959, 4294901760
    %v1961 = vsub.f32 %v1959, %v1960
    %v1962 = vand.u32 %v1961, 4294901760
    %1963 = vmatpush.msra.mxu0 %v1962
    %v1964 = vand.u32 %v158, 4294901760
    %1965 = vmatmul.f32.gmra.mxu0 %v1964
    %v1966 = vpop.f32.mrf.mxu0
    %v1967 = vadd.f32 %v1918, %v1966
    %v1968 = vand.u32 %v161, 4294901760
    %1969 = vmatmul.f32.gmra.mxu0 %v1968
    %v1970 = vpop.f32.mrf.mxu0
    %v1971 = vadd.f32 %v1926, %v1970
    %1972 = vdwg.mxu0
    %1973 = vmatpush.msra.mxu0 0.0
    %1974 = vmatpush.msra.mxu0 0.0
    %1975 = vmatpush.msra.mxu0 0.0
    %1976 = vmatpush.msra.mxu0 0.0
    %1977 = vmatpush.msra.mxu0 0.0
    %1978 = vmatpush.msra.mxu0 0.0
    %1979 = vmatpush.msra.mxu0 0.0
    %1980 = vmatpush.msra.mxu0 0.0
    %1981 = vmatpush.msra.mxu0 0.0
    %1982 = vmatpush.msra.mxu0 0.0
    %1983 = vmatpush.msra.mxu0 0.0
    %1984 = vmatpush.msra.mxu0 0.0
    %v1985 = vand.u32 %v133, 4294901760
    %v1986 = vsub.f32 %v133, %v1985
    %1987 = vmatpush.msra.mxu0 %v1986
    %v1988 = vand.u32 %v124, 4294901760
    %v1989 = vsub.f32 %v124, %v1988
    %1990 = vmatpush.msra.mxu0 %v1989
    %v1991 = vand.u32 %v115, 4294901760
    %v1992 = vsub.f32 %v115, %v1991
    %1993 = vmatpush.msra.mxu0 %v1992
    %v1994 = vand.u32 %v106, 4294901760
    %v1995 = vsub.f32 %v106, %v1994
    %1996 = vmatpush.msra.mxu0 %v1995
    %v1997 = vand.u32 %v158, 4294901760
    %v1998 = vsub.f32 %v158, %v1997
    %1999 = vmatmul.f32.gmra.mxu0 %v1998
    %v2000 = vpop.f32.mrf.mxu0
    %v2001 = vadd.f32 %v1967, %v2000
    %v2002 = vand.u32 %v161, 4294901760
    %v2003 = vsub.f32 %v161, %v2002
    %2004 = vmatmul.f32.gmra.mxu0 %v2003
    %v2005 = vpop.f32.mrf.mxu0
    %v2006 = vadd.f32 %v1971, %v2005
    %2007 = vdwg.mxu0
    %2008 = vmatpush.msra.mxu0 0.0
    %2009 = vmatpush.msra.mxu0 0.0
    %2010 = vmatpush.msra.mxu0 0.0
    %2011 = vmatpush.msra.mxu0 0.0
    %2012 = vmatpush.msra.mxu0 0.0
    %2013 = vmatpush.msra.mxu0 0.0
    %2014 = vmatpush.msra.mxu0 0.0
    %2015 = vmatpush.msra.mxu0 0.0
    %2016 = vmatpush.msra.mxu0 0.0
    %2017 = vmatpush.msra.mxu0 0.0
    %2018 = vmatpush.msra.mxu0 0.0
    %2019 = vmatpush.msra.mxu0 0.0
    %v2020 = vand.u32 %v133, 4294901760
    %2021 = vmatpush.msra.mxu0 %v2020
    %v2022 = vand.u32 %v124, 4294901760
    %2023 = vmatpush.msra.mxu0 %v2022
    %v2024 = vand.u32 %v115, 4294901760
    %2025 = vmatpush.msra.mxu0 %v2024
    %v2026 = vand.u32 %v106, 4294901760
    %2027 = vmatpush.msra.mxu0 %v2026
    %v2028 = vand.u32 %v158, 4294901760
    %v2029 = vsub.f32 %v158, %v2028
    %v2030 = vand.u32 %v2029, 4294901760
    %2031 = vmatmul.f32.gmra.mxu0 %v2030
    %v2032 = vpop.f32.mrf.mxu0
    %v2033 = vadd.f32 %v2001, %v2032
    %v2034 = vand.u32 %v161, 4294901760
    %v2035 = vsub.f32 %v161, %v2034
    %v2036 = vand.u32 %v2035, 4294901760
    %2037 = vmatmul.f32.gmra.mxu0 %v2036
    %v2038 = vpop.f32.mrf.mxu0
    %v2039 = vadd.f32 %v2006, %v2038
    %2040 = vdwg.mxu0
    %2041 = vmatpush.msra.mxu0 0.0
    %2042 = vmatpush.msra.mxu0 0.0
    %2043 = vmatpush.msra.mxu0 0.0
    %2044 = vmatpush.msra.mxu0 0.0
    %2045 = vmatpush.msra.mxu0 0.0
    %2046 = vmatpush.msra.mxu0 0.0
    %2047 = vmatpush.msra.mxu0 0.0
    %2048 = vmatpush.msra.mxu0 0.0
    %2049 = vmatpush.msra.mxu0 0.0
    %2050 = vmatpush.msra.mxu0 0.0
    %2051 = vmatpush.msra.mxu0 0.0
    %2052 = vmatpush.msra.mxu0 0.0
    %v2053 = vand.u32 %v133, 4294901760
    %v2054 = vsub.f32 %v133, %v2053
    %v2055 = vand.u32 %v2054, 4294901760
    %2056 = vmatpush.msra.mxu0 %v2055
    %v2057 = vand.u32 %v124, 4294901760
    %v2058 = vsub.f32 %v124, %v2057
    %v2059 = vand.u32 %v2058, 4294901760
    %2060 = vmatpush.msra.mxu0 %v2059
    %v2061 = vand.u32 %v115, 4294901760
    %v2062 = vsub.f32 %v115, %v2061
    %v2063 = vand.u32 %v2062, 4294901760
    %2064 = vmatpush.msra.mxu0 %v2063
    %v2065 = vand.u32 %v106, 4294901760
    %v2066 = vsub.f32 %v106, %v2065
    %v2067 = vand.u32 %v2066, 4294901760
    %2068 = vmatpush.msra.mxu0 %v2067
    %v2069 = vand.u32 %v158, 4294901760
    %2070 = vmatmul.f32.gmra.mxu0 %v2069
    %v2071 = vpop.f32.mrf.mxu0
    %v2072 = vadd.f32 %v2033, %v2071
    %v2073 = vand.u32 %v161, 4294901760
    %2074 = vmatmul.f32.gmra.mxu0 %v2073
    %v2075 = vpop.f32.mrf.mxu0
    %v2076 = vadd.f32 %v2039, %v2075
    %2077 = vdwg.mxu0
    %2078 = vmatpush.msra.mxu0 0.0
    %2079 = vmatpush.msra.mxu0 0.0
    %2080 = vmatpush.msra.mxu0 0.0
    %2081 = vmatpush.msra.mxu0 0.0
    %2082 = vmatpush.msra.mxu0 0.0
    %2083 = vmatpush.msra.mxu0 0.0
    %2084 = vmatpush.msra.mxu0 0.0
    %2085 = vmatpush.msra.mxu0 0.0
    %2086 = vmatpush.msra.mxu0 0.0
    %2087 = vmatpush.msra.mxu0 0.0
    %2088 = vmatpush.msra.mxu0 0.0
    %2089 = vmatpush.msra.mxu0 0.0
    %v2090 = vand.u32 %v133, 4294901760
    %2091 = vmatpush.msra.mxu0 %v2090
    %v2092 = vand.u32 %v124, 4294901760
    %2093 = vmatpush.msra.mxu0 %v2092
    %v2094 = vand.u32 %v115, 4294901760
    %2095 = vmatpush.msra.mxu0 %v2094
    %v2096 = vand.u32 %v106, 4294901760
    %2097 = vmatpush.msra.mxu0 %v2096
    %v2098 = vand.u32 %v158, 4294901760
    %2099 = vmatmul.f32.gmra.mxu0 %v2098
    %v2100 = vpop.f32.mrf.mxu0
    %v2101 = vadd.f32 %v2072, %v2100
    %v2102 = vand.u32 %v161, 4294901760
    %2103 = vmatmul.f32.gmra.mxu0 %v2102
    %v2104 = vpop.f32.mrf.mxu0
    %v2105 = vadd.f32 %v2076, %v2104
    %2106 = vdwg.mxu0
    %v2107 = vlaneseq
    %v2108 = vand.u32 %v2107, 127
    %vm2109 = vcmp.lt.s32.totalorder %v2108, 8
    %v2110 = vsel %vm2109, %v2101, -1e+30
    %v2111 = vsel %vm2109, %v2105, -1e+30
    %2112 = vmax.xlane.f32.xlu0 %v2110
    %v2113 = vpop.xlane.xlu0 %2112
    %2114 = vmax.xlane.f32.xlu0 %v2111
    %v2115 = vpop.xlane.xlu0 %2114
    %v2116 = vsub.f32 %v2110, %v2113
    %v2117 = vsub.f32 %v2111, %v2115
    %v2118 = vmul.f32 %v2116, 1.442695
    %v2119 = vpow.pop %v2118
    %v2120 = vmul.f32 %v2117, 1.442695
    %v2121 = vpow.pop %v2120
    %2122 = vadd.xlane.f32.xlu0 %v2119
    %v2123 = vpop.xlane.xlu0 %2122
    %2124 = vadd.xlane.f32.xlu0 %v2121
    %v2125 = vpop.xlane.xlu0 %2124
    %v2126 = vrcp.pop %v2123
    %v2127 = vmul.f32 %v2123, %v2126
    %v2128 = vsub.f32 1.0, %v2127
    %v2129 = vmul.f32 %v2126, %v2128
    %v2130 = vadd.f32 %v2126, %v2129
    %vm2131 = vweird.f32 %v2123
    %vm2132 = vweird.f32 %v2126
    %vm2133 = vmor %vm2131, %vm2132
    %v2134 = vsel %vm2133, %v2126, %v2130
    %v2135 = vand.u32 2147483647, %v2123
    %vm2136 = vcmp.eq.f32.partialorder %v2135, 8.507059e+37
    %v2137 = vand.u32 %v2123, 2147483648
    %v2138 = vor.u32 1.1754944e-38, %v2137
    %v2139 = vsel %vm2136, %v2138, %v2134
    %v2140 = vmul.f32 %v2119, %v2139
    %v2141 = vrcp.pop %v2125
    %v2142 = vmul.f32 %v2125, %v2141
    %v2143 = vsub.f32 1.0, %v2142
    %v2144 = vmul.f32 %v2141, %v2143
    %v2145 = vadd.f32 %v2141, %v2144
    %vm2146 = vweird.f32 %v2125
    %vm2147 = vweird.f32 %v2141
    %vm2148 = vmor %vm2146, %vm2147
    %v2149 = vsel %vm2148, %v2141, %v2145
    %v2150 = vand.u32 2147483647, %v2125
    %vm2151 = vcmp.eq.f32.partialorder %v2150, 8.507059e+37
    %v2152 = vand.u32 %v2125, 2147483648
    %v2153 = vor.u32 1.1754944e-38, %v2152
    %v2154 = vsel %vm2151, %v2153, %v2149
    %v2155 = vmul.f32 %v2121, %v2154
    %v2156 = vmul.f32 %v373, 0.5
    %v2157 = vmul.f32 %v589, 0.5
    %v2158 = vmul.f32 %v805, 0.5
    %v2159 = vmul.f32 %v1021, 0.5
    %v2160 = vmul.f32 %v1237, 0.5
    %v2161 = vmul.f32 %v1453, 0.5
    %v2162 = vmul.f32 %v1669, 0.5
    %v2163 = vmul.f32 %v1885, 0.5
    %v2164 = vmul.f32 %v377, 0.5
    %v2165 = vmul.f32 %v593, 0.5
    %v2166 = vmul.f32 %v809, 0.5
    %v2167 = vmul.f32 %v1025, 0.5
    %v2168 = vmul.f32 %v1241, 0.5
    %v2169 = vmul.f32 %v1457, 0.5
    %v2170 = vmul.f32 %v1673, 0.5
    %v2171 = vmul.f32 %v1889, 0.5
    %v2172 = vmul.f32 %v373, 0.70710677
    %v2173 = vmul.f32 %v589, 0.70710677
    %v2174 = vmul.f32 %v805, 0.70710677
    %v2175 = vmul.f32 %v1021, 0.70710677
    %v2176 = vmul.f32 %v1237, 0.70710677
    %v2177 = vmul.f32 %v1453, 0.70710677
    %v2178 = vmul.f32 %v1669, 0.70710677
    %v2179 = vmul.f32 %v1885, 0.70710677
    %v2180 = vmul.f32 %v377, 0.70710677
    %v2181 = vmul.f32 %v593, 0.70710677
    %v2182 = vmul.f32 %v809, 0.70710677
    %v2183 = vmul.f32 %v1025, 0.70710677
    %v2184 = vmul.f32 %v1241, 0.70710677
    %v2185 = vmul.f32 %v1457, 0.70710677
    %v2186 = vmul.f32 %v1673, 0.70710677
    %v2187 = vmul.f32 %v1889, 0.70710677
    %v2188 = vmul.f32 %v2172, %v2172
    %v2189 = vmin.f32 16.0, %v2188
    %v2190 = vmul.f32 %v2189, 2.1237322e-06
    %v2191 = vadd.f32 %v2190, 0.00028619796
    %v2192 = vmul.f32 %v2189, %v2191
    %v2193 = vadd.f32 %v2192, 0.0036580483
    %v2194 = vmul.f32 %v2189, %v2193
    %v2195 = vadd.f32 %v2194, 0.05243302
    %v2196 = vmul.f32 %v2189, %v2195
    %v2197 = vadd.f32 %v2196, 0.18741608
    %v2198 = vmul.f32 %v2189, %v2197
    %v2199 = vadd.f32 %v2198, 1.1283791
    %v2200 = vmul.f32 %v2172, %v2199
    %v2201 = vmul.f32 %v2189, 3.8918573e-05
    %v2202 = vadd.f32 %v2201, 0.001143296
    %v2203 = vmul.f32 %v2189, %v2202
    %v2204 = vadd.f32 %v2203, 0.014752088
    %v2205 = vmul.f32 %v2189, %v2204
    %v2206 = vadd.f32 %v2205, 0.112945676
    %v2207 = vmul.f32 %v2189, %v2206
    %v2208 = vadd.f32 %v2207, 0.4994258
    %v2209 = vmul.f32 %v2189, %v2208
    %v2210 = vadd.f32 %v2209, 1.0
    %v2211 = vrcp.pop %v2210
    %v2212 = vmul.f32 %v2210, %v2211
    %v2213 = vsub.f32 1.0, %v2212
    %v2214 = vmul.f32 %v2211, %v2213
    %v2215 = vadd.f32 %v2211, %v2214
    %vm2216 = vweird.f32 %v2210
    %vm2217 = vweird.f32 %v2211
    %vm2218 = vmor %vm2216, %vm2217
    %v2219 = vsel %vm2218, %v2211, %v2215
    %v2220 = vand.u32 2147483647, %v2210
    %vm2221 = vcmp.eq.f32.partialorder %v2220, 8.507059e+37
    %v2222 = vand.u32 %v2210, 2147483648
    %v2223 = vor.u32 1.1754944e-38, %v2222
    %v2224 = vsel %vm2221, %v2223, %v2219
    %v2225 = vmul.f32 %v2200, %v2224
    %v2226 = vmin.f32 %v2225, 1.0
    %v2227 = vmax.f32 %v2226, -1.0
    %v2228 = vmul.f32 %v2173, %v2173
    %v2229 = vmin.f32 16.0, %v2228
    %v2230 = vmul.f32 %v2229, 2.1237322e-06
    %v2231 = vadd.f32 %v2230, 0.00028619796
    %v2232 = vmul.f32 %v2229, %v2231
    %v2233 = vadd.f32 %v2232, 0.0036580483
    %v2234 = vmul.f32 %v2229, %v2233
    %v2235 = vadd.f32 %v2234, 0.05243302
    %v2236 = vmul.f32 %v2229, %v2235
    %v2237 = vadd.f32 %v2236, 0.18741608
    %v2238 = vmul.f32 %v2229, %v2237
    %v2239 = vadd.f32 %v2238, 1.1283791
    %v2240 = vmul.f32 %v2173, %v2239
    %v2241 = vmul.f32 %v2229, 3.8918573e-05
    %v2242 = vadd.f32 %v2241, 0.001143296
    %v2243 = vmul.f32 %v2229, %v2242
    %v2244 = vadd.f32 %v2243, 0.014752088
    %v2245 = vmul.f32 %v2229, %v2244
    %v2246 = vadd.f32 %v2245, 0.112945676
    %v2247 = vmul.f32 %v2229, %v2246
    %v2248 = vadd.f32 %v2247, 0.4994258
    %v2249 = vmul.f32 %v2229, %v2248
    %v2250 = vadd.f32 %v2249, 1.0
    %v2251 = vrcp.pop %v2250
    %v2252 = vmul.f32 %v2250, %v2251
    %v2253 = vsub.f32 1.0, %v2252
    %v2254 = vmul.f32 %v2251, %v2253
    %v2255 = vadd.f32 %v2251, %v2254
    %vm2256 = vweird.f32 %v2250
    %vm2257 = vweird.f32 %v2251
    %vm2258 = vmor %vm2256, %vm2257
    %v2259 = vsel %vm2258, %v2251, %v2255
    %v2260 = vand.u32 2147483647, %v2250
    %vm2261 = vcmp.eq.f32.partialorder %v2260, 8.507059e+37
    %v2262 = vand.u32 %v2250, 2147483648
    %v2263 = vor.u32 1.1754944e-38, %v2262
    %v2264 = vsel %vm2261, %v2263, %v2259
    %v2265 = vmul.f32 %v2240, %v2264
    %v2266 = vmin.f32 %v2265, 1.0
    %v2267 = vmax.f32 %v2266, -1.0
    %v2268 = vmul.f32 %v2174, %v2174
    %v2269 = vmin.f32 16.0, %v2268
    %v2270 = vmul.f32 %v2269, 2.1237322e-06
    %v2271 = vadd.f32 %v2270, 0.00028619796
    %v2272 = vmul.f32 %v2269, %v2271
    %v2273 = vadd.f32 %v2272, 0.0036580483
    %v2274 = vmul.f32 %v2269, %v2273
    %v2275 = vadd.f32 %v2274, 0.05243302
    %v2276 = vmul.f32 %v2269, %v2275
    %v2277 = vadd.f32 %v2276, 0.18741608
    %v2278 = vmul.f32 %v2269, %v2277
    %v2279 = vadd.f32 %v2278, 1.1283791
    %v2280 = vmul.f32 %v2174, %v2279
    %v2281 = vmul.f32 %v2269, 3.8918573e-05
    %v2282 = vadd.f32 %v2281, 0.001143296
    %v2283 = vmul.f32 %v2269, %v2282
    %v2284 = vadd.f32 %v2283, 0.014752088
    %v2285 = vmul.f32 %v2269, %v2284
    %v2286 = vadd.f32 %v2285, 0.112945676
    %v2287 = vmul.f32 %v2269, %v2286
    %v2288 = vadd.f32 %v2287, 0.4994258
    %v2289 = vmul.f32 %v2269, %v2288
    %v2290 = vadd.f32 %v2289, 1.0
    %v2291 = vrcp.pop %v2290
    %v2292 = vmul.f32 %v2290, %v2291
    %v2293 = vsub.f32 1.0, %v2292
    %v2294 = vmul.f32 %v2291, %v2293
    %v2295 = vadd.f32 %v2291, %v2294
    %vm2296 = vweird.f32 %v2290
    %vm2297 = vweird.f32 %v2291
    %vm2298 = vmor %vm2296, %vm2297
    %v2299 = vsel %vm2298, %v2291, %v2295
    %v2300 = vand.u32 2147483647, %v2290
    %vm2301 = vcmp.eq.f32.partialorder %v2300, 8.507059e+37
    %v2302 = vand.u32 %v2290, 2147483648
    %v2303 = vor.u32 1.1754944e-38, %v2302
    %v2304 = vsel %vm2301, %v2303, %v2299
    %v2305 = vmul.f32 %v2280, %v2304
    %v2306 = vmin.f32 %v2305, 1.0
    %v2307 = vmax.f32 %v2306, -1.0
    %v2308 = vmul.f32 %v2175, %v2175
    %v2309 = vmin.f32 16.0, %v2308
    %v2310 = vmul.f32 %v2309, 2.1237322e-06
    %v2311 = vadd.f32 %v2310, 0.00028619796
    %v2312 = vmul.f32 %v2309, %v2311
    %v2313 = vadd.f32 %v2312, 0.0036580483
    %v2314 = vmul.f32 %v2309, %v2313
    %v2315 = vadd.f32 %v2314, 0.05243302
    %v2316 = vmul.f32 %v2309, %v2315
    %v2317 = vadd.f32 %v2316, 0.18741608
    %v2318 = vmul.f32 %v2309, %v2317
    %v2319 = vadd.f32 %v2318, 1.1283791
    %v2320 = vmul.f32 %v2175, %v2319
    %v2321 = vmul.f32 %v2309, 3.8918573e-05
    %v2322 = vadd.f32 %v2321, 0.001143296
    %v2323 = vmul.f32 %v2309, %v2322
    %v2324 = vadd.f32 %v2323, 0.014752088
    %v2325 = vmul.f32 %v2309, %v2324
    %v2326 = vadd.f32 %v2325, 0.112945676
    %v2327 = vmul.f32 %v2309, %v2326
    %v2328 = vadd.f32 %v2327, 0.4994258
    %v2329 = vmul.f32 %v2309, %v2328
    %v2330 = vadd.f32 %v2329, 1.0
    %v2331 = vrcp.pop %v2330
    %v2332 = vmul.f32 %v2330, %v2331
    %v2333 = vsub.f32 1.0, %v2332
    %v2334 = vmul.f32 %v2331, %v2333
    %v2335 = vadd.f32 %v2331, %v2334
    %vm2336 = vweird.f32 %v2330
    %vm2337 = vweird.f32 %v2331
    %vm2338 = vmor %vm2336, %vm2337
    %v2339 = vsel %vm2338, %v2331, %v2335
    %v2340 = vand.u32 2147483647, %v2330
    %vm2341 = vcmp.eq.f32.partialorder %v2340, 8.507059e+37
    %v2342 = vand.u32 %v2330, 2147483648
    %v2343 = vor.u32 1.1754944e-38, %v2342
    %v2344 = vsel %vm2341, %v2343, %v2339
    %v2345 = vmul.f32 %v2320, %v2344
    %v2346 = vmin.f32 %v2345, 1.0
    %v2347 = vmax.f32 %v2346, -1.0
    %v2348 = vmul.f32 %v2176, %v2176
    %v2349 = vmin.f32 16.0, %v2348
    %v2350 = vmul.f32 %v2349, 2.1237322e-06
    %v2351 = vadd.f32 %v2350, 0.00028619796
    %v2352 = vmul.f32 %v2349, %v2351
    %v2353 = vadd.f32 %v2352, 0.0036580483
    %v2354 = vmul.f32 %v2349, %v2353
    %v2355 = vadd.f32 %v2354, 0.05243302
    %v2356 = vmul.f32 %v2349, %v2355
    %v2357 = vadd.f32 %v2356, 0.18741608
    %v2358 = vmul.f32 %v2349, %v2357
    %v2359 = vadd.f32 %v2358, 1.1283791
    %v2360 = vmul.f32 %v2176, %v2359
    %v2361 = vmul.f32 %v2349, 3.8918573e-05
    %v2362 = vadd.f32 %v2361, 0.001143296
    %v2363 = vmul.f32 %v2349, %v2362
    %v2364 = vadd.f32 %v2363, 0.014752088
    %v2365 = vmul.f32 %v2349, %v2364
    %v2366 = vadd.f32 %v2365, 0.112945676
    %v2367 = vmul.f32 %v2349, %v2366
    %v2368 = vadd.f32 %v2367, 0.4994258
    %v2369 = vmul.f32 %v2349, %v2368
    %v2370 = vadd.f32 %v2369, 1.0
    %v2371 = vrcp.pop %v2370
    %v2372 = vmul.f32 %v2370, %v2371
    %v2373 = vsub.f32 1.0, %v2372
    %v2374 = vmul.f32 %v2371, %v2373
    %v2375 = vadd.f32 %v2371, %v2374
    %vm2376 = vweird.f32 %v2370
    %vm2377 = vweird.f32 %v2371
    %vm2378 = vmor %vm2376, %vm2377
    %v2379 = vsel %vm2378, %v2371, %v2375
    %v2380 = vand.u32 2147483647, %v2370
    %vm2381 = vcmp.eq.f32.partialorder %v2380, 8.507059e+37
    %v2382 = vand.u32 %v2370, 2147483648
    %v2383 = vor.u32 1.1754944e-38, %v2382
    %v2384 = vsel %vm2381, %v2383, %v2379
    %v2385 = vmul.f32 %v2360, %v2384
    %v2386 = vmin.f32 %v2385, 1.0
    %v2387 = vmax.f32 %v2386, -1.0
    %v2388 = vmul.f32 %v2177, %v2177
    %v2389 = vmin.f32 16.0, %v2388
    %v2390 = vmul.f32 %v2389, 2.1237322e-06
    %v2391 = vadd.f32 %v2390, 0.00028619796
    %v2392 = vmul.f32 %v2389, %v2391
    %v2393 = vadd.f32 %v2392, 0.0036580483
    %v2394 = vmul.f32 %v2389, %v2393
    %v2395 = vadd.f32 %v2394, 0.05243302
    %v2396 = vmul.f32 %v2389, %v2395
    %v2397 = vadd.f32 %v2396, 0.18741608
    %v2398 = vmul.f32 %v2389, %v2397
    %v2399 = vadd.f32 %v2398, 1.1283791
    %v2400 = vmul.f32 %v2177, %v2399
    %v2401 = vmul.f32 %v2389, 3.8918573e-05
    %v2402 = vadd.f32 %v2401, 0.001143296
    %v2403 = vmul.f32 %v2389, %v2402
    %v2404 = vadd.f32 %v2403, 0.014752088
    %v2405 = vmul.f32 %v2389, %v2404
    %v2406 = vadd.f32 %v2405, 0.112945676
    %v2407 = vmul.f32 %v2389, %v2406
    %v2408 = vadd.f32 %v2407, 0.4994258
    %v2409 = vmul.f32 %v2389, %v2408
    %v2410 = vadd.f32 %v2409, 1.0
    %v2411 = vrcp.pop %v2410
    %v2412 = vmul.f32 %v2410, %v2411
    %v2413 = vsub.f32 1.0, %v2412
    %v2414 = vmul.f32 %v2411, %v2413
    %v2415 = vadd.f32 %v2411, %v2414
    %vm2416 = vweird.f32 %v2410
    %vm2417 = vweird.f32 %v2411
    %vm2418 = vmor %vm2416, %vm2417
    %v2419 = vsel %vm2418, %v2411, %v2415
    %v2420 = vand.u32 2147483647, %v2410
    %vm2421 = vcmp.eq.f32.partialorder %v2420, 8.507059e+37
    %v2422 = vand.u32 %v2410, 2147483648
    %v2423 = vor.u32 1.1754944e-38, %v2422
    %v2424 = vsel %vm2421, %v2423, %v2419
    %v2425 = vmul.f32 %v2400, %v2424
    %v2426 = vmin.f32 %v2425, 1.0
    %v2427 = vmax.f32 %v2426, -1.0
    %v2428 = vmul.f32 %v2178, %v2178
    %v2429 = vmin.f32 16.0, %v2428
    %v2430 = vmul.f32 %v2429, 2.1237322e-06
    %v2431 = vadd.f32 %v2430, 0.00028619796
    %v2432 = vmul.f32 %v2429, %v2431
    %v2433 = vadd.f32 %v2432, 0.0036580483
    %v2434 = vmul.f32 %v2429, %v2433
    %v2435 = vadd.f32 %v2434, 0.05243302
    %v2436 = vmul.f32 %v2429, %v2435
    %v2437 = vadd.f32 %v2436, 0.18741608
    %v2438 = vmul.f32 %v2429, %v2437
    %v2439 = vadd.f32 %v2438, 1.1283791
    %v2440 = vmul.f32 %v2178, %v2439
    %v2441 = vmul.f32 %v2429, 3.8918573e-05
    %v2442 = vadd.f32 %v2441, 0.001143296
    %v2443 = vmul.f32 %v2429, %v2442
    %v2444 = vadd.f32 %v2443, 0.014752088
    %v2445 = vmul.f32 %v2429, %v2444
    %v2446 = vadd.f32 %v2445, 0.112945676
    %v2447 = vmul.f32 %v2429, %v2446
    %v2448 = vadd.f32 %v2447, 0.4994258
    %v2449 = vmul.f32 %v2429, %v2448
    %v2450 = vadd.f32 %v2449, 1.0
    %v2451 = vrcp.pop %v2450
    %v2452 = vmul.f32 %v2450, %v2451
    %v2453 = vsub.f32 1.0, %v2452
    %v2454 = vmul.f32 %v2451, %v2453
    %v2455 = vadd.f32 %v2451, %v2454
    %vm2456 = vweird.f32 %v2450
    %vm2457 = vweird.f32 %v2451
    %vm2458 = vmor %vm2456, %vm2457
    %v2459 = vsel %vm2458, %v2451, %v2455
    %v2460 = vand.u32 2147483647, %v2450
    %vm2461 = vcmp.eq.f32.partialorder %v2460, 8.507059e+37
    %v2462 = vand.u32 %v2450, 2147483648
    %v2463 = vor.u32 1.1754944e-38, %v2462
    %v2464 = vsel %vm2461, %v2463, %v2459
    %v2465 = vmul.f32 %v2440, %v2464
    %v2466 = vmin.f32 %v2465, 1.0
    %v2467 = vmax.f32 %v2466, -1.0
    %v2468 = vmul.f32 %v2179, %v2179
    %v2469 = vmin.f32 16.0, %v2468
    %v2470 = vmul.f32 %v2469, 2.1237322e-06
    %v2471 = vadd.f32 %v2470, 0.00028619796
    %v2472 = vmul.f32 %v2469, %v2471
    %v2473 = vadd.f32 %v2472, 0.0036580483
    %v2474 = vmul.f32 %v2469, %v2473
    %v2475 = vadd.f32 %v2474, 0.05243302
    %v2476 = vmul.f32 %v2469, %v2475
    %v2477 = vadd.f32 %v2476, 0.18741608
    %v2478 = vmul.f32 %v2469, %v2477
    %v2479 = vadd.f32 %v2478, 1.1283791
    %v2480 = vmul.f32 %v2179, %v2479
    %v2481 = vmul.f32 %v2469, 3.8918573e-05
    %v2482 = vadd.f32 %v2481, 0.001143296
    %v2483 = vmul.f32 %v2469, %v2482
    %v2484 = vadd.f32 %v2483, 0.014752088
    %v2485 = vmul.f32 %v2469, %v2484
    %v2486 = vadd.f32 %v2485, 0.112945676
    %v2487 = vmul.f32 %v2469, %v2486
    %v2488 = vadd.f32 %v2487, 0.4994258
    %v2489 = vmul.f32 %v2469, %v2488
    %v2490 = vadd.f32 %v2489, 1.0
    %v2491 = vrcp.pop %v2490
    %v2492 = vmul.f32 %v2490, %v2491
    %v2493 = vsub.f32 1.0, %v2492
    %v2494 = vmul.f32 %v2491, %v2493
    %v2495 = vadd.f32 %v2491, %v2494
    %vm2496 = vweird.f32 %v2490
    %vm2497 = vweird.f32 %v2491
    %vm2498 = vmor %vm2496, %vm2497
    %v2499 = vsel %vm2498, %v2491, %v2495
    %v2500 = vand.u32 2147483647, %v2490
    %vm2501 = vcmp.eq.f32.partialorder %v2500, 8.507059e+37
    %v2502 = vand.u32 %v2490, 2147483648
    %v2503 = vor.u32 1.1754944e-38, %v2502
    %v2504 = vsel %vm2501, %v2503, %v2499
    %v2505 = vmul.f32 %v2480, %v2504
    %v2506 = vmin.f32 %v2505, 1.0
    %v2507 = vmax.f32 %v2506, -1.0
    %v2508 = vmul.f32 %v2180, %v2180
    %v2509 = vmin.f32 16.0, %v2508
    %v2510 = vmul.f32 %v2509, 2.1237322e-06
    %v2511 = vadd.f32 %v2510, 0.00028619796
    %v2512 = vmul.f32 %v2509, %v2511
    %v2513 = vadd.f32 %v2512, 0.0036580483
    %v2514 = vmul.f32 %v2509, %v2513
    %v2515 = vadd.f32 %v2514, 0.05243302
    %v2516 = vmul.f32 %v2509, %v2515
    %v2517 = vadd.f32 %v2516, 0.18741608
    %v2518 = vmul.f32 %v2509, %v2517
    %v2519 = vadd.f32 %v2518, 1.1283791
    %v2520 = vmul.f32 %v2180, %v2519
    %v2521 = vmul.f32 %v2509, 3.8918573e-05
    %v2522 = vadd.f32 %v2521, 0.001143296
    %v2523 = vmul.f32 %v2509, %v2522
    %v2524 = vadd.f32 %v2523, 0.014752088
    %v2525 = vmul.f32 %v2509, %v2524
    %v2526 = vadd.f32 %v2525, 0.112945676
    %v2527 = vmul.f32 %v2509, %v2526
    %v2528 = vadd.f32 %v2527, 0.4994258
    %v2529 = vmul.f32 %v2509, %v2528
    %v2530 = vadd.f32 %v2529, 1.0
    %v2531 = vrcp.pop %v2530
    %v2532 = vmul.f32 %v2530, %v2531
    %v2533 = vsub.f32 1.0, %v2532
    %v2534 = vmul.f32 %v2531, %v2533
    %v2535 = vadd.f32 %v2531, %v2534
    %vm2536 = vweird.f32 %v2530
    %vm2537 = vweird.f32 %v2531
    %vm2538 = vmor %vm2536, %vm2537
    %v2539 = vsel %vm2538, %v2531, %v2535
    %v2540 = vand.u32 2147483647, %v2530
    %vm2541 = vcmp.eq.f32.partialorder %v2540, 8.507059e+37
    %v2542 = vand.u32 %v2530, 2147483648
    %v2543 = vor.u32 1.1754944e-38, %v2542
    %v2544 = vsel %vm2541, %v2543, %v2539
    %v2545 = vmul.f32 %v2520, %v2544
    %v2546 = vmin.f32 %v2545, 1.0
    %v2547 = vmax.f32 %v2546, -1.0
    %v2548 = vmul.f32 %v2181, %v2181
    %v2549 = vmin.f32 16.0, %v2548
    %v2550 = vmul.f32 %v2549, 2.1237322e-06
    %v2551 = vadd.f32 %v2550, 0.00028619796
    %v2552 = vmul.f32 %v2549, %v2551
    %v2553 = vadd.f32 %v2552, 0.0036580483
    %v2554 = vmul.f32 %v2549, %v2553
    %v2555 = vadd.f32 %v2554, 0.05243302
    %v2556 = vmul.f32 %v2549, %v2555
    %v2557 = vadd.f32 %v2556, 0.18741608
    %v2558 = vmul.f32 %v2549, %v2557
    %v2559 = vadd.f32 %v2558, 1.1283791
    %v2560 = vmul.f32 %v2181, %v2559
    %v2561 = vmul.f32 %v2549, 3.8918573e-05
    %v2562 = vadd.f32 %v2561, 0.001143296
    %v2563 = vmul.f32 %v2549, %v2562
    %v2564 = vadd.f32 %v2563, 0.014752088
    %v2565 = vmul.f32 %v2549, %v2564
    %v2566 = vadd.f32 %v2565, 0.112945676
    %v2567 = vmul.f32 %v2549, %v2566
    %v2568 = vadd.f32 %v2567, 0.4994258
    %v2569 = vmul.f32 %v2549, %v2568
    %v2570 = vadd.f32 %v2569, 1.0
    %v2571 = vrcp.pop %v2570
    %v2572 = vmul.f32 %v2570, %v2571
    %v2573 = vsub.f32 1.0, %v2572
    %v2574 = vmul.f32 %v2571, %v2573
    %v2575 = vadd.f32 %v2571, %v2574
    %vm2576 = vweird.f32 %v2570
    %vm2577 = vweird.f32 %v2571
    %vm2578 = vmor %vm2576, %vm2577
    %v2579 = vsel %vm2578, %v2571, %v2575
    %v2580 = vand.u32 2147483647, %v2570
    %vm2581 = vcmp.eq.f32.partialorder %v2580, 8.507059e+37
    %v2582 = vand.u32 %v2570, 2147483648
    %v2583 = vor.u32 1.1754944e-38, %v2582
    %v2584 = vsel %vm2581, %v2583, %v2579
    %v2585 = vmul.f32 %v2560, %v2584
    %v2586 = vmin.f32 %v2585, 1.0
    %v2587 = vmax.f32 %v2586, -1.0
    %v2588 = vmul.f32 %v2182, %v2182
    %v2589 = vmin.f32 16.0, %v2588
    %v2590 = vmul.f32 %v2589, 2.1237322e-06
    %v2591 = vadd.f32 %v2590, 0.00028619796
    %v2592 = vmul.f32 %v2589, %v2591
    %v2593 = vadd.f32 %v2592, 0.0036580483
    %v2594 = vmul.f32 %v2589, %v2593
    %v2595 = vadd.f32 %v2594, 0.05243302
    %v2596 = vmul.f32 %v2589, %v2595
    %v2597 = vadd.f32 %v2596, 0.18741608
    %v2598 = vmul.f32 %v2589, %v2597
    %v2599 = vadd.f32 %v2598, 1.1283791
    %v2600 = vmul.f32 %v2182, %v2599
    %v2601 = vmul.f32 %v2589, 3.8918573e-05
    %v2602 = vadd.f32 %v2601, 0.001143296
    %v2603 = vmul.f32 %v2589, %v2602
    %v2604 = vadd.f32 %v2603, 0.014752088
    %v2605 = vmul.f32 %v2589, %v2604
    %v2606 = vadd.f32 %v2605, 0.112945676
    %v2607 = vmul.f32 %v2589, %v2606
    %v2608 = vadd.f32 %v2607, 0.4994258
    %v2609 = vmul.f32 %v2589, %v2608
    %v2610 = vadd.f32 %v2609, 1.0
    %v2611 = vrcp.pop %v2610
    %v2612 = vmul.f32 %v2610, %v2611
    %v2613 = vsub.f32 1.0, %v2612
    %v2614 = vmul.f32 %v2611, %v2613
    %v2615 = vadd.f32 %v2611, %v2614
    %vm2616 = vweird.f32 %v2610
    %vm2617 = vweird.f32 %v2611
    %vm2618 = vmor %vm2616, %vm2617
    %v2619 = vsel %vm2618, %v2611, %v2615
    %v2620 = vand.u32 2147483647, %v2610
    %vm2621 = vcmp.eq.f32.partialorder %v2620, 8.507059e+37
    %v2622 = vand.u32 %v2610, 2147483648
    %v2623 = vor.u32 1.1754944e-38, %v2622
    %v2624 = vsel %vm2621, %v2623, %v2619
    %v2625 = vmul.f32 %v2600, %v2624
    %v2626 = vmin.f32 %v2625, 1.0
    %v2627 = vmax.f32 %v2626, -1.0
    %v2628 = vmul.f32 %v2183, %v2183
    %v2629 = vmin.f32 16.0, %v2628
    %v2630 = vmul.f32 %v2629, 2.1237322e-06
    %v2631 = vadd.f32 %v2630, 0.00028619796
    %v2632 = vmul.f32 %v2629, %v2631
    %v2633 = vadd.f32 %v2632, 0.0036580483
    %v2634 = vmul.f32 %v2629, %v2633
    %v2635 = vadd.f32 %v2634, 0.05243302
    %v2636 = vmul.f32 %v2629, %v2635
    %v2637 = vadd.f32 %v2636, 0.18741608
    %v2638 = vmul.f32 %v2629, %v2637
    %v2639 = vadd.f32 %v2638, 1.1283791
    %v2640 = vmul.f32 %v2183, %v2639
    %v2641 = vmul.f32 %v2629, 3.8918573e-05
    %v2642 = vadd.f32 %v2641, 0.001143296
    %v2643 = vmul.f32 %v2629, %v2642
    %v2644 = vadd.f32 %v2643, 0.014752088
    %v2645 = vmul.f32 %v2629, %v2644
    %v2646 = vadd.f32 %v2645, 0.112945676
    %v2647 = vmul.f32 %v2629, %v2646
    %v2648 = vadd.f32 %v2647, 0.4994258
    %v2649 = vmul.f32 %v2629, %v2648
    %v2650 = vadd.f32 %v2649, 1.0
    %v2651 = vrcp.pop %v2650
    %v2652 = vmul.f32 %v2650, %v2651
    %v2653 = vsub.f32 1.0, %v2652
    %v2654 = vmul.f32 %v2651, %v2653
    %v2655 = vadd.f32 %v2651, %v2654
    %vm2656 = vweird.f32 %v2650
    %vm2657 = vweird.f32 %v2651
    %vm2658 = vmor %vm2656, %vm2657
    %v2659 = vsel %vm2658, %v2651, %v2655
    %v2660 = vand.u32 2147483647, %v2650
    %vm2661 = vcmp.eq.f32.partialorder %v2660, 8.507059e+37
    %v2662 = vand.u32 %v2650, 2147483648
    %v2663 = vor.u32 1.1754944e-38, %v2662
    %v2664 = vsel %vm2661, %v2663, %v2659
    %v2665 = vmul.f32 %v2640, %v2664
    %v2666 = vmin.f32 %v2665, 1.0
    %v2667 = vmax.f32 %v2666, -1.0
    %v2668 = vmul.f32 %v2184, %v2184
    %v2669 = vmin.f32 16.0, %v2668
    %v2670 = vmul.f32 %v2669, 2.1237322e-06
    %v2671 = vadd.f32 %v2670, 0.00028619796
    %v2672 = vmul.f32 %v2669, %v2671
    %v2673 = vadd.f32 %v2672, 0.0036580483
    %v2674 = vmul.f32 %v2669, %v2673
    %v2675 = vadd.f32 %v2674, 0.05243302
    %v2676 = vmul.f32 %v2669, %v2675
    %v2677 = vadd.f32 %v2676, 0.18741608
    %v2678 = vmul.f32 %v2669, %v2677
    %v2679 = vadd.f32 %v2678, 1.1283791
    %v2680 = vmul.f32 %v2184, %v2679
    %v2681 = vmul.f32 %v2669, 3.8918573e-05
    %v2682 = vadd.f32 %v2681, 0.001143296
    %v2683 = vmul.f32 %v2669, %v2682
    %v2684 = vadd.f32 %v2683, 0.014752088
    %v2685 = vmul.f32 %v2669, %v2684
    %v2686 = vadd.f32 %v2685, 0.112945676
    %v2687 = vmul.f32 %v2669, %v2686
    %v2688 = vadd.f32 %v2687, 0.4994258
    %v2689 = vmul.f32 %v2669, %v2688
    %v2690 = vadd.f32 %v2689, 1.0
    %v2691 = vrcp.pop %v2690
    %v2692 = vmul.f32 %v2690, %v2691
    %v2693 = vsub.f32 1.0, %v2692
    %v2694 = vmul.f32 %v2691, %v2693
    %v2695 = vadd.f32 %v2691, %v2694
    %vm2696 = vweird.f32 %v2690
    %vm2697 = vweird.f32 %v2691
    %vm2698 = vmor %vm2696, %vm2697
    %v2699 = vsel %vm2698, %v2691, %v2695
    %v2700 = vand.u32 2147483647, %v2690
    %vm2701 = vcmp.eq.f32.partialorder %v2700, 8.507059e+37
    %v2702 = vand.u32 %v2690, 2147483648
    %v2703 = vor.u32 1.1754944e-38, %v2702
    %v2704 = vsel %vm2701, %v2703, %v2699
    %v2705 = vmul.f32 %v2680, %v2704
    %v2706 = vmin.f32 %v2705, 1.0
    %v2707 = vmax.f32 %v2706, -1.0
    %v2708 = vmul.f32 %v2185, %v2185
    %v2709 = vmin.f32 16.0, %v2708
    %v2710 = vmul.f32 %v2709, 2.1237322e-06
    %v2711 = vadd.f32 %v2710, 0.00028619796
    %v2712 = vmul.f32 %v2709, %v2711
    %v2713 = vadd.f32 %v2712, 0.0036580483
    %v2714 = vmul.f32 %v2709, %v2713
    %v2715 = vadd.f32 %v2714, 0.05243302
    %v2716 = vmul.f32 %v2709, %v2715
    %v2717 = vadd.f32 %v2716, 0.18741608
    %v2718 = vmul.f32 %v2709, %v2717
    %v2719 = vadd.f32 %v2718, 1.1283791
    %v2720 = vmul.f32 %v2185, %v2719
    %v2721 = vmul.f32 %v2709, 3.8918573e-05
    %v2722 = vadd.f32 %v2721, 0.001143296
    %v2723 = vmul.f32 %v2709, %v2722
    %v2724 = vadd.f32 %v2723, 0.014752088
    %v2725 = vmul.f32 %v2709, %v2724
    %v2726 = vadd.f32 %v2725, 0.112945676
    %v2727 = vmul.f32 %v2709, %v2726
    %v2728 = vadd.f32 %v2727, 0.4994258
    %v2729 = vmul.f32 %v2709, %v2728
    %v2730 = vadd.f32 %v2729, 1.0
    %v2731 = vrcp.pop %v2730
    %v2732 = vmul.f32 %v2730, %v2731
    %v2733 = vsub.f32 1.0, %v2732
    %v2734 = vmul.f32 %v2731, %v2733
    %v2735 = vadd.f32 %v2731, %v2734
    %vm2736 = vweird.f32 %v2730
    %vm2737 = vweird.f32 %v2731
    %vm2738 = vmor %vm2736, %vm2737
    %v2739 = vsel %vm2738, %v2731, %v2735
    %v2740 = vand.u32 2147483647, %v2730
    %vm2741 = vcmp.eq.f32.partialorder %v2740, 8.507059e+37
    %v2742 = vand.u32 %v2730, 2147483648
    %v2743 = vor.u32 1.1754944e-38, %v2742
    %v2744 = vsel %vm2741, %v2743, %v2739
    %v2745 = vmul.f32 %v2720, %v2744
    %v2746 = vmin.f32 %v2745, 1.0
    %v2747 = vmax.f32 %v2746, -1.0
    %v2748 = vmul.f32 %v2186, %v2186
    %v2749 = vmin.f32 16.0, %v2748
    %v2750 = vmul.f32 %v2749, 2.1237322e-06
    %v2751 = vadd.f32 %v2750, 0.00028619796
    %v2752 = vmul.f32 %v2749, %v2751
    %v2753 = vadd.f32 %v2752, 0.0036580483
    %v2754 = vmul.f32 %v2749, %v2753
    %v2755 = vadd.f32 %v2754, 0.05243302
    %v2756 = vmul.f32 %v2749, %v2755
    %v2757 = vadd.f32 %v2756, 0.18741608
    %v2758 = vmul.f32 %v2749, %v2757
    %v2759 = vadd.f32 %v2758, 1.1283791
    %v2760 = vmul.f32 %v2186, %v2759
    %v2761 = vmul.f32 %v2749, 3.8918573e-05
    %v2762 = vadd.f32 %v2761, 0.001143296
    %v2763 = vmul.f32 %v2749, %v2762
    %v2764 = vadd.f32 %v2763, 0.014752088
    %v2765 = vmul.f32 %v2749, %v2764
    %v2766 = vadd.f32 %v2765, 0.112945676
    %v2767 = vmul.f32 %v2749, %v2766
    %v2768 = vadd.f32 %v2767, 0.4994258
    %v2769 = vmul.f32 %v2749, %v2768
    %v2770 = vadd.f32 %v2769, 1.0
    %v2771 = vrcp.pop %v2770
    %v2772 = vmul.f32 %v2770, %v2771
    %v2773 = vsub.f32 1.0, %v2772
    %v2774 = vmul.f32 %v2771, %v2773
    %v2775 = vadd.f32 %v2771, %v2774
    %vm2776 = vweird.f32 %v2770
    %vm2777 = vweird.f32 %v2771
    %vm2778 = vmor %vm2776, %vm2777
    %v2779 = vsel %vm2778, %v2771, %v2775
    %v2780 = vand.u32 2147483647, %v2770
    %vm2781 = vcmp.eq.f32.partialorder %v2780, 8.507059e+37
    %v2782 = vand.u32 %v2770, 2147483648
    %v2783 = vor.u32 1.1754944e-38, %v2782
    %v2784 = vsel %vm2781, %v2783, %v2779
    %v2785 = vmul.f32 %v2760, %v2784
    %v2786 = vmin.f32 %v2785, 1.0
    %v2787 = vmax.f32 %v2786, -1.0
    %v2788 = vmul.f32 %v2187, %v2187
    %v2789 = vmin.f32 16.0, %v2788
    %v2790 = vmul.f32 %v2789, 2.1237322e-06
    %v2791 = vadd.f32 %v2790, 0.00028619796
    %v2792 = vmul.f32 %v2789, %v2791
    %v2793 = vadd.f32 %v2792, 0.0036580483
    %v2794 = vmul.f32 %v2789, %v2793
    %v2795 = vadd.f32 %v2794, 0.05243302
    %v2796 = vmul.f32 %v2789, %v2795
    %v2797 = vadd.f32 %v2796, 0.18741608
    %v2798 = vmul.f32 %v2789, %v2797
    %v2799 = vadd.f32 %v2798, 1.1283791
    %v2800 = vmul.f32 %v2187, %v2799
    %v2801 = vmul.f32 %v2789, 3.8918573e-05
    %v2802 = vadd.f32 %v2801, 0.001143296
    %v2803 = vmul.f32 %v2789, %v2802
    %v2804 = vadd.f32 %v2803, 0.014752088
    %v2805 = vmul.f32 %v2789, %v2804
    %v2806 = vadd.f32 %v2805, 0.112945676
    %v2807 = vmul.f32 %v2789, %v2806
    %v2808 = vadd.f32 %v2807, 0.4994258
    %v2809 = vmul.f32 %v2789, %v2808
    %v2810 = vadd.f32 %v2809, 1.0
    %v2811 = vrcp.pop %v2810
    %v2812 = vmul.f32 %v2810, %v2811
    %v2813 = vsub.f32 1.0, %v2812
    %v2814 = vmul.f32 %v2811, %v2813
    %v2815 = vadd.f32 %v2811, %v2814
    %vm2816 = vweird.f32 %v2810
    %vm2817 = vweird.f32 %v2811
    %vm2818 = vmor %vm2816, %vm2817
    %v2819 = vsel %vm2818, %v2811, %v2815
    %v2820 = vand.u32 2147483647, %v2810
    %vm2821 = vcmp.eq.f32.partialorder %v2820, 8.507059e+37
    %v2822 = vand.u32 %v2810, 2147483648
    %v2823 = vor.u32 1.1754944e-38, %v2822
    %v2824 = vsel %vm2821, %v2823, %v2819
    %v2825 = vmul.f32 %v2800, %v2824
    %v2826 = vmin.f32 %v2825, 1.0
    %v2827 = vmax.f32 %v2826, -1.0
    %v2828 = vadd.f32 %v2227, 1.0
    %v2829 = vadd.f32 %v2267, 1.0
    %v2830 = vadd.f32 %v2307, 1.0
    %v2831 = vadd.f32 %v2347, 1.0
    %v2832 = vadd.f32 %v2387, 1.0
    %v2833 = vadd.f32 %v2427, 1.0
    %v2834 = vadd.f32 %v2467, 1.0
    %v2835 = vadd.f32 %v2507, 1.0
    %v2836 = vadd.f32 %v2547, 1.0
    %v2837 = vadd.f32 %v2587, 1.0
    %v2838 = vadd.f32 %v2627, 1.0
    %v2839 = vadd.f32 %v2667, 1.0
    %v2840 = vadd.f32 %v2707, 1.0
    %v2841 = vadd.f32 %v2747, 1.0
    %v2842 = vadd.f32 %v2787, 1.0
    %v2843 = vadd.f32 %v2827, 1.0
    %v2844 = vmul.f32 %v2156, %v2828
    %v2845 = vmul.f32 %v2157, %v2829
    %v2846 = vmul.f32 %v2158, %v2830
    %v2847 = vmul.f32 %v2159, %v2831
    %v2848 = vmul.f32 %v2160, %v2832
    %v2849 = vmul.f32 %v2161, %v2833
    %v2850 = vmul.f32 %v2162, %v2834
    %v2851 = vmul.f32 %v2163, %v2835
    %v2852 = vmul.f32 %v2164, %v2836
    %v2853 = vmul.f32 %v2165, %v2837
    %v2854 = vmul.f32 %v2166, %v2838
    %v2855 = vmul.f32 %v2167, %v2839
    %v2856 = vmul.f32 %v2168, %v2840
    %v2857 = vmul.f32 %v2169, %v2841
    %v2858 = vmul.f32 %v2170, %v2842
    %v2859 = vmul.f32 %v2171, %v2843
    %v2860 = vld [vmem:[#allocation7] sm:$0xff]
    %v2861 = vld [vmem:[#allocation7 + $0x8] sm:$0xff]
    %v2862 = vld [vmem:[#allocation7 + $0x10] sm:$0xff]
    %v2863 = vld [vmem:[#allocation7 + $0x18] sm:$0xff]
    %v2864 = vld [vmem:[#allocation7 + $0x20] sm:$0xff]
    %v2865 = vld [vmem:[#allocation7 + $0x28] sm:$0xff]
    %v2866 = vld [vmem:[#allocation7 + $0x30] sm:$0xff]
    %v2867 = vld [vmem:[#allocation7 + $0x38] sm:$0xff]
    %v2868 = vld [vmem:[#allocation7 + $0x40] sm:$0xff]
    %v2869 = vld [vmem:[#allocation7 + $0x48] sm:$0xff]
    %v2870 = vld [vmem:[#allocation7 + $0x50] sm:$0xff]
    %v2871 = vld [vmem:[#allocation7 + $0x58] sm:$0xff]
    %v2872 = vld [vmem:[#allocation7 + $0x60] sm:$0xff]
    %v2873 = vld [vmem:[#allocation7 + $0x68] sm:$0xff]
    %v2874 = vld [vmem:[#allocation7 + $0x70] sm:$0xff]
    %v2875 = vld [vmem:[#allocation7 + $0x78] sm:$0xff]
    %v2876 = vld [vmem:[#allocation7 + $0x80] sm:$0xff]
    %v2877 = vld [vmem:[#allocation7 + $0x88] sm:$0xff]
    %v2878 = vld [vmem:[#allocation7 + $0x90] sm:$0xff]
    %v2879 = vld [vmem:[#allocation7 + $0x98] sm:$0xff]
    %v2880 = vld [vmem:[#allocation7 + $0xa0] sm:$0xff]
    %v2881 = vld [vmem:[#allocation7 + $0xa8] sm:$0xff]
    %v2882 = vld [vmem:[#allocation7 + $0xb0] sm:$0xff]
    %v2883 = vld [vmem:[#allocation7 + $0xb8] sm:$0xff]
    %v2884 = vld [vmem:[#allocation7 + $0xc0] sm:$0xff]
    %v2885 = vld [vmem:[#allocation7 + $0xc8] sm:$0xff]
    %v2886 = vld [vmem:[#allocation7 + $0xd0] sm:$0xff]
    %v2887 = vld [vmem:[#allocation7 + $0xd8] sm:$0xff]
    %v2888 = vld [vmem:[#allocation7 + $0xe0] sm:$0xff]
    %v2889 = vld [vmem:[#allocation7 + $0xe8] sm:$0xff]
    %v2890 = vld [vmem:[#allocation7 + $0xf0] sm:$0xff]
    %v2891 = vld [vmem:[#allocation7 + $0xf8] sm:$0xff]
    %v2892 = vld [vmem:[#allocation7 + $0x100] sm:$0xff]
    %v2893 = vld [vmem:[#allocation7 + $0x108] sm:$0xff]
    %v2894 = vld [vmem:[#allocation7 + $0x110] sm:$0xff]
    %v2895 = vld [vmem:[#allocation7 + $0x118] sm:$0xff]
    %v2896 = vld [vmem:[#allocation7 + $0x120] sm:$0xff]
    %v2897 = vld [vmem:[#allocation7 + $0x128] sm:$0xff]
    %v2898 = vld [vmem:[#allocation7 + $0x130] sm:$0xff]
    %v2899 = vld [vmem:[#allocation7 + $0x138] sm:$0xff]
    %v2900 = vld [vmem:[#allocation7 + $0x140] sm:$0xff]
    %v2901 = vld [vmem:[#allocation7 + $0x148] sm:$0xff]
    %v2902 = vld [vmem:[#allocation7 + $0x150] sm:$0xff]
    %v2903 = vld [vmem:[#allocation7 + $0x158] sm:$0xff]
    %v2904 = vld [vmem:[#allocation7 + $0x160] sm:$0xff]
    %v2905 = vld [vmem:[#allocation7 + $0x168] sm:$0xff]
    %v2906 = vld [vmem:[#allocation7 + $0x170] sm:$0xff]
    %v2907 = vld [vmem:[#allocation7 + $0x178] sm:$0xff]
    %v2908 = vld [vmem:[#allocation7 + $0x180] sm:$0xff]
    %v2909 = vld [vmem:[#allocation7 + $0x188] sm:$0xff]
    %v2910 = vld [vmem:[#allocation7 + $0x190] sm:$0xff]
    %v2911 = vld [vmem:[#allocation7 + $0x198] sm:$0xff]
    %v2912 = vld [vmem:[#allocation7 + $0x1a0] sm:$0xff]
    %v2913 = vld [vmem:[#allocation7 + $0x1a8] sm:$0xff]
    %v2914 = vld [vmem:[#allocation7 + $0x1b0] sm:$0xff]
    %v2915 = vld [vmem:[#allocation7 + $0x1b8] sm:$0xff]
    %v2916 = vld [vmem:[#allocation7 + $0x1c0] sm:$0xff]
    %v2917 = vld [vmem:[#allocation7 + $0x1c8] sm:$0xff]
    %v2918 = vld [vmem:[#allocation7 + $0x1d0] sm:$0xff]
    %v2919 = vld [vmem:[#allocation7 + $0x1d8] sm:$0xff]
    %v2920 = vld [vmem:[#allocation7 + $0x1e0] sm:$0xff]
    %v2921 = vld [vmem:[#allocation7 + $0x1e8] sm:$0xff]
    %v2922 = vld [vmem:[#allocation7 + $0x1f0] sm:$0xff]
    %v2923 = vld [vmem:[#allocation7 + $0x1f8] sm:$0xff]
    %v2924 = vld [vmem:[#allocation7 + $0x200] sm:$0xff]
    %v2925 = vld [vmem:[#allocation7 + $0x208] sm:$0xff]
    %v2926 = vld [vmem:[#allocation7 + $0x210] sm:$0xff]
    %v2927 = vld [vmem:[#allocation7 + $0x218] sm:$0xff]
    %v2928 = vld [vmem:[#allocation7 + $0x220] sm:$0xff]
    %v2929 = vld [vmem:[#allocation7 + $0x228] sm:$0xff]
    %v2930 = vld [vmem:[#allocation7 + $0x230] sm:$0xff]
    %v2931 = vld [vmem:[#allocation7 + $0x238] sm:$0xff]
    %v2932 = vld [vmem:[#allocation7 + $0x240] sm:$0xff]
    %v2933 = vld [vmem:[#allocation7 + $0x248] sm:$0xff]
    %v2934 = vld [vmem:[#allocation7 + $0x250] sm:$0xff]
    %v2935 = vld [vmem:[#allocation7 + $0x258] sm:$0xff]
    %v2936 = vld [vmem:[#allocation7 + $0x260] sm:$0xff]
    %v2937 = vld [vmem:[#allocation7 + $0x268] sm:$0xff]
    %v2938 = vld [vmem:[#allocation7 + $0x270] sm:$0xff]
    %v2939 = vld [vmem:[#allocation7 + $0x278] sm:$0xff]
    %v2940 = vld [vmem:[#allocation7 + $0x280] sm:$0xff]
    %v2941 = vld [vmem:[#allocation7 + $0x288] sm:$0xff]
    %v2942 = vld [vmem:[#allocation7 + $0x290] sm:$0xff]
    %v2943 = vld [vmem:[#allocation7 + $0x298] sm:$0xff]
    %v2944 = vld [vmem:[#allocation7 + $0x2a0] sm:$0xff]
    %v2945 = vld [vmem:[#allocation7 + $0x2a8] sm:$0xff]
    %v2946 = vld [vmem:[#allocation7 + $0x2b0] sm:$0xff]
    %v2947 = vld [vmem:[#allocation7 + $0x2b8] sm:$0xff]
    %v2948 = vld [vmem:[#allocation7 + $0x2c0] sm:$0xff]
    %v2949 = vld [vmem:[#allocation7 + $0x2c8] sm:$0xff]
    %v2950 = vld [vmem:[#allocation7 + $0x2d0] sm:$0xff]
    %v2951 = vld [vmem:[#allocation7 + $0x2d8] sm:$0xff]
    %v2952 = vld [vmem:[#allocation7 + $0x2e0] sm:$0xff]
    %v2953 = vld [vmem:[#allocation7 + $0x2e8] sm:$0xff]
    %v2954 = vld [vmem:[#allocation7 + $0x2f0] sm:$0xff]
    %v2955 = vld [vmem:[#allocation7 + $0x2f8] sm:$0xff]
    %v2956 = vld [vmem:[#allocation7 + $0x300] sm:$0xff]
    %v2957 = vld [vmem:[#allocation7 + $0x308] sm:$0xff]
    %v2958 = vld [vmem:[#allocation7 + $0x310] sm:$0xff]
    %v2959 = vld [vmem:[#allocation7 + $0x318] sm:$0xff]
    %v2960 = vld [vmem:[#allocation7 + $0x320] sm:$0xff]
    %v2961 = vld [vmem:[#allocation7 + $0x328] sm:$0xff]
    %v2962 = vld [vmem:[#allocation7 + $0x330] sm:$0xff]
    %v2963 = vld [vmem:[#allocation7 + $0x338] sm:$0xff]
    %v2964 = vld [vmem:[#allocation7 + $0x340] sm:$0xff]
    %v2965 = vld [vmem:[#allocation7 + $0x348] sm:$0xff]
    %v2966 = vld [vmem:[#allocation7 + $0x350] sm:$0xff]
    %v2967 = vld [vmem:[#allocation7 + $0x358] sm:$0xff]
    %v2968 = vld [vmem:[#allocation7 + $0x360] sm:$0xff]
    %v2969 = vld [vmem:[#allocation7 + $0x368] sm:$0xff]
    %v2970 = vld [vmem:[#allocation7 + $0x370] sm:$0xff]
    %v2971 = vld [vmem:[#allocation7 + $0x378] sm:$0xff]
    %v2972 = vld [vmem:[#allocation7 + $0x380] sm:$0xff]
    %v2973 = vld [vmem:[#allocation7 + $0x388] sm:$0xff]
    %v2974 = vld [vmem:[#allocation7 + $0x390] sm:$0xff]
    %v2975 = vld [vmem:[#allocation7 + $0x398] sm:$0xff]
    %v2976 = vld [vmem:[#allocation7 + $0x3a0] sm:$0xff]
    %v2977 = vld [vmem:[#allocation7 + $0x3a8] sm:$0xff]
    %v2978 = vld [vmem:[#allocation7 + $0x3b0] sm:$0xff]
    %v2979 = vld [vmem:[#allocation7 + $0x3b8] sm:$0xff]
    %v2980 = vld [vmem:[#allocation7 + $0x3c0] sm:$0xff]
    %v2981 = vld [vmem:[#allocation7 + $0x3c8] sm:$0xff]
    %v2982 = vld [vmem:[#allocation7 + $0x3d0] sm:$0xff]
    %v2983 = vld [vmem:[#allocation7 + $0x3d8] sm:$0xff]
    %v2984 = vld [vmem:[#allocation7 + $0x3e0] sm:$0xff]
    %v2985 = vld [vmem:[#allocation7 + $0x3e8] sm:$0xff]
    %v2986 = vld [vmem:[#allocation7 + $0x3f0] sm:$0xff]
    %v2987 = vld [vmem:[#allocation7 + $0x3f8] sm:$0xff]
    %v2988 = vand.u32 %v2980, 4294901760
    %2989 = vmatpush.msra.mxu0 %v2988
    %v2990 = vand.u32 %v2972, 4294901760
    %2991 = vmatpush.msra.mxu0 %v2990
    %v2992 = vand.u32 %v2964, 4294901760
    %2993 = vmatpush.msra.mxu0 %v2992
    %v2994 = vand.u32 %v2956, 4294901760
    %2995 = vmatpush.msra.mxu0 %v2994
    %v2996 = vand.u32 %v2948, 4294901760
    %2997 = vmatpush.msra.mxu0 %v2996
    %v2998 = vand.u32 %v2940, 4294901760
    %2999 = vmatpush.msra.mxu0 %v2998
    %v3000 = vand.u32 %v2932, 4294901760
    %3001 = vmatpush.msra.mxu0 %v3000
    %v3002 = vand.u32 %v2924, 4294901760
    %3003 = vmatpush.msra.mxu0 %v3002
    %v3004 = vand.u32 %v2916, 4294901760
    %3005 = vmatpush.msra.mxu0 %v3004
    %v3006 = vand.u32 %v2908, 4294901760
    %3007 = vmatpush.msra.mxu0 %v3006
    %v3008 = vand.u32 %v2900, 4294901760
    %3009 = vmatpush.msra.mxu0 %v3008
    %v3010 = vand.u32 %v2892, 4294901760
    %3011 = vmatpush.msra.mxu0 %v3010
    %v3012 = vand.u32 %v2884, 4294901760
    %3013 = vmatpush.msra.mxu0 %v3012
    %v3014 = vand.u32 %v2876, 4294901760
    %3015 = vmatpush.msra.mxu0 %v3014
    %v3016 = vand.u32 %v2868, 4294901760
    %3017 = vmatpush.msra.mxu0 %v3016
    %v3018 = vand.u32 %v2860, 4294901760
    %3019 = vmatpush.msra.mxu0 %v3018
    %v3020 = vand.u32 %v2140, 4294901760
    %v3021 = vsub.f32 %v2140, %v3020
    %v3022 = vand.u32 %v3021, 4294901760
    %v3023 = vsub.f32 %v3021, %v3022
    %v3024 = vand.u32 %v3023, 4294901760
    %3025 = vmatmul.f32.gmra.mxu0 %v3024
    %v3026 = vpop.f32.mrf.mxu0
    %v3027 = vadd.f32 0.0, %v3026
    %v3028 = vand.u32 %v2155, 4294901760
    %v3029 = vsub.f32 %v2155, %v3028
    %v3030 = vand.u32 %v3029, 4294901760
    %v3031 = vsub.f32 %v3029, %v3030
    %v3032 = vand.u32 %v3031, 4294901760
    %3033 = vmatmul.f32.gmra.mxu0 %v3032
    %v3034 = vpop.f32.mrf.mxu0
    %v3035 = vadd.f32 0.0, %v3034
    %3036 = vdwg.mxu0
    %v3037 = vand.u32 %v2980, 4294901760
    %v3038 = vsub.f32 %v2980, %v3037
    %v3039 = vand.u32 %v3038, 4294901760
    %v3040 = vsub.f32 %v3038, %v3039
    %v3041 = vand.u32 %v3040, 4294901760
    %3042 = vmatpush.msra.mxu0 %v3041
    %v3043 = vand.u32 %v2972, 4294901760
    %v3044 = vsub.f32 %v2972, %v3043
    %v3045 = vand.u32 %v3044, 4294901760
    %v3046 = vsub.f32 %v3044, %v3045
    %v3047 = vand.u32 %v3046, 4294901760
    %3048 = vmatpush.msra.mxu0 %v3047
    %v3049 = vand.u32 %v2964, 4294901760
    %v3050 = vsub.f32 %v2964, %v3049
    %v3051 = vand.u32 %v3050, 4294901760
    %v3052 = vsub.f32 %v3050, %v3051
    %v3053 = vand.u32 %v3052, 4294901760
    %3054 = vmatpush.msra.mxu0 %v3053
    %v3055 = vand.u32 %v2956, 4294901760
    %v3056 = vsub.f32 %v2956, %v3055
    %v3057 = vand.u32 %v3056, 4294901760
    %v3058 = vsub.f32 %v3056, %v3057
    %v3059 = vand.u32 %v3058, 4294901760
    %3060 = vmatpush.msra.mxu0 %v3059
    %v3061 = vand.u32 %v2948, 4294901760
    %v3062 = vsub.f32 %v2948, %v3061
    %v3063 = vand.u32 %v3062, 4294901760
    %v3064 = vsub.f32 %v3062, %v3063
    %v3065 = vand.u32 %v3064, 4294901760
    %3066 = vmatpush.msra.mxu0 %v3065
    %v3067 = vand.u32 %v2940, 4294901760
    %v3068 = vsub.f32 %v2940, %v3067
    %v3069 = vand.u32 %v3068, 4294901760
    %v3070 = vsub.f32 %v3068, %v3069
    %v3071 = vand.u32 %v3070, 4294901760
    %3072 = vmatpush.msra.mxu0 %v3071
    %v3073 = vand.u32 %v2932, 4294901760
    %v3074 = vsub.f32 %v2932, %v3073
    %v3075 = vand.u32 %v3074, 4294901760
    %v3076 = vsub.f32 %v3074, %v3075
    %v3077 = vand.u32 %v3076, 4294901760
    %3078 = vmatpush.msra.mxu0 %v3077
    %v3079 = vand.u32 %v2924, 4294901760
    %v3080 = vsub.f32 %v2924, %v3079
    %v3081 = vand.u32 %v3080, 4294901760
    %v3082 = vsub.f32 %v3080, %v3081
    %v3083 = vand.u32 %v3082, 4294901760
    %3084 = vmatpush.msra.mxu0 %v3083
    %v3085 = vand.u32 %v2916, 4294901760
    %v3086 = vsub.f32 %v2916, %v3085
    %v3087 = vand.u32 %v3086, 4294901760
    %v3088 = vsub.f32 %v3086, %v3087
    %v3089 = vand.u32 %v3088, 4294901760
    %3090 = vmatpush.msra.mxu0 %v3089
    %v3091 = vand.u32 %v2908, 4294901760
    %v3092 = vsub.f32 %v2908, %v3091
    %v3093 = vand.u32 %v3092, 4294901760
    %v3094 = vsub.f32 %v3092, %v3093
    %v3095 = vand.u32 %v3094, 4294901760
    %3096 = vmatpush.msra.mxu0 %v3095
    %v3097 = vand.u32 %v2900, 4294901760
    %v3098 = vsub.f32 %v2900, %v3097
    %v3099 = vand.u32 %v3098, 4294901760
    %v3100 = vsub.f32 %v3098, %v3099
    %v3101 = vand.u32 %v3100, 4294901760
    %3102 = vmatpush.msra.mxu0 %v3101
    %v3103 = vand.u32 %v2892, 4294901760
    %v3104 = vsub.f32 %v2892, %v3103
    %v3105 = vand.u32 %v3104, 4294901760
    %v3106 = vsub.f32 %v3104, %v3105
    %v3107 = vand.u32 %v3106, 4294901760
    %3108 = vmatpush.msra.mxu0 %v3107
    %v3109 = vand.u32 %v2884, 4294901760
    %v3110 = vsub.f32 %v2884, %v3109
    %v3111 = vand.u32 %v3110, 4294901760
    %v3112 = vsub.f32 %v3110, %v3111
    %v3113 = vand.u32 %v3112, 4294901760
    %3114 = vmatpush.msra.mxu0 %v3113
    %v3115 = vand.u32 %v2876, 4294901760
    %v3116 = vsub.f32 %v2876, %v3115
    %v3117 = vand.u32 %v3116, 4294901760
    %v3118 = vsub.f32 %v3116, %v3117
    %v3119 = vand.u32 %v3118, 4294901760
    %3120 = vmatpush.msra.mxu0 %v3119
    %v3121 = vand.u32 %v2868, 4294901760
    %v3122 = vsub.f32 %v2868, %v3121
    %v3123 = vand.u32 %v3122, 4294901760
    %v3124 = vsub.f32 %v3122, %v3123
    %v3125 = vand.u32 %v3124, 4294901760
    %3126 = vmatpush.msra.mxu0 %v3125
    %v3127 = vand.u32 %v2860, 4294901760
    %v3128 = vsub.f32 %v2860, %v3127
    %v3129 = vand.u32 %v3128, 4294901760
    %v3130 = vsub.f32 %v3128, %v3129
    %v3131 = vand.u32 %v3130, 4294901760
    %3132 = vmatpush.msra.mxu0 %v3131
    %v3133 = vand.u32 %v2140, 4294901760
    %3134 = vmatmul.f32.gmra.mxu0 %v3133
    %v3135 = vpop.f32.mrf.mxu0
    %v3136 = vadd.f32 %v3027, %v3135
    %v3137 = vand.u32 %v2155, 4294901760
    %3138 = vmatmul.f32.gmra.mxu0 %v3137
    %v3139 = vpop.f32.mrf.mxu0
    %v3140 = vadd.f32 %v3035, %v3139
    %3141 = vdwg.mxu0
    %v3142 = vand.u32 %v2980, 4294901760
    %v3143 = vsub.f32 %v2980, %v3142
    %3144 = vmatpush.msra.mxu0 %v3143
    %v3145 = vand.u32 %v2972, 4294901760
    %v3146 = vsub.f32 %v2972, %v3145
    %3147 = vmatpush.msra.mxu0 %v3146
    %v3148 = vand.u32 %v2964, 4294901760
    %v3149 = vsub.f32 %v2964, %v3148
    %3150 = vmatpush.msra.mxu0 %v3149
    %v3151 = vand.u32 %v2956, 4294901760
    %v3152 = vsub.f32 %v2956, %v3151
    %3153 = vmatpush.msra.mxu0 %v3152
    %v3154 = vand.u32 %v2948, 4294901760
    %v3155 = vsub.f32 %v2948, %v3154
    %3156 = vmatpush.msra.mxu0 %v3155
    %v3157 = vand.u32 %v2940, 4294901760
    %v3158 = vsub.f32 %v2940, %v3157
    %3159 = vmatpush.msra.mxu0 %v3158
    %v3160 = vand.u32 %v2932, 4294901760
    %v3161 = vsub.f32 %v2932, %v3160
    %3162 = vmatpush.msra.mxu0 %v3161
    %v3163 = vand.u32 %v2924, 4294901760
    %v3164 = vsub.f32 %v2924, %v3163
    %3165 = vmatpush.msra.mxu0 %v3164
    %v3166 = vand.u32 %v2916, 4294901760
    %v3167 = vsub.f32 %v2916, %v3166
    %3168 = vmatpush.msra.mxu0 %v3167
    %v3169 = vand.u32 %v2908, 4294901760
    %v3170 = vsub.f32 %v2908, %v3169
    %3171 = vmatpush.msra.mxu0 %v3170
    %v3172 = vand.u32 %v2900, 4294901760
    %v3173 = vsub.f32 %v2900, %v3172
    %3174 = vmatpush.msra.mxu0 %v3173
    %v3175 = vand.u32 %v2892, 4294901760
    %v3176 = vsub.f32 %v2892, %v3175
    %3177 = vmatpush.msra.mxu0 %v3176
    %v3178 = vand.u32 %v2884, 4294901760
    %v3179 = vsub.f32 %v2884, %v3178
    %3180 = vmatpush.msra.mxu0 %v3179
    %v3181 = vand.u32 %v2876, 4294901760
    %v3182 = vsub.f32 %v2876, %v3181
    %3183 = vmatpush.msra.mxu0 %v3182
    %v3184 = vand.u32 %v2868, 4294901760
    %v3185 = vsub.f32 %v2868, %v3184
    %3186 = vmatpush.msra.mxu0 %v3185
    %v3187 = vand.u32 %v2860, 4294901760
    %v3188 = vsub.f32 %v2860, %v3187
    %3189 = vmatpush.msra.mxu0 %v3188
    %v3190 = vand.u32 %v2140, 4294901760
    %v3191 = vsub.f32 %v2140, %v3190
    %3192 = vmatmul.f32.gmra.mxu0 %v3191
    %v3193 = vpop.f32.mrf.mxu0
    %v3194 = vadd.f32 %v3136, %v3193
    %v3195 = vand.u32 %v2155, 4294901760
    %v3196 = vsub.f32 %v2155, %v3195
    %3197 = vmatmul.f32.gmra.mxu0 %v3196
    %v3198 = vpop.f32.mrf.mxu0
    %v3199 = vadd.f32 %v3140, %v3198
    %3200 = vdwg.mxu0
    %v3201 = vand.u32 %v2980, 4294901760
    %3202 = vmatpush.msra.mxu0 %v3201
    %v3203 = vand.u32 %v2972, 4294901760
    %3204 = vmatpush.msra.mxu0 %v3203
    %v3205 = vand.u32 %v2964, 4294901760
    %3206 = vmatpush.msra.mxu0 %v3205
    %v3207 = vand.u32 %v2956, 4294901760
    %3208 = vmatpush.msra.mxu0 %v3207
    %v3209 = vand.u32 %v2948, 4294901760
    %3210 = vmatpush.msra.mxu0 %v3209
    %v3211 = vand.u32 %v2940, 4294901760
    %3212 = vmatpush.msra.mxu0 %v3211
    %v3213 = vand.u32 %v2932, 4294901760
    %3214 = vmatpush.msra.mxu0 %v3213
    %v3215 = vand.u32 %v2924, 4294901760
    %3216 = vmatpush.msra.mxu0 %v3215
    %v3217 = vand.u32 %v2916, 4294901760
    %3218 = vmatpush.msra.mxu0 %v3217
    %v3219 = vand.u32 %v2908, 4294901760
    %3220 = vmatpush.msra.mxu0 %v3219
    %v3221 = vand.u32 %v2900, 4294901760
    %3222 = vmatpush.msra.mxu0 %v3221
    %v3223 = vand.u32 %v2892, 4294901760
    %3224 = vmatpush.msra.mxu0 %v3223
    %v3225 = vand.u32 %v2884, 4294901760
    %3226 = vmatpush.msra.mxu0 %v3225
    %v3227 = vand.u32 %v2876, 4294901760
    %3228 = vmatpush.msra.mxu0 %v3227
    %v3229 = vand.u32 %v2868, 4294901760
    %3230 = vmatpush.msra.mxu0 %v3229
    %v3231 = vand.u32 %v2860, 4294901760
    %3232 = vmatpush.msra.mxu0 %v3231
    %v3233 = vand.u32 %v2140, 4294901760
    %v3234 = vsub.f32 %v2140, %v3233
    %v3235 = vand.u32 %v3234, 4294901760
    %3236 = vmatmul.f32.gmra.mxu0 %v3235
    %v3237 = vpop.f32.mrf.mxu0
    %v3238 = vadd.f32 %v3194, %v3237
    %v3239 = vand.u32 %v2155, 4294901760
    %v3240 = vsub.f32 %v2155, %v3239
    %v3241 = vand.u32 %v3240, 4294901760
    %3242 = vmatmul.f32.gmra.mxu0 %v3241
    %v3243 = vpop.f32.mrf.mxu0
    %v3244 = vadd.f32 %v3199, %v3243
    %3245 = vdwg.mxu0
    %v3246 = vand.u32 %v2980, 4294901760
    %v3247 = vsub.f32 %v2980, %v3246
    %v3248 = vand.u32 %v3247, 4294901760
    %3249 = vmatpush.msra.mxu0 %v3248
    %v3250 = vand.u32 %v2972, 4294901760
    %v3251 = vsub.f32 %v2972, %v3250
    %v3252 = vand.u32 %v3251, 4294901760
    %3253 = vmatpush.msra.mxu0 %v3252
    %v3254 = vand.u32 %v2964, 4294901760
    %v3255 = vsub.f32 %v2964, %v3254
    %v3256 = vand.u32 %v3255, 4294901760
    %3257 = vmatpush.msra.mxu0 %v3256
    %v3258 = vand.u32 %v2956, 4294901760
    %v3259 = vsub.f32 %v2956, %v3258
    %v3260 = vand.u32 %v3259, 4294901760
    %3261 = vmatpush.msra.mxu0 %v3260
    %v3262 = vand.u32 %v2948, 4294901760
    %v3263 = vsub.f32 %v2948, %v3262
    %v3264 = vand.u32 %v3263, 4294901760
    %3265 = vmatpush.msra.mxu0 %v3264
    %v3266 = vand.u32 %v2940, 4294901760
    %v3267 = vsub.f32 %v2940, %v3266
    %v3268 = vand.u32 %v3267, 4294901760
    %3269 = vmatpush.msra.mxu0 %v3268
    %v3270 = vand.u32 %v2932, 4294901760
    %v3271 = vsub.f32 %v2932, %v3270
    %v3272 = vand.u32 %v3271, 4294901760
    %3273 = vmatpush.msra.mxu0 %v3272
    %v3274 = vand.u32 %v2924, 4294901760
    %v3275 = vsub.f32 %v2924, %v3274
    %v3276 = vand.u32 %v3275, 4294901760
    %3277 = vmatpush.msra.mxu0 %v3276
    %v3278 = vand.u32 %v2916, 4294901760
    %v3279 = vsub.f32 %v2916, %v3278
    %v3280 = vand.u32 %v3279, 4294901760
    %3281 = vmatpush.msra.mxu0 %v3280
    %v3282 = vand.u32 %v2908, 4294901760
    %v3283 = vsub.f32 %v2908, %v3282
    %v3284 = vand.u32 %v3283, 4294901760
    %3285 = vmatpush.msra.mxu0 %v3284
    %v3286 = vand.u32 %v2900, 4294901760
    %v3287 = vsub.f32 %v2900, %v3286
    %v3288 = vand.u32 %v3287, 4294901760
    %3289 = vmatpush.msra.mxu0 %v3288
    %v3290 = vand.u32 %v2892, 4294901760
    %v3291 = vsub.f32 %v2892, %v3290
    %v3292 = vand.u32 %v3291, 4294901760
    %3293 = vmatpush.msra.mxu0 %v3292
    %v3294 = vand.u32 %v2884, 4294901760
    %v3295 = vsub.f32 %v2884, %v3294
    %v3296 = vand.u32 %v3295, 4294901760
    %3297 = vmatpush.msra.mxu0 %v3296
    %v3298 = vand.u32 %v2876, 4294901760
    %v3299 = vsub.f32 %v2876, %v3298
    %v3300 = vand.u32 %v3299, 4294901760
    %3301 = vmatpush.msra.mxu0 %v3300
    %v3302 = vand.u32 %v2868, 4294901760
    %v3303 = vsub.f32 %v2868, %v3302
    %v3304 = vand.u32 %v3303, 4294901760
    %3305 = vmatpush.msra.mxu0 %v3304
    %v3306 = vand.u32 %v2860, 4294901760
    %v3307 = vsub.f32 %v2860, %v3306
    %v3308 = vand.u32 %v3307, 4294901760
    %3309 = vmatpush.msra.mxu0 %v3308
    %v3310 = vand.u32 %v2140, 4294901760
    %3311 = vmatmul.f32.gmra.mxu0 %v3310
    %v3312 = vpop.f32.mrf.mxu0
    %v3313 = vadd.f32 %v3238, %v3312
    %v3314 = vand.u32 %v2155, 4294901760
    %3315 = vmatmul.f32.gmra.mxu0 %v3314
    %v3316 = vpop.f32.mrf.mxu0
    %v3317 = vadd.f32 %v3244, %v3316
    %3318 = vdwg.mxu0
    %v3319 = vand.u32 %v2980, 4294901760
    %3320 = vmatpush.msra.mxu0 %v3319
    %v3321 = vand.u32 %v2972, 4294901760
    %3322 = vmatpush.msra.mxu0 %v3321
    %v3323 = vand.u32 %v2964, 4294901760
    %3324 = vmatpush.msra.mxu0 %v3323
    %v3325 = vand.u32 %v2956, 4294901760
    %3326 = vmatpush.msra.mxu0 %v3325
    %v3327 = vand.u32 %v2948, 4294901760
    %3328 = vmatpush.msra.mxu0 %v3327
    %v3329 = vand.u32 %v2940, 4294901760
    %3330 = vmatpush.msra.mxu0 %v3329
    %v3331 = vand.u32 %v2932, 4294901760
    %3332 = vmatpush.msra.mxu0 %v3331
    %v3333 = vand.u32 %v2924, 4294901760
    %3334 = vmatpush.msra.mxu0 %v3333
    %v3335 = vand.u32 %v2916, 4294901760
    %3336 = vmatpush.msra.mxu0 %v3335
    %v3337 = vand.u32 %v2908, 4294901760
    %3338 = vmatpush.msra.mxu0 %v3337
    %v3339 = vand.u32 %v2900, 4294901760
    %3340 = vmatpush.msra.mxu0 %v3339
    %v3341 = vand.u32 %v2892, 4294901760
    %3342 = vmatpush.msra.mxu0 %v3341
    %v3343 = vand.u32 %v2884, 4294901760
    %3344 = vmatpush.msra.mxu0 %v3343
    %v3345 = vand.u32 %v2876, 4294901760
    %3346 = vmatpush.msra.mxu0 %v3345
    %v3347 = vand.u32 %v2868, 4294901760
    %3348 = vmatpush.msra.mxu0 %v3347
    %v3349 = vand.u32 %v2860, 4294901760
    %3350 = vmatpush.msra.mxu0 %v3349
    %v3351 = vand.u32 %v2140, 4294901760
    %3352 = vmatmul.f32.gmra.mxu0 %v3351
    %v3353 = vpop.f32.mrf.mxu0
    %v3354 = vadd.f32 %v3313, %v3353
    %v3355 = vand.u32 %v2155, 4294901760
    %3356 = vmatmul.f32.gmra.mxu0 %v3355
    %v3357 = vpop.f32.mrf.mxu0
    %v3358 = vadd.f32 %v3317, %v3357
    %3359 = vdwg.mxu0
    %v3360 = vand.u32 %v2981, 4294901760
    %3361 = vmatpush.msra.mxu0 %v3360
    %v3362 = vand.u32 %v2973, 4294901760
    %3363 = vmatpush.msra.mxu0 %v3362
    %v3364 = vand.u32 %v2965, 4294901760
    %3365 = vmatpush.msra.mxu0 %v3364
    %v3366 = vand.u32 %v2957, 4294901760
    %3367 = vmatpush.msra.mxu0 %v3366
    %v3368 = vand.u32 %v2949, 4294901760
    %3369 = vmatpush.msra.mxu0 %v3368
    %v3370 = vand.u32 %v2941, 4294901760
    %3371 = vmatpush.msra.mxu0 %v3370
    %v3372 = vand.u32 %v2933, 4294901760
    %3373 = vmatpush.msra.mxu0 %v3372
    %v3374 = vand.u32 %v2925, 4294901760
    %3375 = vmatpush.msra.mxu0 %v3374
    %v3376 = vand.u32 %v2917, 4294901760
    %3377 = vmatpush.msra.mxu0 %v3376
    %v3378 = vand.u32 %v2909, 4294901760
    %3379 = vmatpush.msra.mxu0 %v3378
    %v3380 = vand.u32 %v2901, 4294901760
    %3381 = vmatpush.msra.mxu0 %v3380
    %v3382 = vand.u32 %v2893, 4294901760
    %3383 = vmatpush.msra.mxu0 %v3382
    %v3384 = vand.u32 %v2885, 4294901760
    %3385 = vmatpush.msra.mxu0 %v3384
    %v3386 = vand.u32 %v2877, 4294901760
    %3387 = vmatpush.msra.mxu0 %v3386
    %v3388 = vand.u32 %v2869, 4294901760
    %3389 = vmatpush.msra.mxu0 %v3388
    %v3390 = vand.u32 %v2861, 4294901760
    %3391 = vmatpush.msra.mxu0 %v3390
    %v3392 = vand.u32 %v2140, 4294901760
    %v3393 = vsub.f32 %v2140, %v3392
    %v3394 = vand.u32 %v3393, 4294901760
    %v3395 = vsub.f32 %v3393, %v3394
    %v3396 = vand.u32 %v3395, 4294901760
    %3397 = vmatmul.f32.gmra.mxu0 %v3396
    %v3398 = vpop.f32.mrf.mxu0
    %v3399 = vadd.f32 0.0, %v3398
    %v3400 = vand.u32 %v2155, 4294901760
    %v3401 = vsub.f32 %v2155, %v3400
    %v3402 = vand.u32 %v3401, 4294901760
    %v3403 = vsub.f32 %v3401, %v3402
    %v3404 = vand.u32 %v3403, 4294901760
    %3405 = vmatmul.f32.gmra.mxu0 %v3404
    %v3406 = vpop.f32.mrf.mxu0
    %v3407 = vadd.f32 0.0, %v3406
    %3408 = vdwg.mxu0
    %v3409 = vand.u32 %v2981, 4294901760
    %v3410 = vsub.f32 %v2981, %v3409
    %v3411 = vand.u32 %v3410, 4294901760
    %v3412 = vsub.f32 %v3410, %v3411
    %v3413 = vand.u32 %v3412, 4294901760
    %3414 = vmatpush.msra.mxu0 %v3413
    %v3415 = vand.u32 %v2973, 4294901760
    %v3416 = vsub.f32 %v2973, %v3415
    %v3417 = vand.u32 %v3416, 4294901760
    %v3418 = vsub.f32 %v3416, %v3417
    %v3419 = vand.u32 %v3418, 4294901760
    %3420 = vmatpush.msra.mxu0 %v3419
    %v3421 = vand.u32 %v2965, 4294901760
    %v3422 = vsub.f32 %v2965, %v3421
    %v3423 = vand.u32 %v3422, 4294901760
    %v3424 = vsub.f32 %v3422, %v3423
    %v3425 = vand.u32 %v3424, 4294901760
    %3426 = vmatpush.msra.mxu0 %v3425
    %v3427 = vand.u32 %v2957, 4294901760
    %v3428 = vsub.f32 %v2957, %v3427
    %v3429 = vand.u32 %v3428, 4294901760
    %v3430 = vsub.f32 %v3428, %v3429
    %v3431 = vand.u32 %v3430, 4294901760
    %3432 = vmatpush.msra.mxu0 %v3431
    %v3433 = vand.u32 %v2949, 4294901760
    %v3434 = vsub.f32 %v2949, %v3433
    %v3435 = vand.u32 %v3434, 4294901760
    %v3436 = vsub.f32 %v3434, %v3435
    %v3437 = vand.u32 %v3436, 4294901760
    %3438 = vmatpush.msra.mxu0 %v3437
    %v3439 = vand.u32 %v2941, 4294901760
    %v3440 = vsub.f32 %v2941, %v3439
    %v3441 = vand.u32 %v3440, 4294901760
    %v3442 = vsub.f32 %v3440, %v3441
    %v3443 = vand.u32 %v3442, 4294901760
    %3444 = vmatpush.msra.mxu0 %v3443
    %v3445 = vand.u32 %v2933, 4294901760
    %v3446 = vsub.f32 %v2933, %v3445
    %v3447 = vand.u32 %v3446, 4294901760
    %v3448 = vsub.f32 %v3446, %v3447
    %v3449 = vand.u32 %v3448, 4294901760
    %3450 = vmatpush.msra.mxu0 %v3449
    %v3451 = vand.u32 %v2925, 4294901760
    %v3452 = vsub.f32 %v2925, %v3451
    %v3453 = vand.u32 %v3452, 4294901760
    %v3454 = vsub.f32 %v3452, %v3453
    %v3455 = vand.u32 %v3454, 4294901760
    %3456 = vmatpush.msra.mxu0 %v3455
    %v3457 = vand.u32 %v2917, 4294901760
    %v3458 = vsub.f32 %v2917, %v3457
    %v3459 = vand.u32 %v3458, 4294901760
    %v3460 = vsub.f32 %v3458, %v3459
    %v3461 = vand.u32 %v3460, 4294901760
    %3462 = vmatpush.msra.mxu0 %v3461
    %v3463 = vand.u32 %v2909, 4294901760
    %v3464 = vsub.f32 %v2909, %v3463
    %v3465 = vand.u32 %v3464, 4294901760
    %v3466 = vsub.f32 %v3464, %v3465
    %v3467 = vand.u32 %v3466, 4294901760
    %3468 = vmatpush.msra.mxu0 %v3467
    %v3469 = vand.u32 %v2901, 4294901760
    %v3470 = vsub.f32 %v2901, %v3469
    %v3471 = vand.u32 %v3470, 4294901760
    %v3472 = vsub.f32 %v3470, %v3471
    %v3473 = vand.u32 %v3472, 4294901760
    %3474 = vmatpush.msra.mxu0 %v3473
    %v3475 = vand.u32 %v2893, 4294901760
    %v3476 = vsub.f32 %v2893, %v3475
    %v3477 = vand.u32 %v3476, 4294901760
    %v3478 = vsub.f32 %v3476, %v3477
    %v3479 = vand.u32 %v3478, 4294901760
    %3480 = vmatpush.msra.mxu0 %v3479
    %v3481 = vand.u32 %v2885, 4294901760
    %v3482 = vsub.f32 %v2885, %v3481
    %v3483 = vand.u32 %v3482, 4294901760
    %v3484 = vsub.f32 %v3482, %v3483
    %v3485 = vand.u32 %v3484, 4294901760
    %3486 = vmatpush.msra.mxu0 %v3485
    %v3487 = vand.u32 %v2877, 4294901760
    %v3488 = vsub.f32 %v2877, %v3487
    %v3489 = vand.u32 %v3488, 4294901760
    %v3490 = vsub.f32 %v3488, %v3489
    %v3491 = vand.u32 %v3490, 4294901760
    %3492 = vmatpush.msra.mxu0 %v3491
    %v3493 = vand.u32 %v2869, 4294901760
    %v3494 = vsub.f32 %v2869, %v3493
    %v3495 = vand.u32 %v3494, 4294901760
    %v3496 = vsub.f32 %v3494, %v3495
    %v3497 = vand.u32 %v3496, 4294901760
    %3498 = vmatpush.msra.mxu0 %v3497
    %v3499 = vand.u32 %v2861, 4294901760
    %v3500 = vsub.f32 %v2861, %v3499
    %v3501 = vand.u32 %v3500, 4294901760
    %v3502 = vsub.f32 %v3500, %v3501
    %v3503 = vand.u32 %v3502, 4294901760
    %3504 = vmatpush.msra.mxu0 %v3503
    %v3505 = vand.u32 %v2140, 4294901760
    %3506 = vmatmul.f32.gmra.mxu0 %v3505
    %v3507 = vpop.f32.mrf.mxu0
    %v3508 = vadd.f32 %v3399, %v3507
    %v3509 = vand.u32 %v2155, 4294901760
    %3510 = vmatmul.f32.gmra.mxu0 %v3509
    %v3511 = vpop.f32.mrf.mxu0
    %v3512 = vadd.f32 %v3407, %v3511
    %3513 = vdwg.mxu0
    %v3514 = vand.u32 %v2981, 4294901760
    %v3515 = vsub.f32 %v2981, %v3514
    %3516 = vmatpush.msra.mxu0 %v3515
    %v3517 = vand.u32 %v2973, 4294901760
    %v3518 = vsub.f32 %v2973, %v3517
    %3519 = vmatpush.msra.mxu0 %v3518
    %v3520 = vand.u32 %v2965, 4294901760
    %v3521 = vsub.f32 %v2965, %v3520
    %3522 = vmatpush.msra.mxu0 %v3521
    %v3523 = vand.u32 %v2957, 4294901760
    %v3524 = vsub.f32 %v2957, %v3523
    %3525 = vmatpush.msra.mxu0 %v3524
    %v3526 = vand.u32 %v2949, 4294901760
    %v3527 = vsub.f32 %v2949, %v3526
    %3528 = vmatpush.msra.mxu0 %v3527
    %v3529 = vand.u32 %v2941, 4294901760
    %v3530 = vsub.f32 %v2941, %v3529
    %3531 = vmatpush.msra.mxu0 %v3530
    %v3532 = vand.u32 %v2933, 4294901760
    %v3533 = vsub.f32 %v2933, %v3532
    %3534 = vmatpush.msra.mxu0 %v3533
    %v3535 = vand.u32 %v2925, 4294901760
    %v3536 = vsub.f32 %v2925, %v3535
    %3537 = vmatpush.msra.mxu0 %v3536
    %v3538 = vand.u32 %v2917, 4294901760
    %v3539 = vsub.f32 %v2917, %v3538
    %3540 = vmatpush.msra.mxu0 %v3539
    %v3541 = vand.u32 %v2909, 4294901760
    %v3542 = vsub.f32 %v2909, %v3541
    %3543 = vmatpush.msra.mxu0 %v3542
    %v3544 = vand.u32 %v2901, 4294901760
    %v3545 = vsub.f32 %v2901, %v3544
    %3546 = vmatpush.msra.mxu0 %v3545
    %v3547 = vand.u32 %v2893, 4294901760
    %v3548 = vsub.f32 %v2893, %v3547
    %3549 = vmatpush.msra.mxu0 %v3548
    %v3550 = vand.u32 %v2885, 4294901760
    %v3551 = vsub.f32 %v2885, %v3550
    %3552 = vmatpush.msra.mxu0 %v3551
    %v3553 = vand.u32 %v2877, 4294901760
    %v3554 = vsub.f32 %v2877, %v3553
    %3555 = vmatpush.msra.mxu0 %v3554
    %v3556 = vand.u32 %v2869, 4294901760
    %v3557 = vsub.f32 %v2869, %v3556
    %3558 = vmatpush.msra.mxu0 %v3557
    %v3559 = vand.u32 %v2861, 4294901760
    %v3560 = vsub.f32 %v2861, %v3559
    %3561 = vmatpush.msra.mxu0 %v3560
    %v3562 = vand.u32 %v2140, 4294901760
    %v3563 = vsub.f32 %v2140, %v3562
    %3564 = vmatmul.f32.gmra.mxu0 %v3563
    %v3565 = vpop.f32.mrf.mxu0
    %v3566 = vadd.f32 %v3508, %v3565
    %v3567 = vand.u32 %v2155, 4294901760
    %v3568 = vsub.f32 %v2155, %v3567
    %3569 = vmatmul.f32.gmra.mxu0 %v3568
    %v3570 = vpop.f32.mrf.mxu0
    %v3571 = vadd.f32 %v3512, %v3570
    %3572 = vdwg.mxu0
    %v3573 = vand.u32 %v2981, 4294901760
    %3574 = vmatpush.msra.mxu0 %v3573
    %v3575 = vand.u32 %v2973, 4294901760
    %3576 = vmatpush.msra.mxu0 %v3575
    %v3577 = vand.u32 %v2965, 4294901760
    %3578 = vmatpush.msra.mxu0 %v3577
    %v3579 = vand.u32 %v2957, 4294901760
    %3580 = vmatpush.msra.mxu0 %v3579
    %v3581 = vand.u32 %v2949, 4294901760
    %3582 = vmatpush.msra.mxu0 %v3581
    %v3583 = vand.u32 %v2941, 4294901760
    %3584 = vmatpush.msra.mxu0 %v3583
    %v3585 = vand.u32 %v2933, 4294901760
    %3586 = vmatpush.msra.mxu0 %v3585
    %v3587 = vand.u32 %v2925, 4294901760
    %3588 = vmatpush.msra.mxu0 %v3587
    %v3589 = vand.u32 %v2917, 4294901760
    %3590 = vmatpush.msra.mxu0 %v3589
    %v3591 = vand.u32 %v2909, 4294901760
    %3592 = vmatpush.msra.mxu0 %v3591
    %v3593 = vand.u32 %v2901, 4294901760
    %3594 = vmatpush.msra.mxu0 %v3593
    %v3595 = vand.u32 %v2893, 4294901760
    %3596 = vmatpush.msra.mxu0 %v3595
    %v3597 = vand.u32 %v2885, 4294901760
    %3598 = vmatpush.msra.mxu0 %v3597
    %v3599 = vand.u32 %v2877, 4294901760
    %3600 = vmatpush.msra.mxu0 %v3599
    %v3601 = vand.u32 %v2869, 4294901760
    %3602 = vmatpush.msra.mxu0 %v3601
    %v3603 = vand.u32 %v2861, 4294901760
    %3604 = vmatpush.msra.mxu0 %v3603
    %v3605 = vand.u32 %v2140, 4294901760
    %v3606 = vsub.f32 %v2140, %v3605
    %v3607 = vand.u32 %v3606, 4294901760
    %3608 = vmatmul.f32.gmra.mxu0 %v3607
    %v3609 = vpop.f32.mrf.mxu0
    %v3610 = vadd.f32 %v3566, %v3609
    %v3611 = vand.u32 %v2155, 4294901760
    %v3612 = vsub.f32 %v2155, %v3611
    %v3613 = vand.u32 %v3612, 4294901760
    %3614 = vmatmul.f32.gmra.mxu0 %v3613
    %v3615 = vpop.f32.mrf.mxu0
    %v3616 = vadd.f32 %v3571, %v3615
    %3617 = vdwg.mxu0
    %v3618 = vand.u32 %v2981, 4294901760
    %v3619 = vsub.f32 %v2981, %v3618
    %v3620 = vand.u32 %v3619, 4294901760
    %3621 = vmatpush.msra.mxu0 %v3620
    %v3622 = vand.u32 %v2973, 4294901760
    %v3623 = vsub.f32 %v2973, %v3622
    %v3624 = vand.u32 %v3623, 4294901760
    %3625 = vmatpush.msra.mxu0 %v3624
    %v3626 = vand.u32 %v2965, 4294901760
    %v3627 = vsub.f32 %v2965, %v3626
    %v3628 = vand.u32 %v3627, 4294901760
    %3629 = vmatpush.msra.mxu0 %v3628
    %v3630 = vand.u32 %v2957, 4294901760
    %v3631 = vsub.f32 %v2957, %v3630
    %v3632 = vand.u32 %v3631, 4294901760
    %3633 = vmatpush.msra.mxu0 %v3632
    %v3634 = vand.u32 %v2949, 4294901760
    %v3635 = vsub.f32 %v2949, %v3634
    %v3636 = vand.u32 %v3635, 4294901760
    %3637 = vmatpush.msra.mxu0 %v3636
    %v3638 = vand.u32 %v2941, 4294901760
    %v3639 = vsub.f32 %v2941, %v3638
    %v3640 = vand.u32 %v3639, 4294901760
    %3641 = vmatpush.msra.mxu0 %v3640
    %v3642 = vand.u32 %v2933, 4294901760
    %v3643 = vsub.f32 %v2933, %v3642
    %v3644 = vand.u32 %v3643, 4294901760
    %3645 = vmatpush.msra.mxu0 %v3644
    %v3646 = vand.u32 %v2925, 4294901760
    %v3647 = vsub.f32 %v2925, %v3646
    %v3648 = vand.u32 %v3647, 4294901760
    %3649 = vmatpush.msra.mxu0 %v3648
    %v3650 = vand.u32 %v2917, 4294901760
    %v3651 = vsub.f32 %v2917, %v3650
    %v3652 = vand.u32 %v3651, 4294901760
    %3653 = vmatpush.msra.mxu0 %v3652
    %v3654 = vand.u32 %v2909, 4294901760
    %v3655 = vsub.f32 %v2909, %v3654
    %v3656 = vand.u32 %v3655, 4294901760
    %3657 = vmatpush.msra.mxu0 %v3656
    %v3658 = vand.u32 %v2901, 4294901760
    %v3659 = vsub.f32 %v2901, %v3658
    %v3660 = vand.u32 %v3659, 4294901760
    %3661 = vmatpush.msra.mxu0 %v3660
    %v3662 = vand.u32 %v2893, 4294901760
    %v3663 = vsub.f32 %v2893, %v3662
    %v3664 = vand.u32 %v3663, 4294901760
    %3665 = vmatpush.msra.mxu0 %v3664
    %v3666 = vand.u32 %v2885, 4294901760
    %v3667 = vsub.f32 %v2885, %v3666
    %v3668 = vand.u32 %v3667, 4294901760
    %3669 = vmatpush.msra.mxu0 %v3668
    %v3670 = vand.u32 %v2877, 4294901760
    %v3671 = vsub.f32 %v2877, %v3670
    %v3672 = vand.u32 %v3671, 4294901760
    %3673 = vmatpush.msra.mxu0 %v3672
    %v3674 = vand.u32 %v2869, 4294901760
    %v3675 = vsub.f32 %v2869, %v3674
    %v3676 = vand.u32 %v3675, 4294901760
    %3677 = vmatpush.msra.mxu0 %v3676
    %v3678 = vand.u32 %v2861, 4294901760
    %v3679 = vsub.f32 %v2861, %v3678
    %v3680 = vand.u32 %v3679, 4294901760
    %3681 = vmatpush.msra.mxu0 %v3680
    %v3682 = vand.u32 %v2140, 4294901760
    %3683 = vmatmul.f32.gmra.mxu0 %v3682
    %v3684 = vpop.f32.mrf.mxu0
    %v3685 = vadd.f32 %v3610, %v3684
    %v3686 = vand.u32 %v2155, 4294901760
    %3687 = vmatmul.f32.gmra.mxu0 %v3686
    %v3688 = vpop.f32.mrf.mxu0
    %v3689 = vadd.f32 %v3616, %v3688
    %3690 = vdwg.mxu0
    %v3691 = vand.u32 %v2981, 4294901760
    %3692 = vmatpush.msra.mxu0 %v3691
    %v3693 = vand.u32 %v2973, 4294901760
    %3694 = vmatpush.msra.mxu0 %v3693
    %v3695 = vand.u32 %v2965, 4294901760
    %3696 = vmatpush.msra.mxu0 %v3695
    %v3697 = vand.u32 %v2957, 4294901760
    %3698 = vmatpush.msra.mxu0 %v3697
    %v3699 = vand.u32 %v2949, 4294901760
    %3700 = vmatpush.msra.mxu0 %v3699
    %v3701 = vand.u32 %v2941, 4294901760
    %3702 = vmatpush.msra.mxu0 %v3701
    %v3703 = vand.u32 %v2933, 4294901760
    %3704 = vmatpush.msra.mxu0 %v3703
    %v3705 = vand.u32 %v2925, 4294901760
    %3706 = vmatpush.msra.mxu0 %v3705
    %v3707 = vand.u32 %v2917, 4294901760
    %3708 = vmatpush.msra.mxu0 %v3707
    %v3709 = vand.u32 %v2909, 4294901760
    %3710 = vmatpush.msra.mxu0 %v3709
    %v3711 = vand.u32 %v2901, 4294901760
    %3712 = vmatpush.msra.mxu0 %v3711
    %v3713 = vand.u32 %v2893, 4294901760
    %3714 = vmatpush.msra.mxu0 %v3713
    %v3715 = vand.u32 %v2885, 4294901760
    %3716 = vmatpush.msra.mxu0 %v3715
    %v3717 = vand.u32 %v2877, 4294901760
    %3718 = vmatpush.msra.mxu0 %v3717
    %v3719 = vand.u32 %v2869, 4294901760
    %3720 = vmatpush.msra.mxu0 %v3719
    %v3721 = vand.u32 %v2861, 4294901760
    %3722 = vmatpush.msra.mxu0 %v3721
    %v3723 = vand.u32 %v2140, 4294901760
    %3724 = vmatmul.f32.gmra.mxu0 %v3723
    %v3725 = vpop.f32.mrf.mxu0
    %v3726 = vadd.f32 %v3685, %v3725
    %v3727 = vand.u32 %v2155, 4294901760
    %3728 = vmatmul.f32.gmra.mxu0 %v3727
    %v3729 = vpop.f32.mrf.mxu0
    %v3730 = vadd.f32 %v3689, %v3729
    %3731 = vdwg.mxu0
    %v3732 = vand.u32 %v2982, 4294901760
    %3733 = vmatpush.msra.mxu0 %v3732
    %v3734 = vand.u32 %v2974, 4294901760
    %3735 = vmatpush.msra.mxu0 %v3734
    %v3736 = vand.u32 %v2966, 4294901760
    %3737 = vmatpush.msra.mxu0 %v3736
    %v3738 = vand.u32 %v2958, 4294901760
    %3739 = vmatpush.msra.mxu0 %v3738
    %v3740 = vand.u32 %v2950, 4294901760
    %3741 = vmatpush.msra.mxu0 %v3740
    %v3742 = vand.u32 %v2942, 4294901760
    %3743 = vmatpush.msra.mxu0 %v3742
    %v3744 = vand.u32 %v2934, 4294901760
    %3745 = vmatpush.msra.mxu0 %v3744
    %v3746 = vand.u32 %v2926, 4294901760
    %3747 = vmatpush.msra.mxu0 %v3746
    %v3748 = vand.u32 %v2918, 4294901760
    %3749 = vmatpush.msra.mxu0 %v3748
    %v3750 = vand.u32 %v2910, 4294901760
    %3751 = vmatpush.msra.mxu0 %v3750
    %v3752 = vand.u32 %v2902, 4294901760
    %3753 = vmatpush.msra.mxu0 %v3752
    %v3754 = vand.u32 %v2894, 4294901760
    %3755 = vmatpush.msra.mxu0 %v3754
    %v3756 = vand.u32 %v2886, 4294901760
    %3757 = vmatpush.msra.mxu0 %v3756
    %v3758 = vand.u32 %v2878, 4294901760
    %3759 = vmatpush.msra.mxu0 %v3758
    %v3760 = vand.u32 %v2870, 4294901760
    %3761 = vmatpush.msra.mxu0 %v3760
    %v3762 = vand.u32 %v2862, 4294901760
    %3763 = vmatpush.msra.mxu0 %v3762
    %v3764 = vand.u32 %v2140, 4294901760
    %v3765 = vsub.f32 %v2140, %v3764
    %v3766 = vand.u32 %v3765, 4294901760
    %v3767 = vsub.f32 %v3765, %v3766
    %v3768 = vand.u32 %v3767, 4294901760
    %3769 = vmatmul.f32.gmra.mxu0 %v3768
    %v3770 = vpop.f32.mrf.mxu0
    %v3771 = vadd.f32 0.0, %v3770
    %v3772 = vand.u32 %v2155, 4294901760
    %v3773 = vsub.f32 %v2155, %v3772
    %v3774 = vand.u32 %v3773, 4294901760
    %v3775 = vsub.f32 %v3773, %v3774
    %v3776 = vand.u32 %v3775, 4294901760
    %3777 = vmatmul.f32.gmra.mxu0 %v3776
    %v3778 = vpop.f32.mrf.mxu0
    %v3779 = vadd.f32 0.0, %v3778
    %3780 = vdwg.mxu0
    %v3781 = vand.u32 %v2982, 4294901760
    %v3782 = vsub.f32 %v2982, %v3781
    %v3783 = vand.u32 %v3782, 4294901760
    %v3784 = vsub.f32 %v3782, %v3783
    %v3785 = vand.u32 %v3784, 4294901760
    %3786 = vmatpush.msra.mxu0 %v3785
    %v3787 = vand.u32 %v2974, 4294901760
    %v3788 = vsub.f32 %v2974, %v3787
    %v3789 = vand.u32 %v3788, 4294901760
    %v3790 = vsub.f32 %v3788, %v3789
    %v3791 = vand.u32 %v3790, 4294901760
    %3792 = vmatpush.msra.mxu0 %v3791
    %v3793 = vand.u32 %v2966, 4294901760
    %v3794 = vsub.f32 %v2966, %v3793
    %v3795 = vand.u32 %v3794, 4294901760
    %v3796 = vsub.f32 %v3794, %v3795
    %v3797 = vand.u32 %v3796, 4294901760
    %3798 = vmatpush.msra.mxu0 %v3797
    %v3799 = vand.u32 %v2958, 4294901760
    %v3800 = vsub.f32 %v2958, %v3799
    %v3801 = vand.u32 %v3800, 4294901760
    %v3802 = vsub.f32 %v3800, %v3801
    %v3803 = vand.u32 %v3802, 4294901760
    %3804 = vmatpush.msra.mxu0 %v3803
    %v3805 = vand.u32 %v2950, 4294901760
    %v3806 = vsub.f32 %v2950, %v3805
    %v3807 = vand.u32 %v3806, 4294901760
    %v3808 = vsub.f32 %v3806, %v3807
    %v3809 = vand.u32 %v3808, 4294901760
    %3810 = vmatpush.msra.mxu0 %v3809
    %v3811 = vand.u32 %v2942, 4294901760
    %v3812 = vsub.f32 %v2942, %v3811
    %v3813 = vand.u32 %v3812, 4294901760
    %v3814 = vsub.f32 %v3812, %v3813
    %v3815 = vand.u32 %v3814, 4294901760
    %3816 = vmatpush.msra.mxu0 %v3815
    %v3817 = vand.u32 %v2934, 4294901760
    %v3818 = vsub.f32 %v2934, %v3817
    %v3819 = vand.u32 %v3818, 4294901760
    %v3820 = vsub.f32 %v3818, %v3819
    %v3821 = vand.u32 %v3820, 4294901760
    %3822 = vmatpush.msra.mxu0 %v3821
    %v3823 = vand.u32 %v2926, 4294901760
    %v3824 = vsub.f32 %v2926, %v3823
    %v3825 = vand.u32 %v3824, 4294901760
    %v3826 = vsub.f32 %v3824, %v3825
    %v3827 = vand.u32 %v3826, 4294901760
    %3828 = vmatpush.msra.mxu0 %v3827
    %v3829 = vand.u32 %v2918, 4294901760
    %v3830 = vsub.f32 %v2918, %v3829
    %v3831 = vand.u32 %v3830, 4294901760
    %v3832 = vsub.f32 %v3830, %v3831
    %v3833 = vand.u32 %v3832, 4294901760
    %3834 = vmatpush.msra.mxu0 %v3833
    %v3835 = vand.u32 %v2910, 4294901760
    %v3836 = vsub.f32 %v2910, %v3835
    %v3837 = vand.u32 %v3836, 4294901760
    %v3838 = vsub.f32 %v3836, %v3837
    %v3839 = vand.u32 %v3838, 4294901760
    %3840 = vmatpush.msra.mxu0 %v3839
    %v3841 = vand.u32 %v2902, 4294901760
    %v3842 = vsub.f32 %v2902, %v3841
    %v3843 = vand.u32 %v3842, 4294901760
    %v3844 = vsub.f32 %v3842, %v3843
    %v3845 = vand.u32 %v3844, 4294901760
    %3846 = vmatpush.msra.mxu0 %v3845
    %v3847 = vand.u32 %v2894, 4294901760
    %v3848 = vsub.f32 %v2894, %v3847
    %v3849 = vand.u32 %v3848, 4294901760
    %v3850 = vsub.f32 %v3848, %v3849
    %v3851 = vand.u32 %v3850, 4294901760
    %3852 = vmatpush.msra.mxu0 %v3851
    %v3853 = vand.u32 %v2886, 4294901760
    %v3854 = vsub.f32 %v2886, %v3853
    %v3855 = vand.u32 %v3854, 4294901760
    %v3856 = vsub.f32 %v3854, %v3855
    %v3857 = vand.u32 %v3856, 4294901760
    %3858 = vmatpush.msra.mxu0 %v3857
    %v3859 = vand.u32 %v2878, 4294901760
    %v3860 = vsub.f32 %v2878, %v3859
    %v3861 = vand.u32 %v3860, 4294901760
    %v3862 = vsub.f32 %v3860, %v3861
    %v3863 = vand.u32 %v3862, 4294901760
    %3864 = vmatpush.msra.mxu0 %v3863
    %v3865 = vand.u32 %v2870, 4294901760
    %v3866 = vsub.f32 %v2870, %v3865
    %v3867 = vand.u32 %v3866, 4294901760
    %v3868 = vsub.f32 %v3866, %v3867
    %v3869 = vand.u32 %v3868, 4294901760
    %3870 = vmatpush.msra.mxu0 %v3869
    %v3871 = vand.u32 %v2862, 4294901760
    %v3872 = vsub.f32 %v2862, %v3871
    %v3873 = vand.u32 %v3872, 4294901760
    %v3874 = vsub.f32 %v3872, %v3873
    %v3875 = vand.u32 %v3874, 4294901760
    %3876 = vmatpush.msra.mxu0 %v3875
    %v3877 = vand.u32 %v2140, 4294901760
    %3878 = vmatmul.f32.gmra.mxu0 %v3877
    %v3879 = vpop.f32.mrf.mxu0
    %v3880 = vadd.f32 %v3771, %v3879
    %v3881 = vand.u32 %v2155, 4294901760
    %3882 = vmatmul.f32.gmra.mxu0 %v3881
    %v3883 = vpop.f32.mrf.mxu0
    %v3884 = vadd.f32 %v3779, %v3883
    %3885 = vdwg.mxu0
    %v3886 = vand.u32 %v2982, 4294901760
    %v3887 = vsub.f32 %v2982, %v3886
    %3888 = vmatpush.msra.mxu0 %v3887
    %v3889 = vand.u32 %v2974, 4294901760
    %v3890 = vsub.f32 %v2974, %v3889
    %3891 = vmatpush.msra.mxu0 %v3890
    %v3892 = vand.u32 %v2966, 4294901760
    %v3893 = vsub.f32 %v2966, %v3892
    %3894 = vmatpush.msra.mxu0 %v3893
    %v3895 = vand.u32 %v2958, 4294901760
    %v3896 = vsub.f32 %v2958, %v3895
    %3897 = vmatpush.msra.mxu0 %v3896
    %v3898 = vand.u32 %v2950, 4294901760
    %v3899 = vsub.f32 %v2950, %v3898
    %3900 = vmatpush.msra.mxu0 %v3899
    %v3901 = vand.u32 %v2942, 4294901760
    %v3902 = vsub.f32 %v2942, %v3901
    %3903 = vmatpush.msra.mxu0 %v3902
    %v3904 = vand.u32 %v2934, 4294901760
    %v3905 = vsub.f32 %v2934, %v3904
    %3906 = vmatpush.msra.mxu0 %v3905
    %v3907 = vand.u32 %v2926, 4294901760
    %v3908 = vsub.f32 %v2926, %v3907
    %3909 = vmatpush.msra.mxu0 %v3908
    %v3910 = vand.u32 %v2918, 4294901760
    %v3911 = vsub.f32 %v2918, %v3910
    %3912 = vmatpush.msra.mxu0 %v3911
    %v3913 = vand.u32 %v2910, 4294901760
    %v3914 = vsub.f32 %v2910, %v3913
    %3915 = vmatpush.msra.mxu0 %v3914
    %v3916 = vand.u32 %v2902, 4294901760
    %v3917 = vsub.f32 %v2902, %v3916
    %3918 = vmatpush.msra.mxu0 %v3917
    %v3919 = vand.u32 %v2894, 4294901760
    %v3920 = vsub.f32 %v2894, %v3919
    %3921 = vmatpush.msra.mxu0 %v3920
    %v3922 = vand.u32 %v2886, 4294901760
    %v3923 = vsub.f32 %v2886, %v3922
    %3924 = vmatpush.msra.mxu0 %v3923
    %v3925 = vand.u32 %v2878, 4294901760
    %v3926 = vsub.f32 %v2878, %v3925
    %3927 = vmatpush.msra.mxu0 %v3926
    %v3928 = vand.u32 %v2870, 4294901760
    %v3929 = vsub.f32 %v2870, %v3928
    %3930 = vmatpush.msra.mxu0 %v3929
    %v3931 = vand.u32 %v2862, 4294901760
    %v3932 = vsub.f32 %v2862, %v3931
    %3933 = vmatpush.msra.mxu0 %v3932
    %v3934 = vand.u32 %v2140, 4294901760
    %v3935 = vsub.f32 %v2140, %v3934
    %3936 = vmatmul.f32.gmra.mxu0 %v3935
    %v3937 = vpop.f32.mrf.mxu0
    %v3938 = vadd.f32 %v3880, %v3937
    %v3939 = vand.u32 %v2155, 4294901760
    %v3940 = vsub.f32 %v2155, %v3939
    %3941 = vmatmul.f32.gmra.mxu0 %v3940
    %v3942 = vpop.f32.mrf.mxu0
    %v3943 = vadd.f32 %v3884, %v3942
    %3944 = vdwg.mxu0
    %v3945 = vand.u32 %v2982, 4294901760
    %3946 = vmatpush.msra.mxu0 %v3945
    %v3947 = vand.u32 %v2974, 4294901760
    %3948 = vmatpush.msra.mxu0 %v3947
    %v3949 = vand.u32 %v2966, 4294901760
    %3950 = vmatpush.msra.mxu0 %v3949
    %v3951 = vand.u32 %v2958, 4294901760
    %3952 = vmatpush.msra.mxu0 %v3951
    %v3953 = vand.u32 %v2950, 4294901760
    %3954 = vmatpush.msra.mxu0 %v3953
    %v3955 = vand.u32 %v2942, 4294901760
    %3956 = vmatpush.msra.mxu0 %v3955
    %v3957 = vand.u32 %v2934, 4294901760
    %3958 = vmatpush.msra.mxu0 %v3957
    %v3959 = vand.u32 %v2926, 4294901760
    %3960 = vmatpush.msra.mxu0 %v3959
    %v3961 = vand.u32 %v2918, 4294901760
    %3962 = vmatpush.msra.mxu0 %v3961
    %v3963 = vand.u32 %v2910, 4294901760
    %3964 = vmatpush.msra.mxu0 %v3963
    %v3965 = vand.u32 %v2902, 4294901760
    %3966 = vmatpush.msra.mxu0 %v3965
    %v3967 = vand.u32 %v2894, 4294901760
    %3968 = vmatpush.msra.mxu0 %v3967
    %v3969 = vand.u32 %v2886, 4294901760
    %3970 = vmatpush.msra.mxu0 %v3969
    %v3971 = vand.u32 %v2878, 4294901760
    %3972 = vmatpush.msra.mxu0 %v3971
    %v3973 = vand.u32 %v2870, 4294901760
    %3974 = vmatpush.msra.mxu0 %v3973
    %v3975 = vand.u32 %v2862, 4294901760
    %3976 = vmatpush.msra.mxu0 %v3975
    %v3977 = vand.u32 %v2140, 4294901760
    %v3978 = vsub.f32 %v2140, %v3977
    %v3979 = vand.u32 %v3978, 4294901760
    %3980 = vmatmul.f32.gmra.mxu0 %v3979
    %v3981 = vpop.f32.mrf.mxu0
    %v3982 = vadd.f32 %v3938, %v3981
    %v3983 = vand.u32 %v2155, 4294901760
    %v3984 = vsub.f32 %v2155, %v3983
    %v3985 = vand.u32 %v3984, 4294901760
    %3986 = vmatmul.f32.gmra.mxu0 %v3985
    %v3987 = vpop.f32.mrf.mxu0
    %v3988 = vadd.f32 %v3943, %v3987
    %3989 = vdwg.mxu0
    %v3990 = vand.u32 %v2982, 4294901760
    %v3991 = vsub.f32 %v2982, %v3990
    %v3992 = vand.u32 %v3991, 4294901760
    %3993 = vmatpush.msra.mxu0 %v3992
    %v3994 = vand.u32 %v2974, 4294901760
    %v3995 = vsub.f32 %v2974, %v3994
    %v3996 = vand.u32 %v3995, 4294901760
    %3997 = vmatpush.msra.mxu0 %v3996
    %v3998 = vand.u32 %v2966, 4294901760
    %v3999 = vsub.f32 %v2966, %v3998
    %v4000 = vand.u32 %v3999, 4294901760
    %4001 = vmatpush.msra.mxu0 %v4000
    %v4002 = vand.u32 %v2958, 4294901760
    %v4003 = vsub.f32 %v2958, %v4002
    %v4004 = vand.u32 %v4003, 4294901760
    %4005 = vmatpush.msra.mxu0 %v4004
    %v4006 = vand.u32 %v2950, 4294901760
    %v4007 = vsub.f32 %v2950, %v4006
    %v4008 = vand.u32 %v4007, 4294901760
    %4009 = vmatpush.msra.mxu0 %v4008
    %v4010 = vand.u32 %v2942, 4294901760
    %v4011 = vsub.f32 %v2942, %v4010
    %v4012 = vand.u32 %v4011, 4294901760
    %4013 = vmatpush.msra.mxu0 %v4012
    %v4014 = vand.u32 %v2934, 4294901760
    %v4015 = vsub.f32 %v2934, %v4014
    %v4016 = vand.u32 %v4015, 4294901760
    %4017 = vmatpush.msra.mxu0 %v4016
    %v4018 = vand.u32 %v2926, 4294901760
    %v4019 = vsub.f32 %v2926, %v4018
    %v4020 = vand.u32 %v4019, 4294901760
    %4021 = vmatpush.msra.mxu0 %v4020
    %v4022 = vand.u32 %v2918, 4294901760
    %v4023 = vsub.f32 %v2918, %v4022
    %v4024 = vand.u32 %v4023, 4294901760
    %4025 = vmatpush.msra.mxu0 %v4024
    %v4026 = vand.u32 %v2910, 4294901760
    %v4027 = vsub.f32 %v2910, %v4026
    %v4028 = vand.u32 %v4027, 4294901760
    %4029 = vmatpush.msra.mxu0 %v4028
    %v4030 = vand.u32 %v2902, 4294901760
    %v4031 = vsub.f32 %v2902, %v4030
    %v4032 = vand.u32 %v4031, 4294901760
    %4033 = vmatpush.msra.mxu0 %v4032
    %v4034 = vand.u32 %v2894, 4294901760
    %v4035 = vsub.f32 %v2894, %v4034
    %v4036 = vand.u32 %v4035, 4294901760
    %4037 = vmatpush.msra.mxu0 %v4036
    %v4038 = vand.u32 %v2886, 4294901760
    %v4039 = vsub.f32 %v2886, %v4038
    %v4040 = vand.u32 %v4039, 4294901760
    %4041 = vmatpush.msra.mxu0 %v4040
    %v4042 = vand.u32 %v2878, 4294901760
    %v4043 = vsub.f32 %v2878, %v4042
    %v4044 = vand.u32 %v4043, 4294901760
    %4045 = vmatpush.msra.mxu0 %v4044
    %v4046 = vand.u32 %v2870, 4294901760
    %v4047 = vsub.f32 %v2870, %v4046
    %v4048 = vand.u32 %v4047, 4294901760
    %4049 = vmatpush.msra.mxu0 %v4048
    %v4050 = vand.u32 %v2862, 4294901760
    %v4051 = vsub.f32 %v2862, %v4050
    %v4052 = vand.u32 %v4051, 4294901760
    %4053 = vmatpush.msra.mxu0 %v4052
    %v4054 = vand.u32 %v2140, 4294901760
    %4055 = vmatmul.f32.gmra.mxu0 %v4054
    %v4056 = vpop.f32.mrf.mxu0
    %v4057 = vadd.f32 %v3982, %v4056
    %v4058 = vand.u32 %v2155, 4294901760
    %4059 = vmatmul.f32.gmra.mxu0 %v4058
    %v4060 = vpop.f32.mrf.mxu0
    %v4061 = vadd.f32 %v3988, %v4060
    %4062 = vdwg.mxu0
    %v4063 = vand.u32 %v2982, 4294901760
    %4064 = vmatpush.msra.mxu0 %v4063
    %v4065 = vand.u32 %v2974, 4294901760
    %4066 = vmatpush.msra.mxu0 %v4065
    %v4067 = vand.u32 %v2966, 4294901760
    %4068 = vmatpush.msra.mxu0 %v4067
    %v4069 = vand.u32 %v2958, 4294901760
    %4070 = vmatpush.msra.mxu0 %v4069
    %v4071 = vand.u32 %v2950, 4294901760
    %4072 = vmatpush.msra.mxu0 %v4071
    %v4073 = vand.u32 %v2942, 4294901760
    %4074 = vmatpush.msra.mxu0 %v4073
    %v4075 = vand.u32 %v2934, 4294901760
    %4076 = vmatpush.msra.mxu0 %v4075
    %v4077 = vand.u32 %v2926, 4294901760
    %4078 = vmatpush.msra.mxu0 %v4077
    %v4079 = vand.u32 %v2918, 4294901760
    %4080 = vmatpush.msra.mxu0 %v4079
    %v4081 = vand.u32 %v2910, 4294901760
    %4082 = vmatpush.msra.mxu0 %v4081
    %v4083 = vand.u32 %v2902, 4294901760
    %4084 = vmatpush.msra.mxu0 %v4083
    %v4085 = vand.u32 %v2894, 4294901760
    %4086 = vmatpush.msra.mxu0 %v4085
    %v4087 = vand.u32 %v2886, 4294901760
    %4088 = vmatpush.msra.mxu0 %v4087
    %v4089 = vand.u32 %v2878, 4294901760
    %4090 = vmatpush.msra.mxu0 %v4089
    %v4091 = vand.u32 %v2870, 4294901760
    %4092 = vmatpush.msra.mxu0 %v4091
    %v4093 = vand.u32 %v2862, 4294901760
    %4094 = vmatpush.msra.mxu0 %v4093
    %v4095 = vand.u32 %v2140, 4294901760
    %4096 = vmatmul.f32.gmra.mxu0 %v4095
    %v4097 = vpop.f32.mrf.mxu0
    %v4098 = vadd.f32 %v4057, %v4097
    %v4099 = vand.u32 %v2155, 4294901760
    %4100 = vmatmul.f32.gmra.mxu0 %v4099
    %v4101 = vpop.f32.mrf.mxu0
    %v4102 = vadd.f32 %v4061, %v4101
    %4103 = vdwg.mxu0
    %v4104 = vand.u32 %v2983, 4294901760
    %4105 = vmatpush.msra.mxu0 %v4104
    %v4106 = vand.u32 %v2975, 4294901760
    %4107 = vmatpush.msra.mxu0 %v4106
    %v4108 = vand.u32 %v2967, 4294901760
    %4109 = vmatpush.msra.mxu0 %v4108
    %v4110 = vand.u32 %v2959, 4294901760
    %4111 = vmatpush.msra.mxu0 %v4110
    %v4112 = vand.u32 %v2951, 4294901760
    %4113 = vmatpush.msra.mxu0 %v4112
    %v4114 = vand.u32 %v2943, 4294901760
    %4115 = vmatpush.msra.mxu0 %v4114
    %v4116 = vand.u32 %v2935, 4294901760
    %4117 = vmatpush.msra.mxu0 %v4116
    %v4118 = vand.u32 %v2927, 4294901760
    %4119 = vmatpush.msra.mxu0 %v4118
    %v4120 = vand.u32 %v2919, 4294901760
    %4121 = vmatpush.msra.mxu0 %v4120
    %v4122 = vand.u32 %v2911, 4294901760
    %4123 = vmatpush.msra.mxu0 %v4122
    %v4124 = vand.u32 %v2903, 4294901760
    %4125 = vmatpush.msra.mxu0 %v4124
    %v4126 = vand.u32 %v2895, 4294901760
    %4127 = vmatpush.msra.mxu0 %v4126
    %v4128 = vand.u32 %v2887, 4294901760
    %4129 = vmatpush.msra.mxu0 %v4128
    %v4130 = vand.u32 %v2879, 4294901760
    %4131 = vmatpush.msra.mxu0 %v4130
    %v4132 = vand.u32 %v2871, 4294901760
    %4133 = vmatpush.msra.mxu0 %v4132
    %v4134 = vand.u32 %v2863, 4294901760
    %4135 = vmatpush.msra.mxu0 %v4134
    %v4136 = vand.u32 %v2140, 4294901760
    %v4137 = vsub.f32 %v2140, %v4136
    %v4138 = vand.u32 %v4137, 4294901760
    %v4139 = vsub.f32 %v4137, %v4138
    %v4140 = vand.u32 %v4139, 4294901760
    %4141 = vmatmul.f32.gmra.mxu0 %v4140
    %v4142 = vpop.f32.mrf.mxu0
    %v4143 = vadd.f32 0.0, %v4142
    %v4144 = vand.u32 %v2155, 4294901760
    %v4145 = vsub.f32 %v2155, %v4144
    %v4146 = vand.u32 %v4145, 4294901760
    %v4147 = vsub.f32 %v4145, %v4146
    %v4148 = vand.u32 %v4147, 4294901760
    %4149 = vmatmul.f32.gmra.mxu0 %v4148
    %v4150 = vpop.f32.mrf.mxu0
    %v4151 = vadd.f32 0.0, %v4150
    %4152 = vdwg.mxu0
    %v4153 = vand.u32 %v2983, 4294901760
    %v4154 = vsub.f32 %v2983, %v4153
    %v4155 = vand.u32 %v4154, 4294901760
    %v4156 = vsub.f32 %v4154, %v4155
    %v4157 = vand.u32 %v4156, 4294901760
    %4158 = vmatpush.msra.mxu0 %v4157
    %v4159 = vand.u32 %v2975, 4294901760
    %v4160 = vsub.f32 %v2975, %v4159
    %v4161 = vand.u32 %v4160, 4294901760
    %v4162 = vsub.f32 %v4160, %v4161
    %v4163 = vand.u32 %v4162, 4294901760
    %4164 = vmatpush.msra.mxu0 %v4163
    %v4165 = vand.u32 %v2967, 4294901760
    %v4166 = vsub.f32 %v2967, %v4165
    %v4167 = vand.u32 %v4166, 4294901760
    %v4168 = vsub.f32 %v4166, %v4167
    %v4169 = vand.u32 %v4168, 4294901760
    %4170 = vmatpush.msra.mxu0 %v4169
    %v4171 = vand.u32 %v2959, 4294901760
    %v4172 = vsub.f32 %v2959, %v4171
    %v4173 = vand.u32 %v4172, 4294901760
    %v4174 = vsub.f32 %v4172, %v4173
    %v4175 = vand.u32 %v4174, 4294901760
    %4176 = vmatpush.msra.mxu0 %v4175
    %v4177 = vand.u32 %v2951, 4294901760
    %v4178 = vsub.f32 %v2951, %v4177
    %v4179 = vand.u32 %v4178, 4294901760
    %v4180 = vsub.f32 %v4178, %v4179
    %v4181 = vand.u32 %v4180, 4294901760
    %4182 = vmatpush.msra.mxu0 %v4181
    %v4183 = vand.u32 %v2943, 4294901760
    %v4184 = vsub.f32 %v2943, %v4183
    %v4185 = vand.u32 %v4184, 4294901760
    %v4186 = vsub.f32 %v4184, %v4185
    %v4187 = vand.u32 %v4186, 4294901760
    %4188 = vmatpush.msra.mxu0 %v4187
    %v4189 = vand.u32 %v2935, 4294901760
    %v4190 = vsub.f32 %v2935, %v4189
    %v4191 = vand.u32 %v4190, 4294901760
    %v4192 = vsub.f32 %v4190, %v4191
    %v4193 = vand.u32 %v4192, 4294901760
    %4194 = vmatpush.msra.mxu0 %v4193
    %v4195 = vand.u32 %v2927, 4294901760
    %v4196 = vsub.f32 %v2927, %v4195
    %v4197 = vand.u32 %v4196, 4294901760
    %v4198 = vsub.f32 %v4196, %v4197
    %v4199 = vand.u32 %v4198, 4294901760
    %4200 = vmatpush.msra.mxu0 %v4199
    %v4201 = vand.u32 %v2919, 4294901760
    %v4202 = vsub.f32 %v2919, %v4201
    %v4203 = vand.u32 %v4202, 4294901760
    %v4204 = vsub.f32 %v4202, %v4203
    %v4205 = vand.u32 %v4204, 4294901760
    %4206 = vmatpush.msra.mxu0 %v4205
    %v4207 = vand.u32 %v2911, 4294901760
    %v4208 = vsub.f32 %v2911, %v4207
    %v4209 = vand.u32 %v4208, 4294901760
    %v4210 = vsub.f32 %v4208, %v4209
    %v4211 = vand.u32 %v4210, 4294901760
    %4212 = vmatpush.msra.mxu0 %v4211
    %v4213 = vand.u32 %v2903, 4294901760
    %v4214 = vsub.f32 %v2903, %v4213
    %v4215 = vand.u32 %v4214, 4294901760
    %v4216 = vsub.f32 %v4214, %v4215
    %v4217 = vand.u32 %v4216, 4294901760
    %4218 = vmatpush.msra.mxu0 %v4217
    %v4219 = vand.u32 %v2895, 4294901760
    %v4220 = vsub.f32 %v2895, %v4219
    %v4221 = vand.u32 %v4220, 4294901760
    %v4222 = vsub.f32 %v4220, %v4221
    %v4223 = vand.u32 %v4222, 4294901760
    %4224 = vmatpush.msra.mxu0 %v4223
    %v4225 = vand.u32 %v2887, 4294901760
    %v4226 = vsub.f32 %v2887, %v4225
    %v4227 = vand.u32 %v4226, 4294901760
    %v4228 = vsub.f32 %v4226, %v4227
    %v4229 = vand.u32 %v4228, 4294901760
    %4230 = vmatpush.msra.mxu0 %v4229
    %v4231 = vand.u32 %v2879, 4294901760
    %v4232 = vsub.f32 %v2879, %v4231
    %v4233 = vand.u32 %v4232, 4294901760
    %v4234 = vsub.f32 %v4232, %v4233
    %v4235 = vand.u32 %v4234, 4294901760
    %4236 = vmatpush.msra.mxu0 %v4235
    %v4237 = vand.u32 %v2871, 4294901760
    %v4238 = vsub.f32 %v2871, %v4237
    %v4239 = vand.u32 %v4238, 4294901760
    %v4240 = vsub.f32 %v4238, %v4239
    %v4241 = vand.u32 %v4240, 4294901760
    %4242 = vmatpush.msra.mxu0 %v4241
    %v4243 = vand.u32 %v2863, 4294901760
    %v4244 = vsub.f32 %v2863, %v4243
    %v4245 = vand.u32 %v4244, 4294901760
    %v4246 = vsub.f32 %v4244, %v4245
    %v4247 = vand.u32 %v4246, 4294901760
    %4248 = vmatpush.msra.mxu0 %v4247
    %v4249 = vand.u32 %v2140, 4294901760
    %4250 = vmatmul.f32.gmra.mxu0 %v4249
    %v4251 = vpop.f32.mrf.mxu0
    %v4252 = vadd.f32 %v4143, %v4251
    %v4253 = vand.u32 %v2155, 4294901760
    %4254 = vmatmul.f32.gmra.mxu0 %v4253
    %v4255 = vpop.f32.mrf.mxu0
    %v4256 = vadd.f32 %v4151, %v4255
    %4257 = vdwg.mxu0
    %v4258 = vand.u32 %v2983, 4294901760
    %v4259 = vsub.f32 %v2983, %v4258
    %4260 = vmatpush.msra.mxu0 %v4259
    %v4261 = vand.u32 %v2975, 4294901760
    %v4262 = vsub.f32 %v2975, %v4261
    %4263 = vmatpush.msra.mxu0 %v4262
    %v4264 = vand.u32 %v2967, 4294901760
    %v4265 = vsub.f32 %v2967, %v4264
    %4266 = vmatpush.msra.mxu0 %v4265
    %v4267 = vand.u32 %v2959, 4294901760
    %v4268 = vsub.f32 %v2959, %v4267
    %4269 = vmatpush.msra.mxu0 %v4268
    %v4270 = vand.u32 %v2951, 4294901760
    %v4271 = vsub.f32 %v2951, %v4270
    %4272 = vmatpush.msra.mxu0 %v4271
    %v4273 = vand.u32 %v2943, 4294901760
    %v4274 = vsub.f32 %v2943, %v4273
    %4275 = vmatpush.msra.mxu0 %v4274
    %v4276 = vand.u32 %v2935, 4294901760
    %v4277 = vsub.f32 %v2935, %v4276
    %4278 = vmatpush.msra.mxu0 %v4277
    %v4279 = vand.u32 %v2927, 4294901760
    %v4280 = vsub.f32 %v2927, %v4279
    %4281 = vmatpush.msra.mxu0 %v4280
    %v4282 = vand.u32 %v2919, 4294901760
    %v4283 = vsub.f32 %v2919, %v4282
    %4284 = vmatpush.msra.mxu0 %v4283
    %v4285 = vand.u32 %v2911, 4294901760
    %v4286 = vsub.f32 %v2911, %v4285
    %4287 = vmatpush.msra.mxu0 %v4286
    %v4288 = vand.u32 %v2903, 4294901760
    %v4289 = vsub.f32 %v2903, %v4288
    %4290 = vmatpush.msra.mxu0 %v4289
    %v4291 = vand.u32 %v2895, 4294901760
    %v4292 = vsub.f32 %v2895, %v4291
    %4293 = vmatpush.msra.mxu0 %v4292
    %v4294 = vand.u32 %v2887, 4294901760
    %v4295 = vsub.f32 %v2887, %v4294
    %4296 = vmatpush.msra.mxu0 %v4295
    %v4297 = vand.u32 %v2879, 4294901760
    %v4298 = vsub.f32 %v2879, %v4297
    %4299 = vmatpush.msra.mxu0 %v4298
    %v4300 = vand.u32 %v2871, 4294901760
    %v4301 = vsub.f32 %v2871, %v4300
    %4302 = vmatpush.msra.mxu0 %v4301
    %v4303 = vand.u32 %v2863, 4294901760
    %v4304 = vsub.f32 %v2863, %v4303
    %4305 = vmatpush.msra.mxu0 %v4304
    %v4306 = vand.u32 %v2140, 4294901760
    %v4307 = vsub.f32 %v2140, %v4306
    %4308 = vmatmul.f32.gmra.mxu0 %v4307
    %v4309 = vpop.f32.mrf.mxu0
    %v4310 = vadd.f32 %v4252, %v4309
    %v4311 = vand.u32 %v2155, 4294901760
    %v4312 = vsub.f32 %v2155, %v4311
    %4313 = vmatmul.f32.gmra.mxu0 %v4312
    %v4314 = vpop.f32.mrf.mxu0
    %v4315 = vadd.f32 %v4256, %v4314
    %4316 = vdwg.mxu0
    %v4317 = vand.u32 %v2983, 4294901760
    %4318 = vmatpush.msra.mxu0 %v4317
    %v4319 = vand.u32 %v2975, 4294901760
    %4320 = vmatpush.msra.mxu0 %v4319
    %v4321 = vand.u32 %v2967, 4294901760
    %4322 = vmatpush.msra.mxu0 %v4321
    %v4323 = vand.u32 %v2959, 4294901760
    %4324 = vmatpush.msra.mxu0 %v4323
    %v4325 = vand.u32 %v2951, 4294901760
    %4326 = vmatpush.msra.mxu0 %v4325
    %v4327 = vand.u32 %v2943, 4294901760
    %4328 = vmatpush.msra.mxu0 %v4327
    %v4329 = vand.u32 %v2935, 4294901760
    %4330 = vmatpush.msra.mxu0 %v4329
    %v4331 = vand.u32 %v2927, 4294901760
    %4332 = vmatpush.msra.mxu0 %v4331
    %v4333 = vand.u32 %v2919, 4294901760
    %4334 = vmatpush.msra.mxu0 %v4333
    %v4335 = vand.u32 %v2911, 4294901760
    %4336 = vmatpush.msra.mxu0 %v4335
    %v4337 = vand.u32 %v2903, 4294901760
    %4338 = vmatpush.msra.mxu0 %v4337
    %v4339 = vand.u32 %v2895, 4294901760
    %4340 = vmatpush.msra.mxu0 %v4339
    %v4341 = vand.u32 %v2887, 4294901760
    %4342 = vmatpush.msra.mxu0 %v4341
    %v4343 = vand.u32 %v2879, 4294901760
    %4344 = vmatpush.msra.mxu0 %v4343
    %v4345 = vand.u32 %v2871, 4294901760
    %4346 = vmatpush.msra.mxu0 %v4345
    %v4347 = vand.u32 %v2863, 4294901760
    %4348 = vmatpush.msra.mxu0 %v4347
    %v4349 = vand.u32 %v2140, 4294901760
    %v4350 = vsub.f32 %v2140, %v4349
    %v4351 = vand.u32 %v4350, 4294901760
    %4352 = vmatmul.f32.gmra.mxu0 %v4351
    %v4353 = vpop.f32.mrf.mxu0
    %v4354 = vadd.f32 %v4310, %v4353
    %v4355 = vand.u32 %v2155, 4294901760
    %v4356 = vsub.f32 %v2155, %v4355
    %v4357 = vand.u32 %v4356, 4294901760
    %4358 = vmatmul.f32.gmra.mxu0 %v4357
    %v4359 = vpop.f32.mrf.mxu0
    %v4360 = vadd.f32 %v4315, %v4359
    %4361 = vdwg.mxu0
    %v4362 = vand.u32 %v2983, 4294901760
    %v4363 = vsub.f32 %v2983, %v4362
    %v4364 = vand.u32 %v4363, 4294901760
    %4365 = vmatpush.msra.mxu0 %v4364
    %v4366 = vand.u32 %v2975, 4294901760
    %v4367 = vsub.f32 %v2975, %v4366
    %v4368 = vand.u32 %v4367, 4294901760
    %4369 = vmatpush.msra.mxu0 %v4368
    %v4370 = vand.u32 %v2967, 4294901760
    %v4371 = vsub.f32 %v2967, %v4370
    %v4372 = vand.u32 %v4371, 4294901760
    %4373 = vmatpush.msra.mxu0 %v4372
    %v4374 = vand.u32 %v2959, 4294901760
    %v4375 = vsub.f32 %v2959, %v4374
    %v4376 = vand.u32 %v4375, 4294901760
    %4377 = vmatpush.msra.mxu0 %v4376
    %v4378 = vand.u32 %v2951, 4294901760
    %v4379 = vsub.f32 %v2951, %v4378
    %v4380 = vand.u32 %v4379, 4294901760
    %4381 = vmatpush.msra.mxu0 %v4380
    %v4382 = vand.u32 %v2943, 4294901760
    %v4383 = vsub.f32 %v2943, %v4382
    %v4384 = vand.u32 %v4383, 4294901760
    %4385 = vmatpush.msra.mxu0 %v4384
    %v4386 = vand.u32 %v2935, 4294901760
    %v4387 = vsub.f32 %v2935, %v4386
    %v4388 = vand.u32 %v4387, 4294901760
    %4389 = vmatpush.msra.mxu0 %v4388
    %v4390 = vand.u32 %v2927, 4294901760
    %v4391 = vsub.f32 %v2927, %v4390
    %v4392 = vand.u32 %v4391, 4294901760
    %4393 = vmatpush.msra.mxu0 %v4392
    %v4394 = vand.u32 %v2919, 4294901760
    %v4395 = vsub.f32 %v2919, %v4394
    %v4396 = vand.u32 %v4395, 4294901760
    %4397 = vmatpush.msra.mxu0 %v4396
    %v4398 = vand.u32 %v2911, 4294901760
    %v4399 = vsub.f32 %v2911, %v4398
    %v4400 = vand.u32 %v4399, 4294901760
    %4401 = vmatpush.msra.mxu0 %v4400
    %v4402 = vand.u32 %v2903, 4294901760
    %v4403 = vsub.f32 %v2903, %v4402
    %v4404 = vand.u32 %v4403, 4294901760
    %4405 = vmatpush.msra.mxu0 %v4404
    %v4406 = vand.u32 %v2895, 4294901760
    %v4407 = vsub.f32 %v2895, %v4406
    %v4408 = vand.u32 %v4407, 4294901760
    %4409 = vmatpush.msra.mxu0 %v4408
    %v4410 = vand.u32 %v2887, 4294901760
    %v4411 = vsub.f32 %v2887, %v4410
    %v4412 = vand.u32 %v4411, 4294901760
    %4413 = vmatpush.msra.mxu0 %v4412
    %v4414 = vand.u32 %v2879, 4294901760
    %v4415 = vsub.f32 %v2879, %v4414
    %v4416 = vand.u32 %v4415, 4294901760
    %4417 = vmatpush.msra.mxu0 %v4416
    %v4418 = vand.u32 %v2871, 4294901760
    %v4419 = vsub.f32 %v2871, %v4418
    %v4420 = vand.u32 %v4419, 4294901760
    %4421 = vmatpush.msra.mxu0 %v4420
    %v4422 = vand.u32 %v2863, 4294901760
    %v4423 = vsub.f32 %v2863, %v4422
    %v4424 = vand.u32 %v4423, 4294901760
    %4425 = vmatpush.msra.mxu0 %v4424
    %v4426 = vand.u32 %v2140, 4294901760
    %4427 = vmatmul.f32.gmra.mxu0 %v4426
    %v4428 = vpop.f32.mrf.mxu0
    %v4429 = vadd.f32 %v4354, %v4428
    %v4430 = vand.u32 %v2155, 4294901760
    %4431 = vmatmul.f32.gmra.mxu0 %v4430
    %v4432 = vpop.f32.mrf.mxu0
    %v4433 = vadd.f32 %v4360, %v4432
    %4434 = vdwg.mxu0
    %v4435 = vand.u32 %v2983, 4294901760
    %4436 = vmatpush.msra.mxu0 %v4435
    %v4437 = vand.u32 %v2975, 4294901760
    %4438 = vmatpush.msra.mxu0 %v4437
    %v4439 = vand.u32 %v2967, 4294901760
    %4440 = vmatpush.msra.mxu0 %v4439
    %v4441 = vand.u32 %v2959, 4294901760
    %4442 = vmatpush.msra.mxu0 %v4441
    %v4443 = vand.u32 %v2951, 4294901760
    %4444 = vmatpush.msra.mxu0 %v4443
    %v4445 = vand.u32 %v2943, 4294901760
    %4446 = vmatpush.msra.mxu0 %v4445
    %v4447 = vand.u32 %v2935, 4294901760
    %4448 = vmatpush.msra.mxu0 %v4447
    %v4449 = vand.u32 %v2927, 4294901760
    %4450 = vmatpush.msra.mxu0 %v4449
    %v4451 = vand.u32 %v2919, 4294901760
    %4452 = vmatpush.msra.mxu0 %v4451
    %v4453 = vand.u32 %v2911, 4294901760
    %4454 = vmatpush.msra.mxu0 %v4453
    %v4455 = vand.u32 %v2903, 4294901760
    %4456 = vmatpush.msra.mxu0 %v4455
    %v4457 = vand.u32 %v2895, 4294901760
    %4458 = vmatpush.msra.mxu0 %v4457
    %v4459 = vand.u32 %v2887, 4294901760
    %4460 = vmatpush.msra.mxu0 %v4459
    %v4461 = vand.u32 %v2879, 4294901760
    %4462 = vmatpush.msra.mxu0 %v4461
    %v4463 = vand.u32 %v2871, 4294901760
    %4464 = vmatpush.msra.mxu0 %v4463
    %v4465 = vand.u32 %v2863, 4294901760
    %4466 = vmatpush.msra.mxu0 %v4465
    %v4467 = vand.u32 %v2140, 4294901760
    %4468 = vmatmul.f32.gmra.mxu0 %v4467
    %v4469 = vpop.f32.mrf.mxu0
    %v4470 = vadd.f32 %v4429, %v4469
    %v4471 = vand.u32 %v2155, 4294901760
    %4472 = vmatmul.f32.gmra.mxu0 %v4471
    %v4473 = vpop.f32.mrf.mxu0
    %v4474 = vadd.f32 %v4433, %v4473
    %4475 = vdwg.mxu0
    %v4476 = vand.u32 %v2984, 4294901760
    %4477 = vmatpush.msra.mxu0 %v4476
    %v4478 = vand.u32 %v2976, 4294901760
    %4479 = vmatpush.msra.mxu0 %v4478
    %v4480 = vand.u32 %v2968, 4294901760
    %4481 = vmatpush.msra.mxu0 %v4480
    %v4482 = vand.u32 %v2960, 4294901760
    %4483 = vmatpush.msra.mxu0 %v4482
    %v4484 = vand.u32 %v2952, 4294901760
    %4485 = vmatpush.msra.mxu0 %v4484
    %v4486 = vand.u32 %v2944, 4294901760
    %4487 = vmatpush.msra.mxu0 %v4486
    %v4488 = vand.u32 %v2936, 4294901760
    %4489 = vmatpush.msra.mxu0 %v4488
    %v4490 = vand.u32 %v2928, 4294901760
    %4491 = vmatpush.msra.mxu0 %v4490
    %v4492 = vand.u32 %v2920, 4294901760
    %4493 = vmatpush.msra.mxu0 %v4492
    %v4494 = vand.u32 %v2912, 4294901760
    %4495 = vmatpush.msra.mxu0 %v4494
    %v4496 = vand.u32 %v2904, 4294901760
    %4497 = vmatpush.msra.mxu0 %v4496
    %v4498 = vand.u32 %v2896, 4294901760
    %4499 = vmatpush.msra.mxu0 %v4498
    %v4500 = vand.u32 %v2888, 4294901760
    %4501 = vmatpush.msra.mxu0 %v4500
    %v4502 = vand.u32 %v2880, 4294901760
    %4503 = vmatpush.msra.mxu0 %v4502
    %v4504 = vand.u32 %v2872, 4294901760
    %4505 = vmatpush.msra.mxu0 %v4504
    %v4506 = vand.u32 %v2864, 4294901760
    %4507 = vmatpush.msra.mxu0 %v4506
    %v4508 = vand.u32 %v2140, 4294901760
    %v4509 = vsub.f32 %v2140, %v4508
    %v4510 = vand.u32 %v4509, 4294901760
    %v4511 = vsub.f32 %v4509, %v4510
    %v4512 = vand.u32 %v4511, 4294901760
    %4513 = vmatmul.f32.gmra.mxu0 %v4512
    %v4514 = vpop.f32.mrf.mxu0
    %v4515 = vadd.f32 0.0, %v4514
    %v4516 = vand.u32 %v2155, 4294901760
    %v4517 = vsub.f32 %v2155, %v4516
    %v4518 = vand.u32 %v4517, 4294901760
    %v4519 = vsub.f32 %v4517, %v4518
    %v4520 = vand.u32 %v4519, 4294901760
    %4521 = vmatmul.f32.gmra.mxu0 %v4520
    %v4522 = vpop.f32.mrf.mxu0
    %v4523 = vadd.f32 0.0, %v4522
    %4524 = vdwg.mxu0
    %v4525 = vand.u32 %v2984, 4294901760
    %v4526 = vsub.f32 %v2984, %v4525
    %v4527 = vand.u32 %v4526, 4294901760
    %v4528 = vsub.f32 %v4526, %v4527
    %v4529 = vand.u32 %v4528, 4294901760
    %4530 = vmatpush.msra.mxu0 %v4529
    %v4531 = vand.u32 %v2976, 4294901760
    %v4532 = vsub.f32 %v2976, %v4531
    %v4533 = vand.u32 %v4532, 4294901760
    %v4534 = vsub.f32 %v4532, %v4533
    %v4535 = vand.u32 %v4534, 4294901760
    %4536 = vmatpush.msra.mxu0 %v4535
    %v4537 = vand.u32 %v2968, 4294901760
    %v4538 = vsub.f32 %v2968, %v4537
    %v4539 = vand.u32 %v4538, 4294901760
    %v4540 = vsub.f32 %v4538, %v4539
    %v4541 = vand.u32 %v4540, 4294901760
    %4542 = vmatpush.msra.mxu0 %v4541
    %v4543 = vand.u32 %v2960, 4294901760
    %v4544 = vsub.f32 %v2960, %v4543
    %v4545 = vand.u32 %v4544, 4294901760
    %v4546 = vsub.f32 %v4544, %v4545
    %v4547 = vand.u32 %v4546, 4294901760
    %4548 = vmatpush.msra.mxu0 %v4547
    %v4549 = vand.u32 %v2952, 4294901760
    %v4550 = vsub.f32 %v2952, %v4549
    %v4551 = vand.u32 %v4550, 4294901760
    %v4552 = vsub.f32 %v4550, %v4551
    %v4553 = vand.u32 %v4552, 4294901760
    %4554 = vmatpush.msra.mxu0 %v4553
    %v4555 = vand.u32 %v2944, 4294901760
    %v4556 = vsub.f32 %v2944, %v4555
    %v4557 = vand.u32 %v4556, 4294901760
    %v4558 = vsub.f32 %v4556, %v4557
    %v4559 = vand.u32 %v4558, 4294901760
    %4560 = vmatpush.msra.mxu0 %v4559
    %v4561 = vand.u32 %v2936, 4294901760
    %v4562 = vsub.f32 %v2936, %v4561
    %v4563 = vand.u32 %v4562, 4294901760
    %v4564 = vsub.f32 %v4562, %v4563
    %v4565 = vand.u32 %v4564, 4294901760
    %4566 = vmatpush.msra.mxu0 %v4565
    %v4567 = vand.u32 %v2928, 4294901760
    %v4568 = vsub.f32 %v2928, %v4567
    %v4569 = vand.u32 %v4568, 4294901760
    %v4570 = vsub.f32 %v4568, %v4569
    %v4571 = vand.u32 %v4570, 4294901760
    %4572 = vmatpush.msra.mxu0 %v4571
    %v4573 = vand.u32 %v2920, 4294901760
    %v4574 = vsub.f32 %v2920, %v4573
    %v4575 = vand.u32 %v4574, 4294901760
    %v4576 = vsub.f32 %v4574, %v4575
    %v4577 = vand.u32 %v4576, 4294901760
    %4578 = vmatpush.msra.mxu0 %v4577
    %v4579 = vand.u32 %v2912, 4294901760
    %v4580 = vsub.f32 %v2912, %v4579
    %v4581 = vand.u32 %v4580, 4294901760
    %v4582 = vsub.f32 %v4580, %v4581
    %v4583 = vand.u32 %v4582, 4294901760
    %4584 = vmatpush.msra.mxu0 %v4583
    %v4585 = vand.u32 %v2904, 4294901760
    %v4586 = vsub.f32 %v2904, %v4585
    %v4587 = vand.u32 %v4586, 4294901760
    %v4588 = vsub.f32 %v4586, %v4587
    %v4589 = vand.u32 %v4588, 4294901760
    %4590 = vmatpush.msra.mxu0 %v4589
    %v4591 = vand.u32 %v2896, 4294901760
    %v4592 = vsub.f32 %v2896, %v4591
    %v4593 = vand.u32 %v4592, 4294901760
    %v4594 = vsub.f32 %v4592, %v4593
    %v4595 = vand.u32 %v4594, 4294901760
    %4596 = vmatpush.msra.mxu0 %v4595
    %v4597 = vand.u32 %v2888, 4294901760
    %v4598 = vsub.f32 %v2888, %v4597
    %v4599 = vand.u32 %v4598, 4294901760
    %v4600 = vsub.f32 %v4598, %v4599
    %v4601 = vand.u32 %v4600, 4294901760
    %4602 = vmatpush.msra.mxu0 %v4601
    %v4603 = vand.u32 %v2880, 4294901760
    %v4604 = vsub.f32 %v2880, %v4603
    %v4605 = vand.u32 %v4604, 4294901760
    %v4606 = vsub.f32 %v4604, %v4605
    %v4607 = vand.u32 %v4606, 4294901760
    %4608 = vmatpush.msra.mxu0 %v4607
    %v4609 = vand.u32 %v2872, 4294901760
    %v4610 = vsub.f32 %v2872, %v4609
    %v4611 = vand.u32 %v4610, 4294901760
    %v4612 = vsub.f32 %v4610, %v4611
    %v4613 = vand.u32 %v4612, 4294901760
    %4614 = vmatpush.msra.mxu0 %v4613
    %v4615 = vand.u32 %v2864, 4294901760
    %v4616 = vsub.f32 %v2864, %v4615
    %v4617 = vand.u32 %v4616, 4294901760
    %v4618 = vsub.f32 %v4616, %v4617
    %v4619 = vand.u32 %v4618, 4294901760
    %4620 = vmatpush.msra.mxu0 %v4619
    %v4621 = vand.u32 %v2140, 4294901760
    %4622 = vmatmul.f32.gmra.mxu0 %v4621
    %v4623 = vpop.f32.mrf.mxu0
    %v4624 = vadd.f32 %v4515, %v4623
    %v4625 = vand.u32 %v2155, 4294901760
    %4626 = vmatmul.f32.gmra.mxu0 %v4625
    %v4627 = vpop.f32.mrf.mxu0
    %v4628 = vadd.f32 %v4523, %v4627
    %4629 = vdwg.mxu0
    %v4630 = vand.u32 %v2984, 4294901760
    %v4631 = vsub.f32 %v2984, %v4630
    %4632 = vmatpush.msra.mxu0 %v4631
    %v4633 = vand.u32 %v2976, 4294901760
    %v4634 = vsub.f32 %v2976, %v4633
    %4635 = vmatpush.msra.mxu0 %v4634
    %v4636 = vand.u32 %v2968, 4294901760
    %v4637 = vsub.f32 %v2968, %v4636
    %4638 = vmatpush.msra.mxu0 %v4637
    %v4639 = vand.u32 %v2960, 4294901760
    %v4640 = vsub.f32 %v2960, %v4639
    %4641 = vmatpush.msra.mxu0 %v4640
    %v4642 = vand.u32 %v2952, 4294901760
    %v4643 = vsub.f32 %v2952, %v4642
    %4644 = vmatpush.msra.mxu0 %v4643
    %v4645 = vand.u32 %v2944, 4294901760
    %v4646 = vsub.f32 %v2944, %v4645
    %4647 = vmatpush.msra.mxu0 %v4646
    %v4648 = vand.u32 %v2936, 4294901760
    %v4649 = vsub.f32 %v2936, %v4648
    %4650 = vmatpush.msra.mxu0 %v4649
    %v4651 = vand.u32 %v2928, 4294901760
    %v4652 = vsub.f32 %v2928, %v4651
    %4653 = vmatpush.msra.mxu0 %v4652
    %v4654 = vand.u32 %v2920, 4294901760
    %v4655 = vsub.f32 %v2920, %v4654
    %4656 = vmatpush.msra.mxu0 %v4655
    %v4657 = vand.u32 %v2912, 4294901760
    %v4658 = vsub.f32 %v2912, %v4657
    %4659 = vmatpush.msra.mxu0 %v4658
    %v4660 = vand.u32 %v2904, 4294901760
    %v4661 = vsub.f32 %v2904, %v4660
    %4662 = vmatpush.msra.mxu0 %v4661
    %v4663 = vand.u32 %v2896, 4294901760
    %v4664 = vsub.f32 %v2896, %v4663
    %4665 = vmatpush.msra.mxu0 %v4664
    %v4666 = vand.u32 %v2888, 4294901760
    %v4667 = vsub.f32 %v2888, %v4666
    %4668 = vmatpush.msra.mxu0 %v4667
    %v4669 = vand.u32 %v2880, 4294901760
    %v4670 = vsub.f32 %v2880, %v4669
    %4671 = vmatpush.msra.mxu0 %v4670
    %v4672 = vand.u32 %v2872, 4294901760
    %v4673 = vsub.f32 %v2872, %v4672
    %4674 = vmatpush.msra.mxu0 %v4673
    %v4675 = vand.u32 %v2864, 4294901760
    %v4676 = vsub.f32 %v2864, %v4675
    %4677 = vmatpush.msra.mxu0 %v4676
    %v4678 = vand.u32 %v2140, 4294901760
    %v4679 = vsub.f32 %v2140, %v4678
    %4680 = vmatmul.f32.gmra.mxu0 %v4679
    %v4681 = vpop.f32.mrf.mxu0
    %v4682 = vadd.f32 %v4624, %v4681
    %v4683 = vand.u32 %v2155, 4294901760
    %v4684 = vsub.f32 %v2155, %v4683
    %4685 = vmatmul.f32.gmra.mxu0 %v4684
    %v4686 = vpop.f32.mrf.mxu0
    %v4687 = vadd.f32 %v4628, %v4686
    %4688 = vdwg.mxu0
    %v4689 = vand.u32 %v2984, 4294901760
    %4690 = vmatpush.msra.mxu0 %v4689
    %v4691 = vand.u32 %v2976, 4294901760
    %4692 = vmatpush.msra.mxu0 %v4691
    %v4693 = vand.u32 %v2968, 4294901760
    %4694 = vmatpush.msra.mxu0 %v4693
    %v4695 = vand.u32 %v2960, 4294901760
    %4696 = vmatpush.msra.mxu0 %v4695
    %v4697 = vand.u32 %v2952, 4294901760
    %4698 = vmatpush.msra.mxu0 %v4697
    %v4699 = vand.u32 %v2944, 4294901760
    %4700 = vmatpush.msra.mxu0 %v4699
    %v4701 = vand.u32 %v2936, 4294901760
    %4702 = vmatpush.msra.mxu0 %v4701
    %v4703 = vand.u32 %v2928, 4294901760
    %4704 = vmatpush.msra.mxu0 %v4703
    %v4705 = vand.u32 %v2920, 4294901760
    %4706 = vmatpush.msra.mxu0 %v4705
    %v4707 = vand.u32 %v2912, 4294901760
    %4708 = vmatpush.msra.mxu0 %v4707
    %v4709 = vand.u32 %v2904, 4294901760
    %4710 = vmatpush.msra.mxu0 %v4709
    %v4711 = vand.u32 %v2896, 4294901760
    %4712 = vmatpush.msra.mxu0 %v4711
    %v4713 = vand.u32 %v2888, 4294901760
    %4714 = vmatpush.msra.mxu0 %v4713
    %v4715 = vand.u32 %v2880, 4294901760
    %4716 = vmatpush.msra.mxu0 %v4715
    %v4717 = vand.u32 %v2872, 4294901760
    %4718 = vmatpush.msra.mxu0 %v4717
    %v4719 = vand.u32 %v2864, 4294901760
    %4720 = vmatpush.msra.mxu0 %v4719
    %v4721 = vand.u32 %v2140, 4294901760
    %v4722 = vsub.f32 %v2140, %v4721
    %v4723 = vand.u32 %v4722, 4294901760
    %4724 = vmatmul.f32.gmra.mxu0 %v4723
    %v4725 = vpop.f32.mrf.mxu0
    %v4726 = vadd.f32 %v4682, %v4725
    %v4727 = vand.u32 %v2155, 4294901760
    %v4728 = vsub.f32 %v2155, %v4727
    %v4729 = vand.u32 %v4728, 4294901760
    %4730 = vmatmul.f32.gmra.mxu0 %v4729
    %v4731 = vpop.f32.mrf.mxu0
    %v4732 = vadd.f32 %v4687, %v4731
    %4733 = vdwg.mxu0
    %v4734 = vand.u32 %v2984, 4294901760
    %v4735 = vsub.f32 %v2984, %v4734
    %v4736 = vand.u32 %v4735, 4294901760
    %4737 = vmatpush.msra.mxu0 %v4736
    %v4738 = vand.u32 %v2976, 4294901760
    %v4739 = vsub.f32 %v2976, %v4738
    %v4740 = vand.u32 %v4739, 4294901760
    %4741 = vmatpush.msra.mxu0 %v4740
    %v4742 = vand.u32 %v2968, 4294901760
    %v4743 = vsub.f32 %v2968, %v4742
    %v4744 = vand.u32 %v4743, 4294901760
    %4745 = vmatpush.msra.mxu0 %v4744
    %v4746 = vand.u32 %v2960, 4294901760
    %v4747 = vsub.f32 %v2960, %v4746
    %v4748 = vand.u32 %v4747, 4294901760
    %4749 = vmatpush.msra.mxu0 %v4748
    %v4750 = vand.u32 %v2952, 4294901760
    %v4751 = vsub.f32 %v2952, %v4750
    %v4752 = vand.u32 %v4751, 4294901760
    %4753 = vmatpush.msra.mxu0 %v4752
    %v4754 = vand.u32 %v2944, 4294901760
    %v4755 = vsub.f32 %v2944, %v4754
    %v4756 = vand.u32 %v4755, 4294901760
    %4757 = vmatpush.msra.mxu0 %v4756
    %v4758 = vand.u32 %v2936, 4294901760
    %v4759 = vsub.f32 %v2936, %v4758
    %v4760 = vand.u32 %v4759, 4294901760
    %4761 = vmatpush.msra.mxu0 %v4760
    %v4762 = vand.u32 %v2928, 4294901760
    %v4763 = vsub.f32 %v2928, %v4762
    %v4764 = vand.u32 %v4763, 4294901760
    %4765 = vmatpush.msra.mxu0 %v4764
    %v4766 = vand.u32 %v2920, 4294901760
    %v4767 = vsub.f32 %v2920, %v4766
    %v4768 = vand.u32 %v4767, 4294901760
    %4769 = vmatpush.msra.mxu0 %v4768
    %v4770 = vand.u32 %v2912, 4294901760
    %v4771 = vsub.f32 %v2912, %v4770
    %v4772 = vand.u32 %v4771, 4294901760
    %4773 = vmatpush.msra.mxu0 %v4772
    %v4774 = vand.u32 %v2904, 4294901760
    %v4775 = vsub.f32 %v2904, %v4774
    %v4776 = vand.u32 %v4775, 4294901760
    %4777 = vmatpush.msra.mxu0 %v4776
    %v4778 = vand.u32 %v2896, 4294901760
    %v4779 = vsub.f32 %v2896, %v4778
    %v4780 = vand.u32 %v4779, 4294901760
    %4781 = vmatpush.msra.mxu0 %v4780
    %v4782 = vand.u32 %v2888, 4294901760
    %v4783 = vsub.f32 %v2888, %v4782
    %v4784 = vand.u32 %v4783, 4294901760
    %4785 = vmatpush.msra.mxu0 %v4784
    %v4786 = vand.u32 %v2880, 4294901760
    %v4787 = vsub.f32 %v2880, %v4786
    %v4788 = vand.u32 %v4787, 4294901760
    %4789 = vmatpush.msra.mxu0 %v4788
    %v4790 = vand.u32 %v2872, 4294901760
    %v4791 = vsub.f32 %v2872, %v4790
    %v4792 = vand.u32 %v4791, 4294901760
    %4793 = vmatpush.msra.mxu0 %v4792
    %v4794 = vand.u32 %v2864, 4294901760
    %v4795 = vsub.f32 %v2864, %v4794
    %v4796 = vand.u32 %v4795, 4294901760
    %4797 = vmatpush.msra.mxu0 %v4796
    %v4798 = vand.u32 %v2140, 4294901760
    %4799 = vmatmul.f32.gmra.mxu0 %v4798
    %v4800 = vpop.f32.mrf.mxu0
    %v4801 = vadd.f32 %v4726, %v4800
    %v4802 = vand.u32 %v2155, 4294901760
    %4803 = vmatmul.f32.gmra.mxu0 %v4802
    %v4804 = vpop.f32.mrf.mxu0
    %v4805 = vadd.f32 %v4732, %v4804
    %4806 = vdwg.mxu0
    %v4807 = vand.u32 %v2984, 4294901760
    %4808 = vmatpush.msra.mxu0 %v4807
    %v4809 = vand.u32 %v2976, 4294901760
    %4810 = vmatpush.msra.mxu0 %v4809
    %v4811 = vand.u32 %v2968, 4294901760
    %4812 = vmatpush.msra.mxu0 %v4811
    %v4813 = vand.u32 %v2960, 4294901760
    %4814 = vmatpush.msra.mxu0 %v4813
    %v4815 = vand.u32 %v2952, 4294901760
    %4816 = vmatpush.msra.mxu0 %v4815
    %v4817 = vand.u32 %v2944, 4294901760
    %4818 = vmatpush.msra.mxu0 %v4817
    %v4819 = vand.u32 %v2936, 4294901760
    %4820 = vmatpush.msra.mxu0 %v4819
    %v4821 = vand.u32 %v2928, 4294901760
    %4822 = vmatpush.msra.mxu0 %v4821
    %v4823 = vand.u32 %v2920, 4294901760
    %4824 = vmatpush.msra.mxu0 %v4823
    %v4825 = vand.u32 %v2912, 4294901760
    %4826 = vmatpush.msra.mxu0 %v4825
    %v4827 = vand.u32 %v2904, 4294901760
    %4828 = vmatpush.msra.mxu0 %v4827
    %v4829 = vand.u32 %v2896, 4294901760
    %4830 = vmatpush.msra.mxu0 %v4829
    %v4831 = vand.u32 %v2888, 4294901760
    %4832 = vmatpush.msra.mxu0 %v4831
    %v4833 = vand.u32 %v2880, 4294901760
    %4834 = vmatpush.msra.mxu0 %v4833
    %v4835 = vand.u32 %v2872, 4294901760
    %4836 = vmatpush.msra.mxu0 %v4835
    %v4837 = vand.u32 %v2864, 4294901760
    %4838 = vmatpush.msra.mxu0 %v4837
    %v4839 = vand.u32 %v2140, 4294901760
    %4840 = vmatmul.f32.gmra.mxu0 %v4839
    %v4841 = vpop.f32.mrf.mxu0
    %v4842 = vadd.f32 %v4801, %v4841
    %v4843 = vand.u32 %v2155, 4294901760
    %4844 = vmatmul.f32.gmra.mxu0 %v4843
    %v4845 = vpop.f32.mrf.mxu0
    %v4846 = vadd.f32 %v4805, %v4845
    %4847 = vdwg.mxu0
    %v4848 = vand.u32 %v2985, 4294901760
    %4849 = vmatpush.msra.mxu0 %v4848
    %v4850 = vand.u32 %v2977, 4294901760
    %4851 = vmatpush.msra.mxu0 %v4850
    %v4852 = vand.u32 %v2969, 4294901760
    %4853 = vmatpush.msra.mxu0 %v4852
    %v4854 = vand.u32 %v2961, 4294901760
    %4855 = vmatpush.msra.mxu0 %v4854
    %v4856 = vand.u32 %v2953, 4294901760
    %4857 = vmatpush.msra.mxu0 %v4856
    %v4858 = vand.u32 %v2945, 4294901760
    %4859 = vmatpush.msra.mxu0 %v4858
    %v4860 = vand.u32 %v2937, 4294901760
    %4861 = vmatpush.msra.mxu0 %v4860
    %v4862 = vand.u32 %v2929, 4294901760
    %4863 = vmatpush.msra.mxu0 %v4862
    %v4864 = vand.u32 %v2921, 4294901760
    %4865 = vmatpush.msra.mxu0 %v4864
    %v4866 = vand.u32 %v2913, 4294901760
    %4867 = vmatpush.msra.mxu0 %v4866
    %v4868 = vand.u32 %v2905, 4294901760
    %4869 = vmatpush.msra.mxu0 %v4868
    %v4870 = vand.u32 %v2897, 4294901760
    %4871 = vmatpush.msra.mxu0 %v4870
    %v4872 = vand.u32 %v2889, 4294901760
    %4873 = vmatpush.msra.mxu0 %v4872
    %v4874 = vand.u32 %v2881, 4294901760
    %4875 = vmatpush.msra.mxu0 %v4874
    %v4876 = vand.u32 %v2873, 4294901760
    %4877 = vmatpush.msra.mxu0 %v4876
    %v4878 = vand.u32 %v2865, 4294901760
    %4879 = vmatpush.msra.mxu0 %v4878
    %v4880 = vand.u32 %v2140, 4294901760
    %v4881 = vsub.f32 %v2140, %v4880
    %v4882 = vand.u32 %v4881, 4294901760
    %v4883 = vsub.f32 %v4881, %v4882
    %v4884 = vand.u32 %v4883, 4294901760
    %4885 = vmatmul.f32.gmra.mxu0 %v4884
    %v4886 = vpop.f32.mrf.mxu0
    %v4887 = vadd.f32 0.0, %v4886
    %v4888 = vand.u32 %v2155, 4294901760
    %v4889 = vsub.f32 %v2155, %v4888
    %v4890 = vand.u32 %v4889, 4294901760
    %v4891 = vsub.f32 %v4889, %v4890
    %v4892 = vand.u32 %v4891, 4294901760
    %4893 = vmatmul.f32.gmra.mxu0 %v4892
    %v4894 = vpop.f32.mrf.mxu0
    %v4895 = vadd.f32 0.0, %v4894
    %4896 = vdwg.mxu0
    %v4897 = vand.u32 %v2985, 4294901760
    %v4898 = vsub.f32 %v2985, %v4897
    %v4899 = vand.u32 %v4898, 4294901760
    %v4900 = vsub.f32 %v4898, %v4899
    %v4901 = vand.u32 %v4900, 4294901760
    %4902 = vmatpush.msra.mxu0 %v4901
    %v4903 = vand.u32 %v2977, 4294901760
    %v4904 = vsub.f32 %v2977, %v4903
    %v4905 = vand.u32 %v4904, 4294901760
    %v4906 = vsub.f32 %v4904, %v4905
    %v4907 = vand.u32 %v4906, 4294901760
    %4908 = vmatpush.msra.mxu0 %v4907
    %v4909 = vand.u32 %v2969, 4294901760
    %v4910 = vsub.f32 %v2969, %v4909
    %v4911 = vand.u32 %v4910, 4294901760
    %v4912 = vsub.f32 %v4910, %v4911
    %v4913 = vand.u32 %v4912, 4294901760
    %4914 = vmatpush.msra.mxu0 %v4913
    %v4915 = vand.u32 %v2961, 4294901760
    %v4916 = vsub.f32 %v2961, %v4915
    %v4917 = vand.u32 %v4916, 4294901760
    %v4918 = vsub.f32 %v4916, %v4917
    %v4919 = vand.u32 %v4918, 4294901760
    %4920 = vmatpush.msra.mxu0 %v4919
    %v4921 = vand.u32 %v2953, 4294901760
    %v4922 = vsub.f32 %v2953, %v4921
    %v4923 = vand.u32 %v4922, 4294901760
    %v4924 = vsub.f32 %v4922, %v4923
    %v4925 = vand.u32 %v4924, 4294901760
    %4926 = vmatpush.msra.mxu0 %v4925
    %v4927 = vand.u32 %v2945, 4294901760
    %v4928 = vsub.f32 %v2945, %v4927
    %v4929 = vand.u32 %v4928, 4294901760
    %v4930 = vsub.f32 %v4928, %v4929
    %v4931 = vand.u32 %v4930, 4294901760
    %4932 = vmatpush.msra.mxu0 %v4931
    %v4933 = vand.u32 %v2937, 4294901760
    %v4934 = vsub.f32 %v2937, %v4933
    %v4935 = vand.u32 %v4934, 4294901760
    %v4936 = vsub.f32 %v4934, %v4935
    %v4937 = vand.u32 %v4936, 4294901760
    %4938 = vmatpush.msra.mxu0 %v4937
    %v4939 = vand.u32 %v2929, 4294901760
    %v4940 = vsub.f32 %v2929, %v4939
    %v4941 = vand.u32 %v4940, 4294901760
    %v4942 = vsub.f32 %v4940, %v4941
    %v4943 = vand.u32 %v4942, 4294901760
    %4944 = vmatpush.msra.mxu0 %v4943
    %v4945 = vand.u32 %v2921, 4294901760
    %v4946 = vsub.f32 %v2921, %v4945
    %v4947 = vand.u32 %v4946, 4294901760
    %v4948 = vsub.f32 %v4946, %v4947
    %v4949 = vand.u32 %v4948, 4294901760
    %4950 = vmatpush.msra.mxu0 %v4949
    %v4951 = vand.u32 %v2913, 4294901760
    %v4952 = vsub.f32 %v2913, %v4951
    %v4953 = vand.u32 %v4952, 4294901760
    %v4954 = vsub.f32 %v4952, %v4953
    %v4955 = vand.u32 %v4954, 4294901760
    %4956 = vmatpush.msra.mxu0 %v4955
    %v4957 = vand.u32 %v2905, 4294901760
    %v4958 = vsub.f32 %v2905, %v4957
    %v4959 = vand.u32 %v4958, 4294901760
    %v4960 = vsub.f32 %v4958, %v4959
    %v4961 = vand.u32 %v4960, 4294901760
    %4962 = vmatpush.msra.mxu0 %v4961
    %v4963 = vand.u32 %v2897, 4294901760
    %v4964 = vsub.f32 %v2897, %v4963
    %v4965 = vand.u32 %v4964, 4294901760
    %v4966 = vsub.f32 %v4964, %v4965
    %v4967 = vand.u32 %v4966, 4294901760
    %4968 = vmatpush.msra.mxu0 %v4967
    %v4969 = vand.u32 %v2889, 4294901760
    %v4970 = vsub.f32 %v2889, %v4969
    %v4971 = vand.u32 %v4970, 4294901760
    %v4972 = vsub.f32 %v4970, %v4971
    %v4973 = vand.u32 %v4972, 4294901760
    %4974 = vmatpush.msra.mxu0 %v4973
    %v4975 = vand.u32 %v2881, 4294901760
    %v4976 = vsub.f32 %v2881, %v4975
    %v4977 = vand.u32 %v4976, 4294901760
    %v4978 = vsub.f32 %v4976, %v4977
    %v4979 = vand.u32 %v4978, 4294901760
    %4980 = vmatpush.msra.mxu0 %v4979
    %v4981 = vand.u32 %v2873, 4294901760
    %v4982 = vsub.f32 %v2873, %v4981
    %v4983 = vand.u32 %v4982, 4294901760
    %v4984 = vsub.f32 %v4982, %v4983
    %v4985 = vand.u32 %v4984, 4294901760
    %4986 = vmatpush.msra.mxu0 %v4985
    %v4987 = vand.u32 %v2865, 4294901760
    %v4988 = vsub.f32 %v2865, %v4987
    %v4989 = vand.u32 %v4988, 4294901760
    %v4990 = vsub.f32 %v4988, %v4989
    %v4991 = vand.u32 %v4990, 4294901760
    %4992 = vmatpush.msra.mxu0 %v4991
    %v4993 = vand.u32 %v2140, 4294901760
    %4994 = vmatmul.f32.gmra.mxu0 %v4993
    %v4995 = vpop.f32.mrf.mxu0
    %v4996 = vadd.f32 %v4887, %v4995
    %v4997 = vand.u32 %v2155, 4294901760
    %4998 = vmatmul.f32.gmra.mxu0 %v4997
    %v4999 = vpop.f32.mrf.mxu0
    %v5000 = vadd.f32 %v4895, %v4999
    %5001 = vdwg.mxu0
    %v5002 = vand.u32 %v2985, 4294901760
    %v5003 = vsub.f32 %v2985, %v5002
    %5004 = vmatpush.msra.mxu0 %v5003
    %v5005 = vand.u32 %v2977, 4294901760
    %v5006 = vsub.f32 %v2977, %v5005
    %5007 = vmatpush.msra.mxu0 %v5006
    %v5008 = vand.u32 %v2969, 4294901760
    %v5009 = vsub.f32 %v2969, %v5008
    %5010 = vmatpush.msra.mxu0 %v5009
    %v5011 = vand.u32 %v2961, 4294901760
    %v5012 = vsub.f32 %v2961, %v5011
    %5013 = vmatpush.msra.mxu0 %v5012
    %v5014 = vand.u32 %v2953, 4294901760
    %v5015 = vsub.f32 %v2953, %v5014
    %5016 = vmatpush.msra.mxu0 %v5015
    %v5017 = vand.u32 %v2945, 4294901760
    %v5018 = vsub.f32 %v2945, %v5017
    %5019 = vmatpush.msra.mxu0 %v5018
    %v5020 = vand.u32 %v2937, 4294901760
    %v5021 = vsub.f32 %v2937, %v5020
    %5022 = vmatpush.msra.mxu0 %v5021
    %v5023 = vand.u32 %v2929, 4294901760
    %v5024 = vsub.f32 %v2929, %v5023
    %5025 = vmatpush.msra.mxu0 %v5024
    %v5026 = vand.u32 %v2921, 4294901760
    %v5027 = vsub.f32 %v2921, %v5026
    %5028 = vmatpush.msra.mxu0 %v5027
    %v5029 = vand.u32 %v2913, 4294901760
    %v5030 = vsub.f32 %v2913, %v5029
    %5031 = vmatpush.msra.mxu0 %v5030
    %v5032 = vand.u32 %v2905, 4294901760
    %v5033 = vsub.f32 %v2905, %v5032
    %5034 = vmatpush.msra.mxu0 %v5033
    %v5035 = vand.u32 %v2897, 4294901760
    %v5036 = vsub.f32 %v2897, %v5035
    %5037 = vmatpush.msra.mxu0 %v5036
    %v5038 = vand.u32 %v2889, 4294901760
    %v5039 = vsub.f32 %v2889, %v5038
    %5040 = vmatpush.msra.mxu0 %v5039
    %v5041 = vand.u32 %v2881, 4294901760
    %v5042 = vsub.f32 %v2881, %v5041
    %5043 = vmatpush.msra.mxu0 %v5042
    %v5044 = vand.u32 %v2873, 4294901760
    %v5045 = vsub.f32 %v2873, %v5044
    %5046 = vmatpush.msra.mxu0 %v5045
    %v5047 = vand.u32 %v2865, 4294901760
    %v5048 = vsub.f32 %v2865, %v5047
    %5049 = vmatpush.msra.mxu0 %v5048
    %v5050 = vand.u32 %v2140, 4294901760
    %v5051 = vsub.f32 %v2140, %v5050
    %5052 = vmatmul.f32.gmra.mxu0 %v5051
    %v5053 = vpop.f32.mrf.mxu0
    %v5054 = vadd.f32 %v4996, %v5053
    %v5055 = vand.u32 %v2155, 4294901760
    %v5056 = vsub.f32 %v2155, %v5055
    %5057 = vmatmul.f32.gmra.mxu0 %v5056
    %v5058 = vpop.f32.mrf.mxu0
    %v5059 = vadd.f32 %v5000, %v5058
    %5060 = vdwg.mxu0
    %v5061 = vand.u32 %v2985, 4294901760
    %5062 = vmatpush.msra.mxu0 %v5061
    %v5063 = vand.u32 %v2977, 4294901760
    %5064 = vmatpush.msra.mxu0 %v5063
    %v5065 = vand.u32 %v2969, 4294901760
    %5066 = vmatpush.msra.mxu0 %v5065
    %v5067 = vand.u32 %v2961, 4294901760
    %5068 = vmatpush.msra.mxu0 %v5067
    %v5069 = vand.u32 %v2953, 4294901760
    %5070 = vmatpush.msra.mxu0 %v5069
    %v5071 = vand.u32 %v2945, 4294901760
    %5072 = vmatpush.msra.mxu0 %v5071
    %v5073 = vand.u32 %v2937, 4294901760
    %5074 = vmatpush.msra.mxu0 %v5073
    %v5075 = vand.u32 %v2929, 4294901760
    %5076 = vmatpush.msra.mxu0 %v5075
    %v5077 = vand.u32 %v2921, 4294901760
    %5078 = vmatpush.msra.mxu0 %v5077
    %v5079 = vand.u32 %v2913, 4294901760
    %5080 = vmatpush.msra.mxu0 %v5079
    %v5081 = vand.u32 %v2905, 4294901760
    %5082 = vmatpush.msra.mxu0 %v5081
    %v5083 = vand.u32 %v2897, 4294901760
    %5084 = vmatpush.msra.mxu0 %v5083
    %v5085 = vand.u32 %v2889, 4294901760
    %5086 = vmatpush.msra.mxu0 %v5085
    %v5087 = vand.u32 %v2881, 4294901760
    %5088 = vmatpush.msra.mxu0 %v5087
    %v5089 = vand.u32 %v2873, 4294901760
    %5090 = vmatpush.msra.mxu0 %v5089
    %v5091 = vand.u32 %v2865, 4294901760
    %5092 = vmatpush.msra.mxu0 %v5091
    %v5093 = vand.u32 %v2140, 4294901760
    %v5094 = vsub.f32 %v2140, %v5093
    %v5095 = vand.u32 %v5094, 4294901760
    %5096 = vmatmul.f32.gmra.mxu0 %v5095
    %v5097 = vpop.f32.mrf.mxu0
    %v5098 = vadd.f32 %v5054, %v5097
    %v5099 = vand.u32 %v2155, 4294901760
    %v5100 = vsub.f32 %v2155, %v5099
    %v5101 = vand.u32 %v5100, 4294901760
    %5102 = vmatmul.f32.gmra.mxu0 %v5101
    %v5103 = vpop.f32.mrf.mxu0
    %v5104 = vadd.f32 %v5059, %v5103
    %5105 = vdwg.mxu0
    %v5106 = vand.u32 %v2985, 4294901760
    %v5107 = vsub.f32 %v2985, %v5106
    %v5108 = vand.u32 %v5107, 4294901760
    %5109 = vmatpush.msra.mxu0 %v5108
    %v5110 = vand.u32 %v2977, 4294901760
    %v5111 = vsub.f32 %v2977, %v5110
    %v5112 = vand.u32 %v5111, 4294901760
    %5113 = vmatpush.msra.mxu0 %v5112
    %v5114 = vand.u32 %v2969, 4294901760
    %v5115 = vsub.f32 %v2969, %v5114
    %v5116 = vand.u32 %v5115, 4294901760
    %5117 = vmatpush.msra.mxu0 %v5116
    %v5118 = vand.u32 %v2961, 4294901760
    %v5119 = vsub.f32 %v2961, %v5118
    %v5120 = vand.u32 %v5119, 4294901760
    %5121 = vmatpush.msra.mxu0 %v5120
    %v5122 = vand.u32 %v2953, 4294901760
    %v5123 = vsub.f32 %v2953, %v5122
    %v5124 = vand.u32 %v5123, 4294901760
    %5125 = vmatpush.msra.mxu0 %v5124
    %v5126 = vand.u32 %v2945, 4294901760
    %v5127 = vsub.f32 %v2945, %v5126
    %v5128 = vand.u32 %v5127, 4294901760
    %5129 = vmatpush.msra.mxu0 %v5128
    %v5130 = vand.u32 %v2937, 4294901760
    %v5131 = vsub.f32 %v2937, %v5130
    %v5132 = vand.u32 %v5131, 4294901760
    %5133 = vmatpush.msra.mxu0 %v5132
    %v5134 = vand.u32 %v2929, 4294901760
    %v5135 = vsub.f32 %v2929, %v5134
    %v5136 = vand.u32 %v5135, 4294901760
    %5137 = vmatpush.msra.mxu0 %v5136
    %v5138 = vand.u32 %v2921, 4294901760
    %v5139 = vsub.f32 %v2921, %v5138
    %v5140 = vand.u32 %v5139, 4294901760
    %5141 = vmatpush.msra.mxu0 %v5140
    %v5142 = vand.u32 %v2913, 4294901760
    %v5143 = vsub.f32 %v2913, %v5142
    %v5144 = vand.u32 %v5143, 4294901760
    %5145 = vmatpush.msra.mxu0 %v5144
    %v5146 = vand.u32 %v2905, 4294901760
    %v5147 = vsub.f32 %v2905, %v5146
    %v5148 = vand.u32 %v5147, 4294901760
    %5149 = vmatpush.msra.mxu0 %v5148
    %v5150 = vand.u32 %v2897, 4294901760
    %v5151 = vsub.f32 %v2897, %v5150
    %v5152 = vand.u32 %v5151, 4294901760
    %5153 = vmatpush.msra.mxu0 %v5152
    %v5154 = vand.u32 %v2889, 4294901760
    %v5155 = vsub.f32 %v2889, %v5154
    %v5156 = vand.u32 %v5155, 4294901760
    %5157 = vmatpush.msra.mxu0 %v5156
    %v5158 = vand.u32 %v2881, 4294901760
    %v5159 = vsub.f32 %v2881, %v5158
    %v5160 = vand.u32 %v5159, 4294901760
    %5161 = vmatpush.msra.mxu0 %v5160
    %v5162 = vand.u32 %v2873, 4294901760
    %v5163 = vsub.f32 %v2873, %v5162
    %v5164 = vand.u32 %v5163, 4294901760
    %5165 = vmatpush.msra.mxu0 %v5164
    %v5166 = vand.u32 %v2865, 4294901760
    %v5167 = vsub.f32 %v2865, %v5166
    %v5168 = vand.u32 %v5167, 4294901760
    %5169 = vmatpush.msra.mxu0 %v5168
    %v5170 = vand.u32 %v2140, 4294901760
    %5171 = vmatmul.f32.gmra.mxu0 %v5170
    %v5172 = vpop.f32.mrf.mxu0
    %v5173 = vadd.f32 %v5098, %v5172
    %v5174 = vand.u32 %v2155, 4294901760
    %5175 = vmatmul.f32.gmra.mxu0 %v5174
    %v5176 = vpop.f32.mrf.mxu0
    %v5177 = vadd.f32 %v5104, %v5176
    %5178 = vdwg.mxu0
    %v5179 = vand.u32 %v2985, 4294901760
    %5180 = vmatpush.msra.mxu0 %v5179
    %v5181 = vand.u32 %v2977, 4294901760
    %5182 = vmatpush.msra.mxu0 %v5181
    %v5183 = vand.u32 %v2969, 4294901760
    %5184 = vmatpush.msra.mxu0 %v5183
    %v5185 = vand.u32 %v2961, 4294901760
    %5186 = vmatpush.msra.mxu0 %v5185
    %v5187 = vand.u32 %v2953, 4294901760
    %5188 = vmatpush.msra.mxu0 %v5187
    %v5189 = vand.u32 %v2945, 4294901760
    %5190 = vmatpush.msra.mxu0 %v5189
    %v5191 = vand.u32 %v2937, 4294901760
    %5192 = vmatpush.msra.mxu0 %v5191
    %v5193 = vand.u32 %v2929, 4294901760
    %5194 = vmatpush.msra.mxu0 %v5193
    %v5195 = vand.u32 %v2921, 4294901760
    %5196 = vmatpush.msra.mxu0 %v5195
    %v5197 = vand.u32 %v2913, 4294901760
    %5198 = vmatpush.msra.mxu0 %v5197
    %v5199 = vand.u32 %v2905, 4294901760
    %5200 = vmatpush.msra.mxu0 %v5199
    %v5201 = vand.u32 %v2897, 4294901760
    %5202 = vmatpush.msra.mxu0 %v5201
    %v5203 = vand.u32 %v2889, 4294901760
    %5204 = vmatpush.msra.mxu0 %v5203
    %v5205 = vand.u32 %v2881, 4294901760
    %5206 = vmatpush.msra.mxu0 %v5205
    %v5207 = vand.u32 %v2873, 4294901760
    %5208 = vmatpush.msra.mxu0 %v5207
    %v5209 = vand.u32 %v2865, 4294901760
    %5210 = vmatpush.msra.mxu0 %v5209
    %v5211 = vand.u32 %v2140, 4294901760
    %5212 = vmatmul.f32.gmra.mxu0 %v5211
    %v5213 = vpop.f32.mrf.mxu0
    %v5214 = vadd.f32 %v5173, %v5213
    %v5215 = vand.u32 %v2155, 4294901760
    %5216 = vmatmul.f32.gmra.mxu0 %v5215
    %v5217 = vpop.f32.mrf.mxu0
    %v5218 = vadd.f32 %v5177, %v5217
    %5219 = vdwg.mxu0
    %v5220 = vand.u32 %v2986, 4294901760
    %5221 = vmatpush.msra.mxu0 %v5220
    %v5222 = vand.u32 %v2978, 4294901760
    %5223 = vmatpush.msra.mxu0 %v5222
    %v5224 = vand.u32 %v2970, 4294901760
    %5225 = vmatpush.msra.mxu0 %v5224
    %v5226 = vand.u32 %v2962, 4294901760
    %5227 = vmatpush.msra.mxu0 %v5226
    %v5228 = vand.u32 %v2954, 4294901760
    %5229 = vmatpush.msra.mxu0 %v5228
    %v5230 = vand.u32 %v2946, 4294901760
    %5231 = vmatpush.msra.mxu0 %v5230
    %v5232 = vand.u32 %v2938, 4294901760
    %5233 = vmatpush.msra.mxu0 %v5232
    %v5234 = vand.u32 %v2930, 4294901760
    %5235 = vmatpush.msra.mxu0 %v5234
    %v5236 = vand.u32 %v2922, 4294901760
    %5237 = vmatpush.msra.mxu0 %v5236
    %v5238 = vand.u32 %v2914, 4294901760
    %5239 = vmatpush.msra.mxu0 %v5238
    %v5240 = vand.u32 %v2906, 4294901760
    %5241 = vmatpush.msra.mxu0 %v5240
    %v5242 = vand.u32 %v2898, 4294901760
    %5243 = vmatpush.msra.mxu0 %v5242
    %v5244 = vand.u32 %v2890, 4294901760
    %5245 = vmatpush.msra.mxu0 %v5244
    %v5246 = vand.u32 %v2882, 4294901760
    %5247 = vmatpush.msra.mxu0 %v5246
    %v5248 = vand.u32 %v2874, 4294901760
    %5249 = vmatpush.msra.mxu0 %v5248
    %v5250 = vand.u32 %v2866, 4294901760
    %5251 = vmatpush.msra.mxu0 %v5250
    %v5252 = vand.u32 %v2140, 4294901760
    %v5253 = vsub.f32 %v2140, %v5252
    %v5254 = vand.u32 %v5253, 4294901760
    %v5255 = vsub.f32 %v5253, %v5254
    %v5256 = vand.u32 %v5255, 4294901760
    %5257 = vmatmul.f32.gmra.mxu0 %v5256
    %v5258 = vpop.f32.mrf.mxu0
    %v5259 = vadd.f32 0.0, %v5258
    %v5260 = vand.u32 %v2155, 4294901760
    %v5261 = vsub.f32 %v2155, %v5260
    %v5262 = vand.u32 %v5261, 4294901760
    %v5263 = vsub.f32 %v5261, %v5262
    %v5264 = vand.u32 %v5263, 4294901760
    %5265 = vmatmul.f32.gmra.mxu0 %v5264
    %v5266 = vpop.f32.mrf.mxu0
    %v5267 = vadd.f32 0.0, %v5266
    %5268 = vdwg.mxu0
    %v5269 = vand.u32 %v2986, 4294901760
    %v5270 = vsub.f32 %v2986, %v5269
    %v5271 = vand.u32 %v5270, 4294901760
    %v5272 = vsub.f32 %v5270, %v5271
    %v5273 = vand.u32 %v5272, 4294901760
    %5274 = vmatpush.msra.mxu0 %v5273
    %v5275 = vand.u32 %v2978, 4294901760
    %v5276 = vsub.f32 %v2978, %v5275
    %v5277 = vand.u32 %v5276, 4294901760
    %v5278 = vsub.f32 %v5276, %v5277
    %v5279 = vand.u32 %v5278, 4294901760
    %5280 = vmatpush.msra.mxu0 %v5279
    %v5281 = vand.u32 %v2970, 4294901760
    %v5282 = vsub.f32 %v2970, %v5281
    %v5283 = vand.u32 %v5282, 4294901760
    %v5284 = vsub.f32 %v5282, %v5283
    %v5285 = vand.u32 %v5284, 4294901760
    %5286 = vmatpush.msra.mxu0 %v5285
    %v5287 = vand.u32 %v2962, 4294901760
    %v5288 = vsub.f32 %v2962, %v5287
    %v5289 = vand.u32 %v5288, 4294901760
    %v5290 = vsub.f32 %v5288, %v5289
    %v5291 = vand.u32 %v5290, 4294901760
    %5292 = vmatpush.msra.mxu0 %v5291
    %v5293 = vand.u32 %v2954, 4294901760
    %v5294 = vsub.f32 %v2954, %v5293
    %v5295 = vand.u32 %v5294, 4294901760
    %v5296 = vsub.f32 %v5294, %v5295
    %v5297 = vand.u32 %v5296, 4294901760
    %5298 = vmatpush.msra.mxu0 %v5297
    %v5299 = vand.u32 %v2946, 4294901760
    %v5300 = vsub.f32 %v2946, %v5299
    %v5301 = vand.u32 %v5300, 4294901760
    %v5302 = vsub.f32 %v5300, %v5301
    %v5303 = vand.u32 %v5302, 4294901760
    %5304 = vmatpush.msra.mxu0 %v5303
    %v5305 = vand.u32 %v2938, 4294901760
    %v5306 = vsub.f32 %v2938, %v5305
    %v5307 = vand.u32 %v5306, 4294901760
    %v5308 = vsub.f32 %v5306, %v5307
    %v5309 = vand.u32 %v5308, 4294901760
    %5310 = vmatpush.msra.mxu0 %v5309
    %v5311 = vand.u32 %v2930, 4294901760
    %v5312 = vsub.f32 %v2930, %v5311
    %v5313 = vand.u32 %v5312, 4294901760
    %v5314 = vsub.f32 %v5312, %v5313
    %v5315 = vand.u32 %v5314, 4294901760
    %5316 = vmatpush.msra.mxu0 %v5315
    %v5317 = vand.u32 %v2922, 4294901760
    %v5318 = vsub.f32 %v2922, %v5317
    %v5319 = vand.u32 %v5318, 4294901760
    %v5320 = vsub.f32 %v5318, %v5319
    %v5321 = vand.u32 %v5320, 4294901760
    %5322 = vmatpush.msra.mxu0 %v5321
    %v5323 = vand.u32 %v2914, 4294901760
    %v5324 = vsub.f32 %v2914, %v5323
    %v5325 = vand.u32 %v5324, 4294901760
    %v5326 = vsub.f32 %v5324, %v5325
    %v5327 = vand.u32 %v5326, 4294901760
    %5328 = vmatpush.msra.mxu0 %v5327
    %v5329 = vand.u32 %v2906, 4294901760
    %v5330 = vsub.f32 %v2906, %v5329
    %v5331 = vand.u32 %v5330, 4294901760
    %v5332 = vsub.f32 %v5330, %v5331
    %v5333 = vand.u32 %v5332, 4294901760
    %5334 = vmatpush.msra.mxu0 %v5333
    %v5335 = vand.u32 %v2898, 4294901760
    %v5336 = vsub.f32 %v2898, %v5335
    %v5337 = vand.u32 %v5336, 4294901760
    %v5338 = vsub.f32 %v5336, %v5337
    %v5339 = vand.u32 %v5338, 4294901760
    %5340 = vmatpush.msra.mxu0 %v5339
    %v5341 = vand.u32 %v2890, 4294901760
    %v5342 = vsub.f32 %v2890, %v5341
    %v5343 = vand.u32 %v5342, 4294901760
    %v5344 = vsub.f32 %v5342, %v5343
    %v5345 = vand.u32 %v5344, 4294901760
    %5346 = vmatpush.msra.mxu0 %v5345
    %v5347 = vand.u32 %v2882, 4294901760
    %v5348 = vsub.f32 %v2882, %v5347
    %v5349 = vand.u32 %v5348, 4294901760
    %v5350 = vsub.f32 %v5348, %v5349
    %v5351 = vand.u32 %v5350, 4294901760
    %5352 = vmatpush.msra.mxu0 %v5351
    %v5353 = vand.u32 %v2874, 4294901760
    %v5354 = vsub.f32 %v2874, %v5353
    %v5355 = vand.u32 %v5354, 4294901760
    %v5356 = vsub.f32 %v5354, %v5355
    %v5357 = vand.u32 %v5356, 4294901760
    %5358 = vmatpush.msra.mxu0 %v5357
    %v5359 = vand.u32 %v2866, 4294901760
    %v5360 = vsub.f32 %v2866, %v5359
    %v5361 = vand.u32 %v5360, 4294901760
    %v5362 = vsub.f32 %v5360, %v5361
    %v5363 = vand.u32 %v5362, 4294901760
    %5364 = vmatpush.msra.mxu0 %v5363
    %v5365 = vand.u32 %v2140, 4294901760
    %5366 = vmatmul.f32.gmra.mxu0 %v5365
    %v5367 = vpop.f32.mrf.mxu0
    %v5368 = vadd.f32 %v5259, %v5367
    %v5369 = vand.u32 %v2155, 4294901760
    %5370 = vmatmul.f32.gmra.mxu0 %v5369
    %v5371 = vpop.f32.mrf.mxu0
    %v5372 = vadd.f32 %v5267, %v5371
    %5373 = vdwg.mxu0
    %v5374 = vand.u32 %v2986, 4294901760
    %v5375 = vsub.f32 %v2986, %v5374
    %5376 = vmatpush.msra.mxu0 %v5375
    %v5377 = vand.u32 %v2978, 4294901760
    %v5378 = vsub.f32 %v2978, %v5377
    %5379 = vmatpush.msra.mxu0 %v5378
    %v5380 = vand.u32 %v2970, 4294901760
    %v5381 = vsub.f32 %v2970, %v5380
    %5382 = vmatpush.msra.mxu0 %v5381
    %v5383 = vand.u32 %v2962, 4294901760
    %v5384 = vsub.f32 %v2962, %v5383
    %5385 = vmatpush.msra.mxu0 %v5384
    %v5386 = vand.u32 %v2954, 4294901760
    %v5387 = vsub.f32 %v2954, %v5386
    %5388 = vmatpush.msra.mxu0 %v5387
    %v5389 = vand.u32 %v2946, 4294901760
    %v5390 = vsub.f32 %v2946, %v5389
    %5391 = vmatpush.msra.mxu0 %v5390
    %v5392 = vand.u32 %v2938, 4294901760
    %v5393 = vsub.f32 %v2938, %v5392
    %5394 = vmatpush.msra.mxu0 %v5393
    %v5395 = vand.u32 %v2930, 4294901760
    %v5396 = vsub.f32 %v2930, %v5395
    %5397 = vmatpush.msra.mxu0 %v5396
    %v5398 = vand.u32 %v2922, 4294901760
    %v5399 = vsub.f32 %v2922, %v5398
    %5400 = vmatpush.msra.mxu0 %v5399
    %v5401 = vand.u32 %v2914, 4294901760
    %v5402 = vsub.f32 %v2914, %v5401
    %5403 = vmatpush.msra.mxu0 %v5402
    %v5404 = vand.u32 %v2906, 4294901760
    %v5405 = vsub.f32 %v2906, %v5404
    %5406 = vmatpush.msra.mxu0 %v5405
    %v5407 = vand.u32 %v2898, 4294901760
    %v5408 = vsub.f32 %v2898, %v5407
    %5409 = vmatpush.msra.mxu0 %v5408
    %v5410 = vand.u32 %v2890, 4294901760
    %v5411 = vsub.f32 %v2890, %v5410
    %5412 = vmatpush.msra.mxu0 %v5411
    %v5413 = vand.u32 %v2882, 4294901760
    %v5414 = vsub.f32 %v2882, %v5413
    %5415 = vmatpush.msra.mxu0 %v5414
    %v5416 = vand.u32 %v2874, 4294901760
    %v5417 = vsub.f32 %v2874, %v5416
    %5418 = vmatpush.msra.mxu0 %v5417
    %v5419 = vand.u32 %v2866, 4294901760
    %v5420 = vsub.f32 %v2866, %v5419
    %5421 = vmatpush.msra.mxu0 %v5420
    %v5422 = vand.u32 %v2140, 4294901760
    %v5423 = vsub.f32 %v2140, %v5422
    %5424 = vmatmul.f32.gmra.mxu0 %v5423
    %v5425 = vpop.f32.mrf.mxu0
    %v5426 = vadd.f32 %v5368, %v5425
    %v5427 = vand.u32 %v2155, 4294901760
    %v5428 = vsub.f32 %v2155, %v5427
    %5429 = vmatmul.f32.gmra.mxu0 %v5428
    %v5430 = vpop.f32.mrf.mxu0
    %v5431 = vadd.f32 %v5372, %v5430
    %5432 = vdwg.mxu0
    %v5433 = vand.u32 %v2986, 4294901760
    %5434 = vmatpush.msra.mxu0 %v5433
    %v5435 = vand.u32 %v2978, 4294901760
    %5436 = vmatpush.msra.mxu0 %v5435
    %v5437 = vand.u32 %v2970, 4294901760
    %5438 = vmatpush.msra.mxu0 %v5437
    %v5439 = vand.u32 %v2962, 4294901760
    %5440 = vmatpush.msra.mxu0 %v5439
    %v5441 = vand.u32 %v2954, 4294901760
    %5442 = vmatpush.msra.mxu0 %v5441
    %v5443 = vand.u32 %v2946, 4294901760
    %5444 = vmatpush.msra.mxu0 %v5443
    %v5445 = vand.u32 %v2938, 4294901760
    %5446 = vmatpush.msra.mxu0 %v5445
    %v5447 = vand.u32 %v2930, 4294901760
    %5448 = vmatpush.msra.mxu0 %v5447
    %v5449 = vand.u32 %v2922, 4294901760
    %5450 = vmatpush.msra.mxu0 %v5449
    %v5451 = vand.u32 %v2914, 4294901760
    %5452 = vmatpush.msra.mxu0 %v5451
    %v5453 = vand.u32 %v2906, 4294901760
    %5454 = vmatpush.msra.mxu0 %v5453
    %v5455 = vand.u32 %v2898, 4294901760
    %5456 = vmatpush.msra.mxu0 %v5455
    %v5457 = vand.u32 %v2890, 4294901760
    %5458 = vmatpush.msra.mxu0 %v5457
    %v5459 = vand.u32 %v2882, 4294901760
    %5460 = vmatpush.msra.mxu0 %v5459
    %v5461 = vand.u32 %v2874, 4294901760
    %5462 = vmatpush.msra.mxu0 %v5461
    %v5463 = vand.u32 %v2866, 4294901760
    %5464 = vmatpush.msra.mxu0 %v5463
    %v5465 = vand.u32 %v2140, 4294901760
    %v5466 = vsub.f32 %v2140, %v5465
    %v5467 = vand.u32 %v5466, 4294901760
    %5468 = vmatmul.f32.gmra.mxu0 %v5467
    %v5469 = vpop.f32.mrf.mxu0
    %v5470 = vadd.f32 %v5426, %v5469
    %v5471 = vand.u32 %v2155, 4294901760
    %v5472 = vsub.f32 %v2155, %v5471
    %v5473 = vand.u32 %v5472, 4294901760
    %5474 = vmatmul.f32.gmra.mxu0 %v5473
    %v5475 = vpop.f32.mrf.mxu0
    %v5476 = vadd.f32 %v5431, %v5475
    %5477 = vdwg.mxu0
    %v5478 = vand.u32 %v2986, 4294901760
    %v5479 = vsub.f32 %v2986, %v5478
    %v5480 = vand.u32 %v5479, 4294901760
    %5481 = vmatpush.msra.mxu0 %v5480
    %v5482 = vand.u32 %v2978, 4294901760
    %v5483 = vsub.f32 %v2978, %v5482
    %v5484 = vand.u32 %v5483, 4294901760
    %5485 = vmatpush.msra.mxu0 %v5484
    %v5486 = vand.u32 %v2970, 4294901760
    %v5487 = vsub.f32 %v2970, %v5486
    %v5488 = vand.u32 %v5487, 4294901760
    %5489 = vmatpush.msra.mxu0 %v5488
    %v5490 = vand.u32 %v2962, 4294901760
    %v5491 = vsub.f32 %v2962, %v5490
    %v5492 = vand.u32 %v5491, 4294901760
    %5493 = vmatpush.msra.mxu0 %v5492
    %v5494 = vand.u32 %v2954, 4294901760
    %v5495 = vsub.f32 %v2954, %v5494
    %v5496 = vand.u32 %v5495, 4294901760
    %5497 = vmatpush.msra.mxu0 %v5496
    %v5498 = vand.u32 %v2946, 4294901760
    %v5499 = vsub.f32 %v2946, %v5498
    %v5500 = vand.u32 %v5499, 4294901760
    %5501 = vmatpush.msra.mxu0 %v5500
    %v5502 = vand.u32 %v2938, 4294901760
    %v5503 = vsub.f32 %v2938, %v5502
    %v5504 = vand.u32 %v5503, 4294901760
    %5505 = vmatpush.msra.mxu0 %v5504
    %v5506 = vand.u32 %v2930, 4294901760
    %v5507 = vsub.f32 %v2930, %v5506
    %v5508 = vand.u32 %v5507, 4294901760
    %5509 = vmatpush.msra.mxu0 %v5508
    %v5510 = vand.u32 %v2922, 4294901760
    %v5511 = vsub.f32 %v2922, %v5510
    %v5512 = vand.u32 %v5511, 4294901760
    %5513 = vmatpush.msra.mxu0 %v5512
    %v5514 = vand.u32 %v2914, 4294901760
    %v5515 = vsub.f32 %v2914, %v5514
    %v5516 = vand.u32 %v5515, 4294901760
    %5517 = vmatpush.msra.mxu0 %v5516
    %v5518 = vand.u32 %v2906, 4294901760
    %v5519 = vsub.f32 %v2906, %v5518
    %v5520 = vand.u32 %v5519, 4294901760
    %5521 = vmatpush.msra.mxu0 %v5520
    %v5522 = vand.u32 %v2898, 4294901760
    %v5523 = vsub.f32 %v2898, %v5522
    %v5524 = vand.u32 %v5523, 4294901760
    %5525 = vmatpush.msra.mxu0 %v5524
    %v5526 = vand.u32 %v2890, 4294901760
    %v5527 = vsub.f32 %v2890, %v5526
    %v5528 = vand.u32 %v5527, 4294901760
    %5529 = vmatpush.msra.mxu0 %v5528
    %v5530 = vand.u32 %v2882, 4294901760
    %v5531 = vsub.f32 %v2882, %v5530
    %v5532 = vand.u32 %v5531, 4294901760
    %5533 = vmatpush.msra.mxu0 %v5532
    %v5534 = vand.u32 %v2874, 4294901760
    %v5535 = vsub.f32 %v2874, %v5534
    %v5536 = vand.u32 %v5535, 4294901760
    %5537 = vmatpush.msra.mxu0 %v5536
    %v5538 = vand.u32 %v2866, 4294901760
    %v5539 = vsub.f32 %v2866, %v5538
    %v5540 = vand.u32 %v5539, 4294901760
    %5541 = vmatpush.msra.mxu0 %v5540
    %v5542 = vand.u32 %v2140, 4294901760
    %5543 = vmatmul.f32.gmra.mxu0 %v5542
    %v5544 = vpop.f32.mrf.mxu0
    %v5545 = vadd.f32 %v5470, %v5544
    %v5546 = vand.u32 %v2155, 4294901760
    %5547 = vmatmul.f32.gmra.mxu0 %v5546
    %v5548 = vpop.f32.mrf.mxu0
    %v5549 = vadd.f32 %v5476, %v5548
    %5550 = vdwg.mxu0
    %v5551 = vand.u32 %v2986, 4294901760
    %5552 = vmatpush.msra.mxu0 %v5551
    %v5553 = vand.u32 %v2978, 4294901760
    %5554 = vmatpush.msra.mxu0 %v5553
    %v5555 = vand.u32 %v2970, 4294901760
    %5556 = vmatpush.msra.mxu0 %v5555
    %v5557 = vand.u32 %v2962, 4294901760
    %5558 = vmatpush.msra.mxu0 %v5557
    %v5559 = vand.u32 %v2954, 4294901760
    %5560 = vmatpush.msra.mxu0 %v5559
    %v5561 = vand.u32 %v2946, 4294901760
    %5562 = vmatpush.msra.mxu0 %v5561
    %v5563 = vand.u32 %v2938, 4294901760
    %5564 = vmatpush.msra.mxu0 %v5563
    %v5565 = vand.u32 %v2930, 4294901760
    %5566 = vmatpush.msra.mxu0 %v5565
    %v5567 = vand.u32 %v2922, 4294901760
    %5568 = vmatpush.msra.mxu0 %v5567
    %v5569 = vand.u32 %v2914, 4294901760
    %5570 = vmatpush.msra.mxu0 %v5569
    %v5571 = vand.u32 %v2906, 4294901760
    %5572 = vmatpush.msra.mxu0 %v5571
    %v5573 = vand.u32 %v2898, 4294901760
    %5574 = vmatpush.msra.mxu0 %v5573
    %v5575 = vand.u32 %v2890, 4294901760
    %5576 = vmatpush.msra.mxu0 %v5575
    %v5577 = vand.u32 %v2882, 4294901760
    %5578 = vmatpush.msra.mxu0 %v5577
    %v5579 = vand.u32 %v2874, 4294901760
    %5580 = vmatpush.msra.mxu0 %v5579
    %v5581 = vand.u32 %v2866, 4294901760
    %5582 = vmatpush.msra.mxu0 %v5581
    %v5583 = vand.u32 %v2140, 4294901760
    %5584 = vmatmul.f32.gmra.mxu0 %v5583
    %v5585 = vpop.f32.mrf.mxu0
    %v5586 = vadd.f32 %v5545, %v5585
    %v5587 = vand.u32 %v2155, 4294901760
    %5588 = vmatmul.f32.gmra.mxu0 %v5587
    %v5589 = vpop.f32.mrf.mxu0
    %v5590 = vadd.f32 %v5549, %v5589
    %5591 = vdwg.mxu0
    %v5592 = vand.u32 %v2987, 4294901760
    %5593 = vmatpush.msra.mxu0 %v5592
    %v5594 = vand.u32 %v2979, 4294901760
    %5595 = vmatpush.msra.mxu0 %v5594
    %v5596 = vand.u32 %v2971, 4294901760
    %5597 = vmatpush.msra.mxu0 %v5596
    %v5598 = vand.u32 %v2963, 4294901760
    %5599 = vmatpush.msra.mxu0 %v5598
    %v5600 = vand.u32 %v2955, 4294901760
    %5601 = vmatpush.msra.mxu0 %v5600
    %v5602 = vand.u32 %v2947, 4294901760
    %5603 = vmatpush.msra.mxu0 %v5602
    %v5604 = vand.u32 %v2939, 4294901760
    %5605 = vmatpush.msra.mxu0 %v5604
    %v5606 = vand.u32 %v2931, 4294901760
    %5607 = vmatpush.msra.mxu0 %v5606
    %v5608 = vand.u32 %v2923, 4294901760
    %5609 = vmatpush.msra.mxu0 %v5608
    %v5610 = vand.u32 %v2915, 4294901760
    %5611 = vmatpush.msra.mxu0 %v5610
    %v5612 = vand.u32 %v2907, 4294901760
    %5613 = vmatpush.msra.mxu0 %v5612
    %v5614 = vand.u32 %v2899, 4294901760
    %5615 = vmatpush.msra.mxu0 %v5614
    %v5616 = vand.u32 %v2891, 4294901760
    %5617 = vmatpush.msra.mxu0 %v5616
    %v5618 = vand.u32 %v2883, 4294901760
    %5619 = vmatpush.msra.mxu0 %v5618
    %v5620 = vand.u32 %v2875, 4294901760
    %5621 = vmatpush.msra.mxu0 %v5620
    %v5622 = vand.u32 %v2867, 4294901760
    %5623 = vmatpush.msra.mxu0 %v5622
    %v5624 = vand.u32 %v2140, 4294901760
    %v5625 = vsub.f32 %v2140, %v5624
    %v5626 = vand.u32 %v5625, 4294901760
    %v5627 = vsub.f32 %v5625, %v5626
    %v5628 = vand.u32 %v5627, 4294901760
    %5629 = vmatmul.f32.gmra.mxu0 %v5628
    %v5630 = vpop.f32.mrf.mxu0
    %v5631 = vadd.f32 0.0, %v5630
    %v5632 = vand.u32 %v2155, 4294901760
    %v5633 = vsub.f32 %v2155, %v5632
    %v5634 = vand.u32 %v5633, 4294901760
    %v5635 = vsub.f32 %v5633, %v5634
    %v5636 = vand.u32 %v5635, 4294901760
    %5637 = vmatmul.f32.gmra.mxu0 %v5636
    %v5638 = vpop.f32.mrf.mxu0
    %v5639 = vadd.f32 0.0, %v5638
    %5640 = vdwg.mxu0
    %v5641 = vand.u32 %v2987, 4294901760
    %v5642 = vsub.f32 %v2987, %v5641
    %v5643 = vand.u32 %v5642, 4294901760
    %v5644 = vsub.f32 %v5642, %v5643
    %v5645 = vand.u32 %v5644, 4294901760
    %5646 = vmatpush.msra.mxu0 %v5645
    %v5647 = vand.u32 %v2979, 4294901760
    %v5648 = vsub.f32 %v2979, %v5647
    %v5649 = vand.u32 %v5648, 4294901760
    %v5650 = vsub.f32 %v5648, %v5649
    %v5651 = vand.u32 %v5650, 4294901760
    %5652 = vmatpush.msra.mxu0 %v5651
    %v5653 = vand.u32 %v2971, 4294901760
    %v5654 = vsub.f32 %v2971, %v5653
    %v5655 = vand.u32 %v5654, 4294901760
    %v5656 = vsub.f32 %v5654, %v5655
    %v5657 = vand.u32 %v5656, 4294901760
    %5658 = vmatpush.msra.mxu0 %v5657
    %v5659 = vand.u32 %v2963, 4294901760
    %v5660 = vsub.f32 %v2963, %v5659
    %v5661 = vand.u32 %v5660, 4294901760
    %v5662 = vsub.f32 %v5660, %v5661
    %v5663 = vand.u32 %v5662, 4294901760
    %5664 = vmatpush.msra.mxu0 %v5663
    %v5665 = vand.u32 %v2955, 4294901760
    %v5666 = vsub.f32 %v2955, %v5665
    %v5667 = vand.u32 %v5666, 4294901760
    %v5668 = vsub.f32 %v5666, %v5667
    %v5669 = vand.u32 %v5668, 4294901760
    %5670 = vmatpush.msra.mxu0 %v5669
    %v5671 = vand.u32 %v2947, 4294901760
    %v5672 = vsub.f32 %v2947, %v5671
    %v5673 = vand.u32 %v5672, 4294901760
    %v5674 = vsub.f32 %v5672, %v5673
    %v5675 = vand.u32 %v5674, 4294901760
    %5676 = vmatpush.msra.mxu0 %v5675
    %v5677 = vand.u32 %v2939, 4294901760
    %v5678 = vsub.f32 %v2939, %v5677
    %v5679 = vand.u32 %v5678, 4294901760
    %v5680 = vsub.f32 %v5678, %v5679
    %v5681 = vand.u32 %v5680, 4294901760
    %5682 = vmatpush.msra.mxu0 %v5681
    %v5683 = vand.u32 %v2931, 4294901760
    %v5684 = vsub.f32 %v2931, %v5683
    %v5685 = vand.u32 %v5684, 4294901760
    %v5686 = vsub.f32 %v5684, %v5685
    %v5687 = vand.u32 %v5686, 4294901760
    %5688 = vmatpush.msra.mxu0 %v5687
    %v5689 = vand.u32 %v2923, 4294901760
    %v5690 = vsub.f32 %v2923, %v5689
    %v5691 = vand.u32 %v5690, 4294901760
    %v5692 = vsub.f32 %v5690, %v5691
    %v5693 = vand.u32 %v5692, 4294901760
    %5694 = vmatpush.msra.mxu0 %v5693
    %v5695 = vand.u32 %v2915, 4294901760
    %v5696 = vsub.f32 %v2915, %v5695
    %v5697 = vand.u32 %v5696, 4294901760
    %v5698 = vsub.f32 %v5696, %v5697
    %v5699 = vand.u32 %v5698, 4294901760
    %5700 = vmatpush.msra.mxu0 %v5699
    %v5701 = vand.u32 %v2907, 4294901760
    %v5702 = vsub.f32 %v2907, %v5701
    %v5703 = vand.u32 %v5702, 4294901760
    %v5704 = vsub.f32 %v5702, %v5703
    %v5705 = vand.u32 %v5704, 4294901760
    %5706 = vmatpush.msra.mxu0 %v5705
    %v5707 = vand.u32 %v2899, 4294901760
    %v5708 = vsub.f32 %v2899, %v5707
    %v5709 = vand.u32 %v5708, 4294901760
    %v5710 = vsub.f32 %v5708, %v5709
    %v5711 = vand.u32 %v5710, 4294901760
    %5712 = vmatpush.msra.mxu0 %v5711
    %v5713 = vand.u32 %v2891, 4294901760
    %v5714 = vsub.f32 %v2891, %v5713
    %v5715 = vand.u32 %v5714, 4294901760
    %v5716 = vsub.f32 %v5714, %v5715
    %v5717 = vand.u32 %v5716, 4294901760
    %5718 = vmatpush.msra.mxu0 %v5717
    %v5719 = vand.u32 %v2883, 4294901760
    %v5720 = vsub.f32 %v2883, %v5719
    %v5721 = vand.u32 %v5720, 4294901760
    %v5722 = vsub.f32 %v5720, %v5721
    %v5723 = vand.u32 %v5722, 4294901760
    %5724 = vmatpush.msra.mxu0 %v5723
    %v5725 = vand.u32 %v2875, 4294901760
    %v5726 = vsub.f32 %v2875, %v5725
    %v5727 = vand.u32 %v5726, 4294901760
    %v5728 = vsub.f32 %v5726, %v5727
    %v5729 = vand.u32 %v5728, 4294901760
    %5730 = vmatpush.msra.mxu0 %v5729
    %v5731 = vand.u32 %v2867, 4294901760
    %v5732 = vsub.f32 %v2867, %v5731
    %v5733 = vand.u32 %v5732, 4294901760
    %v5734 = vsub.f32 %v5732, %v5733
    %v5735 = vand.u32 %v5734, 4294901760
    %5736 = vmatpush.msra.mxu0 %v5735
    %v5737 = vand.u32 %v2140, 4294901760
    %5738 = vmatmul.f32.gmra.mxu0 %v5737
    %v5739 = vpop.f32.mrf.mxu0
    %v5740 = vadd.f32 %v5631, %v5739
    %v5741 = vand.u32 %v2155, 4294901760
    %5742 = vmatmul.f32.gmra.mxu0 %v5741
    %v5743 = vpop.f32.mrf.mxu0
    %v5744 = vadd.f32 %v5639, %v5743
    %5745 = vdwg.mxu0
    %v5746 = vand.u32 %v2987, 4294901760
    %v5747 = vsub.f32 %v2987, %v5746
    %5748 = vmatpush.msra.mxu0 %v5747
    %v5749 = vand.u32 %v2979, 4294901760
    %v5750 = vsub.f32 %v2979, %v5749
    %5751 = vmatpush.msra.mxu0 %v5750
    %v5752 = vand.u32 %v2971, 4294901760
    %v5753 = vsub.f32 %v2971, %v5752
    %5754 = vmatpush.msra.mxu0 %v5753
    %v5755 = vand.u32 %v2963, 4294901760
    %v5756 = vsub.f32 %v2963, %v5755
    %5757 = vmatpush.msra.mxu0 %v5756
    %v5758 = vand.u32 %v2955, 4294901760
    %v5759 = vsub.f32 %v2955, %v5758
    %5760 = vmatpush.msra.mxu0 %v5759
    %v5761 = vand.u32 %v2947, 4294901760
    %v5762 = vsub.f32 %v2947, %v5761
    %5763 = vmatpush.msra.mxu0 %v5762
    %v5764 = vand.u32 %v2939, 4294901760
    %v5765 = vsub.f32 %v2939, %v5764
    %5766 = vmatpush.msra.mxu0 %v5765
    %v5767 = vand.u32 %v2931, 4294901760
    %v5768 = vsub.f32 %v2931, %v5767
    %5769 = vmatpush.msra.mxu0 %v5768
    %v5770 = vand.u32 %v2923, 4294901760
    %v5771 = vsub.f32 %v2923, %v5770
    %5772 = vmatpush.msra.mxu0 %v5771
    %v5773 = vand.u32 %v2915, 4294901760
    %v5774 = vsub.f32 %v2915, %v5773
    %5775 = vmatpush.msra.mxu0 %v5774
    %v5776 = vand.u32 %v2907, 4294901760
    %v5777 = vsub.f32 %v2907, %v5776
    %5778 = vmatpush.msra.mxu0 %v5777
    %v5779 = vand.u32 %v2899, 4294901760
    %v5780 = vsub.f32 %v2899, %v5779
    %5781 = vmatpush.msra.mxu0 %v5780
    %v5782 = vand.u32 %v2891, 4294901760
    %v5783 = vsub.f32 %v2891, %v5782
    %5784 = vmatpush.msra.mxu0 %v5783
    %v5785 = vand.u32 %v2883, 4294901760
    %v5786 = vsub.f32 %v2883, %v5785
    %5787 = vmatpush.msra.mxu0 %v5786
    %v5788 = vand.u32 %v2875, 4294901760
    %v5789 = vsub.f32 %v2875, %v5788
    %5790 = vmatpush.msra.mxu0 %v5789
    %v5791 = vand.u32 %v2867, 4294901760
    %v5792 = vsub.f32 %v2867, %v5791
    %5793 = vmatpush.msra.mxu0 %v5792
    %v5794 = vand.u32 %v2140, 4294901760
    %v5795 = vsub.f32 %v2140, %v5794
    %5796 = vmatmul.f32.gmra.mxu0 %v5795
    %v5797 = vpop.f32.mrf.mxu0
    %v5798 = vadd.f32 %v5740, %v5797
    %v5799 = vand.u32 %v2155, 4294901760
    %v5800 = vsub.f32 %v2155, %v5799
    %5801 = vmatmul.f32.gmra.mxu0 %v5800
    %v5802 = vpop.f32.mrf.mxu0
    %v5803 = vadd.f32 %v5744, %v5802
    %5804 = vdwg.mxu0
    %v5805 = vand.u32 %v2987, 4294901760
    %5806 = vmatpush.msra.mxu0 %v5805
    %v5807 = vand.u32 %v2979, 4294901760
    %5808 = vmatpush.msra.mxu0 %v5807
    %v5809 = vand.u32 %v2971, 4294901760
    %5810 = vmatpush.msra.mxu0 %v5809
    %v5811 = vand.u32 %v2963, 4294901760
    %5812 = vmatpush.msra.mxu0 %v5811
    %v5813 = vand.u32 %v2955, 4294901760
    %5814 = vmatpush.msra.mxu0 %v5813
    %v5815 = vand.u32 %v2947, 4294901760
    %5816 = vmatpush.msra.mxu0 %v5815
    %v5817 = vand.u32 %v2939, 4294901760
    %5818 = vmatpush.msra.mxu0 %v5817
    %v5819 = vand.u32 %v2931, 4294901760
    %5820 = vmatpush.msra.mxu0 %v5819
    %v5821 = vand.u32 %v2923, 4294901760
    %5822 = vmatpush.msra.mxu0 %v5821
    %v5823 = vand.u32 %v2915, 4294901760
    %5824 = vmatpush.msra.mxu0 %v5823
    %v5825 = vand.u32 %v2907, 4294901760
    %5826 = vmatpush.msra.mxu0 %v5825
    %v5827 = vand.u32 %v2899, 4294901760
    %5828 = vmatpush.msra.mxu0 %v5827
    %v5829 = vand.u32 %v2891, 4294901760
    %5830 = vmatpush.msra.mxu0 %v5829
    %v5831 = vand.u32 %v2883, 4294901760
    %5832 = vmatpush.msra.mxu0 %v5831
    %v5833 = vand.u32 %v2875, 4294901760
    %5834 = vmatpush.msra.mxu0 %v5833
    %v5835 = vand.u32 %v2867, 4294901760
    %5836 = vmatpush.msra.mxu0 %v5835
    %v5837 = vand.u32 %v2140, 4294901760
    %v5838 = vsub.f32 %v2140, %v5837
    %v5839 = vand.u32 %v5838, 4294901760
    %5840 = vmatmul.f32.gmra.mxu0 %v5839
    %v5841 = vpop.f32.mrf.mxu0
    %v5842 = vadd.f32 %v5798, %v5841
    %v5843 = vand.u32 %v2155, 4294901760
    %v5844 = vsub.f32 %v2155, %v5843
    %v5845 = vand.u32 %v5844, 4294901760
    %5846 = vmatmul.f32.gmra.mxu0 %v5845
    %v5847 = vpop.f32.mrf.mxu0
    %v5848 = vadd.f32 %v5803, %v5847
    %5849 = vdwg.mxu0
    %v5850 = vand.u32 %v2987, 4294901760
    %v5851 = vsub.f32 %v2987, %v5850
    %v5852 = vand.u32 %v5851, 4294901760
    %5853 = vmatpush.msra.mxu0 %v5852
    %v5854 = vand.u32 %v2979, 4294901760
    %v5855 = vsub.f32 %v2979, %v5854
    %v5856 = vand.u32 %v5855, 4294901760
    %5857 = vmatpush.msra.mxu0 %v5856
    %v5858 = vand.u32 %v2971, 4294901760
    %v5859 = vsub.f32 %v2971, %v5858
    %v5860 = vand.u32 %v5859, 4294901760
    %5861 = vmatpush.msra.mxu0 %v5860
    %v5862 = vand.u32 %v2963, 4294901760
    %v5863 = vsub.f32 %v2963, %v5862
    %v5864 = vand.u32 %v5863, 4294901760
    %5865 = vmatpush.msra.mxu0 %v5864
    %v5866 = vand.u32 %v2955, 4294901760
    %v5867 = vsub.f32 %v2955, %v5866
    %v5868 = vand.u32 %v5867, 4294901760
    %5869 = vmatpush.msra.mxu0 %v5868
    %v5870 = vand.u32 %v2947, 4294901760
    %v5871 = vsub.f32 %v2947, %v5870
    %v5872 = vand.u32 %v5871, 4294901760
    %5873 = vmatpush.msra.mxu0 %v5872
    %v5874 = vand.u32 %v2939, 4294901760
    %v5875 = vsub.f32 %v2939, %v5874
    %v5876 = vand.u32 %v5875, 4294901760
    %5877 = vmatpush.msra.mxu0 %v5876
    %v5878 = vand.u32 %v2931, 4294901760
    %v5879 = vsub.f32 %v2931, %v5878
    %v5880 = vand.u32 %v5879, 4294901760
    %5881 = vmatpush.msra.mxu0 %v5880
    %v5882 = vand.u32 %v2923, 4294901760
    %v5883 = vsub.f32 %v2923, %v5882
    %v5884 = vand.u32 %v5883, 4294901760
    %5885 = vmatpush.msra.mxu0 %v5884
    %v5886 = vand.u32 %v2915, 4294901760
    %v5887 = vsub.f32 %v2915, %v5886
    %v5888 = vand.u32 %v5887, 4294901760
    %5889 = vmatpush.msra.mxu0 %v5888
    %v5890 = vand.u32 %v2907, 4294901760
    %v5891 = vsub.f32 %v2907, %v5890
    %v5892 = vand.u32 %v5891, 4294901760
    %5893 = vmatpush.msra.mxu0 %v5892
    %v5894 = vand.u32 %v2899, 4294901760
    %v5895 = vsub.f32 %v2899, %v5894
    %v5896 = vand.u32 %v5895, 4294901760
    %5897 = vmatpush.msra.mxu0 %v5896
    %v5898 = vand.u32 %v2891, 4294901760
    %v5899 = vsub.f32 %v2891, %v5898
    %v5900 = vand.u32 %v5899, 4294901760
    %5901 = vmatpush.msra.mxu0 %v5900
    %v5902 = vand.u32 %v2883, 4294901760
    %v5903 = vsub.f32 %v2883, %v5902
    %v5904 = vand.u32 %v5903, 4294901760
    %5905 = vmatpush.msra.mxu0 %v5904
    %v5906 = vand.u32 %v2875, 4294901760
    %v5907 = vsub.f32 %v2875, %v5906
    %v5908 = vand.u32 %v5907, 4294901760
    %5909 = vmatpush.msra.mxu0 %v5908
    %v5910 = vand.u32 %v2867, 4294901760
    %v5911 = vsub.f32 %v2867, %v5910
    %v5912 = vand.u32 %v5911, 4294901760
    %5913 = vmatpush.msra.mxu0 %v5912
    %v5914 = vand.u32 %v2140, 4294901760
    %5915 = vmatmul.f32.gmra.mxu0 %v5914
    %v5916 = vpop.f32.mrf.mxu0
    %v5917 = vadd.f32 %v5842, %v5916
    %v5918 = vand.u32 %v2155, 4294901760
    %5919 = vmatmul.f32.gmra.mxu0 %v5918
    %v5920 = vpop.f32.mrf.mxu0
    %v5921 = vadd.f32 %v5848, %v5920
    %5922 = vdwg.mxu0
    %v5923 = vand.u32 %v2987, 4294901760
    %5924 = vmatpush.msra.mxu0 %v5923
    %v5925 = vand.u32 %v2979, 4294901760
    %5926 = vmatpush.msra.mxu0 %v5925
    %v5927 = vand.u32 %v2971, 4294901760
    %5928 = vmatpush.msra.mxu0 %v5927
    %v5929 = vand.u32 %v2963, 4294901760
    %5930 = vmatpush.msra.mxu0 %v5929
    %v5931 = vand.u32 %v2955, 4294901760
    %5932 = vmatpush.msra.mxu0 %v5931
    %v5933 = vand.u32 %v2947, 4294901760
    %5934 = vmatpush.msra.mxu0 %v5933
    %v5935 = vand.u32 %v2939, 4294901760
    %5936 = vmatpush.msra.mxu0 %v5935
    %v5937 = vand.u32 %v2931, 4294901760
    %5938 = vmatpush.msra.mxu0 %v5937
    %v5939 = vand.u32 %v2923, 4294901760
    %5940 = vmatpush.msra.mxu0 %v5939
    %v5941 = vand.u32 %v2915, 4294901760
    %5942 = vmatpush.msra.mxu0 %v5941
    %v5943 = vand.u32 %v2907, 4294901760
    %5944 = vmatpush.msra.mxu0 %v5943
    %v5945 = vand.u32 %v2899, 4294901760
    %5946 = vmatpush.msra.mxu0 %v5945
    %v5947 = vand.u32 %v2891, 4294901760
    %5948 = vmatpush.msra.mxu0 %v5947
    %v5949 = vand.u32 %v2883, 4294901760
    %5950 = vmatpush.msra.mxu0 %v5949
    %v5951 = vand.u32 %v2875, 4294901760
    %5952 = vmatpush.msra.mxu0 %v5951
    %v5953 = vand.u32 %v2867, 4294901760
    %5954 = vmatpush.msra.mxu0 %v5953
    %v5955 = vand.u32 %v2140, 4294901760
    %5956 = vmatmul.f32.gmra.mxu0 %v5955
    %v5957 = vpop.f32.mrf.mxu0
    %v5958 = vadd.f32 %v5917, %v5957
    %v5959 = vand.u32 %v2155, 4294901760
    %5960 = vmatmul.f32.gmra.mxu0 %v5959
    %v5961 = vpop.f32.mrf.mxu0
    %v5962 = vadd.f32 %v5921, %v5961
    %5963 = vdwg.mxu0
    %v5964 = vmul.f32 %v3354, %v2844
    %v5965 = vmul.f32 %v3726, %v2845
    %v5966 = vmul.f32 %v4098, %v2846
    %v5967 = vmul.f32 %v4470, %v2847
    %v5968 = vmul.f32 %v4842, %v2848
    %v5969 = vmul.f32 %v5214, %v2849
    %v5970 = vmul.f32 %v5586, %v2850
    %v5971 = vmul.f32 %v5958, %v2851
    %v5972 = vmul.f32 %v3358, %v2852
    %v5973 = vmul.f32 %v3730, %v2853
    %v5974 = vmul.f32 %v4102, %v2854
    %v5975 = vmul.f32 %v4474, %v2855
    %v5976 = vmul.f32 %v4846, %v2856
    %v5977 = vmul.f32 %v5218, %v2857
    %v5978 = vmul.f32 %v5590, %v2858
    %v5979 = vmul.f32 %v5962, %v2859
    %v5980 = vld [vmem:[#allocation9] sm:$0xff]
    %v5981 = vld [vmem:[#allocation9 + $0x8] sm:$0xff]
    %v5982 = vld [vmem:[#allocation9 + $0x10] sm:$0xff]
    %v5983 = vld [vmem:[#allocation9 + $0x18] sm:$0xff]
    %v5984 = vld [vmem:[#allocation9 + $0x20] sm:$0xff]
    %v5985 = vld [vmem:[#allocation9 + $0x28] sm:$0xff]
    %v5986 = vld [vmem:[#allocation9 + $0x30] sm:$0xff]
    %v5987 = vld [vmem:[#allocation9 + $0x38] sm:$0xff]
    %v5988 = vld [vmem:[#allocation9 + $0x40] sm:$0xff]
    %v5989 = vld [vmem:[#allocation9 + $0x48] sm:$0xff]
    %v5990 = vld [vmem:[#allocation9 + $0x50] sm:$0xff]
    %v5991 = vld [vmem:[#allocation9 + $0x58] sm:$0xff]
    %v5992 = vld [vmem:[#allocation9 + $0x60] sm:$0xff]
    %v5993 = vld [vmem:[#allocation9 + $0x68] sm:$0xff]
    %v5994 = vld [vmem:[#allocation9 + $0x70] sm:$0xff]
    %v5995 = vld [vmem:[#allocation9 + $0x78] sm:$0xff]
    %v5996 = vld [vmem:[#allocation9 + $0x80] sm:$0xff]
    %v5997 = vld [vmem:[#allocation9 + $0x88] sm:$0xff]
    %v5998 = vld [vmem:[#allocation9 + $0x90] sm:$0xff]
    %v5999 = vld [vmem:[#allocation9 + $0x98] sm:$0xff]
    %v6000 = vld [vmem:[#allocation9 + $0xa0] sm:$0xff]
    %v6001 = vld [vmem:[#allocation9 + $0xa8] sm:$0xff]
    %v6002 = vld [vmem:[#allocation9 + $0xb0] sm:$0xff]
    %v6003 = vld [vmem:[#allocation9 + $0xb8] sm:$0xff]
    %v6004 = vld [vmem:[#allocation9 + $0xc0] sm:$0xff]
    %v6005 = vld [vmem:[#allocation9 + $0xc8] sm:$0xff]
    %v6006 = vld [vmem:[#allocation9 + $0xd0] sm:$0xff]
    %v6007 = vld [vmem:[#allocation9 + $0xd8] sm:$0xff]
    %v6008 = vld [vmem:[#allocation9 + $0xe0] sm:$0xff]
    %v6009 = vld [vmem:[#allocation9 + $0xe8] sm:$0xff]
    %v6010 = vld [vmem:[#allocation9 + $0xf0] sm:$0xff]
    %v6011 = vld [vmem:[#allocation9 + $0xf8] sm:$0xff]
    %v6012 = vld [vmem:[#allocation9 + $0x100] sm:$0xff]
    %v6013 = vld [vmem:[#allocation9 + $0x108] sm:$0xff]
    %v6014 = vld [vmem:[#allocation9 + $0x110] sm:$0xff]
    %v6015 = vld [vmem:[#allocation9 + $0x118] sm:$0xff]
    %v6016 = vld [vmem:[#allocation9 + $0x120] sm:$0xff]
    %v6017 = vld [vmem:[#allocation9 + $0x128] sm:$0xff]
    %v6018 = vld [vmem:[#allocation9 + $0x130] sm:$0xff]
    %v6019 = vld [vmem:[#allocation9 + $0x138] sm:$0xff]
    %v6020 = vld [vmem:[#allocation9 + $0x140] sm:$0xff]
    %v6021 = vld [vmem:[#allocation9 + $0x148] sm:$0xff]
    %v6022 = vld [vmem:[#allocation9 + $0x150] sm:$0xff]
    %v6023 = vld [vmem:[#allocation9 + $0x158] sm:$0xff]
    %v6024 = vld [vmem:[#allocation9 + $0x160] sm:$0xff]
    %v6025 = vld [vmem:[#allocation9 + $0x168] sm:$0xff]
    %v6026 = vld [vmem:[#allocation9 + $0x170] sm:$0xff]
    %v6027 = vld [vmem:[#allocation9 + $0x178] sm:$0xff]
    %v6028 = vld [vmem:[#allocation9 + $0x180] sm:$0xff]
    %v6029 = vld [vmem:[#allocation9 + $0x188] sm:$0xff]
    %v6030 = vld [vmem:[#allocation9 + $0x190] sm:$0xff]
    %v6031 = vld [vmem:[#allocation9 + $0x198] sm:$0xff]
    %v6032 = vld [vmem:[#allocation9 + $0x1a0] sm:$0xff]
    %v6033 = vld [vmem:[#allocation9 + $0x1a8] sm:$0xff]
    %v6034 = vld [vmem:[#allocation9 + $0x1b0] sm:$0xff]
    %v6035 = vld [vmem:[#allocation9 + $0x1b8] sm:$0xff]
    %v6036 = vld [vmem:[#allocation9 + $0x1c0] sm:$0xff]
    %v6037 = vld [vmem:[#allocation9 + $0x1c8] sm:$0xff]
    %v6038 = vld [vmem:[#allocation9 + $0x1d0] sm:$0xff]
    %v6039 = vld [vmem:[#allocation9 + $0x1d8] sm:$0xff]
    %v6040 = vld [vmem:[#allocation9 + $0x1e0] sm:$0xff]
    %v6041 = vld [vmem:[#allocation9 + $0x1e8] sm:$0xff]
    %v6042 = vld [vmem:[#allocation9 + $0x1f0] sm:$0xff]
    %v6043 = vld [vmem:[#allocation9 + $0x1f8] sm:$0xff]
    %v6044 = vld [vmem:[#allocation9 + $0x200] sm:$0xff]
    %v6045 = vld [vmem:[#allocation9 + $0x208] sm:$0xff]
    %v6046 = vld [vmem:[#allocation9 + $0x210] sm:$0xff]
    %v6047 = vld [vmem:[#allocation9 + $0x218] sm:$0xff]
    %v6048 = vld [vmem:[#allocation9 + $0x220] sm:$0xff]
    %v6049 = vld [vmem:[#allocation9 + $0x228] sm:$0xff]
    %v6050 = vld [vmem:[#allocation9 + $0x230] sm:$0xff]
    %v6051 = vld [vmem:[#allocation9 + $0x238] sm:$0xff]
    %v6052 = vld [vmem:[#allocation9 + $0x240] sm:$0xff]
    %v6053 = vld [vmem:[#allocation9 + $0x248] sm:$0xff]
    %v6054 = vld [vmem:[#allocation9 + $0x250] sm:$0xff]
    %v6055 = vld [vmem:[#allocation9 + $0x258] sm:$0xff]
    %v6056 = vld [vmem:[#allocation9 + $0x260] sm:$0xff]
    %v6057 = vld [vmem:[#allocation9 + $0x268] sm:$0xff]
    %v6058 = vld [vmem:[#allocation9 + $0x270] sm:$0xff]
    %v6059 = vld [vmem:[#allocation9 + $0x278] sm:$0xff]
    %v6060 = vld [vmem:[#allocation9 + $0x280] sm:$0xff]
    %v6061 = vld [vmem:[#allocation9 + $0x288] sm:$0xff]
    %v6062 = vld [vmem:[#allocation9 + $0x290] sm:$0xff]
    %v6063 = vld [vmem:[#allocation9 + $0x298] sm:$0xff]
    %v6064 = vld [vmem:[#allocation9 + $0x2a0] sm:$0xff]
    %v6065 = vld [vmem:[#allocation9 + $0x2a8] sm:$0xff]
    %v6066 = vld [vmem:[#allocation9 + $0x2b0] sm:$0xff]
    %v6067 = vld [vmem:[#allocation9 + $0x2b8] sm:$0xff]
    %v6068 = vld [vmem:[#allocation9 + $0x2c0] sm:$0xff]
    %v6069 = vld [vmem:[#allocation9 + $0x2c8] sm:$0xff]
    %v6070 = vld [vmem:[#allocation9 + $0x2d0] sm:$0xff]
    %v6071 = vld [vmem:[#allocation9 + $0x2d8] sm:$0xff]
    %v6072 = vld [vmem:[#allocation9 + $0x2e0] sm:$0xff]
    %v6073 = vld [vmem:[#allocation9 + $0x2e8] sm:$0xff]
    %v6074 = vld [vmem:[#allocation9 + $0x2f0] sm:$0xff]
    %v6075 = vld [vmem:[#allocation9 + $0x2f8] sm:$0xff]
    %v6076 = vld [vmem:[#allocation9 + $0x300] sm:$0xff]
    %v6077 = vld [vmem:[#allocation9 + $0x308] sm:$0xff]
    %v6078 = vld [vmem:[#allocation9 + $0x310] sm:$0xff]
    %v6079 = vld [vmem:[#allocation9 + $0x318] sm:$0xff]
    %v6080 = vld [vmem:[#allocation9 + $0x320] sm:$0xff]
    %v6081 = vld [vmem:[#allocation9 + $0x328] sm:$0xff]
    %v6082 = vld [vmem:[#allocation9 + $0x330] sm:$0xff]
    %v6083 = vld [vmem:[#allocation9 + $0x338] sm:$0xff]
    %v6084 = vld [vmem:[#allocation9 + $0x340] sm:$0xff]
    %v6085 = vld [vmem:[#allocation9 + $0x348] sm:$0xff]
    %v6086 = vld [vmem:[#allocation9 + $0x350] sm:$0xff]
    %v6087 = vld [vmem:[#allocation9 + $0x358] sm:$0xff]
    %v6088 = vld [vmem:[#allocation9 + $0x360] sm:$0xff]
    %v6089 = vld [vmem:[#allocation9 + $0x368] sm:$0xff]
    %v6090 = vld [vmem:[#allocation9 + $0x370] sm:$0xff]
    %v6091 = vld [vmem:[#allocation9 + $0x378] sm:$0xff]
    %v6092 = vld [vmem:[#allocation9 + $0x380] sm:$0xff]
    %v6093 = vld [vmem:[#allocation9 + $0x388] sm:$0xff]
    %v6094 = vld [vmem:[#allocation9 + $0x390] sm:$0xff]
    %v6095 = vld [vmem:[#allocation9 + $0x398] sm:$0xff]
    %v6096 = vld [vmem:[#allocation9 + $0x3a0] sm:$0xff]
    %v6097 = vld [vmem:[#allocation9 + $0x3a8] sm:$0xff]
    %v6098 = vld [vmem:[#allocation9 + $0x3b0] sm:$0xff]
    %v6099 = vld [vmem:[#allocation9 + $0x3b8] sm:$0xff]
    %v6100 = vld [vmem:[#allocation9 + $0x3c0] sm:$0xff]
    %v6101 = vld [vmem:[#allocation9 + $0x3c8] sm:$0xff]
    %v6102 = vld [vmem:[#allocation9 + $0x3d0] sm:$0xff]
    %v6103 = vld [vmem:[#allocation9 + $0x3d8] sm:$0xff]
    %v6104 = vld [vmem:[#allocation9 + $0x3e0] sm:$0xff]
    %v6105 = vld [vmem:[#allocation9 + $0x3e8] sm:$0xff]
    %v6106 = vld [vmem:[#allocation9 + $0x3f0] sm:$0xff]
    %v6107 = vld [vmem:[#allocation9 + $0x3f8] sm:$0xff]
    %v6108 = vld [vmem:[#allocation9 + $0x400] sm:$0xff]
    %v6109 = vld [vmem:[#allocation9 + $0x408] sm:$0xff]
    %v6110 = vld [vmem:[#allocation9 + $0x410] sm:$0xff]
    %v6111 = vld [vmem:[#allocation9 + $0x418] sm:$0xff]
    %v6112 = vld [vmem:[#allocation9 + $0x420] sm:$0xff]
    %v6113 = vld [vmem:[#allocation9 + $0x428] sm:$0xff]
    %v6114 = vld [vmem:[#allocation9 + $0x430] sm:$0xff]
    %v6115 = vld [vmem:[#allocation9 + $0x438] sm:$0xff]
    %v6116 = vld [vmem:[#allocation9 + $0x440] sm:$0xff]
    %v6117 = vld [vmem:[#allocation9 + $0x448] sm:$0xff]
    %v6118 = vld [vmem:[#allocation9 + $0x450] sm:$0xff]
    %v6119 = vld [vmem:[#allocation9 + $0x458] sm:$0xff]
    %v6120 = vld [vmem:[#allocation9 + $0x460] sm:$0xff]
    %v6121 = vld [vmem:[#allocation9 + $0x468] sm:$0xff]
    %v6122 = vld [vmem:[#allocation9 + $0x470] sm:$0xff]
    %v6123 = vld [vmem:[#allocation9 + $0x478] sm:$0xff]
    %v6124 = vand.u32 %v5995, 4294901760
    %6125 = vmatpush.msra.mxu0 %v6124
    %v6126 = vand.u32 %v5994, 4294901760
    %6127 = vmatpush.msra.mxu0 %v6126
    %v6128 = vand.u32 %v5993, 4294901760
    %6129 = vmatpush.msra.mxu0 %v6128
    %v6130 = vand.u32 %v5992, 4294901760
    %6131 = vmatpush.msra.mxu0 %v6130
    %v6132 = vand.u32 %v5991, 4294901760
    %6133 = vmatpush.msra.mxu0 %v6132
    %v6134 = vand.u32 %v5990, 4294901760
    %6135 = vmatpush.msra.mxu0 %v6134
    %v6136 = vand.u32 %v5989, 4294901760
    %6137 = vmatpush.msra.mxu0 %v6136
    %v6138 = vand.u32 %v5988, 4294901760
    %6139 = vmatpush.msra.mxu0 %v6138
    %v6140 = vand.u32 %v5987, 4294901760
    %6141 = vmatpush.msra.mxu0 %v6140
    %v6142 = vand.u32 %v5986, 4294901760
    %6143 = vmatpush.msra.mxu0 %v6142
    %v6144 = vand.u32 %v5985, 4294901760
    %6145 = vmatpush.msra.mxu0 %v6144
    %v6146 = vand.u32 %v5984, 4294901760
    %6147 = vmatpush.msra.mxu0 %v6146
    %v6148 = vand.u32 %v5983, 4294901760
    %6149 = vmatpush.msra.mxu0 %v6148
    %v6150 = vand.u32 %v5982, 4294901760
    %6151 = vmatpush.msra.mxu0 %v6150
    %v6152 = vand.u32 %v5981, 4294901760
    %6153 = vmatpush.msra.mxu0 %v6152
    %v6154 = vand.u32 %v5980, 4294901760
    %6155 = vmatpush.msra.mxu0 %v6154
    %v6156 = vand.u32 %v5964, 4294901760
    %v6157 = vsub.f32 %v5964, %v6156
    %v6158 = vand.u32 %v6157, 4294901760
    %v6159 = vsub.f32 %v6157, %v6158
    %v6160 = vand.u32 %v6159, 4294901760
    %6161 = vmatmul.f32.gmra.mxu0 %v6160
    %v6162 = vpop.f32.mrf.mxu0
    %v6163 = vadd.f32 0.0, %v6162
    %v6164 = vand.u32 %v5972, 4294901760
    %v6165 = vsub.f32 %v5972, %v6164
    %v6166 = vand.u32 %v6165, 4294901760
    %v6167 = vsub.f32 %v6165, %v6166
    %v6168 = vand.u32 %v6167, 4294901760
    %6169 = vmatmul.f32.gmra.mxu0 %v6168
    %v6170 = vpop.f32.mrf.mxu0
    %v6171 = vadd.f32 0.0, %v6170
    %6172 = vdwg.mxu0
    %v6173 = vand.u32 %v5995, 4294901760
    %v6174 = vsub.f32 %v5995, %v6173
    %v6175 = vand.u32 %v6174, 4294901760
    %v6176 = vsub.f32 %v6174, %v6175
    %v6177 = vand.u32 %v6176, 4294901760
    %6178 = vmatpush.msra.mxu0 %v6177
    %v6179 = vand.u32 %v5994, 4294901760
    %v6180 = vsub.f32 %v5994, %v6179
    %v6181 = vand.u32 %v6180, 4294901760
    %v6182 = vsub.f32 %v6180, %v6181
    %v6183 = vand.u32 %v6182, 4294901760
    %6184 = vmatpush.msra.mxu0 %v6183
    %v6185 = vand.u32 %v5993, 4294901760
    %v6186 = vsub.f32 %v5993, %v6185
    %v6187 = vand.u32 %v6186, 4294901760
    %v6188 = vsub.f32 %v6186, %v6187
    %v6189 = vand.u32 %v6188, 4294901760
    %6190 = vmatpush.msra.mxu0 %v6189
    %v6191 = vand.u32 %v5992, 4294901760
    %v6192 = vsub.f32 %v5992, %v6191
    %v6193 = vand.u32 %v6192, 4294901760
    %v6194 = vsub.f32 %v6192, %v6193
    %v6195 = vand.u32 %v6194, 4294901760
    %6196 = vmatpush.msra.mxu0 %v6195
    %v6197 = vand.u32 %v5991, 4294901760
    %v6198 = vsub.f32 %v5991, %v6197
    %v6199 = vand.u32 %v6198, 4294901760
    %v6200 = vsub.f32 %v6198, %v6199
    %v6201 = vand.u32 %v6200, 4294901760
    %6202 = vmatpush.msra.mxu0 %v6201
    %v6203 = vand.u32 %v5990, 4294901760
    %v6204 = vsub.f32 %v5990, %v6203
    %v6205 = vand.u32 %v6204, 4294901760
    %v6206 = vsub.f32 %v6204, %v6205
    %v6207 = vand.u32 %v6206, 4294901760
    %6208 = vmatpush.msra.mxu0 %v6207
    %v6209 = vand.u32 %v5989, 4294901760
    %v6210 = vsub.f32 %v5989, %v6209
    %v6211 = vand.u32 %v6210, 4294901760
    %v6212 = vsub.f32 %v6210, %v6211
    %v6213 = vand.u32 %v6212, 4294901760
    %6214 = vmatpush.msra.mxu0 %v6213
    %v6215 = vand.u32 %v5988, 4294901760
    %v6216 = vsub.f32 %v5988, %v6215
    %v6217 = vand.u32 %v6216, 4294901760
    %v6218 = vsub.f32 %v6216, %v6217
    %v6219 = vand.u32 %v6218, 4294901760
    %6220 = vmatpush.msra.mxu0 %v6219
    %v6221 = vand.u32 %v5987, 4294901760
    %v6222 = vsub.f32 %v5987, %v6221
    %v6223 = vand.u32 %v6222, 4294901760
    %v6224 = vsub.f32 %v6222, %v6223
    %v6225 = vand.u32 %v6224, 4294901760
    %6226 = vmatpush.msra.mxu0 %v6225
    %v6227 = vand.u32 %v5986, 4294901760
    %v6228 = vsub.f32 %v5986, %v6227
    %v6229 = vand.u32 %v6228, 4294901760
    %v6230 = vsub.f32 %v6228, %v6229
    %v6231 = vand.u32 %v6230, 4294901760
    %6232 = vmatpush.msra.mxu0 %v6231
    %v6233 = vand.u32 %v5985, 4294901760
    %v6234 = vsub.f32 %v5985, %v6233
    %v6235 = vand.u32 %v6234, 4294901760
    %v6236 = vsub.f32 %v6234, %v6235
    %v6237 = vand.u32 %v6236, 4294901760
    %6238 = vmatpush.msra.mxu0 %v6237
    %v6239 = vand.u32 %v5984, 4294901760
    %v6240 = vsub.f32 %v5984, %v6239
    %v6241 = vand.u32 %v6240, 4294901760
    %v6242 = vsub.f32 %v6240, %v6241
    %v6243 = vand.u32 %v6242, 4294901760
    %6244 = vmatpush.msra.mxu0 %v6243
    %v6245 = vand.u32 %v5983, 4294901760
    %v6246 = vsub.f32 %v5983, %v6245
    %v6247 = vand.u32 %v6246, 4294901760
    %v6248 = vsub.f32 %v6246, %v6247
    %v6249 = vand.u32 %v6248, 4294901760
    %6250 = vmatpush.msra.mxu0 %v6249
    %v6251 = vand.u32 %v5982, 4294901760
    %v6252 = vsub.f32 %v5982, %v6251
    %v6253 = vand.u32 %v6252, 4294901760
    %v6254 = vsub.f32 %v6252, %v6253
    %v6255 = vand.u32 %v6254, 4294901760
    %6256 = vmatpush.msra.mxu0 %v6255
    %v6257 = vand.u32 %v5981, 4294901760
    %v6258 = vsub.f32 %v5981, %v6257
    %v6259 = vand.u32 %v6258, 4294901760
    %v6260 = vsub.f32 %v6258, %v6259
    %v6261 = vand.u32 %v6260, 4294901760
    %6262 = vmatpush.msra.mxu0 %v6261
    %v6263 = vand.u32 %v5980, 4294901760
    %v6264 = vsub.f32 %v5980, %v6263
    %v6265 = vand.u32 %v6264, 4294901760
    %v6266 = vsub.f32 %v6264, %v6265
    %v6267 = vand.u32 %v6266, 4294901760
    %6268 = vmatpush.msra.mxu0 %v6267
    %v6269 = vand.u32 %v5964, 4294901760
    %6270 = vmatmul.f32.gmra.mxu0 %v6269
    %v6271 = vpop.f32.mrf.mxu0
    %v6272 = vadd.f32 %v6163, %v6271
    %v6273 = vand.u32 %v5972, 4294901760
    %6274 = vmatmul.f32.gmra.mxu0 %v6273
    %v6275 = vpop.f32.mrf.mxu0
    %v6276 = vadd.f32 %v6171, %v6275
    %6277 = vdwg.mxu0
    %v6278 = vand.u32 %v5995, 4294901760
    %v6279 = vsub.f32 %v5995, %v6278
    %6280 = vmatpush.msra.mxu0 %v6279
    %v6281 = vand.u32 %v5994, 4294901760
    %v6282 = vsub.f32 %v5994, %v6281
    %6283 = vmatpush.msra.mxu0 %v6282
    %v6284 = vand.u32 %v5993, 4294901760
    %v6285 = vsub.f32 %v5993, %v6284
    %6286 = vmatpush.msra.mxu0 %v6285
    %v6287 = vand.u32 %v5992, 4294901760
    %v6288 = vsub.f32 %v5992, %v6287
    %6289 = vmatpush.msra.mxu0 %v6288
    %v6290 = vand.u32 %v5991, 4294901760
    %v6291 = vsub.f32 %v5991, %v6290
    %6292 = vmatpush.msra.mxu0 %v6291
    %v6293 = vand.u32 %v5990, 4294901760
    %v6294 = vsub.f32 %v5990, %v6293
    %6295 = vmatpush.msra.mxu0 %v6294
    %v6296 = vand.u32 %v5989, 4294901760
    %v6297 = vsub.f32 %v5989, %v6296
    %6298 = vmatpush.msra.mxu0 %v6297
    %v6299 = vand.u32 %v5988, 4294901760
    %v6300 = vsub.f32 %v5988, %v6299
    %6301 = vmatpush.msra.mxu0 %v6300
    %v6302 = vand.u32 %v5987, 4294901760
    %v6303 = vsub.f32 %v5987, %v6302
    %6304 = vmatpush.msra.mxu0 %v6303
    %v6305 = vand.u32 %v5986, 4294901760
    %v6306 = vsub.f32 %v5986, %v6305
    %6307 = vmatpush.msra.mxu0 %v6306
    %v6308 = vand.u32 %v5985, 4294901760
    %v6309 = vsub.f32 %v5985, %v6308
    %6310 = vmatpush.msra.mxu0 %v6309
    %v6311 = vand.u32 %v5984, 4294901760
    %v6312 = vsub.f32 %v5984, %v6311
    %6313 = vmatpush.msra.mxu0 %v6312
    %v6314 = vand.u32 %v5983, 4294901760
    %v6315 = vsub.f32 %v5983, %v6314
    %6316 = vmatpush.msra.mxu0 %v6315
    %v6317 = vand.u32 %v5982, 4294901760
    %v6318 = vsub.f32 %v5982, %v6317
    %6319 = vmatpush.msra.mxu0 %v6318
    %v6320 = vand.u32 %v5981, 4294901760
    %v6321 = vsub.f32 %v5981, %v6320
    %6322 = vmatpush.msra.mxu0 %v6321
    %v6323 = vand.u32 %v5980, 4294901760
    %v6324 = vsub.f32 %v5980, %v6323
    %6325 = vmatpush.msra.mxu0 %v6324
    %v6326 = vand.u32 %v5964, 4294901760
    %v6327 = vsub.f32 %v5964, %v6326
    %6328 = vmatmul.f32.gmra.mxu0 %v6327
    %v6329 = vpop.f32.mrf.mxu0
    %v6330 = vadd.f32 %v6272, %v6329
    %v6331 = vand.u32 %v5972, 4294901760
    %v6332 = vsub.f32 %v5972, %v6331
    %6333 = vmatmul.f32.gmra.mxu0 %v6332
    %v6334 = vpop.f32.mrf.mxu0
    %v6335 = vadd.f32 %v6276, %v6334
    %6336 = vdwg.mxu0
    %v6337 = vand.u32 %v5995, 4294901760
    %6338 = vmatpush.msra.mxu0 %v6337
    %v6339 = vand.u32 %v5994, 4294901760
    %6340 = vmatpush.msra.mxu0 %v6339
    %v6341 = vand.u32 %v5993, 4294901760
    %6342 = vmatpush.msra.mxu0 %v6341
    %v6343 = vand.u32 %v5992, 4294901760
    %6344 = vmatpush.msra.mxu0 %v6343
    %v6345 = vand.u32 %v5991, 4294901760
    %6346 = vmatpush.msra.mxu0 %v6345
    %v6347 = vand.u32 %v5990, 4294901760
    %6348 = vmatpush.msra.mxu0 %v6347
    %v6349 = vand.u32 %v5989, 4294901760
    %6350 = vmatpush.msra.mxu0 %v6349
    %v6351 = vand.u32 %v5988, 4294901760
    %6352 = vmatpush.msra.mxu0 %v6351
    %v6353 = vand.u32 %v5987, 4294901760
    %6354 = vmatpush.msra.mxu0 %v6353
    %v6355 = vand.u32 %v5986, 4294901760
    %6356 = vmatpush.msra.mxu0 %v6355
    %v6357 = vand.u32 %v5985, 4294901760
    %6358 = vmatpush.msra.mxu0 %v6357
    %v6359 = vand.u32 %v5984, 4294901760
    %6360 = vmatpush.msra.mxu0 %v6359
    %v6361 = vand.u32 %v5983, 4294901760
    %6362 = vmatpush.msra.mxu0 %v6361
    %v6363 = vand.u32 %v5982, 4294901760
    %6364 = vmatpush.msra.mxu0 %v6363
    %v6365 = vand.u32 %v5981, 4294901760
    %6366 = vmatpush.msra.mxu0 %v6365
    %v6367 = vand.u32 %v5980, 4294901760
    %6368 = vmatpush.msra.mxu0 %v6367
    %v6369 = vand.u32 %v5964, 4294901760
    %v6370 = vsub.f32 %v5964, %v6369
    %v6371 = vand.u32 %v6370, 4294901760
    %6372 = vmatmul.f32.gmra.mxu0 %v6371
    %v6373 = vpop.f32.mrf.mxu0
    %v6374 = vadd.f32 %v6330, %v6373
    %v6375 = vand.u32 %v5972, 4294901760
    %v6376 = vsub.f32 %v5972, %v6375
    %v6377 = vand.u32 %v6376, 4294901760
    %6378 = vmatmul.f32.gmra.mxu0 %v6377
    %v6379 = vpop.f32.mrf.mxu0
    %v6380 = vadd.f32 %v6335, %v6379
    %6381 = vdwg.mxu0
    %v6382 = vand.u32 %v5995, 4294901760
    %v6383 = vsub.f32 %v5995, %v6382
    %v6384 = vand.u32 %v6383, 4294901760
    %6385 = vmatpush.msra.mxu0 %v6384
    %v6386 = vand.u32 %v5994, 4294901760
    %v6387 = vsub.f32 %v5994, %v6386
    %v6388 = vand.u32 %v6387, 4294901760
    %6389 = vmatpush.msra.mxu0 %v6388
    %v6390 = vand.u32 %v5993, 4294901760
    %v6391 = vsub.f32 %v5993, %v6390
    %v6392 = vand.u32 %v6391, 4294901760
    %6393 = vmatpush.msra.mxu0 %v6392
    %v6394 = vand.u32 %v5992, 4294901760
    %v6395 = vsub.f32 %v5992, %v6394
    %v6396 = vand.u32 %v6395, 4294901760
    %6397 = vmatpush.msra.mxu0 %v6396
    %v6398 = vand.u32 %v5991, 4294901760
    %v6399 = vsub.f32 %v5991, %v6398
    %v6400 = vand.u32 %v6399, 4294901760
    %6401 = vmatpush.msra.mxu0 %v6400
    %v6402 = vand.u32 %v5990, 4294901760
    %v6403 = vsub.f32 %v5990, %v6402
    %v6404 = vand.u32 %v6403, 4294901760
    %6405 = vmatpush.msra.mxu0 %v6404
    %v6406 = vand.u32 %v5989, 4294901760
    %v6407 = vsub.f32 %v5989, %v6406
    %v6408 = vand.u32 %v6407, 4294901760
    %6409 = vmatpush.msra.mxu0 %v6408
    %v6410 = vand.u32 %v5988, 4294901760
    %v6411 = vsub.f32 %v5988, %v6410
    %v6412 = vand.u32 %v6411, 4294901760
    %6413 = vmatpush.msra.mxu0 %v6412
    %v6414 = vand.u32 %v5987, 4294901760
    %v6415 = vsub.f32 %v5987, %v6414
    %v6416 = vand.u32 %v6415, 4294901760
    %6417 = vmatpush.msra.mxu0 %v6416
    %v6418 = vand.u32 %v5986, 4294901760
    %v6419 = vsub.f32 %v5986, %v6418
    %v6420 = vand.u32 %v6419, 4294901760
    %6421 = vmatpush.msra.mxu0 %v6420
    %v6422 = vand.u32 %v5985, 4294901760
    %v6423 = vsub.f32 %v5985, %v6422
    %v6424 = vand.u32 %v6423, 4294901760
    %6425 = vmatpush.msra.mxu0 %v6424
    %v6426 = vand.u32 %v5984, 4294901760
    %v6427 = vsub.f32 %v5984, %v6426
    %v6428 = vand.u32 %v6427, 4294901760
    %6429 = vmatpush.msra.mxu0 %v6428
    %v6430 = vand.u32 %v5983, 4294901760
    %v6431 = vsub.f32 %v5983, %v6430
    %v6432 = vand.u32 %v6431, 4294901760
    %6433 = vmatpush.msra.mxu0 %v6432
    %v6434 = vand.u32 %v5982, 4294901760
    %v6435 = vsub.f32 %v5982, %v6434
    %v6436 = vand.u32 %v6435, 4294901760
    %6437 = vmatpush.msra.mxu0 %v6436
    %v6438 = vand.u32 %v5981, 4294901760
    %v6439 = vsub.f32 %v5981, %v6438
    %v6440 = vand.u32 %v6439, 4294901760
    %6441 = vmatpush.msra.mxu0 %v6440
    %v6442 = vand.u32 %v5980, 4294901760
    %v6443 = vsub.f32 %v5980, %v6442
    %v6444 = vand.u32 %v6443, 4294901760
    %6445 = vmatpush.msra.mxu0 %v6444
    %v6446 = vand.u32 %v5964, 4294901760
    %6447 = vmatmul.f32.gmra.mxu0 %v6446
    %v6448 = vpop.f32.mrf.mxu0
    %v6449 = vadd.f32 %v6374, %v6448
    %v6450 = vand.u32 %v5972, 4294901760
    %6451 = vmatmul.f32.gmra.mxu0 %v6450
    %v6452 = vpop.f32.mrf.mxu0
    %v6453 = vadd.f32 %v6380, %v6452
    %6454 = vdwg.mxu0
    %v6455 = vand.u32 %v5995, 4294901760
    %6456 = vmatpush.msra.mxu0 %v6455
    %v6457 = vand.u32 %v5994, 4294901760
    %6458 = vmatpush.msra.mxu0 %v6457
    %v6459 = vand.u32 %v5993, 4294901760
    %6460 = vmatpush.msra.mxu0 %v6459
    %v6461 = vand.u32 %v5992, 4294901760
    %6462 = vmatpush.msra.mxu0 %v6461
    %v6463 = vand.u32 %v5991, 4294901760
    %6464 = vmatpush.msra.mxu0 %v6463
    %v6465 = vand.u32 %v5990, 4294901760
    %6466 = vmatpush.msra.mxu0 %v6465
    %v6467 = vand.u32 %v5989, 4294901760
    %6468 = vmatpush.msra.mxu0 %v6467
    %v6469 = vand.u32 %v5988, 4294901760
    %6470 = vmatpush.msra.mxu0 %v6469
    %v6471 = vand.u32 %v5987, 4294901760
    %6472 = vmatpush.msra.mxu0 %v6471
    %v6473 = vand.u32 %v5986, 4294901760
    %6474 = vmatpush.msra.mxu0 %v6473
    %v6475 = vand.u32 %v5985, 4294901760
    %6476 = vmatpush.msra.mxu0 %v6475
    %v6477 = vand.u32 %v5984, 4294901760
    %6478 = vmatpush.msra.mxu0 %v6477
    %v6479 = vand.u32 %v5983, 4294901760
    %6480 = vmatpush.msra.mxu0 %v6479
    %v6481 = vand.u32 %v5982, 4294901760
    %6482 = vmatpush.msra.mxu0 %v6481
    %v6483 = vand.u32 %v5981, 4294901760
    %6484 = vmatpush.msra.mxu0 %v6483
    %v6485 = vand.u32 %v5980, 4294901760
    %6486 = vmatpush.msra.mxu0 %v6485
    %v6487 = vand.u32 %v5964, 4294901760
    %6488 = vmatmul.f32.gmra.mxu0 %v6487
    %v6489 = vpop.f32.mrf.mxu0
    %v6490 = vadd.f32 %v6449, %v6489
    %v6491 = vand.u32 %v5972, 4294901760
    %6492 = vmatmul.f32.gmra.mxu0 %v6491
    %v6493 = vpop.f32.mrf.mxu0
    %v6494 = vadd.f32 %v6453, %v6493
    %6495 = vdwg.mxu0
    %v6496 = vand.u32 %v6011, 4294901760
    %6497 = vmatpush.msra.mxu0 %v6496
    %v6498 = vand.u32 %v6010, 4294901760
    %6499 = vmatpush.msra.mxu0 %v6498
    %v6500 = vand.u32 %v6009, 4294901760
    %6501 = vmatpush.msra.mxu0 %v6500
    %v6502 = vand.u32 %v6008, 4294901760
    %6503 = vmatpush.msra.mxu0 %v6502
    %v6504 = vand.u32 %v6007, 4294901760
    %6505 = vmatpush.msra.mxu0 %v6504
    %v6506 = vand.u32 %v6006, 4294901760
    %6507 = vmatpush.msra.mxu0 %v6506
    %v6508 = vand.u32 %v6005, 4294901760
    %6509 = vmatpush.msra.mxu0 %v6508
    %v6510 = vand.u32 %v6004, 4294901760
    %6511 = vmatpush.msra.mxu0 %v6510
    %v6512 = vand.u32 %v6003, 4294901760
    %6513 = vmatpush.msra.mxu0 %v6512
    %v6514 = vand.u32 %v6002, 4294901760
    %6515 = vmatpush.msra.mxu0 %v6514
    %v6516 = vand.u32 %v6001, 4294901760
    %6517 = vmatpush.msra.mxu0 %v6516
    %v6518 = vand.u32 %v6000, 4294901760
    %6519 = vmatpush.msra.mxu0 %v6518
    %v6520 = vand.u32 %v5999, 4294901760
    %6521 = vmatpush.msra.mxu0 %v6520
    %v6522 = vand.u32 %v5998, 4294901760
    %6523 = vmatpush.msra.mxu0 %v6522
    %v6524 = vand.u32 %v5997, 4294901760
    %6525 = vmatpush.msra.mxu0 %v6524
    %v6526 = vand.u32 %v5996, 4294901760
    %6527 = vmatpush.msra.mxu0 %v6526
    %v6528 = vand.u32 %v5965, 4294901760
    %v6529 = vsub.f32 %v5965, %v6528
    %v6530 = vand.u32 %v6529, 4294901760
    %v6531 = vsub.f32 %v6529, %v6530
    %v6532 = vand.u32 %v6531, 4294901760
    %6533 = vmatmul.f32.gmra.mxu0 %v6532
    %v6534 = vpop.f32.mrf.mxu0
    %v6535 = vadd.f32 %v6490, %v6534
    %v6536 = vand.u32 %v5973, 4294901760
    %v6537 = vsub.f32 %v5973, %v6536
    %v6538 = vand.u32 %v6537, 4294901760
    %v6539 = vsub.f32 %v6537, %v6538
    %v6540 = vand.u32 %v6539, 4294901760
    %6541 = vmatmul.f32.gmra.mxu0 %v6540
    %v6542 = vpop.f32.mrf.mxu0
    %v6543 = vadd.f32 %v6494, %v6542
    %6544 = vdwg.mxu0
    %v6545 = vand.u32 %v6011, 4294901760
    %v6546 = vsub.f32 %v6011, %v6545
    %v6547 = vand.u32 %v6546, 4294901760
    %v6548 = vsub.f32 %v6546, %v6547
    %v6549 = vand.u32 %v6548, 4294901760
    %6550 = vmatpush.msra.mxu0 %v6549
    %v6551 = vand.u32 %v6010, 4294901760
    %v6552 = vsub.f32 %v6010, %v6551
    %v6553 = vand.u32 %v6552, 4294901760
    %v6554 = vsub.f32 %v6552, %v6553
    %v6555 = vand.u32 %v6554, 4294901760
    %6556 = vmatpush.msra.mxu0 %v6555
    %v6557 = vand.u32 %v6009, 4294901760
    %v6558 = vsub.f32 %v6009, %v6557
    %v6559 = vand.u32 %v6558, 4294901760
    %v6560 = vsub.f32 %v6558, %v6559
    %v6561 = vand.u32 %v6560, 4294901760
    %6562 = vmatpush.msra.mxu0 %v6561
    %v6563 = vand.u32 %v6008, 4294901760
    %v6564 = vsub.f32 %v6008, %v6563
    %v6565 = vand.u32 %v6564, 4294901760
    %v6566 = vsub.f32 %v6564, %v6565
    %v6567 = vand.u32 %v6566, 4294901760
    %6568 = vmatpush.msra.mxu0 %v6567
    %v6569 = vand.u32 %v6007, 4294901760
    %v6570 = vsub.f32 %v6007, %v6569
    %v6571 = vand.u32 %v6570, 4294901760
    %v6572 = vsub.f32 %v6570, %v6571
    %v6573 = vand.u32 %v6572, 4294901760
    %6574 = vmatpush.msra.mxu0 %v6573
    %v6575 = vand.u32 %v6006, 4294901760
    %v6576 = vsub.f32 %v6006, %v6575
    %v6577 = vand.u32 %v6576, 4294901760
    %v6578 = vsub.f32 %v6576, %v6577
    %v6579 = vand.u32 %v6578, 4294901760
    %6580 = vmatpush.msra.mxu0 %v6579
    %v6581 = vand.u32 %v6005, 4294901760
    %v6582 = vsub.f32 %v6005, %v6581
    %v6583 = vand.u32 %v6582, 4294901760
    %v6584 = vsub.f32 %v6582, %v6583
    %v6585 = vand.u32 %v6584, 4294901760
    %6586 = vmatpush.msra.mxu0 %v6585
    %v6587 = vand.u32 %v6004, 4294901760
    %v6588 = vsub.f32 %v6004, %v6587
    %v6589 = vand.u32 %v6588, 4294901760
    %v6590 = vsub.f32 %v6588, %v6589
    %v6591 = vand.u32 %v6590, 4294901760
    %6592 = vmatpush.msra.mxu0 %v6591
    %v6593 = vand.u32 %v6003, 4294901760
    %v6594 = vsub.f32 %v6003, %v6593
    %v6595 = vand.u32 %v6594, 4294901760
    %v6596 = vsub.f32 %v6594, %v6595
    %v6597 = vand.u32 %v6596, 4294901760
    %6598 = vmatpush.msra.mxu0 %v6597
    %v6599 = vand.u32 %v6002, 4294901760
    %v6600 = vsub.f32 %v6002, %v6599
    %v6601 = vand.u32 %v6600, 4294901760
    %v6602 = vsub.f32 %v6600, %v6601
    %v6603 = vand.u32 %v6602, 4294901760
    %6604 = vmatpush.msra.mxu0 %v6603
    %v6605 = vand.u32 %v6001, 4294901760
    %v6606 = vsub.f32 %v6001, %v6605
    %v6607 = vand.u32 %v6606, 4294901760
    %v6608 = vsub.f32 %v6606, %v6607
    %v6609 = vand.u32 %v6608, 4294901760
    %6610 = vmatpush.msra.mxu0 %v6609
    %v6611 = vand.u32 %v6000, 4294901760
    %v6612 = vsub.f32 %v6000, %v6611
    %v6613 = vand.u32 %v6612, 4294901760
    %v6614 = vsub.f32 %v6612, %v6613
    %v6615 = vand.u32 %v6614, 4294901760
    %6616 = vmatpush.msra.mxu0 %v6615
    %v6617 = vand.u32 %v5999, 4294901760
    %v6618 = vsub.f32 %v5999, %v6617
    %v6619 = vand.u32 %v6618, 4294901760
    %v6620 = vsub.f32 %v6618, %v6619
    %v6621 = vand.u32 %v6620, 4294901760
    %6622 = vmatpush.msra.mxu0 %v6621
    %v6623 = vand.u32 %v5998, 4294901760
    %v6624 = vsub.f32 %v5998, %v6623
    %v6625 = vand.u32 %v6624, 4294901760
    %v6626 = vsub.f32 %v6624, %v6625
    %v6627 = vand.u32 %v6626, 4294901760
    %6628 = vmatpush.msra.mxu0 %v6627
    %v6629 = vand.u32 %v5997, 4294901760
    %v6630 = vsub.f32 %v5997, %v6629
    %v6631 = vand.u32 %v6630, 4294901760
    %v6632 = vsub.f32 %v6630, %v6631
    %v6633 = vand.u32 %v6632, 4294901760
    %6634 = vmatpush.msra.mxu0 %v6633
    %v6635 = vand.u32 %v5996, 4294901760
    %v6636 = vsub.f32 %v5996, %v6635
    %v6637 = vand.u32 %v6636, 4294901760
    %v6638 = vsub.f32 %v6636, %v6637
    %v6639 = vand.u32 %v6638, 4294901760
    %6640 = vmatpush.msra.mxu0 %v6639
    %v6641 = vand.u32 %v5965, 4294901760
    %6642 = vmatmul.f32.gmra.mxu0 %v6641
    %v6643 = vpop.f32.mrf.mxu0
    %v6644 = vadd.f32 %v6535, %v6643
    %v6645 = vand.u32 %v5973, 4294901760
    %6646 = vmatmul.f32.gmra.mxu0 %v6645
    %v6647 = vpop.f32.mrf.mxu0
    %v6648 = vadd.f32 %v6543, %v6647
    %6649 = vdwg.mxu0
    %v6650 = vand.u32 %v6011, 4294901760
    %v6651 = vsub.f32 %v6011, %v6650
    %6652 = vmatpush.msra.mxu0 %v6651
    %v6653 = vand.u32 %v6010, 4294901760
    %v6654 = vsub.f32 %v6010, %v6653
    %6655 = vmatpush.msra.mxu0 %v6654
    %v6656 = vand.u32 %v6009, 4294901760
    %v6657 = vsub.f32 %v6009, %v6656
    %6658 = vmatpush.msra.mxu0 %v6657
    %v6659 = vand.u32 %v6008, 4294901760
    %v6660 = vsub.f32 %v6008, %v6659
    %6661 = vmatpush.msra.mxu0 %v6660
    %v6662 = vand.u32 %v6007, 4294901760
    %v6663 = vsub.f32 %v6007, %v6662
    %6664 = vmatpush.msra.mxu0 %v6663
    %v6665 = vand.u32 %v6006, 4294901760
    %v6666 = vsub.f32 %v6006, %v6665
    %6667 = vmatpush.msra.mxu0 %v6666
    %v6668 = vand.u32 %v6005, 4294901760
    %v6669 = vsub.f32 %v6005, %v6668
    %6670 = vmatpush.msra.mxu0 %v6669
    %v6671 = vand.u32 %v6004, 4294901760
    %v6672 = vsub.f32 %v6004, %v6671
    %6673 = vmatpush.msra.mxu0 %v6672
    %v6674 = vand.u32 %v6003, 4294901760
    %v6675 = vsub.f32 %v6003, %v6674
    %6676 = vmatpush.msra.mxu0 %v6675
    %v6677 = vand.u32 %v6002, 4294901760
    %v6678 = vsub.f32 %v6002, %v6677
    %6679 = vmatpush.msra.mxu0 %v6678
    %v6680 = vand.u32 %v6001, 4294901760
    %v6681 = vsub.f32 %v6001, %v6680
    %6682 = vmatpush.msra.mxu0 %v6681
    %v6683 = vand.u32 %v6000, 4294901760
    %v6684 = vsub.f32 %v6000, %v6683
    %6685 = vmatpush.msra.mxu0 %v6684
    %v6686 = vand.u32 %v5999, 4294901760
    %v6687 = vsub.f32 %v5999, %v6686
    %6688 = vmatpush.msra.mxu0 %v6687
    %v6689 = vand.u32 %v5998, 4294901760
    %v6690 = vsub.f32 %v5998, %v6689
    %6691 = vmatpush.msra.mxu0 %v6690
    %v6692 = vand.u32 %v5997, 4294901760
    %v6693 = vsub.f32 %v5997, %v6692
    %6694 = vmatpush.msra.mxu0 %v6693
    %v6695 = vand.u32 %v5996, 4294901760
    %v6696 = vsub.f32 %v5996, %v6695
    %6697 = vmatpush.msra.mxu0 %v6696
    %v6698 = vand.u32 %v5965, 4294901760
    %v6699 = vsub.f32 %v5965, %v6698
    %6700 = vmatmul.f32.gmra.mxu0 %v6699
    %v6701 = vpop.f32.mrf.mxu0
    %v6702 = vadd.f32 %v6644, %v6701
    %v6703 = vand.u32 %v5973, 4294901760
    %v6704 = vsub.f32 %v5973, %v6703
    %6705 = vmatmul.f32.gmra.mxu0 %v6704
    %v6706 = vpop.f32.mrf.mxu0
    %v6707 = vadd.f32 %v6648, %v6706
    %6708 = vdwg.mxu0
    %v6709 = vand.u32 %v6011, 4294901760
    %6710 = vmatpush.msra.mxu0 %v6709
    %v6711 = vand.u32 %v6010, 4294901760
    %6712 = vmatpush.msra.mxu0 %v6711
    %v6713 = vand.u32 %v6009, 4294901760
    %6714 = vmatpush.msra.mxu0 %v6713
    %v6715 = vand.u32 %v6008, 4294901760
    %6716 = vmatpush.msra.mxu0 %v6715
    %v6717 = vand.u32 %v6007, 4294901760
    %6718 = vmatpush.msra.mxu0 %v6717
    %v6719 = vand.u32 %v6006, 4294901760
    %6720 = vmatpush.msra.mxu0 %v6719
    %v6721 = vand.u32 %v6005, 4294901760
    %6722 = vmatpush.msra.mxu0 %v6721
    %v6723 = vand.u32 %v6004, 4294901760
    %6724 = vmatpush.msra.mxu0 %v6723
    %v6725 = vand.u32 %v6003, 4294901760
    %6726 = vmatpush.msra.mxu0 %v6725
    %v6727 = vand.u32 %v6002, 4294901760
    %6728 = vmatpush.msra.mxu0 %v6727
    %v6729 = vand.u32 %v6001, 4294901760
    %6730 = vmatpush.msra.mxu0 %v6729
    %v6731 = vand.u32 %v6000, 4294901760
    %6732 = vmatpush.msra.mxu0 %v6731
    %v6733 = vand.u32 %v5999, 4294901760
    %6734 = vmatpush.msra.mxu0 %v6733
    %v6735 = vand.u32 %v5998, 4294901760
    %6736 = vmatpush.msra.mxu0 %v6735
    %v6737 = vand.u32 %v5997, 4294901760
    %6738 = vmatpush.msra.mxu0 %v6737
    %v6739 = vand.u32 %v5996, 4294901760
    %6740 = vmatpush.msra.mxu0 %v6739
    %v6741 = vand.u32 %v5965, 4294901760
    %v6742 = vsub.f32 %v5965, %v6741
    %v6743 = vand.u32 %v6742, 4294901760
    %6744 = vmatmul.f32.gmra.mxu0 %v6743
    %v6745 = vpop.f32.mrf.mxu0
    %v6746 = vadd.f32 %v6702, %v6745
    %v6747 = vand.u32 %v5973, 4294901760
    %v6748 = vsub.f32 %v5973, %v6747
    %v6749 = vand.u32 %v6748, 4294901760
    %6750 = vmatmul.f32.gmra.mxu0 %v6749
    %v6751 = vpop.f32.mrf.mxu0
    %v6752 = vadd.f32 %v6707, %v6751
    %6753 = vdwg.mxu0
    %v6754 = vand.u32 %v6011, 4294901760
    %v6755 = vsub.f32 %v6011, %v6754
    %v6756 = vand.u32 %v6755, 4294901760
    %6757 = vmatpush.msra.mxu0 %v6756
    %v6758 = vand.u32 %v6010, 4294901760
    %v6759 = vsub.f32 %v6010, %v6758
    %v6760 = vand.u32 %v6759, 4294901760
    %6761 = vmatpush.msra.mxu0 %v6760
    %v6762 = vand.u32 %v6009, 4294901760
    %v6763 = vsub.f32 %v6009, %v6762
    %v6764 = vand.u32 %v6763, 4294901760
    %6765 = vmatpush.msra.mxu0 %v6764
    %v6766 = vand.u32 %v6008, 4294901760
    %v6767 = vsub.f32 %v6008, %v6766
    %v6768 = vand.u32 %v6767, 4294901760
    %6769 = vmatpush.msra.mxu0 %v6768
    %v6770 = vand.u32 %v6007, 4294901760
    %v6771 = vsub.f32 %v6007, %v6770
    %v6772 = vand.u32 %v6771, 4294901760
    %6773 = vmatpush.msra.mxu0 %v6772
    %v6774 = vand.u32 %v6006, 4294901760
    %v6775 = vsub.f32 %v6006, %v6774
    %v6776 = vand.u32 %v6775, 4294901760
    %6777 = vmatpush.msra.mxu0 %v6776
    %v6778 = vand.u32 %v6005, 4294901760
    %v6779 = vsub.f32 %v6005, %v6778
    %v6780 = vand.u32 %v6779, 4294901760
    %6781 = vmatpush.msra.mxu0 %v6780
    %v6782 = vand.u32 %v6004, 4294901760
    %v6783 = vsub.f32 %v6004, %v6782
    %v6784 = vand.u32 %v6783, 4294901760
    %6785 = vmatpush.msra.mxu0 %v6784
    %v6786 = vand.u32 %v6003, 4294901760
    %v6787 = vsub.f32 %v6003, %v6786
    %v6788 = vand.u32 %v6787, 4294901760
    %6789 = vmatpush.msra.mxu0 %v6788
    %v6790 = vand.u32 %v6002, 4294901760
    %v6791 = vsub.f32 %v6002, %v6790
    %v6792 = vand.u32 %v6791, 4294901760
    %6793 = vmatpush.msra.mxu0 %v6792
    %v6794 = vand.u32 %v6001, 4294901760
    %v6795 = vsub.f32 %v6001, %v6794
    %v6796 = vand.u32 %v6795, 4294901760
    %6797 = vmatpush.msra.mxu0 %v6796
    %v6798 = vand.u32 %v6000, 4294901760
    %v6799 = vsub.f32 %v6000, %v6798
    %v6800 = vand.u32 %v6799, 4294901760
    %6801 = vmatpush.msra.mxu0 %v6800
    %v6802 = vand.u32 %v5999, 4294901760
    %v6803 = vsub.f32 %v5999, %v6802
    %v6804 = vand.u32 %v6803, 4294901760
    %6805 = vmatpush.msra.mxu0 %v6804
    %v6806 = vand.u32 %v5998, 4294901760
    %v6807 = vsub.f32 %v5998, %v6806
    %v6808 = vand.u32 %v6807, 4294901760
    %6809 = vmatpush.msra.mxu0 %v6808
    %v6810 = vand.u32 %v5997, 4294901760
    %v6811 = vsub.f32 %v5997, %v6810
    %v6812 = vand.u32 %v6811, 4294901760
    %6813 = vmatpush.msra.mxu0 %v6812
    %v6814 = vand.u32 %v5996, 4294901760
    %v6815 = vsub.f32 %v5996, %v6814
    %v6816 = vand.u32 %v6815, 4294901760
    %6817 = vmatpush.msra.mxu0 %v6816
    %v6818 = vand.u32 %v5965, 4294901760
    %6819 = vmatmul.f32.gmra.mxu0 %v6818
    %v6820 = vpop.f32.mrf.mxu0
    %v6821 = vadd.f32 %v6746, %v6820
    %v6822 = vand.u32 %v5973, 4294901760
    %6823 = vmatmul.f32.gmra.mxu0 %v6822
    %v6824 = vpop.f32.mrf.mxu0
    %v6825 = vadd.f32 %v6752, %v6824
    %6826 = vdwg.mxu0
    %v6827 = vand.u32 %v6011, 4294901760
    %6828 = vmatpush.msra.mxu0 %v6827
    %v6829 = vand.u32 %v6010, 4294901760
    %6830 = vmatpush.msra.mxu0 %v6829
    %v6831 = vand.u32 %v6009, 4294901760
    %6832 = vmatpush.msra.mxu0 %v6831
    %v6833 = vand.u32 %v6008, 4294901760
    %6834 = vmatpush.msra.mxu0 %v6833
    %v6835 = vand.u32 %v6007, 4294901760
    %6836 = vmatpush.msra.mxu0 %v6835
    %v6837 = vand.u32 %v6006, 4294901760
    %6838 = vmatpush.msra.mxu0 %v6837
    %v6839 = vand.u32 %v6005, 4294901760
    %6840 = vmatpush.msra.mxu0 %v6839
    %v6841 = vand.u32 %v6004, 4294901760
    %6842 = vmatpush.msra.mxu0 %v6841
    %v6843 = vand.u32 %v6003, 4294901760
    %6844 = vmatpush.msra.mxu0 %v6843
    %v6845 = vand.u32 %v6002, 4294901760
    %6846 = vmatpush.msra.mxu0 %v6845
    %v6847 = vand.u32 %v6001, 4294901760
    %6848 = vmatpush.msra.mxu0 %v6847
    %v6849 = vand.u32 %v6000, 4294901760
    %6850 = vmatpush.msra.mxu0 %v6849
    %v6851 = vand.u32 %v5999, 4294901760
    %6852 = vmatpush.msra.mxu0 %v6851
    %v6853 = vand.u32 %v5998, 4294901760
    %6854 = vmatpush.msra.mxu0 %v6853
    %v6855 = vand.u32 %v5997, 4294901760
    %6856 = vmatpush.msra.mxu0 %v6855
    %v6857 = vand.u32 %v5996, 4294901760
    %6858 = vmatpush.msra.mxu0 %v6857
    %v6859 = vand.u32 %v5965, 4294901760
    %6860 = vmatmul.f32.gmra.mxu0 %v6859
    %v6861 = vpop.f32.mrf.mxu0
    %v6862 = vadd.f32 %v6821, %v6861
    %v6863 = vand.u32 %v5973, 4294901760
    %6864 = vmatmul.f32.gmra.mxu0 %v6863
    %v6865 = vpop.f32.mrf.mxu0
    %v6866 = vadd.f32 %v6825, %v6865
    %6867 = vdwg.mxu0
    %v6868 = vand.u32 %v6027, 4294901760
    %6869 = vmatpush.msra.mxu0 %v6868
    %v6870 = vand.u32 %v6026, 4294901760
    %6871 = vmatpush.msra.mxu0 %v6870
    %v6872 = vand.u32 %v6025, 4294901760
    %6873 = vmatpush.msra.mxu0 %v6872
    %v6874 = vand.u32 %v6024, 4294901760
    %6875 = vmatpush.msra.mxu0 %v6874
    %v6876 = vand.u32 %v6023, 4294901760
    %6877 = vmatpush.msra.mxu0 %v6876
    %v6878 = vand.u32 %v6022, 4294901760
    %6879 = vmatpush.msra.mxu0 %v6878
    %v6880 = vand.u32 %v6021, 4294901760
    %6881 = vmatpush.msra.mxu0 %v6880
    %v6882 = vand.u32 %v6020, 4294901760
    %6883 = vmatpush.msra.mxu0 %v6882
    %v6884 = vand.u32 %v6019, 4294901760
    %6885 = vmatpush.msra.mxu0 %v6884
    %v6886 = vand.u32 %v6018, 4294901760
    %6887 = vmatpush.msra.mxu0 %v6886
    %v6888 = vand.u32 %v6017, 4294901760
    %6889 = vmatpush.msra.mxu0 %v6888
    %v6890 = vand.u32 %v6016, 4294901760
    %6891 = vmatpush.msra.mxu0 %v6890
    %v6892 = vand.u32 %v6015, 4294901760
    %6893 = vmatpush.msra.mxu0 %v6892
    %v6894 = vand.u32 %v6014, 4294901760
    %6895 = vmatpush.msra.mxu0 %v6894
    %v6896 = vand.u32 %v6013, 4294901760
    %6897 = vmatpush.msra.mxu0 %v6896
    %v6898 = vand.u32 %v6012, 4294901760
    %6899 = vmatpush.msra.mxu0 %v6898
    %v6900 = vand.u32 %v5966, 4294901760
    %v6901 = vsub.f32 %v5966, %v6900
    %v6902 = vand.u32 %v6901, 4294901760
    %v6903 = vsub.f32 %v6901, %v6902
    %v6904 = vand.u32 %v6903, 4294901760
    %6905 = vmatmul.f32.gmra.mxu0 %v6904
    %v6906 = vpop.f32.mrf.mxu0
    %v6907 = vadd.f32 %v6862, %v6906
    %v6908 = vand.u32 %v5974, 4294901760
    %v6909 = vsub.f32 %v5974, %v6908
    %v6910 = vand.u32 %v6909, 4294901760
    %v6911 = vsub.f32 %v6909, %v6910
    %v6912 = vand.u32 %v6911, 4294901760
    %6913 = vmatmul.f32.gmra.mxu0 %v6912
    %v6914 = vpop.f32.mrf.mxu0
    %v6915 = vadd.f32 %v6866, %v6914
    %6916 = vdwg.mxu0
    %v6917 = vand.u32 %v6027, 4294901760
    %v6918 = vsub.f32 %v6027, %v6917
    %v6919 = vand.u32 %v6918, 4294901760
    %v6920 = vsub.f32 %v6918, %v6919
    %v6921 = vand.u32 %v6920, 4294901760
    %6922 = vmatpush.msra.mxu0 %v6921
    %v6923 = vand.u32 %v6026, 4294901760
    %v6924 = vsub.f32 %v6026, %v6923
    %v6925 = vand.u32 %v6924, 4294901760
    %v6926 = vsub.f32 %v6924, %v6925
    %v6927 = vand.u32 %v6926, 4294901760
    %6928 = vmatpush.msra.mxu0 %v6927
    %v6929 = vand.u32 %v6025, 4294901760
    %v6930 = vsub.f32 %v6025, %v6929
    %v6931 = vand.u32 %v6930, 4294901760
    %v6932 = vsub.f32 %v6930, %v6931
    %v6933 = vand.u32 %v6932, 4294901760
    %6934 = vmatpush.msra.mxu0 %v6933
    %v6935 = vand.u32 %v6024, 4294901760
    %v6936 = vsub.f32 %v6024, %v6935
    %v6937 = vand.u32 %v6936, 4294901760
    %v6938 = vsub.f32 %v6936, %v6937
    %v6939 = vand.u32 %v6938, 4294901760
    %6940 = vmatpush.msra.mxu0 %v6939
    %v6941 = vand.u32 %v6023, 4294901760
    %v6942 = vsub.f32 %v6023, %v6941
    %v6943 = vand.u32 %v6942, 4294901760
    %v6944 = vsub.f32 %v6942, %v6943
    %v6945 = vand.u32 %v6944, 4294901760
    %6946 = vmatpush.msra.mxu0 %v6945
    %v6947 = vand.u32 %v6022, 4294901760
    %v6948 = vsub.f32 %v6022, %v6947
    %v6949 = vand.u32 %v6948, 4294901760
    %v6950 = vsub.f32 %v6948, %v6949
    %v6951 = vand.u32 %v6950, 4294901760
    %6952 = vmatpush.msra.mxu0 %v6951
    %v6953 = vand.u32 %v6021, 4294901760
    %v6954 = vsub.f32 %v6021, %v6953
    %v6955 = vand.u32 %v6954, 4294901760
    %v6956 = vsub.f32 %v6954, %v6955
    %v6957 = vand.u32 %v6956, 4294901760
    %6958 = vmatpush.msra.mxu0 %v6957
    %v6959 = vand.u32 %v6020, 4294901760
    %v6960 = vsub.f32 %v6020, %v6959
    %v6961 = vand.u32 %v6960, 4294901760
    %v6962 = vsub.f32 %v6960, %v6961
    %v6963 = vand.u32 %v6962, 4294901760
    %6964 = vmatpush.msra.mxu0 %v6963
    %v6965 = vand.u32 %v6019, 4294901760
    %v6966 = vsub.f32 %v6019, %v6965
    %v6967 = vand.u32 %v6966, 4294901760
    %v6968 = vsub.f32 %v6966, %v6967
    %v6969 = vand.u32 %v6968, 4294901760
    %6970 = vmatpush.msra.mxu0 %v6969
    %v6971 = vand.u32 %v6018, 4294901760
    %v6972 = vsub.f32 %v6018, %v6971
    %v6973 = vand.u32 %v6972, 4294901760
    %v6974 = vsub.f32 %v6972, %v6973
    %v6975 = vand.u32 %v6974, 4294901760
    %6976 = vmatpush.msra.mxu0 %v6975
    %v6977 = vand.u32 %v6017, 4294901760
    %v6978 = vsub.f32 %v6017, %v6977
    %v6979 = vand.u32 %v6978, 4294901760
    %v6980 = vsub.f32 %v6978, %v6979
    %v6981 = vand.u32 %v6980, 4294901760
    %6982 = vmatpush.msra.mxu0 %v6981
    %v6983 = vand.u32 %v6016, 4294901760
    %v6984 = vsub.f32 %v6016, %v6983
    %v6985 = vand.u32 %v6984, 4294901760
    %v6986 = vsub.f32 %v6984, %v6985
    %v6987 = vand.u32 %v6986, 4294901760
    %6988 = vmatpush.msra.mxu0 %v6987
    %v6989 = vand.u32 %v6015, 4294901760
    %v6990 = vsub.f32 %v6015, %v6989
    %v6991 = vand.u32 %v6990, 4294901760
    %v6992 = vsub.f32 %v6990, %v6991
    %v6993 = vand.u32 %v6992, 4294901760
    %6994 = vmatpush.msra.mxu0 %v6993
    %v6995 = vand.u32 %v6014, 4294901760
    %v6996 = vsub.f32 %v6014, %v6995
    %v6997 = vand.u32 %v6996, 4294901760
    %v6998 = vsub.f32 %v6996, %v6997
    %v6999 = vand.u32 %v6998, 4294901760
    %7000 = vmatpush.msra.mxu0 %v6999
    %v7001 = vand.u32 %v6013, 4294901760
    %v7002 = vsub.f32 %v6013, %v7001
    %v7003 = vand.u32 %v7002, 4294901760
    %v7004 = vsub.f32 %v7002, %v7003
    %v7005 = vand.u32 %v7004, 4294901760
    %7006 = vmatpush.msra.mxu0 %v7005
    %v7007 = vand.u32 %v6012, 4294901760
    %v7008 = vsub.f32 %v6012, %v7007
    %v7009 = vand.u32 %v7008, 4294901760
    %v7010 = vsub.f32 %v7008, %v7009
    %v7011 = vand.u32 %v7010, 4294901760
    %7012 = vmatpush.msra.mxu0 %v7011
    %v7013 = vand.u32 %v5966, 4294901760
    %7014 = vmatmul.f32.gmra.mxu0 %v7013
    %v7015 = vpop.f32.mrf.mxu0
    %v7016 = vadd.f32 %v6907, %v7015
    %v7017 = vand.u32 %v5974, 4294901760
    %7018 = vmatmul.f32.gmra.mxu0 %v7017
    %v7019 = vpop.f32.mrf.mxu0
    %v7020 = vadd.f32 %v6915, %v7019
    %7021 = vdwg.mxu0
    %v7022 = vand.u32 %v6027, 4294901760
    %v7023 = vsub.f32 %v6027, %v7022
    %7024 = vmatpush.msra.mxu0 %v7023
    %v7025 = vand.u32 %v6026, 4294901760
    %v7026 = vsub.f32 %v6026, %v7025
    %7027 = vmatpush.msra.mxu0 %v7026
    %v7028 = vand.u32 %v6025, 4294901760
    %v7029 = vsub.f32 %v6025, %v7028
    %7030 = vmatpush.msra.mxu0 %v7029
    %v7031 = vand.u32 %v6024, 4294901760
    %v7032 = vsub.f32 %v6024, %v7031
    %7033 = vmatpush.msra.mxu0 %v7032
    %v7034 = vand.u32 %v6023, 4294901760
    %v7035 = vsub.f32 %v6023, %v7034
    %7036 = vmatpush.msra.mxu0 %v7035
    %v7037 = vand.u32 %v6022, 4294901760
    %v7038 = vsub.f32 %v6022, %v7037
    %7039 = vmatpush.msra.mxu0 %v7038
    %v7040 = vand.u32 %v6021, 4294901760
    %v7041 = vsub.f32 %v6021, %v7040
    %7042 = vmatpush.msra.mxu0 %v7041
    %v7043 = vand.u32 %v6020, 4294901760
    %v7044 = vsub.f32 %v6020, %v7043
    %7045 = vmatpush.msra.mxu0 %v7044
    %v7046 = vand.u32 %v6019, 4294901760
    %v7047 = vsub.f32 %v6019, %v7046
    %7048 = vmatpush.msra.mxu0 %v7047
    %v7049 = vand.u32 %v6018, 4294901760
    %v7050 = vsub.f32 %v6018, %v7049
    %7051 = vmatpush.msra.mxu0 %v7050
    %v7052 = vand.u32 %v6017, 4294901760
    %v7053 = vsub.f32 %v6017, %v7052
    %7054 = vmatpush.msra.mxu0 %v7053
    %v7055 = vand.u32 %v6016, 4294901760
    %v7056 = vsub.f32 %v6016, %v7055
    %7057 = vmatpush.msra.mxu0 %v7056
    %v7058 = vand.u32 %v6015, 4294901760
    %v7059 = vsub.f32 %v6015, %v7058
    %7060 = vmatpush.msra.mxu0 %v7059
    %v7061 = vand.u32 %v6014, 4294901760
    %v7062 = vsub.f32 %v6014, %v7061
    %7063 = vmatpush.msra.mxu0 %v7062
    %v7064 = vand.u32 %v6013, 4294901760
    %v7065 = vsub.f32 %v6013, %v7064
    %7066 = vmatpush.msra.mxu0 %v7065
    %v7067 = vand.u32 %v6012, 4294901760
    %v7068 = vsub.f32 %v6012, %v7067
    %7069 = vmatpush.msra.mxu0 %v7068
    %v7070 = vand.u32 %v5966, 4294901760
    %v7071 = vsub.f32 %v5966, %v7070
    %7072 = vmatmul.f32.gmra.mxu0 %v7071
    %v7073 = vpop.f32.mrf.mxu0
    %v7074 = vadd.f32 %v7016, %v7073
    %v7075 = vand.u32 %v5974, 4294901760
    %v7076 = vsub.f32 %v5974, %v7075
    %7077 = vmatmul.f32.gmra.mxu0 %v7076
    %v7078 = vpop.f32.mrf.mxu0
    %v7079 = vadd.f32 %v7020, %v7078
    %7080 = vdwg.mxu0
    %v7081 = vand.u32 %v6027, 4294901760
    %7082 = vmatpush.msra.mxu0 %v7081
    %v7083 = vand.u32 %v6026, 4294901760
    %7084 = vmatpush.msra.mxu0 %v7083
    %v7085 = vand.u32 %v6025, 4294901760
    %7086 = vmatpush.msra.mxu0 %v7085
    %v7087 = vand.u32 %v6024, 4294901760
    %7088 = vmatpush.msra.mxu0 %v7087
    %v7089 = vand.u32 %v6023, 4294901760
    %7090 = vmatpush.msra.mxu0 %v7089
    %v7091 = vand.u32 %v6022, 4294901760
    %7092 = vmatpush.msra.mxu0 %v7091
    %v7093 = vand.u32 %v6021, 4294901760
    %7094 = vmatpush.msra.mxu0 %v7093
    %v7095 = vand.u32 %v6020, 4294901760
    %7096 = vmatpush.msra.mxu0 %v7095
    %v7097 = vand.u32 %v6019, 4294901760
    %7098 = vmatpush.msra.mxu0 %v7097
    %v7099 = vand.u32 %v6018, 4294901760
    %7100 = vmatpush.msra.mxu0 %v7099
    %v7101 = vand.u32 %v6017, 4294901760
    %7102 = vmatpush.msra.mxu0 %v7101
    %v7103 = vand.u32 %v6016, 4294901760
    %7104 = vmatpush.msra.mxu0 %v7103
    %v7105 = vand.u32 %v6015, 4294901760
    %7106 = vmatpush.msra.mxu0 %v7105
    %v7107 = vand.u32 %v6014, 4294901760
    %7108 = vmatpush.msra.mxu0 %v7107
    %v7109 = vand.u32 %v6013, 4294901760
    %7110 = vmatpush.msra.mxu0 %v7109
    %v7111 = vand.u32 %v6012, 4294901760
    %7112 = vmatpush.msra.mxu0 %v7111
    %v7113 = vand.u32 %v5966, 4294901760
    %v7114 = vsub.f32 %v5966, %v7113
    %v7115 = vand.u32 %v7114, 4294901760
    %7116 = vmatmul.f32.gmra.mxu0 %v7115
    %v7117 = vpop.f32.mrf.mxu0
    %v7118 = vadd.f32 %v7074, %v7117
    %v7119 = vand.u32 %v5974, 4294901760
    %v7120 = vsub.f32 %v5974, %v7119
    %v7121 = vand.u32 %v7120, 4294901760
    %7122 = vmatmul.f32.gmra.mxu0 %v7121
    %v7123 = vpop.f32.mrf.mxu0
    %v7124 = vadd.f32 %v7079, %v7123
    %7125 = vdwg.mxu0
    %v7126 = vand.u32 %v6027, 4294901760
    %v7127 = vsub.f32 %v6027, %v7126
    %v7128 = vand.u32 %v7127, 4294901760
    %7129 = vmatpush.msra.mxu0 %v7128
    %v7130 = vand.u32 %v6026, 4294901760
    %v7131 = vsub.f32 %v6026, %v7130
    %v7132 = vand.u32 %v7131, 4294901760
    %7133 = vmatpush.msra.mxu0 %v7132
    %v7134 = vand.u32 %v6025, 4294901760
    %v7135 = vsub.f32 %v6025, %v7134
    %v7136 = vand.u32 %v7135, 4294901760
    %7137 = vmatpush.msra.mxu0 %v7136
    %v7138 = vand.u32 %v6024, 4294901760
    %v7139 = vsub.f32 %v6024, %v7138
    %v7140 = vand.u32 %v7139, 4294901760
    %7141 = vmatpush.msra.mxu0 %v7140
    %v7142 = vand.u32 %v6023, 4294901760
    %v7143 = vsub.f32 %v6023, %v7142
    %v7144 = vand.u32 %v7143, 4294901760
    %7145 = vmatpush.msra.mxu0 %v7144
    %v7146 = vand.u32 %v6022, 4294901760
    %v7147 = vsub.f32 %v6022, %v7146
    %v7148 = vand.u32 %v7147, 4294901760
    %7149 = vmatpush.msra.mxu0 %v7148
    %v7150 = vand.u32 %v6021, 4294901760
    %v7151 = vsub.f32 %v6021, %v7150
    %v7152 = vand.u32 %v7151, 4294901760
    %7153 = vmatpush.msra.mxu0 %v7152
    %v7154 = vand.u32 %v6020, 4294901760
    %v7155 = vsub.f32 %v6020, %v7154
    %v7156 = vand.u32 %v7155, 4294901760
    %7157 = vmatpush.msra.mxu0 %v7156
    %v7158 = vand.u32 %v6019, 4294901760
    %v7159 = vsub.f32 %v6019, %v7158
    %v7160 = vand.u32 %v7159, 4294901760
    %7161 = vmatpush.msra.mxu0 %v7160
    %v7162 = vand.u32 %v6018, 4294901760
    %v7163 = vsub.f32 %v6018, %v7162
    %v7164 = vand.u32 %v7163, 4294901760
    %7165 = vmatpush.msra.mxu0 %v7164
    %v7166 = vand.u32 %v6017, 4294901760
    %v7167 = vsub.f32 %v6017, %v7166
    %v7168 = vand.u32 %v7167, 4294901760
    %7169 = vmatpush.msra.mxu0 %v7168
    %v7170 = vand.u32 %v6016, 4294901760
    %v7171 = vsub.f32 %v6016, %v7170
    %v7172 = vand.u32 %v7171, 4294901760
    %7173 = vmatpush.msra.mxu0 %v7172
    %v7174 = vand.u32 %v6015, 4294901760
    %v7175 = vsub.f32 %v6015, %v7174
    %v7176 = vand.u32 %v7175, 4294901760
    %7177 = vmatpush.msra.mxu0 %v7176
    %v7178 = vand.u32 %v6014, 4294901760
    %v7179 = vsub.f32 %v6014, %v7178
    %v7180 = vand.u32 %v7179, 4294901760
    %7181 = vmatpush.msra.mxu0 %v7180
    %v7182 = vand.u32 %v6013, 4294901760
    %v7183 = vsub.f32 %v6013, %v7182
    %v7184 = vand.u32 %v7183, 4294901760
    %7185 = vmatpush.msra.mxu0 %v7184
    %v7186 = vand.u32 %v6012, 4294901760
    %v7187 = vsub.f32 %v6012, %v7186
    %v7188 = vand.u32 %v7187, 4294901760
    %7189 = vmatpush.msra.mxu0 %v7188
    %v7190 = vand.u32 %v5966, 4294901760
    %7191 = vmatmul.f32.gmra.mxu0 %v7190
    %v7192 = vpop.f32.mrf.mxu0
    %v7193 = vadd.f32 %v7118, %v7192
    %v7194 = vand.u32 %v5974, 4294901760
    %7195 = vmatmul.f32.gmra.mxu0 %v7194
    %v7196 = vpop.f32.mrf.mxu0
    %v7197 = vadd.f32 %v7124, %v7196
    %7198 = vdwg.mxu0
    %v7199 = vand.u32 %v6027, 4294901760
    %7200 = vmatpush.msra.mxu0 %v7199
    %v7201 = vand.u32 %v6026, 4294901760
    %7202 = vmatpush.msra.mxu0 %v7201
    %v7203 = vand.u32 %v6025, 4294901760
    %7204 = vmatpush.msra.mxu0 %v7203
    %v7205 = vand.u32 %v6024, 4294901760
    %7206 = vmatpush.msra.mxu0 %v7205
    %v7207 = vand.u32 %v6023, 4294901760
    %7208 = vmatpush.msra.mxu0 %v7207
    %v7209 = vand.u32 %v6022, 4294901760
    %7210 = vmatpush.msra.mxu0 %v7209
    %v7211 = vand.u32 %v6021, 4294901760
    %7212 = vmatpush.msra.mxu0 %v7211
    %v7213 = vand.u32 %v6020, 4294901760
    %7214 = vmatpush.msra.mxu0 %v7213
    %v7215 = vand.u32 %v6019, 4294901760
    %7216 = vmatpush.msra.mxu0 %v7215
    %v7217 = vand.u32 %v6018, 4294901760
    %7218 = vmatpush.msra.mxu0 %v7217
    %v7219 = vand.u32 %v6017, 4294901760
    %7220 = vmatpush.msra.mxu0 %v7219
    %v7221 = vand.u32 %v6016, 4294901760
    %7222 = vmatpush.msra.mxu0 %v7221
    %v7223 = vand.u32 %v6015, 4294901760
    %7224 = vmatpush.msra.mxu0 %v7223
    %v7225 = vand.u32 %v6014, 4294901760
    %7226 = vmatpush.msra.mxu0 %v7225
    %v7227 = vand.u32 %v6013, 4294901760
    %7228 = vmatpush.msra.mxu0 %v7227
    %v7229 = vand.u32 %v6012, 4294901760
    %7230 = vmatpush.msra.mxu0 %v7229
    %v7231 = vand.u32 %v5966, 4294901760
    %7232 = vmatmul.f32.gmra.mxu0 %v7231
    %v7233 = vpop.f32.mrf.mxu0
    %v7234 = vadd.f32 %v7193, %v7233
    %v7235 = vand.u32 %v5974, 4294901760
    %7236 = vmatmul.f32.gmra.mxu0 %v7235
    %v7237 = vpop.f32.mrf.mxu0
    %v7238 = vadd.f32 %v7197, %v7237
    %7239 = vdwg.mxu0
    %v7240 = vand.u32 %v6043, 4294901760
    %7241 = vmatpush.msra.mxu0 %v7240
    %v7242 = vand.u32 %v6042, 4294901760
    %7243 = vmatpush.msra.mxu0 %v7242
    %v7244 = vand.u32 %v6041, 4294901760
    %7245 = vmatpush.msra.mxu0 %v7244
    %v7246 = vand.u32 %v6040, 4294901760
    %7247 = vmatpush.msra.mxu0 %v7246
    %v7248 = vand.u32 %v6039, 4294901760
    %7249 = vmatpush.msra.mxu0 %v7248
    %v7250 = vand.u32 %v6038, 4294901760
    %7251 = vmatpush.msra.mxu0 %v7250
    %v7252 = vand.u32 %v6037, 4294901760
    %7253 = vmatpush.msra.mxu0 %v7252
    %v7254 = vand.u32 %v6036, 4294901760
    %7255 = vmatpush.msra.mxu0 %v7254
    %v7256 = vand.u32 %v6035, 4294901760
    %7257 = vmatpush.msra.mxu0 %v7256
    %v7258 = vand.u32 %v6034, 4294901760
    %7259 = vmatpush.msra.mxu0 %v7258
    %v7260 = vand.u32 %v6033, 4294901760
    %7261 = vmatpush.msra.mxu0 %v7260
    %v7262 = vand.u32 %v6032, 4294901760
    %7263 = vmatpush.msra.mxu0 %v7262
    %v7264 = vand.u32 %v6031, 4294901760
    %7265 = vmatpush.msra.mxu0 %v7264
    %v7266 = vand.u32 %v6030, 4294901760
    %7267 = vmatpush.msra.mxu0 %v7266
    %v7268 = vand.u32 %v6029, 4294901760
    %7269 = vmatpush.msra.mxu0 %v7268
    %v7270 = vand.u32 %v6028, 4294901760
    %7271 = vmatpush.msra.mxu0 %v7270
    %v7272 = vand.u32 %v5967, 4294901760
    %v7273 = vsub.f32 %v5967, %v7272
    %v7274 = vand.u32 %v7273, 4294901760
    %v7275 = vsub.f32 %v7273, %v7274
    %v7276 = vand.u32 %v7275, 4294901760
    %7277 = vmatmul.f32.gmra.mxu0 %v7276
    %v7278 = vpop.f32.mrf.mxu0
    %v7279 = vadd.f32 %v7234, %v7278
    %v7280 = vand.u32 %v5975, 4294901760
    %v7281 = vsub.f32 %v5975, %v7280
    %v7282 = vand.u32 %v7281, 4294901760
    %v7283 = vsub.f32 %v7281, %v7282
    %v7284 = vand.u32 %v7283, 4294901760
    %7285 = vmatmul.f32.gmra.mxu0 %v7284
    %v7286 = vpop.f32.mrf.mxu0
    %v7287 = vadd.f32 %v7238, %v7286
    %7288 = vdwg.mxu0
    %v7289 = vand.u32 %v6043, 4294901760
    %v7290 = vsub.f32 %v6043, %v7289
    %v7291 = vand.u32 %v7290, 4294901760
    %v7292 = vsub.f32 %v7290, %v7291
    %v7293 = vand.u32 %v7292, 4294901760
    %7294 = vmatpush.msra.mxu0 %v7293
    %v7295 = vand.u32 %v6042, 4294901760
    %v7296 = vsub.f32 %v6042, %v7295
    %v7297 = vand.u32 %v7296, 4294901760
    %v7298 = vsub.f32 %v7296, %v7297
    %v7299 = vand.u32 %v7298, 4294901760
    %7300 = vmatpush.msra.mxu0 %v7299
    %v7301 = vand.u32 %v6041, 4294901760
    %v7302 = vsub.f32 %v6041, %v7301
    %v7303 = vand.u32 %v7302, 4294901760
    %v7304 = vsub.f32 %v7302, %v7303
    %v7305 = vand.u32 %v7304, 4294901760
    %7306 = vmatpush.msra.mxu0 %v7305
    %v7307 = vand.u32 %v6040, 4294901760
    %v7308 = vsub.f32 %v6040, %v7307
    %v7309 = vand.u32 %v7308, 4294901760
    %v7310 = vsub.f32 %v7308, %v7309
    %v7311 = vand.u32 %v7310, 4294901760
    %7312 = vmatpush.msra.mxu0 %v7311
    %v7313 = vand.u32 %v6039, 4294901760
    %v7314 = vsub.f32 %v6039, %v7313
    %v7315 = vand.u32 %v7314, 4294901760
    %v7316 = vsub.f32 %v7314, %v7315
    %v7317 = vand.u32 %v7316, 4294901760
    %7318 = vmatpush.msra.mxu0 %v7317
    %v7319 = vand.u32 %v6038, 4294901760
    %v7320 = vsub.f32 %v6038, %v7319
    %v7321 = vand.u32 %v7320, 4294901760
    %v7322 = vsub.f32 %v7320, %v7321
    %v7323 = vand.u32 %v7322, 4294901760
    %7324 = vmatpush.msra.mxu0 %v7323
    %v7325 = vand.u32 %v6037, 4294901760
    %v7326 = vsub.f32 %v6037, %v7325
    %v7327 = vand.u32 %v7326, 4294901760
    %v7328 = vsub.f32 %v7326, %v7327
    %v7329 = vand.u32 %v7328, 4294901760
    %7330 = vmatpush.msra.mxu0 %v7329
    %v7331 = vand.u32 %v6036, 4294901760
    %v7332 = vsub.f32 %v6036, %v7331
    %v7333 = vand.u32 %v7332, 4294901760
    %v7334 = vsub.f32 %v7332, %v7333
    %v7335 = vand.u32 %v7334, 4294901760
    %7336 = vmatpush.msra.mxu0 %v7335
    %v7337 = vand.u32 %v6035, 4294901760
    %v7338 = vsub.f32 %v6035, %v7337
    %v7339 = vand.u32 %v7338, 4294901760
    %v7340 = vsub.f32 %v7338, %v7339
    %v7341 = vand.u32 %v7340, 4294901760
    %7342 = vmatpush.msra.mxu0 %v7341
    %v7343 = vand.u32 %v6034, 4294901760
    %v7344 = vsub.f32 %v6034, %v7343
    %v7345 = vand.u32 %v7344, 4294901760
    %v7346 = vsub.f32 %v7344, %v7345
    %v7347 = vand.u32 %v7346, 4294901760
    %7348 = vmatpush.msra.mxu0 %v7347
    %v7349 = vand.u32 %v6033, 4294901760
    %v7350 = vsub.f32 %v6033, %v7349
    %v7351 = vand.u32 %v7350, 4294901760
    %v7352 = vsub.f32 %v7350, %v7351
    %v7353 = vand.u32 %v7352, 4294901760
    %7354 = vmatpush.msra.mxu0 %v7353
    %v7355 = vand.u32 %v6032, 4294901760
    %v7356 = vsub.f32 %v6032, %v7355
    %v7357 = vand.u32 %v7356, 4294901760
    %v7358 = vsub.f32 %v7356, %v7357
    %v7359 = vand.u32 %v7358, 4294901760
    %7360 = vmatpush.msra.mxu0 %v7359
    %v7361 = vand.u32 %v6031, 4294901760
    %v7362 = vsub.f32 %v6031, %v7361
    %v7363 = vand.u32 %v7362, 4294901760
    %v7364 = vsub.f32 %v7362, %v7363
    %v7365 = vand.u32 %v7364, 4294901760
    %7366 = vmatpush.msra.mxu0 %v7365
    %v7367 = vand.u32 %v6030, 4294901760
    %v7368 = vsub.f32 %v6030, %v7367
    %v7369 = vand.u32 %v7368, 4294901760
    %v7370 = vsub.f32 %v7368, %v7369
    %v7371 = vand.u32 %v7370, 4294901760
    %7372 = vmatpush.msra.mxu0 %v7371
    %v7373 = vand.u32 %v6029, 4294901760
    %v7374 = vsub.f32 %v6029, %v7373
    %v7375 = vand.u32 %v7374, 4294901760
    %v7376 = vsub.f32 %v7374, %v7375
    %v7377 = vand.u32 %v7376, 4294901760
    %7378 = vmatpush.msra.mxu0 %v7377
    %v7379 = vand.u32 %v6028, 4294901760
    %v7380 = vsub.f32 %v6028, %v7379
    %v7381 = vand.u32 %v7380, 4294901760
    %v7382 = vsub.f32 %v7380, %v7381
    %v7383 = vand.u32 %v7382, 4294901760
    %7384 = vmatpush.msra.mxu0 %v7383
    %v7385 = vand.u32 %v5967, 4294901760
    %7386 = vmatmul.f32.gmra.mxu0 %v7385
    %v7387 = vpop.f32.mrf.mxu0
    %v7388 = vadd.f32 %v7279, %v7387
    %v7389 = vand.u32 %v5975, 4294901760
    %7390 = vmatmul.f32.gmra.mxu0 %v7389
    %v7391 = vpop.f32.mrf.mxu0
    %v7392 = vadd.f32 %v7287, %v7391
    %7393 = vdwg.mxu0
    %v7394 = vand.u32 %v6043, 4294901760
    %v7395 = vsub.f32 %v6043, %v7394
    %7396 = vmatpush.msra.mxu0 %v7395
    %v7397 = vand.u32 %v6042, 4294901760
    %v7398 = vsub.f32 %v6042, %v7397
    %7399 = vmatpush.msra.mxu0 %v7398
    %v7400 = vand.u32 %v6041, 4294901760
    %v7401 = vsub.f32 %v6041, %v7400
    %7402 = vmatpush.msra.mxu0 %v7401
    %v7403 = vand.u32 %v6040, 4294901760
    %v7404 = vsub.f32 %v6040, %v7403
    %7405 = vmatpush.msra.mxu0 %v7404
    %v7406 = vand.u32 %v6039, 4294901760
    %v7407 = vsub.f32 %v6039, %v7406
    %7408 = vmatpush.msra.mxu0 %v7407
    %v7409 = vand.u32 %v6038, 4294901760
    %v7410 = vsub.f32 %v6038, %v7409
    %7411 = vmatpush.msra.mxu0 %v7410
    %v7412 = vand.u32 %v6037, 4294901760
    %v7413 = vsub.f32 %v6037, %v7412
    %7414 = vmatpush.msra.mxu0 %v7413
    %v7415 = vand.u32 %v6036, 4294901760
    %v7416 = vsub.f32 %v6036, %v7415
    %7417 = vmatpush.msra.mxu0 %v7416
    %v7418 = vand.u32 %v6035, 4294901760
    %v7419 = vsub.f32 %v6035, %v7418
    %7420 = vmatpush.msra.mxu0 %v7419
    %v7421 = vand.u32 %v6034, 4294901760
    %v7422 = vsub.f32 %v6034, %v7421
    %7423 = vmatpush.msra.mxu0 %v7422
    %v7424 = vand.u32 %v6033, 4294901760
    %v7425 = vsub.f32 %v6033, %v7424
    %7426 = vmatpush.msra.mxu0 %v7425
    %v7427 = vand.u32 %v6032, 4294901760
    %v7428 = vsub.f32 %v6032, %v7427
    %7429 = vmatpush.msra.mxu0 %v7428
    %v7430 = vand.u32 %v6031, 4294901760
    %v7431 = vsub.f32 %v6031, %v7430
    %7432 = vmatpush.msra.mxu0 %v7431
    %v7433 = vand.u32 %v6030, 4294901760
    %v7434 = vsub.f32 %v6030, %v7433
    %7435 = vmatpush.msra.mxu0 %v7434
    %v7436 = vand.u32 %v6029, 4294901760
    %v7437 = vsub.f32 %v6029, %v7436
    %7438 = vmatpush.msra.mxu0 %v7437
    %v7439 = vand.u32 %v6028, 4294901760
    %v7440 = vsub.f32 %v6028, %v7439
    %7441 = vmatpush.msra.mxu0 %v7440
    %v7442 = vand.u32 %v5967, 4294901760
    %v7443 = vsub.f32 %v5967, %v7442
    %7444 = vmatmul.f32.gmra.mxu0 %v7443
    %v7445 = vpop.f32.mrf.mxu0
    %v7446 = vadd.f32 %v7388, %v7445
    %v7447 = vand.u32 %v5975, 4294901760
    %v7448 = vsub.f32 %v5975, %v7447
    %7449 = vmatmul.f32.gmra.mxu0 %v7448
    %v7450 = vpop.f32.mrf.mxu0
    %v7451 = vadd.f32 %v7392, %v7450
    %7452 = vdwg.mxu0
    %v7453 = vand.u32 %v6043, 4294901760
    %7454 = vmatpush.msra.mxu0 %v7453
    %v7455 = vand.u32 %v6042, 4294901760
    %7456 = vmatpush.msra.mxu0 %v7455
    %v7457 = vand.u32 %v6041, 4294901760
    %7458 = vmatpush.msra.mxu0 %v7457
    %v7459 = vand.u32 %v6040, 4294901760
    %7460 = vmatpush.msra.mxu0 %v7459
    %v7461 = vand.u32 %v6039, 4294901760
    %7462 = vmatpush.msra.mxu0 %v7461
    %v7463 = vand.u32 %v6038, 4294901760
    %7464 = vmatpush.msra.mxu0 %v7463
    %v7465 = vand.u32 %v6037, 4294901760
    %7466 = vmatpush.msra.mxu0 %v7465
    %v7467 = vand.u32 %v6036, 4294901760
    %7468 = vmatpush.msra.mxu0 %v7467
    %v7469 = vand.u32 %v6035, 4294901760
    %7470 = vmatpush.msra.mxu0 %v7469
    %v7471 = vand.u32 %v6034, 4294901760
    %7472 = vmatpush.msra.mxu0 %v7471
    %v7473 = vand.u32 %v6033, 4294901760
    %7474 = vmatpush.msra.mxu0 %v7473
    %v7475 = vand.u32 %v6032, 4294901760
    %7476 = vmatpush.msra.mxu0 %v7475
    %v7477 = vand.u32 %v6031, 4294901760
    %7478 = vmatpush.msra.mxu0 %v7477
    %v7479 = vand.u32 %v6030, 4294901760
    %7480 = vmatpush.msra.mxu0 %v7479
    %v7481 = vand.u32 %v6029, 4294901760
    %7482 = vmatpush.msra.mxu0 %v7481
    %v7483 = vand.u32 %v6028, 4294901760
    %7484 = vmatpush.msra.mxu0 %v7483
    %v7485 = vand.u32 %v5967, 4294901760
    %v7486 = vsub.f32 %v5967, %v7485
    %v7487 = vand.u32 %v7486, 4294901760
    %7488 = vmatmul.f32.gmra.mxu0 %v7487
    %v7489 = vpop.f32.mrf.mxu0
    %v7490 = vadd.f32 %v7446, %v7489
    %v7491 = vand.u32 %v5975, 4294901760
    %v7492 = vsub.f32 %v5975, %v7491
    %v7493 = vand.u32 %v7492, 4294901760
    %7494 = vmatmul.f32.gmra.mxu0 %v7493
    %v7495 = vpop.f32.mrf.mxu0
    %v7496 = vadd.f32 %v7451, %v7495
    %7497 = vdwg.mxu0
    %v7498 = vand.u32 %v6043, 4294901760
    %v7499 = vsub.f32 %v6043, %v7498
    %v7500 = vand.u32 %v7499, 4294901760
    %7501 = vmatpush.msra.mxu0 %v7500
    %v7502 = vand.u32 %v6042, 4294901760
    %v7503 = vsub.f32 %v6042, %v7502
    %v7504 = vand.u32 %v7503, 4294901760
    %7505 = vmatpush.msra.mxu0 %v7504
    %v7506 = vand.u32 %v6041, 4294901760
    %v7507 = vsub.f32 %v6041, %v7506
    %v7508 = vand.u32 %v7507, 4294901760
    %7509 = vmatpush.msra.mxu0 %v7508
    %v7510 = vand.u32 %v6040, 4294901760
    %v7511 = vsub.f32 %v6040, %v7510
    %v7512 = vand.u32 %v7511, 4294901760
    %7513 = vmatpush.msra.mxu0 %v7512
    %v7514 = vand.u32 %v6039, 4294901760
    %v7515 = vsub.f32 %v6039, %v7514
    %v7516 = vand.u32 %v7515, 4294901760
    %7517 = vmatpush.msra.mxu0 %v7516
    %v7518 = vand.u32 %v6038, 4294901760
    %v7519 = vsub.f32 %v6038, %v7518
    %v7520 = vand.u32 %v7519, 4294901760
    %7521 = vmatpush.msra.mxu0 %v7520
    %v7522 = vand.u32 %v6037, 4294901760
    %v7523 = vsub.f32 %v6037, %v7522
    %v7524 = vand.u32 %v7523, 4294901760
    %7525 = vmatpush.msra.mxu0 %v7524
    %v7526 = vand.u32 %v6036, 4294901760
    %v7527 = vsub.f32 %v6036, %v7526
    %v7528 = vand.u32 %v7527, 4294901760
    %7529 = vmatpush.msra.mxu0 %v7528
    %v7530 = vand.u32 %v6035, 4294901760
    %v7531 = vsub.f32 %v6035, %v7530
    %v7532 = vand.u32 %v7531, 4294901760
    %7533 = vmatpush.msra.mxu0 %v7532
    %v7534 = vand.u32 %v6034, 4294901760
    %v7535 = vsub.f32 %v6034, %v7534
    %v7536 = vand.u32 %v7535, 4294901760
    %7537 = vmatpush.msra.mxu0 %v7536
    %v7538 = vand.u32 %v6033, 4294901760
    %v7539 = vsub.f32 %v6033, %v7538
    %v7540 = vand.u32 %v7539, 4294901760
    %7541 = vmatpush.msra.mxu0 %v7540
    %v7542 = vand.u32 %v6032, 4294901760
    %v7543 = vsub.f32 %v6032, %v7542
    %v7544 = vand.u32 %v7543, 4294901760
    %7545 = vmatpush.msra.mxu0 %v7544
    %v7546 = vand.u32 %v6031, 4294901760
    %v7547 = vsub.f32 %v6031, %v7546
    %v7548 = vand.u32 %v7547, 4294901760
    %7549 = vmatpush.msra.mxu0 %v7548
    %v7550 = vand.u32 %v6030, 4294901760
    %v7551 = vsub.f32 %v6030, %v7550
    %v7552 = vand.u32 %v7551, 4294901760
    %7553 = vmatpush.msra.mxu0 %v7552
    %v7554 = vand.u32 %v6029, 4294901760
    %v7555 = vsub.f32 %v6029, %v7554
    %v7556 = vand.u32 %v7555, 4294901760
    %7557 = vmatpush.msra.mxu0 %v7556
    %v7558 = vand.u32 %v6028, 4294901760
    %v7559 = vsub.f32 %v6028, %v7558
    %v7560 = vand.u32 %v7559, 4294901760
    %7561 = vmatpush.msra.mxu0 %v7560
    %v7562 = vand.u32 %v5967, 4294901760
    %7563 = vmatmul.f32.gmra.mxu0 %v7562
    %v7564 = vpop.f32.mrf.mxu0
    %v7565 = vadd.f32 %v7490, %v7564
    %v7566 = vand.u32 %v5975, 4294901760
    %7567 = vmatmul.f32.gmra.mxu0 %v7566
    %v7568 = vpop.f32.mrf.mxu0
    %v7569 = vadd.f32 %v7496, %v7568
    %7570 = vdwg.mxu0
    %v7571 = vand.u32 %v6043, 4294901760
    %7572 = vmatpush.msra.mxu0 %v7571
    %v7573 = vand.u32 %v6042, 4294901760
    %7574 = vmatpush.msra.mxu0 %v7573
    %v7575 = vand.u32 %v6041, 4294901760
    %7576 = vmatpush.msra.mxu0 %v7575
    %v7577 = vand.u32 %v6040, 4294901760
    %7578 = vmatpush.msra.mxu0 %v7577
    %v7579 = vand.u32 %v6039, 4294901760
    %7580 = vmatpush.msra.mxu0 %v7579
    %v7581 = vand.u32 %v6038, 4294901760
    %7582 = vmatpush.msra.mxu0 %v7581
    %v7583 = vand.u32 %v6037, 4294901760
    %7584 = vmatpush.msra.mxu0 %v7583
    %v7585 = vand.u32 %v6036, 4294901760
    %7586 = vmatpush.msra.mxu0 %v7585
    %v7587 = vand.u32 %v6035, 4294901760
    %7588 = vmatpush.msra.mxu0 %v7587
    %v7589 = vand.u32 %v6034, 4294901760
    %7590 = vmatpush.msra.mxu0 %v7589
    %v7591 = vand.u32 %v6033, 4294901760
    %7592 = vmatpush.msra.mxu0 %v7591
    %v7593 = vand.u32 %v6032, 4294901760
    %7594 = vmatpush.msra.mxu0 %v7593
    %v7595 = vand.u32 %v6031, 4294901760
    %7596 = vmatpush.msra.mxu0 %v7595
    %v7597 = vand.u32 %v6030, 4294901760
    %7598 = vmatpush.msra.mxu0 %v7597
    %v7599 = vand.u32 %v6029, 4294901760
    %7600 = vmatpush.msra.mxu0 %v7599
    %v7601 = vand.u32 %v6028, 4294901760
    %7602 = vmatpush.msra.mxu0 %v7601
    %v7603 = vand.u32 %v5967, 4294901760
    %7604 = vmatmul.f32.gmra.mxu0 %v7603
    %v7605 = vpop.f32.mrf.mxu0
    %v7606 = vadd.f32 %v7565, %v7605
    %v7607 = vand.u32 %v5975, 4294901760
    %7608 = vmatmul.f32.gmra.mxu0 %v7607
    %v7609 = vpop.f32.mrf.mxu0
    %v7610 = vadd.f32 %v7569, %v7609
    %7611 = vdwg.mxu0
    %v7612 = vand.u32 %v6059, 4294901760
    %7613 = vmatpush.msra.mxu0 %v7612
    %v7614 = vand.u32 %v6058, 4294901760
    %7615 = vmatpush.msra.mxu0 %v7614
    %v7616 = vand.u32 %v6057, 4294901760
    %7617 = vmatpush.msra.mxu0 %v7616
    %v7618 = vand.u32 %v6056, 4294901760
    %7619 = vmatpush.msra.mxu0 %v7618
    %v7620 = vand.u32 %v6055, 4294901760
    %7621 = vmatpush.msra.mxu0 %v7620
    %v7622 = vand.u32 %v6054, 4294901760
    %7623 = vmatpush.msra.mxu0 %v7622
    %v7624 = vand.u32 %v6053, 4294901760
    %7625 = vmatpush.msra.mxu0 %v7624
    %v7626 = vand.u32 %v6052, 4294901760
    %7627 = vmatpush.msra.mxu0 %v7626
    %v7628 = vand.u32 %v6051, 4294901760
    %7629 = vmatpush.msra.mxu0 %v7628
    %v7630 = vand.u32 %v6050, 4294901760
    %7631 = vmatpush.msra.mxu0 %v7630
    %v7632 = vand.u32 %v6049, 4294901760
    %7633 = vmatpush.msra.mxu0 %v7632
    %v7634 = vand.u32 %v6048, 4294901760
    %7635 = vmatpush.msra.mxu0 %v7634
    %v7636 = vand.u32 %v6047, 4294901760
    %7637 = vmatpush.msra.mxu0 %v7636
    %v7638 = vand.u32 %v6046, 4294901760
    %7639 = vmatpush.msra.mxu0 %v7638
    %v7640 = vand.u32 %v6045, 4294901760
    %7641 = vmatpush.msra.mxu0 %v7640
    %v7642 = vand.u32 %v6044, 4294901760
    %7643 = vmatpush.msra.mxu0 %v7642
    %v7644 = vand.u32 %v5968, 4294901760
    %v7645 = vsub.f32 %v5968, %v7644
    %v7646 = vand.u32 %v7645, 4294901760
    %v7647 = vsub.f32 %v7645, %v7646
    %v7648 = vand.u32 %v7647, 4294901760
    %7649 = vmatmul.f32.gmra.mxu0 %v7648
    %v7650 = vpop.f32.mrf.mxu0
    %v7651 = vadd.f32 %v7606, %v7650
    %v7652 = vand.u32 %v5976, 4294901760
    %v7653 = vsub.f32 %v5976, %v7652
    %v7654 = vand.u32 %v7653, 4294901760
    %v7655 = vsub.f32 %v7653, %v7654
    %v7656 = vand.u32 %v7655, 4294901760
    %7657 = vmatmul.f32.gmra.mxu0 %v7656
    %v7658 = vpop.f32.mrf.mxu0
    %v7659 = vadd.f32 %v7610, %v7658
    %7660 = vdwg.mxu0
    %v7661 = vand.u32 %v6059, 4294901760
    %v7662 = vsub.f32 %v6059, %v7661
    %v7663 = vand.u32 %v7662, 4294901760
    %v7664 = vsub.f32 %v7662, %v7663
    %v7665 = vand.u32 %v7664, 4294901760
    %7666 = vmatpush.msra.mxu0 %v7665
    %v7667 = vand.u32 %v6058, 4294901760
    %v7668 = vsub.f32 %v6058, %v7667
    %v7669 = vand.u32 %v7668, 4294901760
    %v7670 = vsub.f32 %v7668, %v7669
    %v7671 = vand.u32 %v7670, 4294901760
    %7672 = vmatpush.msra.mxu0 %v7671
    %v7673 = vand.u32 %v6057, 4294901760
    %v7674 = vsub.f32 %v6057, %v7673
    %v7675 = vand.u32 %v7674, 4294901760
    %v7676 = vsub.f32 %v7674, %v7675
    %v7677 = vand.u32 %v7676, 4294901760
    %7678 = vmatpush.msra.mxu0 %v7677
    %v7679 = vand.u32 %v6056, 4294901760
    %v7680 = vsub.f32 %v6056, %v7679
    %v7681 = vand.u32 %v7680, 4294901760
    %v7682 = vsub.f32 %v7680, %v7681
    %v7683 = vand.u32 %v7682, 4294901760
    %7684 = vmatpush.msra.mxu0 %v7683
    %v7685 = vand.u32 %v6055, 4294901760
    %v7686 = vsub.f32 %v6055, %v7685
    %v7687 = vand.u32 %v7686, 4294901760
    %v7688 = vsub.f32 %v7686, %v7687
    %v7689 = vand.u32 %v7688, 4294901760
    %7690 = vmatpush.msra.mxu0 %v7689
    %v7691 = vand.u32 %v6054, 4294901760
    %v7692 = vsub.f32 %v6054, %v7691
    %v7693 = vand.u32 %v7692, 4294901760
    %v7694 = vsub.f32 %v7692, %v7693
    %v7695 = vand.u32 %v7694, 4294901760
    %7696 = vmatpush.msra.mxu0 %v7695
    %v7697 = vand.u32 %v6053, 4294901760
    %v7698 = vsub.f32 %v6053, %v7697
    %v7699 = vand.u32 %v7698, 4294901760
    %v7700 = vsub.f32 %v7698, %v7699
    %v7701 = vand.u32 %v7700, 4294901760
    %7702 = vmatpush.msra.mxu0 %v7701
    %v7703 = vand.u32 %v6052, 4294901760
    %v7704 = vsub.f32 %v6052, %v7703
    %v7705 = vand.u32 %v7704, 4294901760
    %v7706 = vsub.f32 %v7704, %v7705
    %v7707 = vand.u32 %v7706, 4294901760
    %7708 = vmatpush.msra.mxu0 %v7707
    %v7709 = vand.u32 %v6051, 4294901760
    %v7710 = vsub.f32 %v6051, %v7709
    %v7711 = vand.u32 %v7710, 4294901760
    %v7712 = vsub.f32 %v7710, %v7711
    %v7713 = vand.u32 %v7712, 4294901760
    %7714 = vmatpush.msra.mxu0 %v7713
    %v7715 = vand.u32 %v6050, 4294901760
    %v7716 = vsub.f32 %v6050, %v7715
    %v7717 = vand.u32 %v7716, 4294901760
    %v7718 = vsub.f32 %v7716, %v7717
    %v7719 = vand.u32 %v7718, 4294901760
    %7720 = vmatpush.msra.mxu0 %v7719
    %v7721 = vand.u32 %v6049, 4294901760
    %v7722 = vsub.f32 %v6049, %v7721
    %v7723 = vand.u32 %v7722, 4294901760
    %v7724 = vsub.f32 %v7722, %v7723
    %v7725 = vand.u32 %v7724, 4294901760
    %7726 = vmatpush.msra.mxu0 %v7725
    %v7727 = vand.u32 %v6048, 4294901760
    %v7728 = vsub.f32 %v6048, %v7727
    %v7729 = vand.u32 %v7728, 4294901760
    %v7730 = vsub.f32 %v7728, %v7729
    %v7731 = vand.u32 %v7730, 4294901760
    %7732 = vmatpush.msra.mxu0 %v7731
    %v7733 = vand.u32 %v6047, 4294901760
    %v7734 = vsub.f32 %v6047, %v7733
    %v7735 = vand.u32 %v7734, 4294901760
    %v7736 = vsub.f32 %v7734, %v7735
    %v7737 = vand.u32 %v7736, 4294901760
    %7738 = vmatpush.msra.mxu0 %v7737
    %v7739 = vand.u32 %v6046, 4294901760
    %v7740 = vsub.f32 %v6046, %v7739
    %v7741 = vand.u32 %v7740, 4294901760
    %v7742 = vsub.f32 %v7740, %v7741
    %v7743 = vand.u32 %v7742, 4294901760
    %7744 = vmatpush.msra.mxu0 %v7743
    %v7745 = vand.u32 %v6045, 4294901760
    %v7746 = vsub.f32 %v6045, %v7745
    %v7747 = vand.u32 %v7746, 4294901760
    %v7748 = vsub.f32 %v7746, %v7747
    %v7749 = vand.u32 %v7748, 4294901760
    %7750 = vmatpush.msra.mxu0 %v7749
    %v7751 = vand.u32 %v6044, 4294901760
    %v7752 = vsub.f32 %v6044, %v7751
    %v7753 = vand.u32 %v7752, 4294901760
    %v7754 = vsub.f32 %v7752, %v7753
    %v7755 = vand.u32 %v7754, 4294901760
    %7756 = vmatpush.msra.mxu0 %v7755
    %v7757 = vand.u32 %v5968, 4294901760
    %7758 = vmatmul.f32.gmra.mxu0 %v7757
    %v7759 = vpop.f32.mrf.mxu0
    %v7760 = vadd.f32 %v7651, %v7759
    %v7761 = vand.u32 %v5976, 4294901760
    %7762 = vmatmul.f32.gmra.mxu0 %v7761
    %v7763 = vpop.f32.mrf.mxu0
    %v7764 = vadd.f32 %v7659, %v7763
    %7765 = vdwg.mxu0
    %v7766 = vand.u32 %v6059, 4294901760
    %v7767 = vsub.f32 %v6059, %v7766
    %7768 = vmatpush.msra.mxu0 %v7767
    %v7769 = vand.u32 %v6058, 4294901760
    %v7770 = vsub.f32 %v6058, %v7769
    %7771 = vmatpush.msra.mxu0 %v7770
    %v7772 = vand.u32 %v6057, 4294901760
    %v7773 = vsub.f32 %v6057, %v7772
    %7774 = vmatpush.msra.mxu0 %v7773
    %v7775 = vand.u32 %v6056, 4294901760
    %v7776 = vsub.f32 %v6056, %v7775
    %7777 = vmatpush.msra.mxu0 %v7776
    %v7778 = vand.u32 %v6055, 4294901760
    %v7779 = vsub.f32 %v6055, %v7778
    %7780 = vmatpush.msra.mxu0 %v7779
    %v7781 = vand.u32 %v6054, 4294901760
    %v7782 = vsub.f32 %v6054, %v7781
    %7783 = vmatpush.msra.mxu0 %v7782
    %v7784 = vand.u32 %v6053, 4294901760
    %v7785 = vsub.f32 %v6053, %v7784
    %7786 = vmatpush.msra.mxu0 %v7785
    %v7787 = vand.u32 %v6052, 4294901760
    %v7788 = vsub.f32 %v6052, %v7787
    %7789 = vmatpush.msra.mxu0 %v7788
    %v7790 = vand.u32 %v6051, 4294901760
    %v7791 = vsub.f32 %v6051, %v7790
    %7792 = vmatpush.msra.mxu0 %v7791
    %v7793 = vand.u32 %v6050, 4294901760
    %v7794 = vsub.f32 %v6050, %v7793
    %7795 = vmatpush.msra.mxu0 %v7794
    %v7796 = vand.u32 %v6049, 4294901760
    %v7797 = vsub.f32 %v6049, %v7796
    %7798 = vmatpush.msra.mxu0 %v7797
    %v7799 = vand.u32 %v6048, 4294901760
    %v7800 = vsub.f32 %v6048, %v7799
    %7801 = vmatpush.msra.mxu0 %v7800
    %v7802 = vand.u32 %v6047, 4294901760
    %v7803 = vsub.f32 %v6047, %v7802
    %7804 = vmatpush.msra.mxu0 %v7803
    %v7805 = vand.u32 %v6046, 4294901760
    %v7806 = vsub.f32 %v6046, %v7805
    %7807 = vmatpush.msra.mxu0 %v7806
    %v7808 = vand.u32 %v6045, 4294901760
    %v7809 = vsub.f32 %v6045, %v7808
    %7810 = vmatpush.msra.mxu0 %v7809
    %v7811 = vand.u32 %v6044, 4294901760
    %v7812 = vsub.f32 %v6044, %v7811
    %7813 = vmatpush.msra.mxu0 %v7812
    %v7814 = vand.u32 %v5968, 4294901760
    %v7815 = vsub.f32 %v5968, %v7814
    %7816 = vmatmul.f32.gmra.mxu0 %v7815
    %v7817 = vpop.f32.mrf.mxu0
    %v7818 = vadd.f32 %v7760, %v7817
    %v7819 = vand.u32 %v5976, 4294901760
    %v7820 = vsub.f32 %v5976, %v7819
    %7821 = vmatmul.f32.gmra.mxu0 %v7820
    %v7822 = vpop.f32.mrf.mxu0
    %v7823 = vadd.f32 %v7764, %v7822
    %7824 = vdwg.mxu0
    %v7825 = vand.u32 %v6059, 4294901760
    %7826 = vmatpush.msra.mxu0 %v7825
    %v7827 = vand.u32 %v6058, 4294901760
    %7828 = vmatpush.msra.mxu0 %v7827
    %v7829 = vand.u32 %v6057, 4294901760
    %7830 = vmatpush.msra.mxu0 %v7829
    %v7831 = vand.u32 %v6056, 4294901760
    %7832 = vmatpush.msra.mxu0 %v7831
    %v7833 = vand.u32 %v6055, 4294901760
    %7834 = vmatpush.msra.mxu0 %v7833
    %v7835 = vand.u32 %v6054, 4294901760
    %7836 = vmatpush.msra.mxu0 %v7835
    %v7837 = vand.u32 %v6053, 4294901760
    %7838 = vmatpush.msra.mxu0 %v7837
    %v7839 = vand.u32 %v6052, 4294901760
    %7840 = vmatpush.msra.mxu0 %v7839
    %v7841 = vand.u32 %v6051, 4294901760
    %7842 = vmatpush.msra.mxu0 %v7841
    %v7843 = vand.u32 %v6050, 4294901760
    %7844 = vmatpush.msra.mxu0 %v7843
    %v7845 = vand.u32 %v6049, 4294901760
    %7846 = vmatpush.msra.mxu0 %v7845
    %v7847 = vand.u32 %v6048, 4294901760
    %7848 = vmatpush.msra.mxu0 %v7847
    %v7849 = vand.u32 %v6047, 4294901760
    %7850 = vmatpush.msra.mxu0 %v7849
    %v7851 = vand.u32 %v6046, 4294901760
    %7852 = vmatpush.msra.mxu0 %v7851
    %v7853 = vand.u32 %v6045, 4294901760
    %7854 = vmatpush.msra.mxu0 %v7853
    %v7855 = vand.u32 %v6044, 4294901760
    %7856 = vmatpush.msra.mxu0 %v7855
    %v7857 = vand.u32 %v5968, 4294901760
    %v7858 = vsub.f32 %v5968, %v7857
    %v7859 = vand.u32 %v7858, 4294901760
    %7860 = vmatmul.f32.gmra.mxu0 %v7859
    %v7861 = vpop.f32.mrf.mxu0
    %v7862 = vadd.f32 %v7818, %v7861
    %v7863 = vand.u32 %v5976, 4294901760
    %v7864 = vsub.f32 %v5976, %v7863
    %v7865 = vand.u32 %v7864, 4294901760
    %7866 = vmatmul.f32.gmra.mxu0 %v7865
    %v7867 = vpop.f32.mrf.mxu0
    %v7868 = vadd.f32 %v7823, %v7867
    %7869 = vdwg.mxu0
    %v7870 = vand.u32 %v6059, 4294901760
    %v7871 = vsub.f32 %v6059, %v7870
    %v7872 = vand.u32 %v7871, 4294901760
    %7873 = vmatpush.msra.mxu0 %v7872
    %v7874 = vand.u32 %v6058, 4294901760
    %v7875 = vsub.f32 %v6058, %v7874
    %v7876 = vand.u32 %v7875, 4294901760
    %7877 = vmatpush.msra.mxu0 %v7876
    %v7878 = vand.u32 %v6057, 4294901760
    %v7879 = vsub.f32 %v6057, %v7878
    %v7880 = vand.u32 %v7879, 4294901760
    %7881 = vmatpush.msra.mxu0 %v7880
    %v7882 = vand.u32 %v6056, 4294901760
    %v7883 = vsub.f32 %v6056, %v7882
    %v7884 = vand.u32 %v7883, 4294901760
    %7885 = vmatpush.msra.mxu0 %v7884
    %v7886 = vand.u32 %v6055, 4294901760
    %v7887 = vsub.f32 %v6055, %v7886
    %v7888 = vand.u32 %v7887, 4294901760
    %7889 = vmatpush.msra.mxu0 %v7888
    %v7890 = vand.u32 %v6054, 4294901760
    %v7891 = vsub.f32 %v6054, %v7890
    %v7892 = vand.u32 %v7891, 4294901760
    %7893 = vmatpush.msra.mxu0 %v7892
    %v7894 = vand.u32 %v6053, 4294901760
    %v7895 = vsub.f32 %v6053, %v7894
    %v7896 = vand.u32 %v7895, 4294901760
    %7897 = vmatpush.msra.mxu0 %v7896
    %v7898 = vand.u32 %v6052, 4294901760
    %v7899 = vsub.f32 %v6052, %v7898
    %v7900 = vand.u32 %v7899, 4294901760
    %7901 = vmatpush.msra.mxu0 %v7900
    %v7902 = vand.u32 %v6051, 4294901760
    %v7903 = vsub.f32 %v6051, %v7902
    %v7904 = vand.u32 %v7903, 4294901760
    %7905 = vmatpush.msra.mxu0 %v7904
    %v7906 = vand.u32 %v6050, 4294901760
    %v7907 = vsub.f32 %v6050, %v7906
    %v7908 = vand.u32 %v7907, 4294901760
    %7909 = vmatpush.msra.mxu0 %v7908
    %v7910 = vand.u32 %v6049, 4294901760
    %v7911 = vsub.f32 %v6049, %v7910
    %v7912 = vand.u32 %v7911, 4294901760
    %7913 = vmatpush.msra.mxu0 %v7912
    %v7914 = vand.u32 %v6048, 4294901760
    %v7915 = vsub.f32 %v6048, %v7914
    %v7916 = vand.u32 %v7915, 4294901760
    %7917 = vmatpush.msra.mxu0 %v7916
    %v7918 = vand.u32 %v6047, 4294901760
    %v7919 = vsub.f32 %v6047, %v7918
    %v7920 = vand.u32 %v7919, 4294901760
    %7921 = vmatpush.msra.mxu0 %v7920
    %v7922 = vand.u32 %v6046, 4294901760
    %v7923 = vsub.f32 %v6046, %v7922
    %v7924 = vand.u32 %v7923, 4294901760
    %7925 = vmatpush.msra.mxu0 %v7924
    %v7926 = vand.u32 %v6045, 4294901760
    %v7927 = vsub.f32 %v6045, %v7926
    %v7928 = vand.u32 %v7927, 4294901760
    %7929 = vmatpush.msra.mxu0 %v7928
    %v7930 = vand.u32 %v6044, 4294901760
    %v7931 = vsub.f32 %v6044, %v7930
    %v7932 = vand.u32 %v7931, 4294901760
    %7933 = vmatpush.msra.mxu0 %v7932
    %v7934 = vand.u32 %v5968, 4294901760
    %7935 = vmatmul.f32.gmra.mxu0 %v7934
    %v7936 = vpop.f32.mrf.mxu0
    %v7937 = vadd.f32 %v7862, %v7936
    %v7938 = vand.u32 %v5976, 4294901760
    %7939 = vmatmul.f32.gmra.mxu0 %v7938
    %v7940 = vpop.f32.mrf.mxu0
    %v7941 = vadd.f32 %v7868, %v7940
    %7942 = vdwg.mxu0
    %v7943 = vand.u32 %v6059, 4294901760
    %7944 = vmatpush.msra.mxu0 %v7943
    %v7945 = vand.u32 %v6058, 4294901760
    %7946 = vmatpush.msra.mxu0 %v7945
    %v7947 = vand.u32 %v6057, 4294901760
    %7948 = vmatpush.msra.mxu0 %v7947
    %v7949 = vand.u32 %v6056, 4294901760
    %7950 = vmatpush.msra.mxu0 %v7949
    %v7951 = vand.u32 %v6055, 4294901760
    %7952 = vmatpush.msra.mxu0 %v7951
    %v7953 = vand.u32 %v6054, 4294901760
    %7954 = vmatpush.msra.mxu0 %v7953
    %v7955 = vand.u32 %v6053, 4294901760
    %7956 = vmatpush.msra.mxu0 %v7955
    %v7957 = vand.u32 %v6052, 4294901760
    %7958 = vmatpush.msra.mxu0 %v7957
    %v7959 = vand.u32 %v6051, 4294901760
    %7960 = vmatpush.msra.mxu0 %v7959
    %v7961 = vand.u32 %v6050, 4294901760
    %7962 = vmatpush.msra.mxu0 %v7961
    %v7963 = vand.u32 %v6049, 4294901760
    %7964 = vmatpush.msra.mxu0 %v7963
    %v7965 = vand.u32 %v6048, 4294901760
    %7966 = vmatpush.msra.mxu0 %v7965
    %v7967 = vand.u32 %v6047, 4294901760
    %7968 = vmatpush.msra.mxu0 %v7967
    %v7969 = vand.u32 %v6046, 4294901760
    %7970 = vmatpush.msra.mxu0 %v7969
    %v7971 = vand.u32 %v6045, 4294901760
    %7972 = vmatpush.msra.mxu0 %v7971
    %v7973 = vand.u32 %v6044, 4294901760
    %7974 = vmatpush.msra.mxu0 %v7973
    %v7975 = vand.u32 %v5968, 4294901760
    %7976 = vmatmul.f32.gmra.mxu0 %v7975
    %v7977 = vpop.f32.mrf.mxu0
    %v7978 = vadd.f32 %v7937, %v7977
    %v7979 = vand.u32 %v5976, 4294901760
    %7980 = vmatmul.f32.gmra.mxu0 %v7979
    %v7981 = vpop.f32.mrf.mxu0
    %v7982 = vadd.f32 %v7941, %v7981
    %7983 = vdwg.mxu0
    %v7984 = vand.u32 %v6075, 4294901760
    %7985 = vmatpush.msra.mxu0 %v7984
    %v7986 = vand.u32 %v6074, 4294901760
    %7987 = vmatpush.msra.mxu0 %v7986
    %v7988 = vand.u32 %v6073, 4294901760
    %7989 = vmatpush.msra.mxu0 %v7988
    %v7990 = vand.u32 %v6072, 4294901760
    %7991 = vmatpush.msra.mxu0 %v7990
    %v7992 = vand.u32 %v6071, 4294901760
    %7993 = vmatpush.msra.mxu0 %v7992
    %v7994 = vand.u32 %v6070, 4294901760
    %7995 = vmatpush.msra.mxu0 %v7994
    %v7996 = vand.u32 %v6069, 4294901760
    %7997 = vmatpush.msra.mxu0 %v7996
    %v7998 = vand.u32 %v6068, 4294901760
    %7999 = vmatpush.msra.mxu0 %v7998
    %v8000 = vand.u32 %v6067, 4294901760
    %8001 = vmatpush.msra.mxu0 %v8000
    %v8002 = vand.u32 %v6066, 4294901760
    %8003 = vmatpush.msra.mxu0 %v8002
    %v8004 = vand.u32 %v6065, 4294901760
    %8005 = vmatpush.msra.mxu0 %v8004
    %v8006 = vand.u32 %v6064, 4294901760
    %8007 = vmatpush.msra.mxu0 %v8006
    %v8008 = vand.u32 %v6063, 4294901760
    %8009 = vmatpush.msra.mxu0 %v8008
    %v8010 = vand.u32 %v6062, 4294901760
    %8011 = vmatpush.msra.mxu0 %v8010
    %v8012 = vand.u32 %v6061, 4294901760
    %8013 = vmatpush.msra.mxu0 %v8012
    %v8014 = vand.u32 %v6060, 4294901760
    %8015 = vmatpush.msra.mxu0 %v8014
    %v8016 = vand.u32 %v5969, 4294901760
    %v8017 = vsub.f32 %v5969, %v8016
    %v8018 = vand.u32 %v8017, 4294901760
    %v8019 = vsub.f32 %v8017, %v8018
    %v8020 = vand.u32 %v8019, 4294901760
    %8021 = vmatmul.f32.gmra.mxu0 %v8020
    %v8022 = vpop.f32.mrf.mxu0
    %v8023 = vadd.f32 %v7978, %v8022
    %v8024 = vand.u32 %v5977, 4294901760
    %v8025 = vsub.f32 %v5977, %v8024
    %v8026 = vand.u32 %v8025, 4294901760
    %v8027 = vsub.f32 %v8025, %v8026
    %v8028 = vand.u32 %v8027, 4294901760
    %8029 = vmatmul.f32.gmra.mxu0 %v8028
    %v8030 = vpop.f32.mrf.mxu0
    %v8031 = vadd.f32 %v7982, %v8030
    %8032 = vdwg.mxu0
    %v8033 = vand.u32 %v6075, 4294901760
    %v8034 = vsub.f32 %v6075, %v8033
    %v8035 = vand.u32 %v8034, 4294901760
    %v8036 = vsub.f32 %v8034, %v8035
    %v8037 = vand.u32 %v8036, 4294901760
    %8038 = vmatpush.msra.mxu0 %v8037
    %v8039 = vand.u32 %v6074, 4294901760
    %v8040 = vsub.f32 %v6074, %v8039
    %v8041 = vand.u32 %v8040, 4294901760
    %v8042 = vsub.f32 %v8040, %v8041
    %v8043 = vand.u32 %v8042, 4294901760
    %8044 = vmatpush.msra.mxu0 %v8043
    %v8045 = vand.u32 %v6073, 4294901760
    %v8046 = vsub.f32 %v6073, %v8045
    %v8047 = vand.u32 %v8046, 4294901760
    %v8048 = vsub.f32 %v8046, %v8047
    %v8049 = vand.u32 %v8048, 4294901760
    %8050 = vmatpush.msra.mxu0 %v8049
    %v8051 = vand.u32 %v6072, 4294901760
    %v8052 = vsub.f32 %v6072, %v8051
    %v8053 = vand.u32 %v8052, 4294901760
    %v8054 = vsub.f32 %v8052, %v8053
    %v8055 = vand.u32 %v8054, 4294901760
    %8056 = vmatpush.msra.mxu0 %v8055
    %v8057 = vand.u32 %v6071, 4294901760
    %v8058 = vsub.f32 %v6071, %v8057
    %v8059 = vand.u32 %v8058, 4294901760
    %v8060 = vsub.f32 %v8058, %v8059
    %v8061 = vand.u32 %v8060, 4294901760
    %8062 = vmatpush.msra.mxu0 %v8061
    %v8063 = vand.u32 %v6070, 4294901760
    %v8064 = vsub.f32 %v6070, %v8063
    %v8065 = vand.u32 %v8064, 4294901760
    %v8066 = vsub.f32 %v8064, %v8065
    %v8067 = vand.u32 %v8066, 4294901760
    %8068 = vmatpush.msra.mxu0 %v8067
    %v8069 = vand.u32 %v6069, 4294901760
    %v8070 = vsub.f32 %v6069, %v8069
    %v8071 = vand.u32 %v8070, 4294901760
    %v8072 = vsub.f32 %v8070, %v8071
    %v8073 = vand.u32 %v8072, 4294901760
    %8074 = vmatpush.msra.mxu0 %v8073
    %v8075 = vand.u32 %v6068, 4294901760
    %v8076 = vsub.f32 %v6068, %v8075
    %v8077 = vand.u32 %v8076, 4294901760
    %v8078 = vsub.f32 %v8076, %v8077
    %v8079 = vand.u32 %v8078, 4294901760
    %8080 = vmatpush.msra.mxu0 %v8079
    %v8081 = vand.u32 %v6067, 4294901760
    %v8082 = vsub.f32 %v6067, %v8081
    %v8083 = vand.u32 %v8082, 4294901760
    %v8084 = vsub.f32 %v8082, %v8083
    %v8085 = vand.u32 %v8084, 4294901760
    %8086 = vmatpush.msra.mxu0 %v8085
    %v8087 = vand.u32 %v6066, 4294901760
    %v8088 = vsub.f32 %v6066, %v8087
    %v8089 = vand.u32 %v8088, 4294901760
    %v8090 = vsub.f32 %v8088, %v8089
    %v8091 = vand.u32 %v8090, 4294901760
    %8092 = vmatpush.msra.mxu0 %v8091
    %v8093 = vand.u32 %v6065, 4294901760
    %v8094 = vsub.f32 %v6065, %v8093
    %v8095 = vand.u32 %v8094, 4294901760
    %v8096 = vsub.f32 %v8094, %v8095
    %v8097 = vand.u32 %v8096, 4294901760
    %8098 = vmatpush.msra.mxu0 %v8097
    %v8099 = vand.u32 %v6064, 4294901760
    %v8100 = vsub.f32 %v6064, %v8099
    %v8101 = vand.u32 %v8100, 4294901760
    %v8102 = vsub.f32 %v8100, %v8101
    %v8103 = vand.u32 %v8102, 4294901760
    %8104 = vmatpush.msra.mxu0 %v8103
    %v8105 = vand.u32 %v6063, 4294901760
    %v8106 = vsub.f32 %v6063, %v8105
    %v8107 = vand.u32 %v8106, 4294901760
    %v8108 = vsub.f32 %v8106, %v8107
    %v8109 = vand.u32 %v8108, 4294901760
    %8110 = vmatpush.msra.mxu0 %v8109
    %v8111 = vand.u32 %v6062, 4294901760
    %v8112 = vsub.f32 %v6062, %v8111
    %v8113 = vand.u32 %v8112, 4294901760
    %v8114 = vsub.f32 %v8112, %v8113
    %v8115 = vand.u32 %v8114, 4294901760
    %8116 = vmatpush.msra.mxu0 %v8115
    %v8117 = vand.u32 %v6061, 4294901760
    %v8118 = vsub.f32 %v6061, %v8117
    %v8119 = vand.u32 %v8118, 4294901760
    %v8120 = vsub.f32 %v8118, %v8119
    %v8121 = vand.u32 %v8120, 4294901760
    %8122 = vmatpush.msra.mxu0 %v8121
    %v8123 = vand.u32 %v6060, 4294901760
    %v8124 = vsub.f32 %v6060, %v8123
    %v8125 = vand.u32 %v8124, 4294901760
    %v8126 = vsub.f32 %v8124, %v8125
    %v8127 = vand.u32 %v8126, 4294901760
    %8128 = vmatpush.msra.mxu0 %v8127
    %v8129 = vand.u32 %v5969, 4294901760
    %8130 = vmatmul.f32.gmra.mxu0 %v8129
    %v8131 = vpop.f32.mrf.mxu0
    %v8132 = vadd.f32 %v8023, %v8131
    %v8133 = vand.u32 %v5977, 4294901760
    %8134 = vmatmul.f32.gmra.mxu0 %v8133
    %v8135 = vpop.f32.mrf.mxu0
    %v8136 = vadd.f32 %v8031, %v8135
    %8137 = vdwg.mxu0
    %v8138 = vand.u32 %v6075, 4294901760
    %v8139 = vsub.f32 %v6075, %v8138
    %8140 = vmatpush.msra.mxu0 %v8139
    %v8141 = vand.u32 %v6074, 4294901760
    %v8142 = vsub.f32 %v6074, %v8141
    %8143 = vmatpush.msra.mxu0 %v8142
    %v8144 = vand.u32 %v6073, 4294901760
    %v8145 = vsub.f32 %v6073, %v8144
    %8146 = vmatpush.msra.mxu0 %v8145
    %v8147 = vand.u32 %v6072, 4294901760
    %v8148 = vsub.f32 %v6072, %v8147
    %8149 = vmatpush.msra.mxu0 %v8148
    %v8150 = vand.u32 %v6071, 4294901760
    %v8151 = vsub.f32 %v6071, %v8150
    %8152 = vmatpush.msra.mxu0 %v8151
    %v8153 = vand.u32 %v6070, 4294901760
    %v8154 = vsub.f32 %v6070, %v8153
    %8155 = vmatpush.msra.mxu0 %v8154
    %v8156 = vand.u32 %v6069, 4294901760
    %v8157 = vsub.f32 %v6069, %v8156
    %8158 = vmatpush.msra.mxu0 %v8157
    %v8159 = vand.u32 %v6068, 4294901760
    %v8160 = vsub.f32 %v6068, %v8159
    %8161 = vmatpush.msra.mxu0 %v8160
    %v8162 = vand.u32 %v6067, 4294901760
    %v8163 = vsub.f32 %v6067, %v8162
    %8164 = vmatpush.msra.mxu0 %v8163
    %v8165 = vand.u32 %v6066, 4294901760
    %v8166 = vsub.f32 %v6066, %v8165
    %8167 = vmatpush.msra.mxu0 %v8166
    %v8168 = vand.u32 %v6065, 4294901760
    %v8169 = vsub.f32 %v6065, %v8168
    %8170 = vmatpush.msra.mxu0 %v8169
    %v8171 = vand.u32 %v6064, 4294901760
    %v8172 = vsub.f32 %v6064, %v8171
    %8173 = vmatpush.msra.mxu0 %v8172
    %v8174 = vand.u32 %v6063, 4294901760
    %v8175 = vsub.f32 %v6063, %v8174
    %8176 = vmatpush.msra.mxu0 %v8175
    %v8177 = vand.u32 %v6062, 4294901760
    %v8178 = vsub.f32 %v6062, %v8177
    %8179 = vmatpush.msra.mxu0 %v8178
    %v8180 = vand.u32 %v6061, 4294901760
    %v8181 = vsub.f32 %v6061, %v8180
    %8182 = vmatpush.msra.mxu0 %v8181
    %v8183 = vand.u32 %v6060, 4294901760
    %v8184 = vsub.f32 %v6060, %v8183
    %8185 = vmatpush.msra.mxu0 %v8184
    %v8186 = vand.u32 %v5969, 4294901760
    %v8187 = vsub.f32 %v5969, %v8186
    %8188 = vmatmul.f32.gmra.mxu0 %v8187
    %v8189 = vpop.f32.mrf.mxu0
    %v8190 = vadd.f32 %v8132, %v8189
    %v8191 = vand.u32 %v5977, 4294901760
    %v8192 = vsub.f32 %v5977, %v8191
    %8193 = vmatmul.f32.gmra.mxu0 %v8192
    %v8194 = vpop.f32.mrf.mxu0
    %v8195 = vadd.f32 %v8136, %v8194
    %8196 = vdwg.mxu0
    %v8197 = vand.u32 %v6075, 4294901760
    %8198 = vmatpush.msra.mxu0 %v8197
    %v8199 = vand.u32 %v6074, 4294901760
    %8200 = vmatpush.msra.mxu0 %v8199
    %v8201 = vand.u32 %v6073, 4294901760
    %8202 = vmatpush.msra.mxu0 %v8201
    %v8203 = vand.u32 %v6072, 4294901760
    %8204 = vmatpush.msra.mxu0 %v8203
    %v8205 = vand.u32 %v6071, 4294901760
    %8206 = vmatpush.msra.mxu0 %v8205
    %v8207 = vand.u32 %v6070, 4294901760
    %8208 = vmatpush.msra.mxu0 %v8207
    %v8209 = vand.u32 %v6069, 4294901760
    %8210 = vmatpush.msra.mxu0 %v8209
    %v8211 = vand.u32 %v6068, 4294901760
    %8212 = vmatpush.msra.mxu0 %v8211
    %v8213 = vand.u32 %v6067, 4294901760
    %8214 = vmatpush.msra.mxu0 %v8213
    %v8215 = vand.u32 %v6066, 4294901760
    %8216 = vmatpush.msra.mxu0 %v8215
    %v8217 = vand.u32 %v6065, 4294901760
    %8218 = vmatpush.msra.mxu0 %v8217
    %v8219 = vand.u32 %v6064, 4294901760
    %8220 = vmatpush.msra.mxu0 %v8219
    %v8221 = vand.u32 %v6063, 4294901760
    %8222 = vmatpush.msra.mxu0 %v8221
    %v8223 = vand.u32 %v6062, 4294901760
    %8224 = vmatpush.msra.mxu0 %v8223
    %v8225 = vand.u32 %v6061, 4294901760
    %8226 = vmatpush.msra.mxu0 %v8225
    %v8227 = vand.u32 %v6060, 4294901760
    %8228 = vmatpush.msra.mxu0 %v8227
    %v8229 = vand.u32 %v5969, 4294901760
    %v8230 = vsub.f32 %v5969, %v8229
    %v8231 = vand.u32 %v8230, 4294901760
    %8232 = vmatmul.f32.gmra.mxu0 %v8231
    %v8233 = vpop.f32.mrf.mxu0
    %v8234 = vadd.f32 %v8190, %v8233
    %v8235 = vand.u32 %v5977, 4294901760
    %v8236 = vsub.f32 %v5977, %v8235
    %v8237 = vand.u32 %v8236, 4294901760
    %8238 = vmatmul.f32.gmra.mxu0 %v8237
    %v8239 = vpop.f32.mrf.mxu0
    %v8240 = vadd.f32 %v8195, %v8239
    %8241 = vdwg.mxu0
    %v8242 = vand.u32 %v6075, 4294901760
    %v8243 = vsub.f32 %v6075, %v8242
    %v8244 = vand.u32 %v8243, 4294901760
    %8245 = vmatpush.msra.mxu0 %v8244
    %v8246 = vand.u32 %v6074, 4294901760
    %v8247 = vsub.f32 %v6074, %v8246
    %v8248 = vand.u32 %v8247, 4294901760
    %8249 = vmatpush.msra.mxu0 %v8248
    %v8250 = vand.u32 %v6073, 4294901760
    %v8251 = vsub.f32 %v6073, %v8250
    %v8252 = vand.u32 %v8251, 4294901760
    %8253 = vmatpush.msra.mxu0 %v8252
    %v8254 = vand.u32 %v6072, 4294901760
    %v8255 = vsub.f32 %v6072, %v8254
    %v8256 = vand.u32 %v8255, 4294901760
    %8257 = vmatpush.msra.mxu0 %v8256
    %v8258 = vand.u32 %v6071, 4294901760
    %v8259 = vsub.f32 %v6071, %v8258
    %v8260 = vand.u32 %v8259, 4294901760
    %8261 = vmatpush.msra.mxu0 %v8260
    %v8262 = vand.u32 %v6070, 4294901760
    %v8263 = vsub.f32 %v6070, %v8262
    %v8264 = vand.u32 %v8263, 4294901760
    %8265 = vmatpush.msra.mxu0 %v8264
    %v8266 = vand.u32 %v6069, 4294901760
    %v8267 = vsub.f32 %v6069, %v8266
    %v8268 = vand.u32 %v8267, 4294901760
    %8269 = vmatpush.msra.mxu0 %v8268
    %v8270 = vand.u32 %v6068, 4294901760
    %v8271 = vsub.f32 %v6068, %v8270
    %v8272 = vand.u32 %v8271, 4294901760
    %8273 = vmatpush.msra.mxu0 %v8272
    %v8274 = vand.u32 %v6067, 4294901760
    %v8275 = vsub.f32 %v6067, %v8274
    %v8276 = vand.u32 %v8275, 4294901760
    %8277 = vmatpush.msra.mxu0 %v8276
    %v8278 = vand.u32 %v6066, 4294901760
    %v8279 = vsub.f32 %v6066, %v8278
    %v8280 = vand.u32 %v8279, 4294901760
    %8281 = vmatpush.msra.mxu0 %v8280
    %v8282 = vand.u32 %v6065, 4294901760
    %v8283 = vsub.f32 %v6065, %v8282
    %v8284 = vand.u32 %v8283, 4294901760
    %8285 = vmatpush.msra.mxu0 %v8284
    %v8286 = vand.u32 %v6064, 4294901760
    %v8287 = vsub.f32 %v6064, %v8286
    %v8288 = vand.u32 %v8287, 4294901760
    %8289 = vmatpush.msra.mxu0 %v8288
    %v8290 = vand.u32 %v6063, 4294901760
    %v8291 = vsub.f32 %v6063, %v8290
    %v8292 = vand.u32 %v8291, 4294901760
    %8293 = vmatpush.msra.mxu0 %v8292
    %v8294 = vand.u32 %v6062, 4294901760
    %v8295 = vsub.f32 %v6062, %v8294
    %v8296 = vand.u32 %v8295, 4294901760
    %8297 = vmatpush.msra.mxu0 %v8296
    %v8298 = vand.u32 %v6061, 4294901760
    %v8299 = vsub.f32 %v6061, %v8298
    %v8300 = vand.u32 %v8299, 4294901760
    %8301 = vmatpush.msra.mxu0 %v8300
    %v8302 = vand.u32 %v6060, 4294901760
    %v8303 = vsub.f32 %v6060, %v8302
    %v8304 = vand.u32 %v8303, 4294901760
    %8305 = vmatpush.msra.mxu0 %v8304
    %v8306 = vand.u32 %v5969, 4294901760
    %8307 = vmatmul.f32.gmra.mxu0 %v8306
    %v8308 = vpop.f32.mrf.mxu0
    %v8309 = vadd.f32 %v8234, %v8308
    %v8310 = vand.u32 %v5977, 4294901760
    %8311 = vmatmul.f32.gmra.mxu0 %v8310
    %v8312 = vpop.f32.mrf.mxu0
    %v8313 = vadd.f32 %v8240, %v8312
    %8314 = vdwg.mxu0
    %v8315 = vand.u32 %v6075, 4294901760
    %8316 = vmatpush.msra.mxu0 %v8315
    %v8317 = vand.u32 %v6074, 4294901760
    %8318 = vmatpush.msra.mxu0 %v8317
    %v8319 = vand.u32 %v6073, 4294901760
    %8320 = vmatpush.msra.mxu0 %v8319
    %v8321 = vand.u32 %v6072, 4294901760
    %8322 = vmatpush.msra.mxu0 %v8321
    %v8323 = vand.u32 %v6071, 4294901760
    %8324 = vmatpush.msra.mxu0 %v8323
    %v8325 = vand.u32 %v6070, 4294901760
    %8326 = vmatpush.msra.mxu0 %v8325
    %v8327 = vand.u32 %v6069, 4294901760
    %8328 = vmatpush.msra.mxu0 %v8327
    %v8329 = vand.u32 %v6068, 4294901760
    %8330 = vmatpush.msra.mxu0 %v8329
    %v8331 = vand.u32 %v6067, 4294901760
    %8332 = vmatpush.msra.mxu0 %v8331
    %v8333 = vand.u32 %v6066, 4294901760
    %8334 = vmatpush.msra.mxu0 %v8333
    %v8335 = vand.u32 %v6065, 4294901760
    %8336 = vmatpush.msra.mxu0 %v8335
    %v8337 = vand.u32 %v6064, 4294901760
    %8338 = vmatpush.msra.mxu0 %v8337
    %v8339 = vand.u32 %v6063, 4294901760
    %8340 = vmatpush.msra.mxu0 %v8339
    %v8341 = vand.u32 %v6062, 4294901760
    %8342 = vmatpush.msra.mxu0 %v8341
    %v8343 = vand.u32 %v6061, 4294901760
    %8344 = vmatpush.msra.mxu0 %v8343
    %v8345 = vand.u32 %v6060, 4294901760
    %8346 = vmatpush.msra.mxu0 %v8345
    %v8347 = vand.u32 %v5969, 4294901760
    %8348 = vmatmul.f32.gmra.mxu0 %v8347
    %v8349 = vpop.f32.mrf.mxu0
    %v8350 = vadd.f32 %v8309, %v8349
    %v8351 = vand.u32 %v5977, 4294901760
    %8352 = vmatmul.f32.gmra.mxu0 %v8351
    %v8353 = vpop.f32.mrf.mxu0
    %v8354 = vadd.f32 %v8313, %v8353
    %8355 = vdwg.mxu0
    %v8356 = vand.u32 %v6091, 4294901760
    %8357 = vmatpush.msra.mxu0 %v8356
    %v8358 = vand.u32 %v6090, 4294901760
    %8359 = vmatpush.msra.mxu0 %v8358
    %v8360 = vand.u32 %v6089, 4294901760
    %8361 = vmatpush.msra.mxu0 %v8360
    %v8362 = vand.u32 %v6088, 4294901760
    %8363 = vmatpush.msra.mxu0 %v8362
    %v8364 = vand.u32 %v6087, 4294901760
    %8365 = vmatpush.msra.mxu0 %v8364
    %v8366 = vand.u32 %v6086, 4294901760
    %8367 = vmatpush.msra.mxu0 %v8366
    %v8368 = vand.u32 %v6085, 4294901760
    %8369 = vmatpush.msra.mxu0 %v8368
    %v8370 = vand.u32 %v6084, 4294901760
    %8371 = vmatpush.msra.mxu0 %v8370
    %v8372 = vand.u32 %v6083, 4294901760
    %8373 = vmatpush.msra.mxu0 %v8372
    %v8374 = vand.u32 %v6082, 4294901760
    %8375 = vmatpush.msra.mxu0 %v8374
    %v8376 = vand.u32 %v6081, 4294901760
    %8377 = vmatpush.msra.mxu0 %v8376
    %v8378 = vand.u32 %v6080, 4294901760
    %8379 = vmatpush.msra.mxu0 %v8378
    %v8380 = vand.u32 %v6079, 4294901760
    %8381 = vmatpush.msra.mxu0 %v8380
    %v8382 = vand.u32 %v6078, 4294901760
    %8383 = vmatpush.msra.mxu0 %v8382
    %v8384 = vand.u32 %v6077, 4294901760
    %8385 = vmatpush.msra.mxu0 %v8384
    %v8386 = vand.u32 %v6076, 4294901760
    %8387 = vmatpush.msra.mxu0 %v8386
    %v8388 = vand.u32 %v5970, 4294901760
    %v8389 = vsub.f32 %v5970, %v8388
    %v8390 = vand.u32 %v8389, 4294901760
    %v8391 = vsub.f32 %v8389, %v8390
    %v8392 = vand.u32 %v8391, 4294901760
    %8393 = vmatmul.f32.gmra.mxu0 %v8392
    %v8394 = vpop.f32.mrf.mxu0
    %v8395 = vadd.f32 %v8350, %v8394
    %v8396 = vand.u32 %v5978, 4294901760
    %v8397 = vsub.f32 %v5978, %v8396
    %v8398 = vand.u32 %v8397, 4294901760
    %v8399 = vsub.f32 %v8397, %v8398
    %v8400 = vand.u32 %v8399, 4294901760
    %8401 = vmatmul.f32.gmra.mxu0 %v8400
    %v8402 = vpop.f32.mrf.mxu0
    %v8403 = vadd.f32 %v8354, %v8402
    %8404 = vdwg.mxu0
    %v8405 = vand.u32 %v6091, 4294901760
    %v8406 = vsub.f32 %v6091, %v8405
    %v8407 = vand.u32 %v8406, 4294901760
    %v8408 = vsub.f32 %v8406, %v8407
    %v8409 = vand.u32 %v8408, 4294901760
    %8410 = vmatpush.msra.mxu0 %v8409
    %v8411 = vand.u32 %v6090, 4294901760
    %v8412 = vsub.f32 %v6090, %v8411
    %v8413 = vand.u32 %v8412, 4294901760
    %v8414 = vsub.f32 %v8412, %v8413
    %v8415 = vand.u32 %v8414, 4294901760
    %8416 = vmatpush.msra.mxu0 %v8415
    %v8417 = vand.u32 %v6089, 4294901760
    %v8418 = vsub.f32 %v6089, %v8417
    %v8419 = vand.u32 %v8418, 4294901760
    %v8420 = vsub.f32 %v8418, %v8419
    %v8421 = vand.u32 %v8420, 4294901760
    %8422 = vmatpush.msra.mxu0 %v8421
    %v8423 = vand.u32 %v6088, 4294901760
    %v8424 = vsub.f32 %v6088, %v8423
    %v8425 = vand.u32 %v8424, 4294901760
    %v8426 = vsub.f32 %v8424, %v8425
    %v8427 = vand.u32 %v8426, 4294901760
    %8428 = vmatpush.msra.mxu0 %v8427
    %v8429 = vand.u32 %v6087, 4294901760
    %v8430 = vsub.f32 %v6087, %v8429
    %v8431 = vand.u32 %v8430, 4294901760
    %v8432 = vsub.f32 %v8430, %v8431
    %v8433 = vand.u32 %v8432, 4294901760
    %8434 = vmatpush.msra.mxu0 %v8433
    %v8435 = vand.u32 %v6086, 4294901760
    %v8436 = vsub.f32 %v6086, %v8435
    %v8437 = vand.u32 %v8436, 4294901760
    %v8438 = vsub.f32 %v8436, %v8437
    %v8439 = vand.u32 %v8438, 4294901760
    %8440 = vmatpush.msra.mxu0 %v8439
    %v8441 = vand.u32 %v6085, 4294901760
    %v8442 = vsub.f32 %v6085, %v8441
    %v8443 = vand.u32 %v8442, 4294901760
    %v8444 = vsub.f32 %v8442, %v8443
    %v8445 = vand.u32 %v8444, 4294901760
    %8446 = vmatpush.msra.mxu0 %v8445
    %v8447 = vand.u32 %v6084, 4294901760
    %v8448 = vsub.f32 %v6084, %v8447
    %v8449 = vand.u32 %v8448, 4294901760
    %v8450 = vsub.f32 %v8448, %v8449
    %v8451 = vand.u32 %v8450, 4294901760
    %8452 = vmatpush.msra.mxu0 %v8451
    %v8453 = vand.u32 %v6083, 4294901760
    %v8454 = vsub.f32 %v6083, %v8453
    %v8455 = vand.u32 %v8454, 4294901760
    %v8456 = vsub.f32 %v8454, %v8455
    %v8457 = vand.u32 %v8456, 4294901760
    %8458 = vmatpush.msra.mxu0 %v8457
    %v8459 = vand.u32 %v6082, 4294901760
    %v8460 = vsub.f32 %v6082, %v8459
    %v8461 = vand.u32 %v8460, 4294901760
    %v8462 = vsub.f32 %v8460, %v8461
    %v8463 = vand.u32 %v8462, 4294901760
    %8464 = vmatpush.msra.mxu0 %v8463
    %v8465 = vand.u32 %v6081, 4294901760
    %v8466 = vsub.f32 %v6081, %v8465
    %v8467 = vand.u32 %v8466, 4294901760
    %v8468 = vsub.f32 %v8466, %v8467
    %v8469 = vand.u32 %v8468, 4294901760
    %8470 = vmatpush.msra.mxu0 %v8469
    %v8471 = vand.u32 %v6080, 4294901760
    %v8472 = vsub.f32 %v6080, %v8471
    %v8473 = vand.u32 %v8472, 4294901760
    %v8474 = vsub.f32 %v8472, %v8473
    %v8475 = vand.u32 %v8474, 4294901760
    %8476 = vmatpush.msra.mxu0 %v8475
    %v8477 = vand.u32 %v6079, 4294901760
    %v8478 = vsub.f32 %v6079, %v8477
    %v8479 = vand.u32 %v8478, 4294901760
    %v8480 = vsub.f32 %v8478, %v8479
    %v8481 = vand.u32 %v8480, 4294901760
    %8482 = vmatpush.msra.mxu0 %v8481
    %v8483 = vand.u32 %v6078, 4294901760
    %v8484 = vsub.f32 %v6078, %v8483
    %v8485 = vand.u32 %v8484, 4294901760
    %v8486 = vsub.f32 %v8484, %v8485
    %v8487 = vand.u32 %v8486, 4294901760
    %8488 = vmatpush.msra.mxu0 %v8487
    %v8489 = vand.u32 %v6077, 4294901760
    %v8490 = vsub.f32 %v6077, %v8489
    %v8491 = vand.u32 %v8490, 4294901760
    %v8492 = vsub.f32 %v8490, %v8491
    %v8493 = vand.u32 %v8492, 4294901760
    %8494 = vmatpush.msra.mxu0 %v8493
    %v8495 = vand.u32 %v6076, 4294901760
    %v8496 = vsub.f32 %v6076, %v8495
    %v8497 = vand.u32 %v8496, 4294901760
    %v8498 = vsub.f32 %v8496, %v8497
    %v8499 = vand.u32 %v8498, 4294901760
    %8500 = vmatpush.msra.mxu0 %v8499
    %v8501 = vand.u32 %v5970, 4294901760
    %8502 = vmatmul.f32.gmra.mxu0 %v8501
    %v8503 = vpop.f32.mrf.mxu0
    %v8504 = vadd.f32 %v8395, %v8503
    %v8505 = vand.u32 %v5978, 4294901760
    %8506 = vmatmul.f32.gmra.mxu0 %v8505
    %v8507 = vpop.f32.mrf.mxu0
    %v8508 = vadd.f32 %v8403, %v8507
    %8509 = vdwg.mxu0
    %v8510 = vand.u32 %v6091, 4294901760
    %v8511 = vsub.f32 %v6091, %v8510
    %8512 = vmatpush.msra.mxu0 %v8511
    %v8513 = vand.u32 %v6090, 4294901760
    %v8514 = vsub.f32 %v6090, %v8513
    %8515 = vmatpush.msra.mxu0 %v8514
    %v8516 = vand.u32 %v6089, 4294901760
    %v8517 = vsub.f32 %v6089, %v8516
    %8518 = vmatpush.msra.mxu0 %v8517
    %v8519 = vand.u32 %v6088, 4294901760
    %v8520 = vsub.f32 %v6088, %v8519
    %8521 = vmatpush.msra.mxu0 %v8520
    %v8522 = vand.u32 %v6087, 4294901760
    %v8523 = vsub.f32 %v6087, %v8522
    %8524 = vmatpush.msra.mxu0 %v8523
    %v8525 = vand.u32 %v6086, 4294901760
    %v8526 = vsub.f32 %v6086, %v8525
    %8527 = vmatpush.msra.mxu0 %v8526
    %v8528 = vand.u32 %v6085, 4294901760
    %v8529 = vsub.f32 %v6085, %v8528
    %8530 = vmatpush.msra.mxu0 %v8529
    %v8531 = vand.u32 %v6084, 4294901760
    %v8532 = vsub.f32 %v6084, %v8531
    %8533 = vmatpush.msra.mxu0 %v8532
    %v8534 = vand.u32 %v6083, 4294901760
    %v8535 = vsub.f32 %v6083, %v8534
    %8536 = vmatpush.msra.mxu0 %v8535
    %v8537 = vand.u32 %v6082, 4294901760
    %v8538 = vsub.f32 %v6082, %v8537
    %8539 = vmatpush.msra.mxu0 %v8538
    %v8540 = vand.u32 %v6081, 4294901760
    %v8541 = vsub.f32 %v6081, %v8540
    %8542 = vmatpush.msra.mxu0 %v8541
    %v8543 = vand.u32 %v6080, 4294901760
    %v8544 = vsub.f32 %v6080, %v8543
    %8545 = vmatpush.msra.mxu0 %v8544
    %v8546 = vand.u32 %v6079, 4294901760
    %v8547 = vsub.f32 %v6079, %v8546
    %8548 = vmatpush.msra.mxu0 %v8547
    %v8549 = vand.u32 %v6078, 4294901760
    %v8550 = vsub.f32 %v6078, %v8549
    %8551 = vmatpush.msra.mxu0 %v8550
    %v8552 = vand.u32 %v6077, 4294901760
    %v8553 = vsub.f32 %v6077, %v8552
    %8554 = vmatpush.msra.mxu0 %v8553
    %v8555 = vand.u32 %v6076, 4294901760
    %v8556 = vsub.f32 %v6076, %v8555
    %8557 = vmatpush.msra.mxu0 %v8556
    %v8558 = vand.u32 %v5970, 4294901760
    %v8559 = vsub.f32 %v5970, %v8558
    %8560 = vmatmul.f32.gmra.mxu0 %v8559
    %v8561 = vpop.f32.mrf.mxu0
    %v8562 = vadd.f32 %v8504, %v8561
    %v8563 = vand.u32 %v5978, 4294901760
    %v8564 = vsub.f32 %v5978, %v8563
    %8565 = vmatmul.f32.gmra.mxu0 %v8564
    %v8566 = vpop.f32.mrf.mxu0
    %v8567 = vadd.f32 %v8508, %v8566
    %8568 = vdwg.mxu0
    %v8569 = vand.u32 %v6091, 4294901760
    %8570 = vmatpush.msra.mxu0 %v8569
    %v8571 = vand.u32 %v6090, 4294901760
    %8572 = vmatpush.msra.mxu0 %v8571
    %v8573 = vand.u32 %v6089, 4294901760
    %8574 = vmatpush.msra.mxu0 %v8573
    %v8575 = vand.u32 %v6088, 4294901760
    %8576 = vmatpush.msra.mxu0 %v8575
    %v8577 = vand.u32 %v6087, 4294901760
    %8578 = vmatpush.msra.mxu0 %v8577
    %v8579 = vand.u32 %v6086, 4294901760
    %8580 = vmatpush.msra.mxu0 %v8579
    %v8581 = vand.u32 %v6085, 4294901760
    %8582 = vmatpush.msra.mxu0 %v8581
    %v8583 = vand.u32 %v6084, 4294901760
    %8584 = vmatpush.msra.mxu0 %v8583
    %v8585 = vand.u32 %v6083, 4294901760
    %8586 = vmatpush.msra.mxu0 %v8585
    %v8587 = vand.u32 %v6082, 4294901760
    %8588 = vmatpush.msra.mxu0 %v8587
    %v8589 = vand.u32 %v6081, 4294901760
    %8590 = vmatpush.msra.mxu0 %v8589
    %v8591 = vand.u32 %v6080, 4294901760
    %8592 = vmatpush.msra.mxu0 %v8591
    %v8593 = vand.u32 %v6079, 4294901760
    %8594 = vmatpush.msra.mxu0 %v8593
    %v8595 = vand.u32 %v6078, 4294901760
    %8596 = vmatpush.msra.mxu0 %v8595
    %v8597 = vand.u32 %v6077, 4294901760
    %8598 = vmatpush.msra.mxu0 %v8597
    %v8599 = vand.u32 %v6076, 4294901760
    %8600 = vmatpush.msra.mxu0 %v8599
    %v8601 = vand.u32 %v5970, 4294901760
    %v8602 = vsub.f32 %v5970, %v8601
    %v8603 = vand.u32 %v8602, 4294901760
    %8604 = vmatmul.f32.gmra.mxu0 %v8603
    %v8605 = vpop.f32.mrf.mxu0
    %v8606 = vadd.f32 %v8562, %v8605
    %v8607 = vand.u32 %v5978, 4294901760
    %v8608 = vsub.f32 %v5978, %v8607
    %v8609 = vand.u32 %v8608, 4294901760
    %8610 = vmatmul.f32.gmra.mxu0 %v8609
    %v8611 = vpop.f32.mrf.mxu0
    %v8612 = vadd.f32 %v8567, %v8611
    %8613 = vdwg.mxu0
    %v8614 = vand.u32 %v6091, 4294901760
    %v8615 = vsub.f32 %v6091, %v8614
    %v8616 = vand.u32 %v8615, 4294901760
    %8617 = vmatpush.msra.mxu0 %v8616
    %v8618 = vand.u32 %v6090, 4294901760
    %v8619 = vsub.f32 %v6090, %v8618
    %v8620 = vand.u32 %v8619, 4294901760
    %8621 = vmatpush.msra.mxu0 %v8620
    %v8622 = vand.u32 %v6089, 4294901760
    %v8623 = vsub.f32 %v6089, %v8622
    %v8624 = vand.u32 %v8623, 4294901760
    %8625 = vmatpush.msra.mxu0 %v8624
    %v8626 = vand.u32 %v6088, 4294901760
    %v8627 = vsub.f32 %v6088, %v8626
    %v8628 = vand.u32 %v8627, 4294901760
    %8629 = vmatpush.msra.mxu0 %v8628
    %v8630 = vand.u32 %v6087, 4294901760
    %v8631 = vsub.f32 %v6087, %v8630
    %v8632 = vand.u32 %v8631, 4294901760
    %8633 = vmatpush.msra.mxu0 %v8632
    %v8634 = vand.u32 %v6086, 4294901760
    %v8635 = vsub.f32 %v6086, %v8634
    %v8636 = vand.u32 %v8635, 4294901760
    %8637 = vmatpush.msra.mxu0 %v8636
    %v8638 = vand.u32 %v6085, 4294901760
    %v8639 = vsub.f32 %v6085, %v8638
    %v8640 = vand.u32 %v8639, 4294901760
    %8641 = vmatpush.msra.mxu0 %v8640
    %v8642 = vand.u32 %v6084, 4294901760
    %v8643 = vsub.f32 %v6084, %v8642
    %v8644 = vand.u32 %v8643, 4294901760
    %8645 = vmatpush.msra.mxu0 %v8644
    %v8646 = vand.u32 %v6083, 4294901760
    %v8647 = vsub.f32 %v6083, %v8646
    %v8648 = vand.u32 %v8647, 4294901760
    %8649 = vmatpush.msra.mxu0 %v8648
    %v8650 = vand.u32 %v6082, 4294901760
    %v8651 = vsub.f32 %v6082, %v8650
    %v8652 = vand.u32 %v8651, 4294901760
    %8653 = vmatpush.msra.mxu0 %v8652
    %v8654 = vand.u32 %v6081, 4294901760
    %v8655 = vsub.f32 %v6081, %v8654
    %v8656 = vand.u32 %v8655, 4294901760
    %8657 = vmatpush.msra.mxu0 %v8656
    %v8658 = vand.u32 %v6080, 4294901760
    %v8659 = vsub.f32 %v6080, %v8658
    %v8660 = vand.u32 %v8659, 4294901760
    %8661 = vmatpush.msra.mxu0 %v8660
    %v8662 = vand.u32 %v6079, 4294901760
    %v8663 = vsub.f32 %v6079, %v8662
    %v8664 = vand.u32 %v8663, 4294901760
    %8665 = vmatpush.msra.mxu0 %v8664
    %v8666 = vand.u32 %v6078, 4294901760
    %v8667 = vsub.f32 %v6078, %v8666
    %v8668 = vand.u32 %v8667, 4294901760
    %8669 = vmatpush.msra.mxu0 %v8668
    %v8670 = vand.u32 %v6077, 4294901760
    %v8671 = vsub.f32 %v6077, %v8670
    %v8672 = vand.u32 %v8671, 4294901760
    %8673 = vmatpush.msra.mxu0 %v8672
    %v8674 = vand.u32 %v6076, 4294901760
    %v8675 = vsub.f32 %v6076, %v8674
    %v8676 = vand.u32 %v8675, 4294901760
    %8677 = vmatpush.msra.mxu0 %v8676
    %v8678 = vand.u32 %v5970, 4294901760
    %8679 = vmatmul.f32.gmra.mxu0 %v8678
    %v8680 = vpop.f32.mrf.mxu0
    %v8681 = vadd.f32 %v8606, %v8680
    %v8682 = vand.u32 %v5978, 4294901760
    %8683 = vmatmul.f32.gmra.mxu0 %v8682
    %v8684 = vpop.f32.mrf.mxu0
    %v8685 = vadd.f32 %v8612, %v8684
    %8686 = vdwg.mxu0
    %v8687 = vand.u32 %v6091, 4294901760
    %8688 = vmatpush.msra.mxu0 %v8687
    %v8689 = vand.u32 %v6090, 4294901760
    %8690 = vmatpush.msra.mxu0 %v8689
    %v8691 = vand.u32 %v6089, 4294901760
    %8692 = vmatpush.msra.mxu0 %v8691
    %v8693 = vand.u32 %v6088, 4294901760
    %8694 = vmatpush.msra.mxu0 %v8693
    %v8695 = vand.u32 %v6087, 4294901760
    %8696 = vmatpush.msra.mxu0 %v8695
    %v8697 = vand.u32 %v6086, 4294901760
    %8698 = vmatpush.msra.mxu0 %v8697
    %v8699 = vand.u32 %v6085, 4294901760
    %8700 = vmatpush.msra.mxu0 %v8699
    %v8701 = vand.u32 %v6084, 4294901760
    %8702 = vmatpush.msra.mxu0 %v8701
    %v8703 = vand.u32 %v6083, 4294901760
    %8704 = vmatpush.msra.mxu0 %v8703
    %v8705 = vand.u32 %v6082, 4294901760
    %8706 = vmatpush.msra.mxu0 %v8705
    %v8707 = vand.u32 %v6081, 4294901760
    %8708 = vmatpush.msra.mxu0 %v8707
    %v8709 = vand.u32 %v6080, 4294901760
    %8710 = vmatpush.msra.mxu0 %v8709
    %v8711 = vand.u32 %v6079, 4294901760
    %8712 = vmatpush.msra.mxu0 %v8711
    %v8713 = vand.u32 %v6078, 4294901760
    %8714 = vmatpush.msra.mxu0 %v8713
    %v8715 = vand.u32 %v6077, 4294901760
    %8716 = vmatpush.msra.mxu0 %v8715
    %v8717 = vand.u32 %v6076, 4294901760
    %8718 = vmatpush.msra.mxu0 %v8717
    %v8719 = vand.u32 %v5970, 4294901760
    %8720 = vmatmul.f32.gmra.mxu0 %v8719
    %v8721 = vpop.f32.mrf.mxu0
    %v8722 = vadd.f32 %v8681, %v8721
    %v8723 = vand.u32 %v5978, 4294901760
    %8724 = vmatmul.f32.gmra.mxu0 %v8723
    %v8725 = vpop.f32.mrf.mxu0
    %v8726 = vadd.f32 %v8685, %v8725
    %8727 = vdwg.mxu0
    %v8728 = vand.u32 %v6107, 4294901760
    %8729 = vmatpush.msra.mxu0 %v8728
    %v8730 = vand.u32 %v6106, 4294901760
    %8731 = vmatpush.msra.mxu0 %v8730
    %v8732 = vand.u32 %v6105, 4294901760
    %8733 = vmatpush.msra.mxu0 %v8732
    %v8734 = vand.u32 %v6104, 4294901760
    %8735 = vmatpush.msra.mxu0 %v8734
    %v8736 = vand.u32 %v6103, 4294901760
    %8737 = vmatpush.msra.mxu0 %v8736
    %v8738 = vand.u32 %v6102, 4294901760
    %8739 = vmatpush.msra.mxu0 %v8738
    %v8740 = vand.u32 %v6101, 4294901760
    %8741 = vmatpush.msra.mxu0 %v8740
    %v8742 = vand.u32 %v6100, 4294901760
    %8743 = vmatpush.msra.mxu0 %v8742
    %v8744 = vand.u32 %v6099, 4294901760
    %8745 = vmatpush.msra.mxu0 %v8744
    %v8746 = vand.u32 %v6098, 4294901760
    %8747 = vmatpush.msra.mxu0 %v8746
    %v8748 = vand.u32 %v6097, 4294901760
    %8749 = vmatpush.msra.mxu0 %v8748
    %v8750 = vand.u32 %v6096, 4294901760
    %8751 = vmatpush.msra.mxu0 %v8750
    %v8752 = vand.u32 %v6095, 4294901760
    %8753 = vmatpush.msra.mxu0 %v8752
    %v8754 = vand.u32 %v6094, 4294901760
    %8755 = vmatpush.msra.mxu0 %v8754
    %v8756 = vand.u32 %v6093, 4294901760
    %8757 = vmatpush.msra.mxu0 %v8756
    %v8758 = vand.u32 %v6092, 4294901760
    %8759 = vmatpush.msra.mxu0 %v8758
    %v8760 = vand.u32 %v5971, 4294901760
    %v8761 = vsub.f32 %v5971, %v8760
    %v8762 = vand.u32 %v8761, 4294901760
    %v8763 = vsub.f32 %v8761, %v8762
    %v8764 = vand.u32 %v8763, 4294901760
    %8765 = vmatmul.f32.gmra.mxu0 %v8764
    %v8766 = vpop.f32.mrf.mxu0
    %v8767 = vadd.f32 %v8722, %v8766
    %v8768 = vand.u32 %v5979, 4294901760
    %v8769 = vsub.f32 %v5979, %v8768
    %v8770 = vand.u32 %v8769, 4294901760
    %v8771 = vsub.f32 %v8769, %v8770
    %v8772 = vand.u32 %v8771, 4294901760
    %8773 = vmatmul.f32.gmra.mxu0 %v8772
    %v8774 = vpop.f32.mrf.mxu0
    %v8775 = vadd.f32 %v8726, %v8774
    %8776 = vdwg.mxu0
    %v8777 = vand.u32 %v6107, 4294901760
    %v8778 = vsub.f32 %v6107, %v8777
    %v8779 = vand.u32 %v8778, 4294901760
    %v8780 = vsub.f32 %v8778, %v8779
    %v8781 = vand.u32 %v8780, 4294901760
    %8782 = vmatpush.msra.mxu0 %v8781
    %v8783 = vand.u32 %v6106, 4294901760
    %v8784 = vsub.f32 %v6106, %v8783
    %v8785 = vand.u32 %v8784, 4294901760
    %v8786 = vsub.f32 %v8784, %v8785
    %v8787 = vand.u32 %v8786, 4294901760
    %8788 = vmatpush.msra.mxu0 %v8787
    %v8789 = vand.u32 %v6105, 4294901760
    %v8790 = vsub.f32 %v6105, %v8789
    %v8791 = vand.u32 %v8790, 4294901760
    %v8792 = vsub.f32 %v8790, %v8791
    %v8793 = vand.u32 %v8792, 4294901760
    %8794 = vmatpush.msra.mxu0 %v8793
    %v8795 = vand.u32 %v6104, 4294901760
    %v8796 = vsub.f32 %v6104, %v8795
    %v8797 = vand.u32 %v8796, 4294901760
    %v8798 = vsub.f32 %v8796, %v8797
    %v8799 = vand.u32 %v8798, 4294901760
    %8800 = vmatpush.msra.mxu0 %v8799
    %v8801 = vand.u32 %v6103, 4294901760
    %v8802 = vsub.f32 %v6103, %v8801
    %v8803 = vand.u32 %v8802, 4294901760
    %v8804 = vsub.f32 %v8802, %v8803
    %v8805 = vand.u32 %v8804, 4294901760
    %8806 = vmatpush.msra.mxu0 %v8805
    %v8807 = vand.u32 %v6102, 4294901760
    %v8808 = vsub.f32 %v6102, %v8807
    %v8809 = vand.u32 %v8808, 4294901760
    %v8810 = vsub.f32 %v8808, %v8809
    %v8811 = vand.u32 %v8810, 4294901760
    %8812 = vmatpush.msra.mxu0 %v8811
    %v8813 = vand.u32 %v6101, 4294901760
    %v8814 = vsub.f32 %v6101, %v8813
    %v8815 = vand.u32 %v8814, 4294901760
    %v8816 = vsub.f32 %v8814, %v8815
    %v8817 = vand.u32 %v8816, 4294901760
    %8818 = vmatpush.msra.mxu0 %v8817
    %v8819 = vand.u32 %v6100, 4294901760
    %v8820 = vsub.f32 %v6100, %v8819
    %v8821 = vand.u32 %v8820, 4294901760
    %v8822 = vsub.f32 %v8820, %v8821
    %v8823 = vand.u32 %v8822, 4294901760
    %8824 = vmatpush.msra.mxu0 %v8823
    %v8825 = vand.u32 %v6099, 4294901760
    %v8826 = vsub.f32 %v6099, %v8825
    %v8827 = vand.u32 %v8826, 4294901760
    %v8828 = vsub.f32 %v8826, %v8827
    %v8829 = vand.u32 %v8828, 4294901760
    %8830 = vmatpush.msra.mxu0 %v8829
    %v8831 = vand.u32 %v6098, 4294901760
    %v8832 = vsub.f32 %v6098, %v8831
    %v8833 = vand.u32 %v8832, 4294901760
    %v8834 = vsub.f32 %v8832, %v8833
    %v8835 = vand.u32 %v8834, 4294901760
    %8836 = vmatpush.msra.mxu0 %v8835
    %v8837 = vand.u32 %v6097, 4294901760
    %v8838 = vsub.f32 %v6097, %v8837
    %v8839 = vand.u32 %v8838, 4294901760
    %v8840 = vsub.f32 %v8838, %v8839
    %v8841 = vand.u32 %v8840, 4294901760
    %8842 = vmatpush.msra.mxu0 %v8841
    %v8843 = vand.u32 %v6096, 4294901760
    %v8844 = vsub.f32 %v6096, %v8843
    %v8845 = vand.u32 %v8844, 4294901760
    %v8846 = vsub.f32 %v8844, %v8845
    %v8847 = vand.u32 %v8846, 4294901760
    %8848 = vmatpush.msra.mxu0 %v8847
    %v8849 = vand.u32 %v6095, 4294901760
    %v8850 = vsub.f32 %v6095, %v8849
    %v8851 = vand.u32 %v8850, 4294901760
    %v8852 = vsub.f32 %v8850, %v8851
    %v8853 = vand.u32 %v8852, 4294901760
    %8854 = vmatpush.msra.mxu0 %v8853
    %v8855 = vand.u32 %v6094, 4294901760
    %v8856 = vsub.f32 %v6094, %v8855
    %v8857 = vand.u32 %v8856, 4294901760
    %v8858 = vsub.f32 %v8856, %v8857
    %v8859 = vand.u32 %v8858, 4294901760
    %8860 = vmatpush.msra.mxu0 %v8859
    %v8861 = vand.u32 %v6093, 4294901760
    %v8862 = vsub.f32 %v6093, %v8861
    %v8863 = vand.u32 %v8862, 4294901760
    %v8864 = vsub.f32 %v8862, %v8863
    %v8865 = vand.u32 %v8864, 4294901760
    %8866 = vmatpush.msra.mxu0 %v8865
    %v8867 = vand.u32 %v6092, 4294901760
    %v8868 = vsub.f32 %v6092, %v8867
    %v8869 = vand.u32 %v8868, 4294901760
    %v8870 = vsub.f32 %v8868, %v8869
    %v8871 = vand.u32 %v8870, 4294901760
    %8872 = vmatpush.msra.mxu0 %v8871
    %v8873 = vand.u32 %v5971, 4294901760
    %8874 = vmatmul.f32.gmra.mxu0 %v8873
    %v8875 = vpop.f32.mrf.mxu0
    %v8876 = vadd.f32 %v8767, %v8875
    %v8877 = vand.u32 %v5979, 4294901760
    %8878 = vmatmul.f32.gmra.mxu0 %v8877
    %v8879 = vpop.f32.mrf.mxu0
    %v8880 = vadd.f32 %v8775, %v8879
    %8881 = vdwg.mxu0
    %v8882 = vand.u32 %v6107, 4294901760
    %v8883 = vsub.f32 %v6107, %v8882
    %8884 = vmatpush.msra.mxu0 %v8883
    %v8885 = vand.u32 %v6106, 4294901760
    %v8886 = vsub.f32 %v6106, %v8885
    %8887 = vmatpush.msra.mxu0 %v8886
    %v8888 = vand.u32 %v6105, 4294901760
    %v8889 = vsub.f32 %v6105, %v8888
    %8890 = vmatpush.msra.mxu0 %v8889
    %v8891 = vand.u32 %v6104, 4294901760
    %v8892 = vsub.f32 %v6104, %v8891
    %8893 = vmatpush.msra.mxu0 %v8892
    %v8894 = vand.u32 %v6103, 4294901760
    %v8895 = vsub.f32 %v6103, %v8894
    %8896 = vmatpush.msra.mxu0 %v8895
    %v8897 = vand.u32 %v6102, 4294901760
    %v8898 = vsub.f32 %v6102, %v8897
    %8899 = vmatpush.msra.mxu0 %v8898
    %v8900 = vand.u32 %v6101, 4294901760
    %v8901 = vsub.f32 %v6101, %v8900
    %8902 = vmatpush.msra.mxu0 %v8901
    %v8903 = vand.u32 %v6100, 4294901760
    %v8904 = vsub.f32 %v6100, %v8903
    %8905 = vmatpush.msra.mxu0 %v8904
    %v8906 = vand.u32 %v6099, 4294901760
    %v8907 = vsub.f32 %v6099, %v8906
    %8908 = vmatpush.msra.mxu0 %v8907
    %v8909 = vand.u32 %v6098, 4294901760
    %v8910 = vsub.f32 %v6098, %v8909
    %8911 = vmatpush.msra.mxu0 %v8910
    %v8912 = vand.u32 %v6097, 4294901760
    %v8913 = vsub.f32 %v6097, %v8912
    %8914 = vmatpush.msra.mxu0 %v8913
    %v8915 = vand.u32 %v6096, 4294901760
    %v8916 = vsub.f32 %v6096, %v8915
    %8917 = vmatpush.msra.mxu0 %v8916
    %v8918 = vand.u32 %v6095, 4294901760
    %v8919 = vsub.f32 %v6095, %v8918
    %8920 = vmatpush.msra.mxu0 %v8919
    %v8921 = vand.u32 %v6094, 4294901760
    %v8922 = vsub.f32 %v6094, %v8921
    %8923 = vmatpush.msra.mxu0 %v8922
    %v8924 = vand.u32 %v6093, 4294901760
    %v8925 = vsub.f32 %v6093, %v8924
    %8926 = vmatpush.msra.mxu0 %v8925
    %v8927 = vand.u32 %v6092, 4294901760
    %v8928 = vsub.f32 %v6092, %v8927
    %8929 = vmatpush.msra.mxu0 %v8928
    %v8930 = vand.u32 %v5971, 4294901760
    %v8931 = vsub.f32 %v5971, %v8930
    %8932 = vmatmul.f32.gmra.mxu0 %v8931
    %v8933 = vpop.f32.mrf.mxu0
    %v8934 = vadd.f32 %v8876, %v8933
    %v8935 = vand.u32 %v5979, 4294901760
    %v8936 = vsub.f32 %v5979, %v8935
    %8937 = vmatmul.f32.gmra.mxu0 %v8936
    %v8938 = vpop.f32.mrf.mxu0
    %v8939 = vadd.f32 %v8880, %v8938
    %8940 = vdwg.mxu0
    %v8941 = vand.u32 %v6107, 4294901760
    %8942 = vmatpush.msra.mxu0 %v8941
    %v8943 = vand.u32 %v6106, 4294901760
    %8944 = vmatpush.msra.mxu0 %v8943
    %v8945 = vand.u32 %v6105, 4294901760
    %8946 = vmatpush.msra.mxu0 %v8945
    %v8947 = vand.u32 %v6104, 4294901760
    %8948 = vmatpush.msra.mxu0 %v8947
    %v8949 = vand.u32 %v6103, 4294901760
    %8950 = vmatpush.msra.mxu0 %v8949
    %v8951 = vand.u32 %v6102, 4294901760
    %8952 = vmatpush.msra.mxu0 %v8951
    %v8953 = vand.u32 %v6101, 4294901760
    %8954 = vmatpush.msra.mxu0 %v8953
    %v8955 = vand.u32 %v6100, 4294901760
    %8956 = vmatpush.msra.mxu0 %v8955
    %v8957 = vand.u32 %v6099, 4294901760
    %8958 = vmatpush.msra.mxu0 %v8957
    %v8959 = vand.u32 %v6098, 4294901760
    %8960 = vmatpush.msra.mxu0 %v8959
    %v8961 = vand.u32 %v6097, 4294901760
    %8962 = vmatpush.msra.mxu0 %v8961
    %v8963 = vand.u32 %v6096, 4294901760
    %8964 = vmatpush.msra.mxu0 %v8963
    %v8965 = vand.u32 %v6095, 4294901760
    %8966 = vmatpush.msra.mxu0 %v8965
    %v8967 = vand.u32 %v6094, 4294901760
    %8968 = vmatpush.msra.mxu0 %v8967
    %v8969 = vand.u32 %v6093, 4294901760
    %8970 = vmatpush.msra.mxu0 %v8969
    %v8971 = vand.u32 %v6092, 4294901760
    %8972 = vmatpush.msra.mxu0 %v8971
    %v8973 = vand.u32 %v5971, 4294901760
    %v8974 = vsub.f32 %v5971, %v8973
    %v8975 = vand.u32 %v8974, 4294901760
    %8976 = vmatmul.f32.gmra.mxu0 %v8975
    %v8977 = vpop.f32.mrf.mxu0
    %v8978 = vadd.f32 %v8934, %v8977
    %v8979 = vand.u32 %v5979, 4294901760
    %v8980 = vsub.f32 %v5979, %v8979
    %v8981 = vand.u32 %v8980, 4294901760
    %8982 = vmatmul.f32.gmra.mxu0 %v8981
    %v8983 = vpop.f32.mrf.mxu0
    %v8984 = vadd.f32 %v8939, %v8983
    %8985 = vdwg.mxu0
    %v8986 = vand.u32 %v6107, 4294901760
    %v8987 = vsub.f32 %v6107, %v8986
    %v8988 = vand.u32 %v8987, 4294901760
    %8989 = vmatpush.msra.mxu0 %v8988
    %v8990 = vand.u32 %v6106, 4294901760
    %v8991 = vsub.f32 %v6106, %v8990
    %v8992 = vand.u32 %v8991, 4294901760
    %8993 = vmatpush.msra.mxu0 %v8992
    %v8994 = vand.u32 %v6105, 4294901760
    %v8995 = vsub.f32 %v6105, %v8994
    %v8996 = vand.u32 %v8995, 4294901760
    %8997 = vmatpush.msra.mxu0 %v8996
    %v8998 = vand.u32 %v6104, 4294901760
    %v8999 = vsub.f32 %v6104, %v8998
    %v9000 = vand.u32 %v8999, 4294901760
    %9001 = vmatpush.msra.mxu0 %v9000
    %v9002 = vand.u32 %v6103, 4294901760
    %v9003 = vsub.f32 %v6103, %v9002
    %v9004 = vand.u32 %v9003, 4294901760
    %9005 = vmatpush.msra.mxu0 %v9004
    %v9006 = vand.u32 %v6102, 4294901760
    %v9007 = vsub.f32 %v6102, %v9006
    %v9008 = vand.u32 %v9007, 4294901760
    %9009 = vmatpush.msra.mxu0 %v9008
    %v9010 = vand.u32 %v6101, 4294901760
    %v9011 = vsub.f32 %v6101, %v9010
    %v9012 = vand.u32 %v9011, 4294901760
    %9013 = vmatpush.msra.mxu0 %v9012
    %v9014 = vand.u32 %v6100, 4294901760
    %v9015 = vsub.f32 %v6100, %v9014
    %v9016 = vand.u32 %v9015, 4294901760
    %9017 = vmatpush.msra.mxu0 %v9016
    %v9018 = vand.u32 %v6099, 4294901760
    %v9019 = vsub.f32 %v6099, %v9018
    %v9020 = vand.u32 %v9019, 4294901760
    %9021 = vmatpush.msra.mxu0 %v9020
    %v9022 = vand.u32 %v6098, 4294901760
    %v9023 = vsub.f32 %v6098, %v9022
    %v9024 = vand.u32 %v9023, 4294901760
    %9025 = vmatpush.msra.mxu0 %v9024
    %v9026 = vand.u32 %v6097, 4294901760
    %v9027 = vsub.f32 %v6097, %v9026
    %v9028 = vand.u32 %v9027, 4294901760
    %9029 = vmatpush.msra.mxu0 %v9028
    %v9030 = vand.u32 %v6096, 4294901760
    %v9031 = vsub.f32 %v6096, %v9030
    %v9032 = vand.u32 %v9031, 4294901760
    %9033 = vmatpush.msra.mxu0 %v9032
    %v9034 = vand.u32 %v6095, 4294901760
    %v9035 = vsub.f32 %v6095, %v9034
    %v9036 = vand.u32 %v9035, 4294901760
    %9037 = vmatpush.msra.mxu0 %v9036
    %v9038 = vand.u32 %v6094, 4294901760
    %v9039 = vsub.f32 %v6094, %v9038
    %v9040 = vand.u32 %v9039, 4294901760
    %9041 = vmatpush.msra.mxu0 %v9040
    %v9042 = vand.u32 %v6093, 4294901760
    %v9043 = vsub.f32 %v6093, %v9042
    %v9044 = vand.u32 %v9043, 4294901760
    %9045 = vmatpush.msra.mxu0 %v9044
    %v9046 = vand.u32 %v6092, 4294901760
    %v9047 = vsub.f32 %v6092, %v9046
    %v9048 = vand.u32 %v9047, 4294901760
    %9049 = vmatpush.msra.mxu0 %v9048
    %v9050 = vand.u32 %v5971, 4294901760
    %9051 = vmatmul.f32.gmra.mxu0 %v9050
    %v9052 = vpop.f32.mrf.mxu0
    %v9053 = vadd.f32 %v8978, %v9052
    %v9054 = vand.u32 %v5979, 4294901760
    %9055 = vmatmul.f32.gmra.mxu0 %v9054
    %v9056 = vpop.f32.mrf.mxu0
    %v9057 = vadd.f32 %v8984, %v9056
    %9058 = vdwg.mxu0
    %v9059 = vand.u32 %v6107, 4294901760
    %9060 = vmatpush.msra.mxu0 %v9059
    %v9061 = vand.u32 %v6106, 4294901760
    %9062 = vmatpush.msra.mxu0 %v9061
    %v9063 = vand.u32 %v6105, 4294901760
    %9064 = vmatpush.msra.mxu0 %v9063
    %v9065 = vand.u32 %v6104, 4294901760
    %9066 = vmatpush.msra.mxu0 %v9065
    %v9067 = vand.u32 %v6103, 4294901760
    %9068 = vmatpush.msra.mxu0 %v9067
    %v9069 = vand.u32 %v6102, 4294901760
    %9070 = vmatpush.msra.mxu0 %v9069
    %v9071 = vand.u32 %v6101, 4294901760
    %9072 = vmatpush.msra.mxu0 %v9071
    %v9073 = vand.u32 %v6100, 4294901760
    %9074 = vmatpush.msra.mxu0 %v9073
    %v9075 = vand.u32 %v6099, 4294901760
    %9076 = vmatpush.msra.mxu0 %v9075
    %v9077 = vand.u32 %v6098, 4294901760
    %9078 = vmatpush.msra.mxu0 %v9077
    %v9079 = vand.u32 %v6097, 4294901760
    %9080 = vmatpush.msra.mxu0 %v9079
    %v9081 = vand.u32 %v6096, 4294901760
    %9082 = vmatpush.msra.mxu0 %v9081
    %v9083 = vand.u32 %v6095, 4294901760
    %9084 = vmatpush.msra.mxu0 %v9083
    %v9085 = vand.u32 %v6094, 4294901760
    %9086 = vmatpush.msra.mxu0 %v9085
    %v9087 = vand.u32 %v6093, 4294901760
    %9088 = vmatpush.msra.mxu0 %v9087
    %v9089 = vand.u32 %v6092, 4294901760
    %9090 = vmatpush.msra.mxu0 %v9089
    %v9091 = vand.u32 %v5971, 4294901760
    %9092 = vmatmul.f32.gmra.mxu0 %v9091
    %v9093 = vpop.f32.mrf.mxu0
    %v9094 = vadd.f32 %v9053, %v9093
    %v9095 = vand.u32 %v5979, 4294901760
    %9096 = vmatmul.f32.gmra.mxu0 %v9095
    %v9097 = vpop.f32.mrf.mxu0
    %v9098 = vadd.f32 %v9057, %v9097
    %9099 = vdwg.mxu0
    %v9100 = vand.u32 %v6123, 4294901760
    %9101 = vmatpush.msra.mxu0 %v9100
    %v9102 = vand.u32 %v6122, 4294901760
    %9103 = vmatpush.msra.mxu0 %v9102
    %v9104 = vand.u32 %v6121, 4294901760
    %9105 = vmatpush.msra.mxu0 %v9104
    %v9106 = vand.u32 %v6120, 4294901760
    %9107 = vmatpush.msra.mxu0 %v9106
    %v9108 = vand.u32 %v6119, 4294901760
    %9109 = vmatpush.msra.mxu0 %v9108
    %v9110 = vand.u32 %v6118, 4294901760
    %9111 = vmatpush.msra.mxu0 %v9110
    %v9112 = vand.u32 %v6117, 4294901760
    %9113 = vmatpush.msra.mxu0 %v9112
    %v9114 = vand.u32 %v6116, 4294901760
    %9115 = vmatpush.msra.mxu0 %v9114
    %v9116 = vand.u32 %v6115, 4294901760
    %9117 = vmatpush.msra.mxu0 %v9116
    %v9118 = vand.u32 %v6114, 4294901760
    %9119 = vmatpush.msra.mxu0 %v9118
    %v9120 = vand.u32 %v6113, 4294901760
    %9121 = vmatpush.msra.mxu0 %v9120
    %v9122 = vand.u32 %v6112, 4294901760
    %9123 = vmatpush.msra.mxu0 %v9122
    %v9124 = vand.u32 %v6111, 4294901760
    %9125 = vmatpush.msra.mxu0 %v9124
    %v9126 = vand.u32 %v6110, 4294901760
    %9127 = vmatpush.msra.mxu0 %v9126
    %v9128 = vand.u32 %v6109, 4294901760
    %9129 = vmatpush.msra.mxu0 %v9128
    %v9130 = vand.u32 %v6108, 4294901760
    %9131 = vmatpush.msra.mxu0 %v9130
    %v9132 = vand.u32 %v2140, 4294901760
    %v9133 = vsub.f32 %v2140, %v9132
    %v9134 = vand.u32 %v9133, 4294901760
    %v9135 = vsub.f32 %v9133, %v9134
    %v9136 = vand.u32 %v9135, 4294901760
    %9137 = vmatmul.f32.gmra.mxu0 %v9136
    %v9138 = vpop.f32.mrf.mxu0
    %v9139 = vadd.f32 %v9094, %v9138
    %v9140 = vand.u32 %v2155, 4294901760
    %v9141 = vsub.f32 %v2155, %v9140
    %v9142 = vand.u32 %v9141, 4294901760
    %v9143 = vsub.f32 %v9141, %v9142
    %v9144 = vand.u32 %v9143, 4294901760
    %9145 = vmatmul.f32.gmra.mxu0 %v9144
    %v9146 = vpop.f32.mrf.mxu0
    %v9147 = vadd.f32 %v9098, %v9146
    %9148 = vdwg.mxu0
    %v9149 = vand.u32 %v6123, 4294901760
    %v9150 = vsub.f32 %v6123, %v9149
    %v9151 = vand.u32 %v9150, 4294901760
    %v9152 = vsub.f32 %v9150, %v9151
    %v9153 = vand.u32 %v9152, 4294901760
    %9154 = vmatpush.msra.mxu0 %v9153
    %v9155 = vand.u32 %v6122, 4294901760
    %v9156 = vsub.f32 %v6122, %v9155
    %v9157 = vand.u32 %v9156, 4294901760
    %v9158 = vsub.f32 %v9156, %v9157
    %v9159 = vand.u32 %v9158, 4294901760
    %9160 = vmatpush.msra.mxu0 %v9159
    %v9161 = vand.u32 %v6121, 4294901760
    %v9162 = vsub.f32 %v6121, %v9161
    %v9163 = vand.u32 %v9162, 4294901760
    %v9164 = vsub.f32 %v9162, %v9163
    %v9165 = vand.u32 %v9164, 4294901760
    %9166 = vmatpush.msra.mxu0 %v9165
    %v9167 = vand.u32 %v6120, 4294901760
    %v9168 = vsub.f32 %v6120, %v9167
    %v9169 = vand.u32 %v9168, 4294901760
    %v9170 = vsub.f32 %v9168, %v9169
    %v9171 = vand.u32 %v9170, 4294901760
    %9172 = vmatpush.msra.mxu0 %v9171
    %v9173 = vand.u32 %v6119, 4294901760
    %v9174 = vsub.f32 %v6119, %v9173
    %v9175 = vand.u32 %v9174, 4294901760
    %v9176 = vsub.f32 %v9174, %v9175
    %v9177 = vand.u32 %v9176, 4294901760
    %9178 = vmatpush.msra.mxu0 %v9177
    %v9179 = vand.u32 %v6118, 4294901760
    %v9180 = vsub.f32 %v6118, %v9179
    %v9181 = vand.u32 %v9180, 4294901760
    %v9182 = vsub.f32 %v9180, %v9181
    %v9183 = vand.u32 %v9182, 4294901760
    %9184 = vmatpush.msra.mxu0 %v9183
    %v9185 = vand.u32 %v6117, 4294901760
    %v9186 = vsub.f32 %v6117, %v9185
    %v9187 = vand.u32 %v9186, 4294901760
    %v9188 = vsub.f32 %v9186, %v9187
    %v9189 = vand.u32 %v9188, 4294901760
    %9190 = vmatpush.msra.mxu0 %v9189
    %v9191 = vand.u32 %v6116, 4294901760
    %v9192 = vsub.f32 %v6116, %v9191
    %v9193 = vand.u32 %v9192, 4294901760
    %v9194 = vsub.f32 %v9192, %v9193
    %v9195 = vand.u32 %v9194, 4294901760
    %9196 = vmatpush.msra.mxu0 %v9195
    %v9197 = vand.u32 %v6115, 4294901760
    %v9198 = vsub.f32 %v6115, %v9197
    %v9199 = vand.u32 %v9198, 4294901760
    %v9200 = vsub.f32 %v9198, %v9199
    %v9201 = vand.u32 %v9200, 4294901760
    %9202 = vmatpush.msra.mxu0 %v9201
    %v9203 = vand.u32 %v6114, 4294901760
    %v9204 = vsub.f32 %v6114, %v9203
    %v9205 = vand.u32 %v9204, 4294901760
    %v9206 = vsub.f32 %v9204, %v9205
    %v9207 = vand.u32 %v9206, 4294901760
    %9208 = vmatpush.msra.mxu0 %v9207
    %v9209 = vand.u32 %v6113, 4294901760
    %v9210 = vsub.f32 %v6113, %v9209
    %v9211 = vand.u32 %v9210, 4294901760
    %v9212 = vsub.f32 %v9210, %v9211
    %v9213 = vand.u32 %v9212, 4294901760
    %9214 = vmatpush.msra.mxu0 %v9213
    %v9215 = vand.u32 %v6112, 4294901760
    %v9216 = vsub.f32 %v6112, %v9215
    %v9217 = vand.u32 %v9216, 4294901760
    %v9218 = vsub.f32 %v9216, %v9217
    %v9219 = vand.u32 %v9218, 4294901760
    %9220 = vmatpush.msra.mxu0 %v9219
    %v9221 = vand.u32 %v6111, 4294901760
    %v9222 = vsub.f32 %v6111, %v9221
    %v9223 = vand.u32 %v9222, 4294901760
    %v9224 = vsub.f32 %v9222, %v9223
    %v9225 = vand.u32 %v9224, 4294901760
    %9226 = vmatpush.msra.mxu0 %v9225
    %v9227 = vand.u32 %v6110, 4294901760
    %v9228 = vsub.f32 %v6110, %v9227
    %v9229 = vand.u32 %v9228, 4294901760
    %v9230 = vsub.f32 %v9228, %v9229
    %v9231 = vand.u32 %v9230, 4294901760
    %9232 = vmatpush.msra.mxu0 %v9231
    %v9233 = vand.u32 %v6109, 4294901760
    %v9234 = vsub.f32 %v6109, %v9233
    %v9235 = vand.u32 %v9234, 4294901760
    %v9236 = vsub.f32 %v9234, %v9235
    %v9237 = vand.u32 %v9236, 4294901760
    %9238 = vmatpush.msra.mxu0 %v9237
    %v9239 = vand.u32 %v6108, 4294901760
    %v9240 = vsub.f32 %v6108, %v9239
    %v9241 = vand.u32 %v9240, 4294901760
    %v9242 = vsub.f32 %v9240, %v9241
    %v9243 = vand.u32 %v9242, 4294901760
    %9244 = vmatpush.msra.mxu0 %v9243
    %v9245 = vand.u32 %v2140, 4294901760
    %9246 = vmatmul.f32.gmra.mxu0 %v9245
    %v9247 = vpop.f32.mrf.mxu0
    %v9248 = vadd.f32 %v9139, %v9247
    %v9249 = vand.u32 %v2155, 4294901760
    %9250 = vmatmul.f32.gmra.mxu0 %v9249
    %v9251 = vpop.f32.mrf.mxu0
    %v9252 = vadd.f32 %v9147, %v9251
    %9253 = vdwg.mxu0
    %v9254 = vand.u32 %v6123, 4294901760
    %v9255 = vsub.f32 %v6123, %v9254
    %9256 = vmatpush.msra.mxu0 %v9255
    %v9257 = vand.u32 %v6122, 4294901760
    %v9258 = vsub.f32 %v6122, %v9257
    %9259 = vmatpush.msra.mxu0 %v9258
    %v9260 = vand.u32 %v6121, 4294901760
    %v9261 = vsub.f32 %v6121, %v9260
    %9262 = vmatpush.msra.mxu0 %v9261
    %v9263 = vand.u32 %v6120, 4294901760
    %v9264 = vsub.f32 %v6120, %v9263
    %9265 = vmatpush.msra.mxu0 %v9264
    %v9266 = vand.u32 %v6119, 4294901760
    %v9267 = vsub.f32 %v6119, %v9266
    %9268 = vmatpush.msra.mxu0 %v9267
    %v9269 = vand.u32 %v6118, 4294901760
    %v9270 = vsub.f32 %v6118, %v9269
    %9271 = vmatpush.msra.mxu0 %v9270
    %v9272 = vand.u32 %v6117, 4294901760
    %v9273 = vsub.f32 %v6117, %v9272
    %9274 = vmatpush.msra.mxu0 %v9273
    %v9275 = vand.u32 %v6116, 4294901760
    %v9276 = vsub.f32 %v6116, %v9275
    %9277 = vmatpush.msra.mxu0 %v9276
    %v9278 = vand.u32 %v6115, 4294901760
    %v9279 = vsub.f32 %v6115, %v9278
    %9280 = vmatpush.msra.mxu0 %v9279
    %v9281 = vand.u32 %v6114, 4294901760
    %v9282 = vsub.f32 %v6114, %v9281
    %9283 = vmatpush.msra.mxu0 %v9282
    %v9284 = vand.u32 %v6113, 4294901760
    %v9285 = vsub.f32 %v6113, %v9284
    %9286 = vmatpush.msra.mxu0 %v9285
    %v9287 = vand.u32 %v6112, 4294901760
    %v9288 = vsub.f32 %v6112, %v9287
    %9289 = vmatpush.msra.mxu0 %v9288
    %v9290 = vand.u32 %v6111, 4294901760
    %v9291 = vsub.f32 %v6111, %v9290
    %9292 = vmatpush.msra.mxu0 %v9291
    %v9293 = vand.u32 %v6110, 4294901760
    %v9294 = vsub.f32 %v6110, %v9293
    %9295 = vmatpush.msra.mxu0 %v9294
    %v9296 = vand.u32 %v6109, 4294901760
    %v9297 = vsub.f32 %v6109, %v9296
    %9298 = vmatpush.msra.mxu0 %v9297
    %v9299 = vand.u32 %v6108, 4294901760
    %v9300 = vsub.f32 %v6108, %v9299
    %9301 = vmatpush.msra.mxu0 %v9300
    %v9302 = vand.u32 %v2140, 4294901760
    %v9303 = vsub.f32 %v2140, %v9302
    %9304 = vmatmul.f32.gmra.mxu0 %v9303
    %v9305 = vpop.f32.mrf.mxu0
    %v9306 = vadd.f32 %v9248, %v9305
    %v9307 = vand.u32 %v2155, 4294901760
    %v9308 = vsub.f32 %v2155, %v9307
    %9309 = vmatmul.f32.gmra.mxu0 %v9308
    %v9310 = vpop.f32.mrf.mxu0
    %v9311 = vadd.f32 %v9252, %v9310
    %9312 = vdwg.mxu0
    %v9313 = vand.u32 %v6123, 4294901760
    %9314 = vmatpush.msra.mxu0 %v9313
    %v9315 = vand.u32 %v6122, 4294901760
    %9316 = vmatpush.msra.mxu0 %v9315
    %v9317 = vand.u32 %v6121, 4294901760
    %9318 = vmatpush.msra.mxu0 %v9317
    %v9319 = vand.u32 %v6120, 4294901760
    %9320 = vmatpush.msra.mxu0 %v9319
    %v9321 = vand.u32 %v6119, 4294901760
    %9322 = vmatpush.msra.mxu0 %v9321
    %v9323 = vand.u32 %v6118, 4294901760
    %9324 = vmatpush.msra.mxu0 %v9323
    %v9325 = vand.u32 %v6117, 4294901760
    %9326 = vmatpush.msra.mxu0 %v9325
    %v9327 = vand.u32 %v6116, 4294901760
    %9328 = vmatpush.msra.mxu0 %v9327
    %v9329 = vand.u32 %v6115, 4294901760
    %9330 = vmatpush.msra.mxu0 %v9329
    %v9331 = vand.u32 %v6114, 4294901760
    %9332 = vmatpush.msra.mxu0 %v9331
    %v9333 = vand.u32 %v6113, 4294901760
    %9334 = vmatpush.msra.mxu0 %v9333
    %v9335 = vand.u32 %v6112, 4294901760
    %9336 = vmatpush.msra.mxu0 %v9335
    %v9337 = vand.u32 %v6111, 4294901760
    %9338 = vmatpush.msra.mxu0 %v9337
    %v9339 = vand.u32 %v6110, 4294901760
    %9340 = vmatpush.msra.mxu0 %v9339
    %v9341 = vand.u32 %v6109, 4294901760
    %9342 = vmatpush.msra.mxu0 %v9341
    %v9343 = vand.u32 %v6108, 4294901760
    %9344 = vmatpush.msra.mxu0 %v9343
    %v9345 = vand.u32 %v2140, 4294901760
    %v9346 = vsub.f32 %v2140, %v9345
    %v9347 = vand.u32 %v9346, 4294901760
    %9348 = vmatmul.f32.gmra.mxu0 %v9347
    %v9349 = vpop.f32.mrf.mxu0
    %v9350 = vadd.f32 %v9306, %v9349
    %v9351 = vand.u32 %v2155, 4294901760
    %v9352 = vsub.f32 %v2155, %v9351
    %v9353 = vand.u32 %v9352, 4294901760
    %9354 = vmatmul.f32.gmra.mxu0 %v9353
    %v9355 = vpop.f32.mrf.mxu0
    %v9356 = vadd.f32 %v9311, %v9355
    %9357 = vdwg.mxu0
    %v9358 = vand.u32 %v6123, 4294901760
    %v9359 = vsub.f32 %v6123, %v9358
    %v9360 = vand.u32 %v9359, 4294901760
    %9361 = vmatpush.msra.mxu0 %v9360
    %v9362 = vand.u32 %v6122, 4294901760
    %v9363 = vsub.f32 %v6122, %v9362
    %v9364 = vand.u32 %v9363, 4294901760
    %9365 = vmatpush.msra.mxu0 %v9364
    %v9366 = vand.u32 %v6121, 4294901760
    %v9367 = vsub.f32 %v6121, %v9366
    %v9368 = vand.u32 %v9367, 4294901760
    %9369 = vmatpush.msra.mxu0 %v9368
    %v9370 = vand.u32 %v6120, 4294901760
    %v9371 = vsub.f32 %v6120, %v9370
    %v9372 = vand.u32 %v9371, 4294901760
    %9373 = vmatpush.msra.mxu0 %v9372
    %v9374 = vand.u32 %v6119, 4294901760
    %v9375 = vsub.f32 %v6119, %v9374
    %v9376 = vand.u32 %v9375, 4294901760
    %9377 = vmatpush.msra.mxu0 %v9376
    %v9378 = vand.u32 %v6118, 4294901760
    %v9379 = vsub.f32 %v6118, %v9378
    %v9380 = vand.u32 %v9379, 4294901760
    %9381 = vmatpush.msra.mxu0 %v9380
    %v9382 = vand.u32 %v6117, 4294901760
    %v9383 = vsub.f32 %v6117, %v9382
    %v9384 = vand.u32 %v9383, 4294901760
    %9385 = vmatpush.msra.mxu0 %v9384
    %v9386 = vand.u32 %v6116, 4294901760
    %v9387 = vsub.f32 %v6116, %v9386
    %v9388 = vand.u32 %v9387, 4294901760
    %9389 = vmatpush.msra.mxu0 %v9388
    %v9390 = vand.u32 %v6115, 4294901760
    %v9391 = vsub.f32 %v6115, %v9390
    %v9392 = vand.u32 %v9391, 4294901760
    %9393 = vmatpush.msra.mxu0 %v9392
    %v9394 = vand.u32 %v6114, 4294901760
    %v9395 = vsub.f32 %v6114, %v9394
    %v9396 = vand.u32 %v9395, 4294901760
    %9397 = vmatpush.msra.mxu0 %v9396
    %v9398 = vand.u32 %v6113, 4294901760
    %v9399 = vsub.f32 %v6113, %v9398
    %v9400 = vand.u32 %v9399, 4294901760
    %9401 = vmatpush.msra.mxu0 %v9400
    %v9402 = vand.u32 %v6112, 4294901760
    %v9403 = vsub.f32 %v6112, %v9402
    %v9404 = vand.u32 %v9403, 4294901760
    %9405 = vmatpush.msra.mxu0 %v9404
    %v9406 = vand.u32 %v6111, 4294901760
    %v9407 = vsub.f32 %v6111, %v9406
    %v9408 = vand.u32 %v9407, 4294901760
    %9409 = vmatpush.msra.mxu0 %v9408
    %v9410 = vand.u32 %v6110, 4294901760
    %v9411 = vsub.f32 %v6110, %v9410
    %v9412 = vand.u32 %v9411, 4294901760
    %9413 = vmatpush.msra.mxu0 %v9412
    %v9414 = vand.u32 %v6109, 4294901760
    %v9415 = vsub.f32 %v6109, %v9414
    %v9416 = vand.u32 %v9415, 4294901760
    %9417 = vmatpush.msra.mxu0 %v9416
    %v9418 = vand.u32 %v6108, 4294901760
    %v9419 = vsub.f32 %v6108, %v9418
    %v9420 = vand.u32 %v9419, 4294901760
    %9421 = vmatpush.msra.mxu0 %v9420
    %v9422 = vand.u32 %v2140, 4294901760
    %9423 = vmatmul.f32.gmra.mxu0 %v9422
    %v9424 = vpop.f32.mrf.mxu0
    %v9425 = vadd.f32 %v9350, %v9424
    %v9426 = vand.u32 %v2155, 4294901760
    %9427 = vmatmul.f32.gmra.mxu0 %v9426
    %v9428 = vpop.f32.mrf.mxu0
    %v9429 = vadd.f32 %v9356, %v9428
    %9430 = vdwg.mxu0
    %v9431 = vand.u32 %v6123, 4294901760
    %9432 = vmatpush.msra.mxu0 %v9431
    %v9433 = vand.u32 %v6122, 4294901760
    %9434 = vmatpush.msra.mxu0 %v9433
    %v9435 = vand.u32 %v6121, 4294901760
    %9436 = vmatpush.msra.mxu0 %v9435
    %v9437 = vand.u32 %v6120, 4294901760
    %9438 = vmatpush.msra.mxu0 %v9437
    %v9439 = vand.u32 %v6119, 4294901760
    %9440 = vmatpush.msra.mxu0 %v9439
    %v9441 = vand.u32 %v6118, 4294901760
    %9442 = vmatpush.msra.mxu0 %v9441
    %v9443 = vand.u32 %v6117, 4294901760
    %9444 = vmatpush.msra.mxu0 %v9443
    %v9445 = vand.u32 %v6116, 4294901760
    %9446 = vmatpush.msra.mxu0 %v9445
    %v9447 = vand.u32 %v6115, 4294901760
    %9448 = vmatpush.msra.mxu0 %v9447
    %v9449 = vand.u32 %v6114, 4294901760
    %9450 = vmatpush.msra.mxu0 %v9449
    %v9451 = vand.u32 %v6113, 4294901760
    %9452 = vmatpush.msra.mxu0 %v9451
    %v9453 = vand.u32 %v6112, 4294901760
    %9454 = vmatpush.msra.mxu0 %v9453
    %v9455 = vand.u32 %v6111, 4294901760
    %9456 = vmatpush.msra.mxu0 %v9455
    %v9457 = vand.u32 %v6110, 4294901760
    %9458 = vmatpush.msra.mxu0 %v9457
    %v9459 = vand.u32 %v6109, 4294901760
    %9460 = vmatpush.msra.mxu0 %v9459
    %v9461 = vand.u32 %v6108, 4294901760
    %9462 = vmatpush.msra.mxu0 %v9461
    %v9463 = vand.u32 %v2140, 4294901760
    %9464 = vmatmul.f32.gmra.mxu0 %v9463
    %v9465 = vpop.f32.mrf.mxu0
    %v9466 = vadd.f32 %v9425, %v9465
    %v9467 = vand.u32 %v2155, 4294901760
    %9468 = vmatmul.f32.gmra.mxu0 %v9467
    %v9469 = vpop.f32.mrf.mxu0
    %v9470 = vadd.f32 %v9429, %v9469
    %9471 = vdwg.mxu0
    %9472 = vst [vmem:[%s5] sm:$0xff] %v9466
    %9473 = vst [vmem:[%s5 + $0x8] sm:$0xff] %v9470
    // Predicated region
    $region42: #{moe_forward.1} parent=1 // pred_check
      _
    $region43: #{moe_forward.1} parent=1 // pred_check_branch
      %9475 = sbr.rel (0) target = $region45
    $region44: #{moe_forward.1} parent=1 // pred_region
      _
    $region45: #{moe_forward.1} parent=1 // pred_fallthru
      _
    // Predicated region
    $region46: #{moe_forward.1} parent=1 // pred_check
      _
    $region47: #{moe_forward.1} parent=1 // pred_check_branch
      %9477 = sbr.rel (0) target = $region49
    $region48: #{moe_forward.1} parent=1 // pred_region
      _
    $region49: #{moe_forward.1} parent=1 // pred_fallthru
      _
    %9478 = vsyncpa [#allocation3], 1
    %9479 = vsyncpa [#allocation5], 1
    %9480 = vsyncpa [#allocation8], 1

</llo_original>
